<compile_context>
chip_gen: v5e
topology: v5e:2x2
jax: 0.10.0
libtpu: 0.0.40
codegen_flags: <defaults>
</compile_context>

<pallas_src>
import jax
import jax.numpy as jnp
from jax.experimental import pallas as pl
from jax.experimental.pallas import tpu as pltpu

MID = 128            # midfc_channel (1024 in the original, scaled down)
H5 = 5 * MID
NUM_LSTM = 2
EPS = 1e-5           # BatchNorm1d eps (PyTorch default)
WDTYPE = jnp.bfloat16
ADTYPE = jnp.bfloat16  # inter-kernel activation dtype (HBM traffic)

HAND_IN = 42
HAND_PAD = 128       # pad hand feature dim to a lane multiple
CONV_K, CONV_S, CONV_P = 7, 2, 3
CONV_OUT = 64
CONV_PAD = 128       # conv output channels padded 64 -> 128 (MXU/lane occupancy)
KPAD = 256           # im2col K = 49*3 = 147 padded to 256

_VMEM = pl.BlockSpec(memory_space=pltpu.MemorySpace.VMEM)


# ----------------------------------------------------------------------------
# in-kernel helpers
# ----------------------------------------------------------------------------
def _dot(x, w):
    """MXU matmul: cast activations to the (bf16) weight dtype, accumulate in f32."""
    return jnp.dot(x.astype(w.dtype), w, preferred_element_type=jnp.float32)


def _bn_relu(h, gamma, beta):
    """Training-mode BatchNorm1d (biased variance) over axis 0 of this block, + ReLU.

    Each block holds exactly one timestep's B rows, so the statistics match the
    per-timestep BN of the PyTorch forward loop.
    """
    mean = jnp.mean(h, axis=0, keepdims=True)
    c = h - mean
    var = jnp.mean(c * c, axis=0, keepdims=True)
    return jnp.maximum(c * jax.lax.rsqrt(var + EPS) * gamma + beta, 0.0)


def _const(a):
    """Whole-array resident BlockSpec with a constant index_map (no re-DMA per step)."""
    nd = a.ndim
    return pl.BlockSpec(a.shape, lambda t, _nd=nd: (0,) * _nd)


# ----------------------------------------------------------------------------
# 1) backbone: conv1 (im2col, no bias) + ReLU + in-kernel global-avg-pool + fc
#    grid over images; weights resident; conv intermediate stays in VMEM
# ----------------------------------------------------------------------------
def _backbone_kernel(patch_ref, wc_ref, wf_ref, bf_ref, out_ref):
    conv = jnp.maximum(_dot(patch_ref[0], wc_ref[...]), 0.0)   # (OH*OW, 128)
    pooled = jnp.mean(conv, axis=0, keepdims=True)             # (1, 128) GAP, no matmul
    out_ref[0] = (_dot(pooled, wf_ref[...]) + bf_ref[...]).astype(out_ref.dtype)


def backbone_forward(img_nchw, p):
    n, c, hh, ww = img_nchw.shape
    x = jnp.transpose(img_nchw, (0, 2, 3, 1))                   # NCHW -> NHWC
    xp = jnp.pad(x, ((0, 0), (CONV_P, CONV_P), (CONV_P, CONV_P), (0, 0)))
    oh = (hh + 2 * CONV_P - CONV_K) // CONV_S + 1
    ow = (ww + 2 * CONV_P - CONV_K) // CONV_S + 1
    patches = []
    for kh in range(CONV_K):
        for kw in range(CONV_K):
            patches.append(xp[:, kh:kh + CONV_S * oh:CONV_S,
                               kw:kw + CONV_S * ow:CONV_S, :])
    patches = jnp.concatenate(patches, axis=-1).reshape(n, oh * ow, CONV_K * CONV_K * c)
    patches = jnp.pad(patches, ((0, 0), (0, 0),
                                (0, KPAD - CONV_K * CONV_K * c))).astype(ADTYPE)
    out = pl.pallas_call(
        _backbone_kernel,
        out_shape=jax.ShapeDtypeStruct((n, 1, MID), ADTYPE),
        grid=(n,),
        in_specs=[pl.BlockSpec((1, oh * ow, KPAD), lambda i: (i, 0, 0)),
                  pl.BlockSpec((KPAD, CONV_PAD), lambda i: (0, 0)),
                  pl.BlockSpec((CONV_PAD, MID), lambda i: (0, 0)),
                  pl.BlockSpec((1, MID), lambda i: (0, 0))],
        out_specs=pl.BlockSpec((1, 1, MID), lambda i: (i, 0, 0)),
        compiler_params=pltpu.CompilerParams(dimension_semantics=("parallel",)),
    )(patches, p["conv1_w"], p["fc_w"], p["fc_b"])
    return out.reshape(n, MID)


# ----------------------------------------------------------------------------
# 2) fused hand-MLP + fine-MLP + LSTM layer-0 x-side gates: grid over timesteps,
#    per-timestep BN statistics computed in-block (no S matrix)
# ----------------------------------------------------------------------------
def _feature_kernel(hand_ref, rgb_ref,
                    hw1, hb1, hg, hbe, hw2, hb2,
                    fw1r, fw1h, fb1, fg, fbe, fw2, fb2,
                    wih0, bl0,
                    feat_ref, gx0_ref):
    hand = hand_ref[0]
    rgb = rgb_ref[0]
    # self.hand
    hh = _dot(hand, hw1[...]) + hb1[...]
    hr = _bn_relu(hh, hg[...], hbe[...])
    hand_feat = _dot(hr, hw2[...]) + hb2[...]
    # self.fine on cat(rgb_feature, hand_feature): w1 split into rgb/hand halves
    fh = _dot(rgb, fw1r[...]) + _dot(hand_feat, fw1h[...]) + fb1[...]
    fr = _bn_relu(fh, fg[...], fbe[...])
    feat = _dot(fr, fw2[...]) + fb2[...]
    feat_ref[0] = feat.astype(feat_ref.dtype)
    # precompute non-recurrent x-side gates of LSTM layer 0 (b_ih0 + b_hh0 folded)
    gx0_ref[0] = (_dot(feat, wih0[...]) + bl0[...]).astype(gx0_ref.dtype)


def hand_fine_gx0(hand_tbd, rgb_tbm, p_hand, p_fine, p_l0):
    seq_len, batch = hand_tbd.shape[:2]
    weights = (p_hand["w1"], p_hand["b1"], p_hand["gamma"], p_hand["beta"],
               p_hand["w2"], p_hand["b2"],
               p_fine["w1_rgb"], p_fine["w1_hand"], p_fine["b1"],
               p_fine["gamma"], p_fine["beta"], p_fine["w2"], p_fine["b2"],
               p_l0["wih"], p_l0["b"])
    return pl.pallas_call(
        _feature_kernel,
        out_shape=(jax.ShapeDtypeStruct((seq_len, batch, MID), ADTYPE),
                   jax.ShapeDtypeStruct((seq_len, batch, 4 * MID), ADTYPE)),
        grid=(seq_len,),
        in_specs=[pl.BlockSpec((1, batch, HAND_PAD), lambda t: (t, 0, 0)),
                  pl.BlockSpec((1, batch, MID), lambda t: (t, 0, 0))]
                 + [_const(w) for w in weights],
        out_specs=(pl.BlockSpec((1, batch, MID), lambda t: (t, 0, 0)),
                   pl.BlockSpec((1, batch, 4 * MID), lambda t: (t, 0, 0))),
        compiler_params=pltpu.CompilerParams(dimension_semantics=("parallel",)),
    )(hand_tbd, rgb_tbm, *weights)


# ----------------------------------------------------------------------------
# 3) fused initiala1 / initiala2 / contin1 / contin2 (shared input feature[t=0]);
#    results written directly into out_ref slices
# ----------------------------------------------------------------------------
def _init_heads_kernel(x_ref, w1, b1, g, be, w2a1, w2a2, w2c1, w2c2, b2, out_ref):
    h = _dot(x_ref[...], w1[...]) + b1[...]                  # (B, 10*MID)
    hr = _bn_relu(h, g[...], be[...])
    out_ref[:, 0 * MID:1 * MID] = _dot(hr[:, 0 * MID:2 * MID], w2a1[...]) + b2[:, 0 * MID:1 * MID]
    out_ref[:, 1 * MID:2 * MID] = _dot(hr[:, 2 * MID:4 * MID], w2a2[...]) + b2[:, 1 * MID:2 * MID]
    out_ref[:, 2 * MID:3 * MID] = _dot(hr[:, 4 * MID:7 * MID], w2c1[...]) + b2[:, 2 * MID:3 * MID]
    out_ref[:, 3 * MID:4 * MID] = _dot(hr[:, 7 * MID:10 * MID], w2c2[...]) + b2[:, 3 * MID:4 * MID]


def init_heads(f0, p):
    b = f0.shape[0]
    return pl.pallas_call(
        _init_heads_kernel,
        out_shape=jax.ShapeDtypeStruct((b, 4 * MID), jnp.float32),
        in_specs=[_VMEM] * 10,
        out_specs=_VMEM,
    )(f0, p["w1"], p["b1"], p["gamma"], p["beta"],
      p["w2_a1"], p["w2_a2"], p["w2_c1"], p["w2_c2"], p["b2"])


# ----------------------------------------------------------------------------
# 4) recurrent 2-layer LSTM: single grid-less kernel, lax.fori_loop over T,
#    state in vregs, layer-1 x/h matmuls fused (K = 2*MID), batch padded to 8
# ----------------------------------------------------------------------------
def _lstm_seq_kernel(gx0_ref, h0i, c0i, h1i, c1i, whh0, w1cat, b1, out_ref):
    seq_len = gx0_ref.shape[0]

    def cell(gates, c_prev):                                  # PyTorch gate order (i, f, g, o)
        i = jax.nn.sigmoid(gates[:, 0 * MID:1 * MID])
        f = jax.nn.sigmoid(gates[:, 1 * MID:2 * MID])
        g = jnp.tanh(gates[:, 2 * MID:3 * MID])
        o = jax.nn.sigmoid(gates[:, 3 * MID:4 * MID])
        c_new = f * c_prev + i * g
        return o * jnp.tanh(c_new), c_new

    def body(t, carry):
        h0, c0, h1, c1 = carry
        g0 = gx0_ref[t].astype(jnp.float32) + _dot(h0, whh0[...])   # x-side precomputed
        h0n, c0n = cell(g0, c0)
        g1 = _dot(jnp.concatenate([h0n, h1], axis=-1), w1cat[...]) + b1[...]
        h1n, c1n = cell(g1, c1)
        out_ref[t] = h1n.astype(out_ref.dtype)                      # output[-1] at step t
        return h0n, c0n, h1n, c1n

    jax.lax.fori_loop(0, seq_len, body,
                      (h0i[...], c0i[...], h1i[...], c1i[...]))


def lstm_over_time(gx0_tbf, init_state, p_lstm, seq_len, batch):
    bp = max(8, ((batch + 7) // 8) * 8)                       # sublane-pad the batch
    gx0 = gx0_tbf
    if bp != batch:
        gx0 = jnp.pad(gx0, ((0, 0), (0, bp - batch), (0, 0)))
        init_state = tuple(jnp.pad(s, ((0, bp - batch), (0, 0))) for s in init_state)
    h0i, c0i, h1i, c1i = init_state
    out = pl.pallas_call(
        _lstm_seq_kernel,
        out_shape=jax.ShapeDtypeStruct((seq_len, bp, MID), ADTYPE),
        in_specs=[_VMEM] * 8,
        out_specs=_VMEM,
    )(gx0, h0i, c0i, h1i, c1i,
      p_lstm[0]["whh"], p_lstm[1]["w1cat"], p_lstm[1]["b"])
    return out[:, :batch, :]


# ----------------------------------------------------------------------------
# 5) fused x / y / z heads: w1 of the three heads fused into one (MID, 3*5*MID)
#    GEMM (lane-dense 1920-wide), grid over timesteps for per-timestep BN,
#    per-head w2 results written straight into out_ref slices
# ----------------------------------------------------------------------------
def _xyz_kernel(x_ref, w1, b1, g, be, w2, b2, out_ref):
    x = x_ref[0]
    h = _dot(x, w1[...]) + b1[...]                            # (B, 3*H5)
    hr = _bn_relu(h, g[...], be[...])
    for hd in range(3):
        out_ref[0, :, hd * H5:(hd + 1) * H5] = (
            _dot(hr[:, hd * H5:(hd + 1) * H5], w2[hd]) + b2[:, hd * H5:(hd + 1) * H5]
        ).astype(out_ref.dtype)


def xyz_heads(out_last_tbm, p, seq_len, batch):
    out = pl.pallas_call(
        _xyz_kernel,
        out_shape=jax.ShapeDtypeStruct((seq_len, batch, 3 * H5), jnp.float32),
        grid=(seq_len,),
        in_specs=[pl.BlockSpec((1, batch, MID), lambda t: (t, 0, 0)),
                  pl.BlockSpec((MID, 3 * H5), lambda t: (0, 0)),
                  pl.BlockSpec((1, 3 * H5), lambda t: (0, 0)),
                  pl.BlockSpec((1, 3 * H5), lambda t: (0, 0)),
                  pl.BlockSpec((1, 3 * H5), lambda t: (0, 0)),
                  pl.BlockSpec((3, H5, H5), lambda t: (0, 0, 0)),
                  pl.BlockSpec((1, 3 * H5), lambda t: (0, 0))],
        out_specs=pl.BlockSpec((1, batch, 3 * H5), lambda t: (t, 0, 0)),
        compiler_params=pltpu.CompilerParams(dimension_semantics=("parallel",)),
    )(out_last_tbm, p["w1"], p["b1"], p["gamma"], p["beta"], p["w2"], p["b2"])
    return out.reshape(seq_len, batch, 3, H5)


# ----------------------------------------------------------------------------
# Parameter init (deterministic, synthetic); weights bf16, biases/BN affine f32
# ----------------------------------------------------------------------------
def init_params(key):
    keys = iter(jax.random.split(key, 80))

    def w_init(d_in, d_out):
        return (jax.random.normal(next(keys), (d_in, d_out), jnp.float32)
                / jnp.sqrt(jnp.float32(d_in))).astype(WDTYPE)

    def b_init(d):
        return jax.random.normal(next(keys), (1, d), jnp.float32) * 0.01

    params = {}

    # backbone: conv1 3->64 (7x7, bias=False) padded to 128 out channels, fc 64->MID
    conv_w = (jax.random.normal(next(keys), (CONV_K * CONV_K * 3, CONV_OUT), jnp.float32)
              / jnp.sqrt(jnp.float32(CONV_K * CONV_K * 3)))
    conv_w = jnp.pad(conv_w, ((0, KPAD - conv_w.shape[0]),
                              (0, CONV_PAD - CONV_OUT))).astype(WDTYPE)
    fc_w = (jax.random.normal(next(keys), (CONV_OUT, MID), jnp.float32)
            / jnp.sqrt(jnp.float32(CONV_OUT)))
    fc_w = jnp.pad(fc_w, ((0, CONV_PAD - CONV_OUT), (0, 0))).astype(WDTYPE)
    params["backbone"] = {"conv1_w": conv_w, "fc_w": fc_w, "fc_b": b_init(MID)}

    # hand: Linear(42, 2*MID), BN, ReLU, Linear(2*MID, MID); K padded 42 -> 128
    hw1 = (jax.random.normal(next(keys), (HAND_IN, 2 * MID), jnp.float32)
           / jnp.sqrt(jnp.float32(HAND_IN)))
    hw1 = jnp.pad(hw1, ((0, HAND_PAD - HAND_IN), (0, 0))).astype(WDTYPE)
    params["hand"] = {"w1": hw1, "b1": b_init(2 * MID),
                      "gamma": jnp.ones((1, 2 * MID), jnp.float32),
                      "beta": jnp.zeros((1, 2 * MID), jnp.float32),
                      "w2": w_init(2 * MID, MID), "b2": b_init(MID)}

    # fine: Linear(2*MID, MID) with w1 split into rgb / hand halves, BN, ReLU, Linear
    fw1 = (jax.random.normal(next(keys), (2 * MID, MID), jnp.float32)
           / jnp.sqrt(jnp.float32(2 * MID)))
    params["fine"] = {"w1_rgb": fw1[:MID].astype(WDTYPE),
                      "w1_hand": fw1[MID:].astype(WDTYPE),
                      "b1": b_init(MID),
                      "gamma": jnp.ones((1, MID), jnp.float32),
                      "beta": jnp.zeros((1, MID), jnp.float32),
                      "w2": w_init(MID, MID), "b2": b_init(MID)}

    # fused initiala1 / initiala2 / contin1 / contin2
    hid_sizes = [2 * MID, 2 * MID, 3 * MID, 3 * MID]
    w1s, b1s, w2s, b2s = [], [], [], []
    for hsz in hid_sizes:
        w1s.append(w_init(MID, hsz))
        b1s.append(b_init(hsz))
        w2s.append(w_init(hsz, MID))
        b2s.append(b_init(MID))
    total_hid = sum(hid_sizes)
    params["init_heads"] = {"w1": jnp.concatenate(w1s, axis=1),
                            "b1": jnp.concatenate(b1s, axis=1),
                            "gamma": jnp.ones((1, total_hid), jnp.float32),
                            "beta": jnp.zeros((1, total_hid), jnp.float32),
                            "w2_a1": w2s[0], "w2_a2": w2s[1],
                            "w2_c1": w2s[2], "w2_c2": w2s[3],
                            "b2": jnp.concatenate(b2s, axis=1)}

    # x / y / z heads: w1 fused along the output axis, w2 stacked per head
    xw1, xb1, xw2, xb2 = [], [], [], []
    for _ in range(3):
        xw1.append(w_init(MID, H5))
        xb1.append(b_init(H5))
        xw2.append(w_init(H5, H5))
        xb2.append(b_init(H5))
    params["xyz"] = {"w1": jnp.concatenate(xw1, axis=1),         # (MID, 3*H5)
                     "b1": jnp.concatenate(xb1, axis=1),         # (1, 3*H5)
                     "gamma": jnp.ones((1, 3 * H5), jnp.float32),
                     "beta": jnp.zeros((1, 3 * H5), jnp.float32),
                     "w2": jnp.stack(xw2),                       # (3, H5, H5)
                     "b2": jnp.concatenate(xb2, axis=1)}         # (1, 3*H5)

    # 2-layer LSTM (input size == hidden size == MID); b = b_ih + b_hh folded;
    # layer 1 stores concat([wih1; whh1]) so its two matmuls fuse into one K=2*MID GEMM
    wih0, whh0 = w_init(MID, 4 * MID), w_init(MID, 4 * MID)
    b0 = b_init(4 * MID)
    wih1, whh1 = w_init(MID, 4 * MID), w_init(MID, 4 * MID)
    b1 = b_init(4 * MID)
    params["lstm"] = [{"wih": wih0, "whh": whh0, "b": b0},
                      {"w1cat": jnp.concatenate([wih1, whh1], axis=0), "b": b1}]
    return params


# ----------------------------------------------------------------------------
# Forward (mirrors Baseline_RGB.forward with WITH_HAND=True, LOSS='Ori')
# ----------------------------------------------------------------------------
def baseline_rgb_forward(img, hand, seq_len, params):
    batch = img.shape[0]
    chan, hh, ww = img.shape[2], img.shape[3], img.shape[4]
    rows = seq_len * batch

    # time-major layout (t, b) for all per-timestep work
    img_tb = jnp.transpose(img, (1, 0, 2, 3, 4)).reshape(rows, chan, hh, ww)
    hand_tbd = jnp.transpose(hand, (1, 0, 2))                               # (T, B, 42)
    hand_tbd = jnp.pad(hand_tbd,
                       ((0, 0), (0, 0), (0, HAND_PAD - HAND_IN))).astype(ADTYPE)

    rgb_feat = backbone_forward(img_tb, params["backbone"])                 # (T*B, MID) bf16
    rgb_feat = rgb_feat.reshape(seq_len, batch, MID)

    feature, gx0 = hand_fine_gx0(hand_tbd, rgb_feat,
                                 params["hand"], params["fine"],
                                 params["lstm"][0])                         # bf16, bf16

    # cinit / hout from feature at sequences == 0
    init_out = init_heads(feature[0], params["init_heads"])                 # (B, 4*MID)
    c0i = init_out[:, 0 * MID:1 * MID]     # initiala1 -> c layer 0
    c1i = init_out[:, 1 * MID:2 * MID]     # initiala2 -> c layer 1
    h0i = init_out[:, 2 * MID:3 * MID]     # contin1   -> h layer 0
    h1i = init_out[:, 3 * MID:4 * MID]     # contin2   -> h layer 1

    out_last = lstm_over_time(gx0, (h0i, c0i, h1i, c1i),
                              params["lstm"], seq_len, batch)               # (T, B, MID) bf16

    return xyz_heads(out_last, params["xyz"], seq_len, batch)               # (T, B, 3, 5*MID)


# ----------------------------------------------------------------------------
if __name__ == "__main__":
    key = jax.random.PRNGKey(0)
    k_img, k_hand, k_params = jax.random.split(key, 3)

    B, T, C, H, W = 2, 3, 3, 16, 16
    img = jax.random.normal(k_img, (B, T, C, H, W), jnp.float32)
    hand = jax.random.normal(k_hand, (B, T, HAND_IN), jnp.float32)
    params = init_params(k_params)

    fwd = jax.jit(lambda im, ha, pa: baseline_rgb_forward(im, ha, T, pa))
    preds = jax.block_until_ready(fwd(img, hand, params))

    assert preds.shape == (T, B, 3, 5 * MID)
    assert bool(jnp.all(jnp.isfinite(preds)))
    print("KERNEL_OK")
</pallas_src>

<mosaic_0001>
module attributes {stable_mosaic.version = 11 : i64} {
  func.func @_backbone_kernel(%arg0: i32, %arg1: memref<1x64x256xbf16, #tpu.memory_space<vmem>>, %arg2: memref<256x128xbf16, #tpu.memory_space<vmem>>, %arg3: memref<128x128xbf16, #tpu.memory_space<vmem>>, %arg4: memref<1x128xf32, #tpu.memory_space<vmem>>, %arg5: memref<1x1x128xbf16, #tpu.memory_space<vmem>>) attributes {dimension_semantics = [#tpu.dimension_semantics<parallel>], iteration_bounds = array<i64: 6>, scalar_prefetch = 0 : i64, scratch_operands = 0 : i64, tpu.core_type = #tpu.core_type<tc>, window_params = [{transform_indices = @transform_0, window_bounds = array<i64: 1, 64, 256>}, {pipeline_mode = #tpu.pipeline_mode<synchronous>, transform_indices = @transform_1, window_bounds = array<i64: 256, 128>}, {pipeline_mode = #tpu.pipeline_mode<synchronous>, transform_indices = @transform_2, window_bounds = array<i64: 128, 128>}, {pipeline_mode = #tpu.pipeline_mode<synchronous>, transform_indices = @transform_3, window_bounds = array<i64: 1, 128>}, {transform_indices = @transform_4, window_bounds = array<i64: 1, 1, 128>}]} {
    %c0 = arith.constant 0 : index
    %c0_0 = arith.constant 0 : index
    %c0_1 = arith.constant 0 : index
    %0 = vector.load %arg1[%c0, %c0_0, %c0_1] : memref<1x64x256xbf16, #tpu.memory_space<vmem>>, vector<1x64x256xbf16>
    %1 = vector.shape_cast %0 : vector<1x64x256xbf16> to vector<64x256xbf16>
    %c0_2 = arith.constant 0 : index
    %c0_3 = arith.constant 0 : index
    %2 = vector.load %arg2[%c0_2, %c0_3] : memref<256x128xbf16, #tpu.memory_space<vmem>>, vector<256x128xbf16>
    %cst = arith.constant dense<0.000000e+00> : vector<64x128xf32>
    %3 = tpu.matmul %1, %2, %cst {dimension_numbers = #tpu.dot_dimension_numbers<[1], [0], [0], [1], [0, 0, 1, 1], [], []>} : vector<64x256xbf16>, vector<256x128xbf16>, vector<64x128xf32> -> vector<64x128xf32>
    %cst_4 = arith.constant 0.000000e+00 : f32
    %4 = vector.broadcast %cst_4 : f32 to vector<64x128xf32>
    %5 = arith.maximumf %3, %4 : vector<64x128xf32>
    %cst_5 = arith.constant dense<0.000000e+00> : vector<128xf32>
    %6 = vector.multi_reduction <add>, %5, %cst_5 [0] : vector<64x128xf32> to vector<128xf32>
    %7 = vector.shape_cast %6 : vector<128xf32> to vector<1x128xf32>
    %cst_6 = arith.constant 6.400000e+01 : f32
    %8 = vector.broadcast %cst_6 : f32 to vector<1x128xf32>
    %9 = arith.divf %7, %8 : vector<1x128xf32>
    %c0_7 = arith.constant 0 : index
    %c0_8 = arith.constant 0 : index
    %10 = vector.load %arg3[%c0_7, %c0_8] : memref<128x128xbf16, #tpu.memory_space<vmem>>, vector<128x128xbf16>
    %11 = arith.truncf %9 : vector<1x128xf32> to vector<1x128xbf16>
    %cst_9 = arith.constant dense<0.000000e+00> : vector<1x128xf32>
    %12 = tpu.matmul %11, %10, %cst_9 {dimension_numbers = #tpu.dot_dimension_numbers<[1], [0], [0], [1], [0, 0, 1, 1], [], []>} : vector<1x128xbf16>, vector<128x128xbf16>, vector<1x128xf32> -> vector<1x128xf32>
    %c0_10 = arith.constant 0 : index
    %c0_11 = arith.constant 0 : index
    %13 = vector.load %arg4[%c0_10, %c0_11] : memref<1x128xf32, #tpu.memory_space<vmem>>, vector<1x128xf32>
    %14 = arith.addf %12, %13 : vector<1x128xf32>
    %15 = arith.truncf %14 : vector<1x128xf32> to vector<1x128xbf16>
    %c0_12 = arith.constant 0 : index
    %c0_13 = arith.constant 0 : index
    %c0_14 = arith.constant 0 : index
    %16 = vector.load %arg5[%c0_12, %c0_13, %c0_14] : memref<1x1x128xbf16, #tpu.memory_space<vmem>>, vector<1x1x128xbf16>
    %17 = vector.shape_cast %16 : vector<1x1x128xbf16> to vector<1x128xbf16>
    %18 = vector.shape_cast %15 : vector<1x128xbf16> to vector<1x1x128xbf16>
    tpu.vector_store %arg5[%c0_12, %c0_13, %c0_14], %18 {strides = array<i32>} : memref<1x1x128xbf16, #tpu.memory_space<vmem>>, vector<1x1x128xbf16>,
    return
  }
  func.func @transform_0(%arg0: i32) -> (i32, i32, i32) {
    %c0_i32 = arith.constant 0 : i32
    %c0_i32_0 = arith.constant 0 : i32
    %c0_i32_1 = arith.constant 0 : i32
    return %arg0, %c0_i32, %c0_i32_0 : i32, i32, i32
  }
  func.func @transform_1(%arg0: i32) -> (i32, i32) {
    %c0_i32 = arith.constant 0 : i32
    %c0_i32_0 = arith.constant 0 : i32
    %c0_i32_1 = arith.constant 0 : i32
    return %c0_i32, %c0_i32_0 : i32, i32
  }
  func.func @transform_2(%arg0: i32) -> (i32, i32) {
    %c0_i32 = arith.constant 0 : i32
    %c0_i32_0 = arith.constant 0 : i32
    %c0_i32_1 = arith.constant 0 : i32
    return %c0_i32, %c0_i32_0 : i32, i32
  }
  func.func @transform_3(%arg0: i32) -> (i32, i32) {
    %c0_i32 = arith.constant 0 : i32
    %c0_i32_0 = arith.constant 0 : i32
    %c0_i32_1 = arith.constant 0 : i32
    return %c0_i32, %c0_i32_0 : i32, i32
  }
  func.func @transform_4(%arg0: i32) -> (i32, i32, i32) {
    %c0_i32 = arith.constant 0 : i32
    %c0_i32_0 = arith.constant 0 : i32
    %c0_i32_1 = arith.constant 0 : i32
    return %arg0, %c0_i32, %c0_i32_0 : i32, i32, i32
  }
}

module attributes {stable_mosaic.version = 11 : i64} {
  func.func @_feature_kernel(%arg0: i32, %arg1: memref<1x2x128xbf16, #tpu.memory_space<vmem>>, %arg2: memref<1x2x128xbf16, #tpu.memory_space<vmem>>, %arg3: memref<128x256xbf16, #tpu.memory_space<vmem>>, %arg4: memref<1x256xf32, #tpu.memory_space<vmem>>, %arg5: memref<1x256xf32, #tpu.memory_space<vmem>>, %arg6: memref<1x256xf32, #tpu.memory_space<vmem>>, %arg7: memref<256x128xbf16, #tpu.memory_space<vmem>>, %arg8: memref<1x128xf32, #tpu.memory_space<vmem>>, %arg9: memref<128x128xbf16, #tpu.memory_space<vmem>>, %arg10: memref<128x128xbf16, #tpu.memory_space<vmem>>, %arg11: memref<1x128xf32, #tpu.memory_space<vmem>>, %arg12: memref<1x128xf32, #tpu.memory_space<vmem>>, %arg13: memref<1x128xf32, #tpu.memory_space<vmem>>, %arg14: memref<128x128xbf16, #tpu.memory_space<vmem>>, %arg15: memref<1x128xf32, #tpu.memory_space<vmem>>, %arg16: memref<128x512xbf16, #tpu.memory_space<vmem>>, %arg17: memref<1x512xf32, #tpu.memory_space<vmem>>, %arg18: memref<1x2x128xbf16, #tpu.memory_space<vmem>>, %arg19: memref<1x2x512xbf16, #tpu.memory_space<vmem>>) attributes {dimension_semantics = [#tpu.dimension_semantics<parallel>], iteration_bounds = array<i64: 3>, scalar_prefetch = 0 : i64, scratch_operands = 0 : i64, tpu.core_type = #tpu.core_type<tc>, window_params = [{transform_indices = @transform_0, window_bounds = array<i64: 1, 2, 128>}, {transform_indices = @transform_1, window_bounds = array<i64: 1, 2, 128>}, {pipeline_mode = #tpu.pipeline_mode<synchronous>, transform_indices = @transform_2, window_bounds = array<i64: 128, 256>}, {pipeline_mode = #tpu.pipeline_mode<synchronous>, transform_indices = @transform_3, window_bounds = array<i64: 1, 256>}, {pipeline_mode = #tpu.pipeline_mode<synchronous>, transform_indices = @transform_4, window_bounds = array<i64: 1, 256>}, {pipeline_mode = #tpu.pipeline_mode<synchronous>, transform_indices = @transform_5, window_bounds = array<i64: 1, 256>}, {pipeline_mode = #tpu.pipeline_mode<synchronous>, transform_indices = @transform_6, window_bounds = array<i64: 256, 128>}, {pipeline_mode = #tpu.pipeline_mode<synchronous>, transform_indices = @transform_7, window_bounds = array<i64: 1, 128>}, {pipeline_mode = #tpu.pipeline_mode<synchronous>, transform_indices = @transform_8, window_bounds = array<i64: 128, 128>}, {pipeline_mode = #tpu.pipeline_mode<synchronous>, transform_indices = @transform_9, window_bounds = array<i64: 128, 128>}, {pipeline_mode = #tpu.pipeline_mode<synchronous>, transform_indices = @transform_10, window_bounds = array<i64: 1, 128>}, {pipeline_mode = #tpu.pipeline_mode<synchronous>, transform_indices = @transform_11, window_bounds = array<i64: 1, 128>}, {pipeline_mode = #tpu.pipeline_mode<synchronous>, transform_indices = @transform_12, window_bounds = array<i64: 1, 128>}, {pipeline_mode = #tpu.pipeline_mode<synchronous>, transform_indices = @transform_13, window_bounds = array<i64: 128, 128>}, {pipeline_mode = #tpu.pipeline_mode<synchronous>, transform_indices = @transform_14, window_bounds = array<i64: 1, 128>}, {pipeline_mode = #tpu.pipeline_mode<synchronous>, transform_indices = @transform_15, window_bounds = array<i64: 128, 512>}, {pipeline_mode = #tpu.pipeline_mode<synchronous>, transform_indices = @transform_16, window_bounds = array<i64: 1, 512>}, {transform_indices = @transform_17, window_bounds = array<i64: 1, 2, 128>}, {transform_indices = @transform_18, window_bounds = array<i64: 1, 2, 512>}]} {
    %c0 = arith.constant 0 : index
    %c0_0 = arith.constant 0 : index
    %c0_1 = arith.constant 0 : index
    %0 = vector.load %arg1[%c0, %c0_0, %c0_1] : memref<1x2x128xbf16, #tpu.memory_space<vmem>>, vector<1x2x128xbf16>
    %1 = vector.shape_cast %0 : vector<1x2x128xbf16> to vector<2x128xbf16>
    %c0_2 = arith.constant 0 : index
    %c0_3 = arith.constant 0 : index
    %c0_4 = arith.constant 0 : index
    %2 = vector.load %arg2[%c0_2, %c0_3, %c0_4] : memref<1x2x128xbf16, #tpu.memory_space<vmem>>, vector<1x2x128xbf16>
    %3 = vector.shape_cast %2 : vector<1x2x128xbf16> to vector<2x128xbf16>
    %c0_5 = arith.constant 0 : index
    %c0_6 = arith.constant 0 : index
    %4 = vector.load %arg3[%c0_5, %c0_6] : memref<128x256xbf16, #tpu.memory_space<vmem>>, vector<128x256xbf16>
    %cst = arith.constant dense<0.000000e+00> : vector<2x256xf32>
    %5 = tpu.matmul %1, %4, %cst {dimension_numbers = #tpu.dot_dimension_numbers<[1], [0], [0], [1], [0, 0, 1, 1], [], []>} : vector<2x128xbf16>, vector<128x256xbf16>, vector<2x256xf32> -> vector<2x256xf32>
    %c0_7 = arith.constant 0 : index
    %c0_8 = arith.constant 0 : index
    %6 = vector.load %arg4[%c0_7, %c0_8] : memref<1x256xf32, #tpu.memory_space<vmem>>, vector<1x256xf32>
    %7 = vector.broadcast %6 : vector<1x256xf32> to vector<2x256xf32>
    %8 = arith.addf %5, %7 : vector<2x256xf32>
    %c0_9 = arith.constant 0 : index
    %c0_10 = arith.constant 0 : index
    %9 = vector.load %arg5[%c0_9, %c0_10] : memref<1x256xf32, #tpu.memory_space<vmem>>, vector<1x256xf32>
    %c0_11 = arith.constant 0 : index
    %c0_12 = arith.constant 0 : index
    %10 = vector.load %arg6[%c0_11, %c0_12] : memref<1x256xf32, #tpu.memory_space<vmem>>, vector<1x256xf32>
    %cst_13 = arith.constant dense<0.000000e+00> : vector<256xf32>
    %11 = vector.multi_reduction <add>, %8, %cst_13 [0] : vector<2x256xf32> to vector<256xf32>
    %12 = vector.shape_cast %11 : vector<256xf32> to vector<1x256xf32>
    %cst_14 = arith.constant 2.000000e+00 : f32
    %13 = vector.broadcast %cst_14 : f32 to vector<1x256xf32>
    %14 = arith.divf %12, %13 : vector<1x256xf32>
    %15 = vector.broadcast %14 : vector<1x256xf32> to vector<2x256xf32>
    %16 = arith.subf %8, %15 : vector<2x256xf32>
    %17 = arith.mulf %16, %16 : vector<2x256xf32>
    %cst_15 = arith.constant dense<0.000000e+00> : vector<256xf32>
    %18 = vector.multi_reduction <add>, %17, %cst_15 [0] : vector<2x256xf32> to vector<256xf32>
    %19 = vector.shape_cast %18 : vector<256xf32> to vector<1x256xf32>
    %cst_16 = arith.constant 2.000000e+00 : f32
    %20 = vector.broadcast %cst_16 : f32 to vector<1x256xf32>
    %21 = arith.divf %19, %20 : vector<1x256xf32>
    %cst_17 = arith.constant 9.99999974E-6 : f32
    %22 = vector.broadcast %cst_17 : f32 to vector<1x256xf32>
    %23 = arith.addf %21, %22 : vector<1x256xf32>
    %24 = math.rsqrt %23 : vector<1x256xf32>
    %25 = vector.broadcast %24 : vector<1x256xf32> to vector<2x256xf32>
    %26 = arith.mulf %16, %25 : vector<2x256xf32>
    %27 = vector.broadcast %9 : vector<1x256xf32> to vector<2x256xf32>
    %28 = arith.mulf %26, %27 : vector<2x256xf32>
    %29 = vector.broadcast %10 : vector<1x256xf32> to vector<2x256xf32>
    %30 = arith.addf %28, %29 : vector<2x256xf32>
    %cst_18 = arith.constant 0.000000e+00 : f32
    %31 = vector.broadcast %cst_18 : f32 to vector<2x256xf32>
    %32 = arith.maximumf %30, %31 : vector<2x256xf32>
    %c0_19 = arith.constant 0 : index
    %c0_20 = arith.constant 0 : index
    %33 = vector.load %arg7[%c0_19, %c0_20] : memref<256x128xbf16, #tpu.memory_space<vmem>>, vector<256x128xbf16>
    %34 = arith.truncf %32 : vector<2x256xf32> to vector<2x256xbf16>
    %cst_21 = arith.constant dense<0.000000e+00> : vector<2x128xf32>
    %35 = tpu.matmul %34, %33, %cst_21 {dimension_numbers = #tpu.dot_dimension_numbers<[1], [0], [0], [1], [0, 0, 1, 1], [], []>} : vector<2x256xbf16>, vector<256x128xbf16>, vector<2x128xf32> -> vector<2x128xf32>
    %c0_22 = arith.constant 0 : index
    %c0_23 = arith.constant 0 : index
    %36 = vector.load %arg8[%c0_22, %c0_23] : memref<1x128xf32, #tpu.memory_space<vmem>>, vector<1x128xf32>
    %37 = vector.broadcast %36 : vector<1x128xf32> to vector<2x128xf32>
    %38 = arith.addf %35, %37 : vector<2x128xf32>
    %c0_24 = arith.constant 0 : index
    %c0_25 = arith.constant 0 : index
    %39 = vector.load %arg9[%c0_24, %c0_25] : memref<128x128xbf16, #tpu.memory_space<vmem>>, vector<128x128xbf16>
    %cst_26 = arith.constant dense<0.000000e+00> : vector<2x128xf32>
    %40 = tpu.matmul %3, %39, %cst_26 {dimension_numbers = #tpu.dot_dimension_numbers<[1], [0], [0], [1], [0, 0, 1, 1], [], []>} : vector<2x128xbf16>, vector<128x128xbf16>, vector<2x128xf32> -> vector<2x128xf32>
    %c0_27 = arith.constant 0 : index
    %c0_28 = arith.constant 0 : index
    %41 = vector.load %arg10[%c0_27, %c0_28] : memref<128x128xbf16, #tpu.memory_space<vmem>>, vector<128x128xbf16>
    %42 = arith.truncf %38 : vector<2x128xf32> to vector<2x128xbf16>
    %cst_29 = arith.constant dense<0.000000e+00> : vector<2x128xf32>
    %43 = tpu.matmul %42, %41, %cst_29 {dimension_numbers = #tpu.dot_dimension_numbers<[1], [0], [0], [1], [0, 0, 1, 1], [], []>} : vector<2x128xbf16>, vector<128x128xbf16>, vector<2x128xf32> -> vector<2x128xf32>
    %44 = arith.addf %40, %43 : vector<2x128xf32>
    %c0_30 = arith.constant 0 : index
    %c0_31 = arith.constant 0 : index
    %45 = vector.load %arg11[%c0_30, %c0_31] : memref<1x128xf32, #tpu.memory_space<vmem>>, vector<1x128xf32>
    %46 = vector.broadcast %45 : vector<1x128xf32> to vector<2x128xf32>
    %47 = arith.addf %44, %46 : vector<2x128xf32>
    %c0_32 = arith.constant 0 : index
    %c0_33 = arith.constant 0 : index
    %48 = vector.load %arg12[%c0_32, %c0_33] : memref<1x128xf32, #tpu.memory_space<vmem>>, vector<1x128xf32>
    %c0_34 = arith.constant 0 : index
    %c0_35 = arith.constant 0 : index
    %49 = vector.load %arg13[%c0_34, %c0_35] : memref<1x128xf32, #tpu.memory_space<vmem>>, vector<1x128xf32>
    %cst_36 = arith.constant dense<0.000000e+00> : vector<128xf32>
    %50 = vector.multi_reduction <add>, %47, %cst_36 [0] : vector<2x128xf32> to vector<128xf32>
    %51 = vector.shape_cast %50 : vector<128xf32> to vector<1x128xf32>
    %cst_37 = arith.constant 2.000000e+00 : f32
    %52 = vector.broadcast %cst_37 : f32 to vector<1x128xf32>
    %53 = arith.divf %51, %52 : vector<1x128xf32>
    %54 = vector.broadcast %53 : vector<1x128xf32> to vector<2x128xf32>
    %55 = arith.subf %47, %54 : vector<2x128xf32>
    %56 = arith.mulf %55, %55 : vector<2x128xf32>
    %cst_38 = arith.constant dense<0.000000e+00> : vector<128xf32>
    %57 = vector.multi_reduction <add>, %56, %cst_38 [0] : vector<2x128xf32> to vector<128xf32>
    %58 = vector.shape_cast %57 : vector<128xf32> to vector<1x128xf32>
    %cst_39 = arith.constant 2.000000e+00 : f32
    %59 = vector.broadcast %cst_39 : f32 to vector<1x128xf32>
    %60 = arith.divf %58, %59 : vector<1x128xf32>
    %cst_40 = arith.constant 9.99999974E-6 : f32
    %61 = vector.broadcast %cst_40 : f32 to vector<1x128xf32>
    %62 = arith.addf %60, %61 : vector<1x128xf32>
    %63 = math.rsqrt %62 : vector<1x128xf32>
    %64 = vector.broadcast %63 : vector<1x128xf32> to vector<2x128xf32>
    %65 = arith.mulf %55, %64 : vector<2x128xf32>
    %66 = vector.broadcast %48 : vector<1x128xf32> to vector<2x128xf32>
    %67 = arith.mulf %65, %66 : vector<2x128xf32>
    %68 = vector.broadcast %49 : vector<1x128xf32> to vector<2x128xf32>
    %69 = arith.addf %67, %68 : vector<2x128xf32>
    %cst_41 = arith.constant 0.000000e+00 : f32
    %70 = vector.broadcast %cst_41 : f32 to vector<2x128xf32>
    %71 = arith.maximumf %69, %70 : vector<2x128xf32>
    %c0_42 = arith.constant 0 : index
    %c0_43 = arith.constant 0 : index
    %72 = vector.load %arg14[%c0_42, %c0_43] : memref<128x128xbf16, #tpu.memory_space<vmem>>, vector<128x128xbf16>
    %73 = arith.truncf %71 : vector<2x128xf32> to vector<2x128xbf16>
    %cst_44 = arith.constant dense<0.000000e+00> : vector<2x128xf32>
    %74 = tpu.matmul %73, %72, %cst_44 {dimension_numbers = #tpu.dot_dimension_numbers<[1], [0], [0], [1], [0, 0, 1, 1], [], []>} : vector<2x128xbf16>, vector<128x128xbf16>, vector<2x128xf32> -> vector<2x128xf32>
    %c0_45 = arith.constant 0 : index
    %c0_46 = arith.constant 0 : index
    %75 = vector.load %arg15[%c0_45, %c0_46] : memref<1x128xf32, #tpu.memory_space<vmem>>, vector<1x128xf32>
    %76 = vector.broadcast %75 : vector<1x128xf32> to vector<2x128xf32>
    %77 = arith.addf %74, %76 : vector<2x128xf32>
    %78 = arith.truncf %77 : vector<2x128xf32> to vector<2x128xbf16>
    %c0_47 = arith.constant 0 : index
    %c0_48 = arith.constant 0 : index
    %c0_49 = arith.constant 0 : index
    %79 = vector.load %arg18[%c0_47, %c0_48, %c0_49] : memref<1x2x128xbf16, #tpu.memory_space<vmem>>, vector<1x2x128xbf16>
    %80 = vector.shape_cast %79 : vector<1x2x128xbf16> to vector<2x128xbf16>
    %81 = vector.shape_cast %78 : vector<2x128xbf16> to vector<1x2x128xbf16>
    tpu.vector_store %arg18[%c0_47, %c0_48, %c0_49], %81 {strides = array<i32>} : memref<1x2x128xbf16, #tpu.memory_space<vmem>>, vector<1x2x128xbf16>,
    %c0_50 = arith.constant 0 : index
    %c0_51 = arith.constant 0 : index
    %82 = vector.load %arg16[%c0_50, %c0_51] : memref<128x512xbf16, #tpu.memory_space<vmem>>, vector<128x512xbf16>
    %83 = arith.truncf %77 : vector<2x128xf32> to vector<2x128xbf16>
    %cst_52 = arith.constant dense<0.000000e+00> : vector<2x512xf32>
    %84 = tpu.matmul %83, %82, %cst_52 {dimension_numbers = #tpu.dot_dimension_numbers<[1], [0], [0], [1], [0, 0, 1, 1], [], []>} : vector<2x128xbf16>, vector<128x512xbf16>, vector<2x512xf32> -> vector<2x512xf32>
    %c0_53 = arith.constant 0 : index
    %c0_54 = arith.constant 0 : index
    %85 = vector.load %arg17[%c0_53, %c0_54] : memref<1x512xf32, #tpu.memory_space<vmem>>, vector<1x512xf32>
    %86 = vector.broadcast %85 : vector<1x512xf32> to vector<2x512xf32>
    %87 = arith.addf %84, %86 : vector<2x512xf32>
    %88 = arith.truncf %87 : vector<2x512xf32> to vector<2x512xbf16>
    %c0_55 = arith.constant 0 : index
    %c0_56 = arith.constant 0 : index
    %c0_57 = arith.constant 0 : index
    %89 = vector.load %arg19[%c0_55, %c0_56, %c0_57] : memref<1x2x512xbf16, #tpu.memory_space<vmem>>, vector<1x2x512xbf16>
    %90 = vector.shape_cast %89 : vector<1x2x512xbf16> to vector<2x512xbf16>
    %91 = vector.shape_cast %88 : vector<2x512xbf16> to vector<1x2x512xbf16>
    tpu.vector_store %arg19[%c0_55, %c0_56, %c0_57], %91 {strides = array<i32>} : memref<1x2x512xbf16, #tpu.memory_space<vmem>>, vector<1x2x512xbf16>,
    return
  }
  func.func @transform_0(%arg0: i32) -> (i32, i32, i32) {
    %c0_i32 = arith.constant 0 : i32
    %c0_i32_0 = arith.constant 0 : i32
    %c0_i32_1 = arith.constant 0 : i32
    return %arg0, %c0_i32, %c0_i32_0 : i32, i32, i32
  }
  func.func @transform_1(%arg0: i32) -> (i32, i32, i32) {
    %c0_i32 = arith.constant 0 : i32
    %c0_i32_0 = arith.constant 0 : i32
    %c0_i32_1 = arith.constant 0 : i32
    return %arg0, %c0_i32, %c0_i32_0 : i32, i32, i32
  }
  func.func @transform_2(%arg0: i32) -> (i32, i32) {
    %c0_i32 = arith.constant 0 : i32
    %c0_i32_0 = arith.constant 0 : i32
    %c0_i32_1 = arith.constant 0 : i32
    return %c0_i32, %c0_i32_0 : i32, i32
  }
  func.func @transform_3(%arg0: i32) -> (i32, i32) {
    %c0_i32 = arith.constant 0 : i32
    %c0_i32_0 = arith.constant 0 : i32
    %c0_i32_1 = arith.constant 0 : i32
    return %c0_i32, %c0_i32_0 : i32, i32
  }
  func.func @transform_4(%arg0: i32) -> (i32, i32) {
    %c0_i32 = arith.constant 0 : i32
    %c0_i32_0 = arith.constant 0 : i32
    %c0_i32_1 = arith.constant 0 : i32
    return %c0_i32, %c0_i32_0 : i32, i32
  }
  func.func @transform_5(%arg0: i32) -> (i32, i32) {
    %c0_i32 = arith.constant 0 : i32
    %c0_i32_0 = arith.constant 0 : i32
    %c0_i32_1 = arith.constant 0 : i32
    return %c0_i32, %c0_i32_0 : i32, i32
  }
  func.func @transform_6(%arg0: i32) -> (i32, i32) {
    %c0_i32 = arith.constant 0 : i32
    %c0_i32_0 = arith.constant 0 : i32
    %c0_i32_1 = arith.constant 0 : i32
    return %c0_i32, %c0_i32_0 : i32, i32
  }
  func.func @transform_7(%arg0: i32) -> (i32, i32) {
    %c0_i32 = arith.constant 0 : i32
    %c0_i32_0 = arith.constant 0 : i32
    %c0_i32_1 = arith.constant 0 : i32
    return %c0_i32, %c0_i32_0 : i32, i32
  }
  func.func @transform_8(%arg0: i32) -> (i32, i32) {
    %c0_i32 = arith.constant 0 : i32
    %c0_i32_0 = arith.constant 0 : i32
    %c0_i32_1 = arith.constant 0 : i32
    return %c0_i32, %c0_i32_0 : i32, i32
  }
  func.func @transform_9(%arg0: i32) -> (i32, i32) {
    %c0_i32 = arith.constant 0 : i32
    %c0_i32_0 = arith.constant 0 : i32
    %c0_i32_1 = arith.constant 0 : i32
    return %c0_i32, %c0_i32_0 : i32, i32
  }
  func.func @transform_10(%arg0: i32) -> (i32, i32) {
    %c0_i32 = arith.constant 0 : i32
    %c0_i32_0 = arith.constant 0 : i32
    %c0_i32_1 = arith.constant 0 : i32
    return %c0_i32, %c0_i32_0 : i32, i32
  }
  func.func @transform_11(%arg0: i32) -> (i32, i32) {
    %c0_i32 = arith.constant 0 : i32
    %c0_i32_0 = arith.constant 0 : i32
    %c0_i32_1 = arith.constant 0 : i32
    return %c0_i32, %c0_i32_0 : i32, i32
  }
  func.func @transform_12(%arg0: i32) -> (i32, i32) {
    %c0_i32 = arith.constant 0 : i32
    %c0_i32_0 = arith.constant 0 : i32
    %c0_i32_1 = arith.constant 0 : i32
    return %c0_i32, %c0_i32_0 : i32, i32
  }
  func.func @transform_13(%arg0: i32) -> (i32, i32) {
    %c0_i32 = arith.constant 0 : i32
    %c0_i32_0 = arith.constant 0 : i32
    %c0_i32_1 = arith.constant 0 : i32
    return %c0_i32, %c0_i32_0 : i32, i32
  }
  func.func @transform_14(%arg0: i32) -> (i32, i32) {
    %c0_i32 = arith.constant 0 : i32
    %c0_i32_0 = arith.constant 0 : i32
    %c0_i32_1 = arith.constant 0 : i32
    return %c0_i32, %c0_i32_0 : i32, i32
  }
  func.func @transform_15(%arg0: i32) -> (i32, i32) {
    %c0_i32 = arith.constant 0 : i32
    %c0_i32_0 = arith.constant 0 : i32
    %c0_i32_1 = arith.constant 0 : i32
    return %c0_i32, %c0_i32_0 : i32, i32
  }
  func.func @transform_16(%arg0: i32) -> (i32, i32) {
    %c0_i32 = arith.constant 0 : i32
    %c0_i32_0 = arith.constant 0 : i32
    %c0_i32_1 = arith.constant 0 : i32
    return %c0_i32, %c0_i32_0 : i32, i32
  }
  func.func @transform_17(%arg0: i32) -> (i32, i32, i32) {
    %c0_i32 = arith.constant 0 : i32
    %c0_i32_0 = arith.constant 0 : i32
    %c0_i32_1 = arith.constant 0 : i32
    return %arg0, %c0_i32, %c0_i32_0 : i32, i32, i32
  }
  func.func @transform_18(%arg0: i32) -> (i32, i32, i32) {
    %c0_i32 = arith.constant 0 : i32
    %c0_i32_0 = arith.constant 0 : i32
    %c0_i32_1 = arith.constant 0 : i32
    return %arg0, %c0_i32, %c0_i32_0 : i32, i32, i32
  }
}

module attributes {stable_mosaic.version = 11 : i64} {
  func.func @_init_heads_kernel(%arg0: memref<2x128xbf16, #tpu.memory_space<vmem>>, %arg1: memref<128x1280xbf16, #tpu.memory_space<vmem>>, %arg2: memref<1x1280xf32, #tpu.memory_space<vmem>>, %arg3: memref<1x1280xf32, #tpu.memory_space<vmem>>, %arg4: memref<1x1280xf32, #tpu.memory_space<vmem>>, %arg5: memref<256x128xbf16, #tpu.memory_space<vmem>>, %arg6: memref<256x128xbf16, #tpu.memory_space<vmem>>, %arg7: memref<384x128xbf16, #tpu.memory_space<vmem>>, %arg8: memref<384x128xbf16, #tpu.memory_space<vmem>>, %arg9: memref<1x512xf32, #tpu.memory_space<vmem>>, %arg10: memref<2x512xf32, #tpu.memory_space<vmem>>) attributes {dimension_semantics = [], scalar_prefetch = 0 : i64, scratch_operands = 0 : i64, tpu.core_type = #tpu.core_type<tc>} {
    %c0 = arith.constant 0 : index
    %c0_0 = arith.constant 0 : index
    %0 = vector.load %arg0[%c0, %c0_0] : memref<2x128xbf16, #tpu.memory_space<vmem>>, vector<2x128xbf16>
    %c0_1 = arith.constant 0 : index
    %c0_2 = arith.constant 0 : index
    %1 = vector.load %arg1[%c0_1, %c0_2] : memref<128x1280xbf16, #tpu.memory_space<vmem>>, vector<128x1280xbf16>
    %cst = arith.constant dense<0.000000e+00> : vector<2x1280xf32>
    %2 = tpu.matmul %0, %1, %cst {dimension_numbers = #tpu.dot_dimension_numbers<[1], [0], [0], [1], [0, 0, 1, 1], [], []>} : vector<2x128xbf16>, vector<128x1280xbf16>, vector<2x1280xf32> -> vector<2x1280xf32>
    %c0_3 = arith.constant 0 : index
    %c0_4 = arith.constant 0 : index
    %3 = vector.load %arg2[%c0_3, %c0_4] : memref<1x1280xf32, #tpu.memory_space<vmem>>, vector<1x1280xf32>
    %4 = vector.broadcast %3 : vector<1x1280xf32> to vector<2x1280xf32>
    %5 = arith.addf %2, %4 : vector<2x1280xf32>
    %c0_5 = arith.constant 0 : index
    %c0_6 = arith.constant 0 : index
    %6 = vector.load %arg3[%c0_5, %c0_6] : memref<1x1280xf32, #tpu.memory_space<vmem>>, vector<1x1280xf32>
    %c0_7 = arith.constant 0 : index
    %c0_8 = arith.constant 0 : index
    %7 = vector.load %arg4[%c0_7, %c0_8] : memref<1x1280xf32, #tpu.memory_space<vmem>>, vector<1x1280xf32>
    %cst_9 = arith.constant dense<0.000000e+00> : vector<1280xf32>
    %8 = vector.multi_reduction <add>, %5, %cst_9 [0] : vector<2x1280xf32> to vector<1280xf32>
    %9 = vector.shape_cast %8 : vector<1280xf32> to vector<1x1280xf32>
    %cst_10 = arith.constant 2.000000e+00 : f32
    %10 = vector.broadcast %cst_10 : f32 to vector<1x1280xf32>
    %11 = arith.divf %9, %10 : vector<1x1280xf32>
    %12 = vector.broadcast %11 : vector<1x1280xf32> to vector<2x1280xf32>
    %13 = arith.subf %5, %12 : vector<2x1280xf32>
    %14 = arith.mulf %13, %13 : vector<2x1280xf32>
    %cst_11 = arith.constant dense<0.000000e+00> : vector<1280xf32>
    %15 = vector.multi_reduction <add>, %14, %cst_11 [0] : vector<2x1280xf32> to vector<1280xf32>
    %16 = vector.shape_cast %15 : vector<1280xf32> to vector<1x1280xf32>
    %cst_12 = arith.constant 2.000000e+00 : f32
    %17 = vector.broadcast %cst_12 : f32 to vector<1x1280xf32>
    %18 = arith.divf %16, %17 : vector<1x1280xf32>
    %cst_13 = arith.constant 9.99999974E-6 : f32
    %19 = vector.broadcast %cst_13 : f32 to vector<1x1280xf32>
    %20 = arith.addf %18, %19 : vector<1x1280xf32>
    %21 = math.rsqrt %20 : vector<1x1280xf32>
    %22 = vector.broadcast %21 : vector<1x1280xf32> to vector<2x1280xf32>
    %23 = arith.mulf %13, %22 : vector<2x1280xf32>
    %24 = vector.broadcast %6 : vector<1x1280xf32> to vector<2x1280xf32>
    %25 = arith.mulf %23, %24 : vector<2x1280xf32>
    %26 = vector.broadcast %7 : vector<1x1280xf32> to vector<2x1280xf32>
    %27 = arith.addf %25, %26 : vector<2x1280xf32>
    %cst_14 = arith.constant 0.000000e+00 : f32
    %28 = vector.broadcast %cst_14 : f32 to vector<2x1280xf32>
    %29 = arith.maximumf %27, %28 : vector<2x1280xf32>
    %30 = vector.extract_strided_slice %29 {offsets = [0, 0], sizes = [2, 256], strides = [1, 1]} : vector<2x1280xf32> to vector<2x256xf32>
    %c0_15 = arith.constant 0 : index
    %c0_16 = arith.constant 0 : index
    %31 = vector.load %arg5[%c0_15, %c0_16] : memref<256x128xbf16, #tpu.memory_space<vmem>>, vector<256x128xbf16>
    %32 = arith.truncf %30 : vector<2x256xf32> to vector<2x256xbf16>
    %cst_17 = arith.constant dense<0.000000e+00> : vector<2x128xf32>
    %33 = tpu.matmul %32, %31, %cst_17 {dimension_numbers = #tpu.dot_dimension_numbers<[1], [0], [0], [1], [0, 0, 1, 1], [], []>} : vector<2x256xbf16>, vector<256x128xbf16>, vector<2x128xf32> -> vector<2x128xf32>
    %c0_18 = arith.constant 0 : index
    %c0_19 = arith.constant 0 : index
    %34 = vector.load %arg9[%c0_18, %c0_19] : memref<1x512xf32, #tpu.memory_space<vmem>>, vector<1x128xf32>
    %35 = vector.broadcast %34 : vector<1x128xf32> to vector<2x128xf32>
    %36 = arith.addf %33, %35 : vector<2x128xf32>
    %c0_20 = arith.constant 0 : index
    %c0_21 = arith.constant 0 : index
    %37 = vector.load %arg10[%c0_20, %c0_21] : memref<2x512xf32, #tpu.memory_space<vmem>>, vector<2x128xf32>
    tpu.vector_store %arg10[%c0_20, %c0_21], %36 {strides = array<i32>} : memref<2x512xf32, #tpu.memory_space<vmem>>, vector<2x128xf32>,
    %38 = vector.extract_strided_slice %29 {offsets = [0, 256], sizes = [2, 256], strides = [1, 1]} : vector<2x1280xf32> to vector<2x256xf32>
    %c0_22 = arith.constant 0 : index
    %c0_23 = arith.constant 0 : index
    %39 = vector.load %arg6[%c0_22, %c0_23] : memref<256x128xbf16, #tpu.memory_space<vmem>>, vector<256x128xbf16>
    %40 = arith.truncf %38 : vector<2x256xf32> to vector<2x256xbf16>
    %cst_24 = arith.constant dense<0.000000e+00> : vector<2x128xf32>
    %41 = tpu.matmul %40, %39, %cst_24 {dimension_numbers = #tpu.dot_dimension_numbers<[1], [0], [0], [1], [0, 0, 1, 1], [], []>} : vector<2x256xbf16>, vector<256x128xbf16>, vector<2x128xf32> -> vector<2x128xf32>
    %c0_25 = arith.constant 0 : index
    %c128 = arith.constant 128 : index
    %42 = vector.load %arg9[%c0_25, %c128] : memref<1x512xf32, #tpu.memory_space<vmem>>, vector<1x128xf32>
    %43 = vector.broadcast %42 : vector<1x128xf32> to vector<2x128xf32>
    %44 = arith.addf %41, %43 : vector<2x128xf32>
    %c0_26 = arith.constant 0 : index
    %c128_27 = arith.constant 128 : index
    %45 = vector.load %arg10[%c0_26, %c128_27] : memref<2x512xf32, #tpu.memory_space<vmem>>, vector<2x128xf32>
    tpu.vector_store %arg10[%c0_26, %c128_27], %44 {strides = array<i32>} : memref<2x512xf32, #tpu.memory_space<vmem>>, vector<2x128xf32>,
    %46 = vector.extract_strided_slice %29 {offsets = [0, 512], sizes = [2, 384], strides = [1, 1]} : vector<2x1280xf32> to vector<2x384xf32>
    %c0_28 = arith.constant 0 : index
    %c0_29 = arith.constant 0 : index
    %47 = vector.load %arg7[%c0_28, %c0_29] : memref<384x128xbf16, #tpu.memory_space<vmem>>, vector<384x128xbf16>
    %48 = arith.truncf %46 : vector<2x384xf32> to vector<2x384xbf16>
    %cst_30 = arith.constant dense<0.000000e+00> : vector<2x128xf32>
    %49 = tpu.matmul %48, %47, %cst_30 {dimension_numbers = #tpu.dot_dimension_numbers<[1], [0], [0], [1], [0, 0, 1, 1], [], []>} : vector<2x384xbf16>, vector<384x128xbf16>, vector<2x128xf32> -> vector<2x128xf32>
    %c0_31 = arith.constant 0 : index
    %c256 = arith.constant 256 : index
    %50 = vector.load %arg9[%c0_31, %c256] : memref<1x512xf32, #tpu.memory_space<vmem>>, vector<1x128xf32>
    %51 = vector.broadcast %50 : vector<1x128xf32> to vector<2x128xf32>
    %52 = arith.addf %49, %51 : vector<2x128xf32>
    %c0_32 = arith.constant 0 : index
    %c256_33 = arith.constant 256 : index
    %53 = vector.load %arg10[%c0_32, %c256_33] : memref<2x512xf32, #tpu.memory_space<vmem>>, vector<2x128xf32>
    tpu.vector_store %arg10[%c0_32, %c256_33], %52 {strides = array<i32>} : memref<2x512xf32, #tpu.memory_space<vmem>>, vector<2x128xf32>,
    %54 = vector.extract_strided_slice %29 {offsets = [0, 896], sizes = [2, 384], strides = [1, 1]} : vector<2x1280xf32> to vector<2x384xf32>
    %c0_34 = arith.constant 0 : index
    %c0_35 = arith.constant 0 : index
    %55 = vector.load %arg8[%c0_34, %c0_35] : memref<384x128xbf16, #tpu.memory_space<vmem>>, vector<384x128xbf16>
    %56 = arith.truncf %54 : vector<2x384xf32> to vector<2x384xbf16>
    %cst_36 = arith.constant dense<0.000000e+00> : vector<2x128xf32>
    %57 = tpu.matmul %56, %55, %cst_36 {dimension_numbers = #tpu.dot_dimension_numbers<[1], [0], [0], [1], [0, 0, 1, 1], [], []>} : vector<2x384xbf16>, vector<384x128xbf16>, vector<2x128xf32> -> vector<2x128xf32>
    %c0_37 = arith.constant 0 : index
    %c384 = arith.constant 384 : index
    %58 = vector.load %arg9[%c0_37, %c384] : memref<1x512xf32, #tpu.memory_space<vmem>>, vector<1x128xf32>
    %59 = vector.broadcast %58 : vector<1x128xf32> to vector<2x128xf32>
    %60 = arith.addf %57, %59 : vector<2x128xf32>
    %c0_38 = arith.constant 0 : index
    %c384_39 = arith.constant 384 : index
    %61 = vector.load %arg10[%c0_38, %c384_39] : memref<2x512xf32, #tpu.memory_space<vmem>>, vector<2x128xf32>
    tpu.vector_store %arg10[%c0_38, %c384_39], %60 {strides = array<i32>} : memref<2x512xf32, #tpu.memory_space<vmem>>, vector<2x128xf32>,
    return
  }
}

module attributes {stable_mosaic.version = 11 : i64} {
  func.func @_lstm_seq_kernel(%arg0: memref<3x8x512xbf16, #tpu.memory_space<vmem>>, %arg1: memref<8x128xf32, #tpu.memory_space<vmem>>, %arg2: memref<8x128xf32, #tpu.memory_space<vmem>>, %arg3: memref<8x128xf32, #tpu.memory_space<vmem>>, %arg4: memref<8x128xf32, #tpu.memory_space<vmem>>, %arg5: memref<128x512xbf16, #tpu.memory_space<vmem>>, %arg6: memref<256x512xbf16, #tpu.memory_space<vmem>>, %arg7: memref<1x512xf32, #tpu.memory_space<vmem>>, %arg8: memref<3x8x128xbf16, #tpu.memory_space<vmem>>) attributes {dimension_semantics = [], scalar_prefetch = 0 : i64, scratch_operands = 0 : i64, tpu.core_type = #tpu.core_type<tc>} {
    %c0 = arith.constant 0 : index
    %c0_0 = arith.constant 0 : index
    %0 = vector.load %arg1[%c0, %c0_0] : memref<8x128xf32, #tpu.memory_space<vmem>>, vector<8x128xf32>
    %c0_1 = arith.constant 0 : index
    %c0_2 = arith.constant 0 : index
    %1 = vector.load %arg2[%c0_1, %c0_2] : memref<8x128xf32, #tpu.memory_space<vmem>>, vector<8x128xf32>
    %c0_3 = arith.constant 0 : index
    %c0_4 = arith.constant 0 : index
    %2 = vector.load %arg3[%c0_3, %c0_4] : memref<8x128xf32, #tpu.memory_space<vmem>>, vector<8x128xf32>
    %c0_5 = arith.constant 0 : index
    %c0_6 = arith.constant 0 : index
    %3 = vector.load %arg4[%c0_5, %c0_6] : memref<8x128xf32, #tpu.memory_space<vmem>>, vector<8x128xf32>
    %c0_i32 = arith.constant 0 : i32
    %c3_i32 = arith.constant 3 : i32
    %4 = arith.addi %c0_i32, %c3_i32 : i32
    %c1_i32 = arith.constant 1 : i32
    %5:4 = scf.for %arg9 = %c0_i32 to %4 step %c1_i32 iter_args(%arg10 = %0, %arg11 = %1, %arg12 = %2, %arg13 = %3) -> (vector<8x128xf32>, vector<8x128xf32>, vector<8x128xf32>, vector<8x128xf32>)  : i32 {
      %6 = arith.index_cast %arg9 : i32 to index
      %c0_8 = arith.constant 0 : index
      %c0_9 = arith.constant 0 : index
      %7 = vector.load %arg0[%6, %c0_8, %c0_9] : memref<3x8x512xbf16, #tpu.memory_space<vmem>>, vector<1x8x512xbf16>
      %8 = vector.shape_cast %7 : vector<1x8x512xbf16> to vector<8x512xbf16>
      %9 = arith.extf %8 : vector<8x512xbf16> to vector<8x512xf32>
      %c0_10 = arith.constant 0 : index
      %c0_11 = arith.constant 0 : index
      %10 = vector.load %arg5[%c0_10, %c0_11] : memref<128x512xbf16, #tpu.memory_space<vmem>>, vector<128x512xbf16>
      %11 = arith.truncf %arg10 : vector<8x128xf32> to vector<8x128xbf16>
      %cst = arith.constant dense<0.000000e+00> : vector<8x512xf32>
      %12 = tpu.matmul %11, %10, %cst {dimension_numbers = #tpu.dot_dimension_numbers<[1], [0], [0], [1], [0, 0, 1, 1], [], []>} : vector<8x128xbf16>, vector<128x512xbf16>, vector<8x512xf32> -> vector<8x512xf32>
      %13 = arith.addf %9, %12 : vector<8x512xf32>
      %14 = vector.extract_strided_slice %13 {offsets = [0, 0], sizes = [8, 128], strides = [1, 1]} : vector<8x512xf32> to vector<8x128xf32>
      %15 = arith.negf %14 : vector<8x128xf32>
      %16 = math.exp %15 : vector<8x128xf32>
      %cst_12 = arith.constant 1.000000e+00 : f32
      %17 = vector.broadcast %cst_12 : f32 to vector<8x128xf32>
      %18 = arith.addf %17, %16 : vector<8x128xf32>
      %19 = arith.divf %17, %18 : vector<8x128xf32>
      %20 = vector.extract_strided_slice %13 {offsets = [0, 128], sizes = [8, 128], strides = [1, 1]} : vector<8x512xf32> to vector<8x128xf32>
      %21 = arith.negf %20 : vector<8x128xf32>
      %22 = math.exp %21 : vector<8x128xf32>
      %cst_13 = arith.constant 1.000000e+00 : f32
      %23 = vector.broadcast %cst_13 : f32 to vector<8x128xf32>
      %24 = arith.addf %23, %22 : vector<8x128xf32>
      %25 = arith.divf %23, %24 : vector<8x128xf32>
      %26 = vector.extract_strided_slice %13 {offsets = [0, 256], sizes = [8, 128], strides = [1, 1]} : vector<8x512xf32> to vector<8x128xf32>
      %27 = math.tanh %26 : vector<8x128xf32>
      %28 = vector.extract_strided_slice %13 {offsets = [0, 384], sizes = [8, 128], strides = [1, 1]} : vector<8x512xf32> to vector<8x128xf32>
      %29 = arith.negf %28 : vector<8x128xf32>
      %30 = math.exp %29 : vector<8x128xf32>
      %cst_14 = arith.constant 1.000000e+00 : f32
      %31 = vector.broadcast %cst_14 : f32 to vector<8x128xf32>
      %32 = arith.addf %31, %30 : vector<8x128xf32>
      %33 = arith.divf %31, %32 : vector<8x128xf32>
      %34 = arith.mulf %25, %arg11 : vector<8x128xf32>
      %35 = arith.mulf %19, %27 : vector<8x128xf32>
      %36 = arith.addf %34, %35 : vector<8x128xf32>
      %37 = math.tanh %36 : vector<8x128xf32>
      %38 = arith.mulf %33, %37 : vector<8x128xf32>
      %39 = tpu.concatenate %38, %arg12 in 1 : vector<8x128xf32>, vector<8x128xf32> -> vector<8x256xf32>
      %c0_15 = arith.constant 0 : index
      %c0_16 = arith.constant 0 : index
      %40 = vector.load %arg6[%c0_15, %c0_16] : memref<256x512xbf16, #tpu.memory_space<vmem>>, vector<256x512xbf16>
      %41 = arith.truncf %39 : vector<8x256xf32> to vector<8x256xbf16>
      %cst_17 = arith.constant dense<0.000000e+00> : vector<8x512xf32>
      %42 = tpu.matmul %41, %40, %cst_17 {dimension_numbers = #tpu.dot_dimension_numbers<[1], [0], [0], [1], [0, 0, 1, 1], [], []>} : vector<8x256xbf16>, vector<256x512xbf16>, vector<8x512xf32> -> vector<8x512xf32>
      %c0_18 = arith.constant 0 : index
      %c0_19 = arith.constant 0 : index
      %43 = vector.load %arg7[%c0_18, %c0_19] : memref<1x512xf32, #tpu.memory_space<vmem>>, vector<1x512xf32>
      %44 = vector.broadcast %43 : vector<1x512xf32> to vector<8x512xf32>
      %45 = arith.addf %42, %44 : vector<8x512xf32>
      %46 = vector.extract_strided_slice %45 {offsets = [0, 0], sizes = [8, 128], strides = [1, 1]} : vector<8x512xf32> to vector<8x128xf32>
      %47 = arith.negf %46 : vector<8x128xf32>
      %48 = math.exp %47 : vector<8x128xf32>
      %cst_20 = arith.constant 1.000000e+00 : f32
      %49 = vector.broadcast %cst_20 : f32 to vector<8x128xf32>
      %50 = arith.addf %49, %48 : vector<8x128xf32>
      %51 = arith.divf %49, %50 : vector<8x128xf32>
      %52 = vector.extract_strided_slice %45 {offsets = [0, 128], sizes = [8, 128], strides = [1, 1]} : vector<8x512xf32> to vector<8x128xf32>
      %53 = arith.negf %52 : vector<8x128xf32>
      %54 = math.exp %53 : vector<8x128xf32>
      %cst_21 = arith.constant 1.000000e+00 : f32
      %55 = vector.broadcast %cst_21 : f32 to vector<8x128xf32>
      %56 = arith.addf %55, %54 : vector<8x128xf32>
      %57 = arith.divf %55, %56 : vector<8x128xf32>
      %58 = vector.extract_strided_slice %45 {offsets = [0, 256], sizes = [8, 128], strides = [1, 1]} : vector<8x512xf32> to vector<8x128xf32>
      %59 = math.tanh %58 : vector<8x128xf32>
      %60 = vector.extract_strided_slice %45 {offsets = [0, 384], sizes = [8, 128], strides = [1, 1]} : vector<8x512xf32> to vector<8x128xf32>
      %61 = arith.negf %60 : vector<8x128xf32>
      %62 = math.exp %61 : vector<8x128xf32>
      %cst_22 = arith.constant 1.000000e+00 : f32
      %63 = vector.broadcast %cst_22 : f32 to vector<8x128xf32>
      %64 = arith.addf %63, %62 : vector<8x128xf32>
      %65 = arith.divf %63, %64 : vector<8x128xf32>
      %66 = arith.mulf %57, %arg13 : vector<8x128xf32>
      %67 = arith.mulf %51, %59 : vector<8x128xf32>
      %68 = arith.addf %66, %67 : vector<8x128xf32>
      %69 = math.tanh %68 : vector<8x128xf32>
      %70 = arith.mulf %65, %69 : vector<8x128xf32>
      %71 = arith.truncf %70 : vector<8x128xf32> to vector<8x128xbf16>
      %72 = arith.index_cast %arg9 : i32 to index
      %c0_23 = arith.constant 0 : index
      %c0_24 = arith.constant 0 : index
      %73 = vector.load %arg8[%72, %c0_23, %c0_24] : memref<3x8x128xbf16, #tpu.memory_space<vmem>>, vector<1x8x128xbf16>
      %74 = vector.shape_cast %73 : vector<1x8x128xbf16> to vector<8x128xbf16>
      %75 = vector.shape_cast %71 : vector<8x128xbf16> to vector<1x8x128xbf16>
      tpu.vector_store %arg8[%72, %c0_23, %c0_24], %75 {strides = array<i32>} : memref<3x8x128xbf16, #tpu.memory_space<vmem>>, vector<1x8x128xbf16>,
      scf.yield %38, %36, %70, %68 : vector<8x128xf32>, vector<8x128xf32>, vector<8x128xf32>, vector<8x128xf32>
    }
    %c3_i32_7 = arith.constant 3 : i32
    return
  }
}

module attributes {stable_mosaic.version = 11 : i64} {
  func.func @_xyz_kernel(%arg0: i32, %arg1: memref<1x2x128xbf16, #tpu.memory_space<vmem>>, %arg2: memref<128x1920xbf16, #tpu.memory_space<vmem>>, %arg3: memref<1x1920xf32, #tpu.memory_space<vmem>>, %arg4: memref<1x1920xf32, #tpu.memory_space<vmem>>, %arg5: memref<1x1920xf32, #tpu.memory_space<vmem>>, %arg6: memref<3x640x640xbf16, #tpu.memory_space<vmem>>, %arg7: memref<1x1920xf32, #tpu.memory_space<vmem>>, %arg8: memref<1x2x1920xf32, #tpu.memory_space<vmem>>) attributes {dimension_semantics = [#tpu.dimension_semantics<parallel>], iteration_bounds = array<i64: 3>, scalar_prefetch = 0 : i64, scratch_operands = 0 : i64, tpu.core_type = #tpu.core_type<tc>, window_params = [{transform_indices = @transform_0, window_bounds = array<i64: 1, 2, 128>}, {pipeline_mode = #tpu.pipeline_mode<synchronous>, transform_indices = @transform_1, window_bounds = array<i64: 128, 1920>}, {pipeline_mode = #tpu.pipeline_mode<synchronous>, transform_indices = @transform_2, window_bounds = array<i64: 1, 1920>}, {pipeline_mode = #tpu.pipeline_mode<synchronous>, transform_indices = @transform_3, window_bounds = array<i64: 1, 1920>}, {pipeline_mode = #tpu.pipeline_mode<synchronous>, transform_indices = @transform_4, window_bounds = array<i64: 1, 1920>}, {pipeline_mode = #tpu.pipeline_mode<synchronous>, transform_indices = @transform_5, window_bounds = array<i64: 3, 640, 640>}, {pipeline_mode = #tpu.pipeline_mode<synchronous>, transform_indices = @transform_6, window_bounds = array<i64: 1, 1920>}, {transform_indices = @transform_7, window_bounds = array<i64: 1, 2, 1920>}]} {
    %c0 = arith.constant 0 : index
    %c0_0 = arith.constant 0 : index
    %c0_1 = arith.constant 0 : index
    %0 = vector.load %arg1[%c0, %c0_0, %c0_1] : memref<1x2x128xbf16, #tpu.memory_space<vmem>>, vector<1x2x128xbf16>
    %1 = vector.shape_cast %0 : vector<1x2x128xbf16> to vector<2x128xbf16>
    %c0_2 = arith.constant 0 : index
    %c0_3 = arith.constant 0 : index
    %2 = vector.load %arg2[%c0_2, %c0_3] : memref<128x1920xbf16, #tpu.memory_space<vmem>>, vector<128x1920xbf16>
    %cst = arith.constant dense<0.000000e+00> : vector<2x1920xf32>
    %3 = tpu.matmul %1, %2, %cst {dimension_numbers = #tpu.dot_dimension_numbers<[1], [0], [0], [1], [0, 0, 1, 1], [], []>} : vector<2x128xbf16>, vector<128x1920xbf16>, vector<2x1920xf32> -> vector<2x1920xf32>
    %c0_4 = arith.constant 0 : index
    %c0_5 = arith.constant 0 : index
    %4 = vector.load %arg3[%c0_4, %c0_5] : memref<1x1920xf32, #tpu.memory_space<vmem>>, vector<1x1920xf32>
    %5 = vector.broadcast %4 : vector<1x1920xf32> to vector<2x1920xf32>
    %6 = arith.addf %3, %5 : vector<2x1920xf32>
    %c0_6 = arith.constant 0 : index
    %c0_7 = arith.constant 0 : index
    %7 = vector.load %arg4[%c0_6, %c0_7] : memref<1x1920xf32, #tpu.memory_space<vmem>>, vector<1x1920xf32>
    %c0_8 = arith.constant 0 : index
    %c0_9 = arith.constant 0 : index
    %8 = vector.load %arg5[%c0_8, %c0_9] : memref<1x1920xf32, #tpu.memory_space<vmem>>, vector<1x1920xf32>
    %cst_10 = arith.constant dense<0.000000e+00> : vector<1920xf32>
    %9 = vector.multi_reduction <add>, %6, %cst_10 [0] : vector<2x1920xf32> to vector<1920xf32>
    %10 = vector.shape_cast %9 : vector<1920xf32> to vector<1x1920xf32>
    %cst_11 = arith.constant 2.000000e+00 : f32
    %11 = vector.broadcast %cst_11 : f32 to vector<1x1920xf32>
    %12 = arith.divf %10, %11 : vector<1x1920xf32>
    %13 = vector.broadcast %12 : vector<1x1920xf32> to vector<2x1920xf32>
    %14 = arith.subf %6, %13 : vector<2x1920xf32>
    %15 = arith.mulf %14, %14 : vector<2x1920xf32>
    %cst_12 = arith.constant dense<0.000000e+00> : vector<1920xf32>
    %16 = vector.multi_reduction <add>, %15, %cst_12 [0] : vector<2x1920xf32> to vector<1920xf32>
    %17 = vector.shape_cast %16 : vector<1920xf32> to vector<1x1920xf32>
    %cst_13 = arith.constant 2.000000e+00 : f32
    %18 = vector.broadcast %cst_13 : f32 to vector<1x1920xf32>
    %19 = arith.divf %17, %18 : vector<1x1920xf32>
    %cst_14 = arith.constant 9.99999974E-6 : f32
    %20 = vector.broadcast %cst_14 : f32 to vector<1x1920xf32>
    %21 = arith.addf %19, %20 : vector<1x1920xf32>
    %22 = math.rsqrt %21 : vector<1x1920xf32>
    %23 = vector.broadcast %22 : vector<1x1920xf32> to vector<2x1920xf32>
    %24 = arith.mulf %14, %23 : vector<2x1920xf32>
    %25 = vector.broadcast %7 : vector<1x1920xf32> to vector<2x1920xf32>
    %26 = arith.mulf %24, %25 : vector<2x1920xf32>
    %27 = vector.broadcast %8 : vector<1x1920xf32> to vector<2x1920xf32>
    %28 = arith.addf %26, %27 : vector<2x1920xf32>
    %cst_15 = arith.constant 0.000000e+00 : f32
    %29 = vector.broadcast %cst_15 : f32 to vector<2x1920xf32>
    %30 = arith.maximumf %28, %29 : vector<2x1920xf32>
    %31 = vector.extract_strided_slice %30 {offsets = [0, 0], sizes = [2, 640], strides = [1, 1]} : vector<2x1920xf32> to vector<2x640xf32>
    %c0_16 = arith.constant 0 : index
    %c0_17 = arith.constant 0 : index
    %c0_18 = arith.constant 0 : index
    %32 = vector.load %arg6[%c0_16, %c0_17, %c0_18] : memref<3x640x640xbf16, #tpu.memory_space<vmem>>, vector<1x640x640xbf16>
    %33 = vector.shape_cast %32 : vector<1x640x640xbf16> to vector<640x640xbf16>
    %34 = arith.truncf %31 : vector<2x640xf32> to vector<2x640xbf16>
    %cst_19 = arith.constant dense<0.000000e+00> : vector<2x640xf32>
    %35 = tpu.matmul %34, %33, %cst_19 {dimension_numbers = #tpu.dot_dimension_numbers<[1], [0], [0], [1], [0, 0, 1, 1], [], []>} : vector<2x640xbf16>, vector<640x640xbf16>, vector<2x640xf32> -> vector<2x640xf32>
    %c0_20 = arith.constant 0 : index
    %c0_21 = arith.constant 0 : index
    %36 = vector.load %arg7[%c0_20, %c0_21] : memref<1x1920xf32, #tpu.memory_space<vmem>>, vector<1x640xf32>
    %37 = vector.broadcast %36 : vector<1x640xf32> to vector<2x640xf32>
    %38 = arith.addf %35, %37 : vector<2x640xf32>
    %c0_22 = arith.constant 0 : index
    %c0_23 = arith.constant 0 : index
    %c0_24 = arith.constant 0 : index
    %39 = vector.load %arg8[%c0_22, %c0_23, %c0_24] : memref<1x2x1920xf32, #tpu.memory_space<vmem>>, vector<1x2x640xf32>
    %40 = vector.shape_cast %39 : vector<1x2x640xf32> to vector<2x640xf32>
    %41 = vector.shape_cast %38 : vector<2x640xf32> to vector<1x2x640xf32>
    tpu.vector_store %arg8[%c0_22, %c0_23, %c0_24], %41 {strides = array<i32>} : memref<1x2x1920xf32, #tpu.memory_space<vmem>>, vector<1x2x640xf32>,
    %42 = vector.extract_strided_slice %30 {offsets = [0, 640], sizes = [2, 640], strides = [1, 1]} : vector<2x1920xf32> to vector<2x640xf32>
    %c1 = arith.constant 1 : index
    %c0_25 = arith.constant 0 : index
    %c0_26 = arith.constant 0 : index
    %43 = vector.load %arg6[%c1, %c0_25, %c0_26] : memref<3x640x640xbf16, #tpu.memory_space<vmem>>, vector<1x640x640xbf16>
    %44 = vector.shape_cast %43 : vector<1x640x640xbf16> to vector<640x640xbf16>
    %45 = arith.truncf %42 : vector<2x640xf32> to vector<2x640xbf16>
    %cst_27 = arith.constant dense<0.000000e+00> : vector<2x640xf32>
    %46 = tpu.matmul %45, %44, %cst_27 {dimension_numbers = #tpu.dot_dimension_numbers<[1], [0], [0], [1], [0, 0, 1, 1], [], []>} : vector<2x640xbf16>, vector<640x640xbf16>, vector<2x640xf32> -> vector<2x640xf32>
    %c0_28 = arith.constant 0 : index
    %c640 = arith.constant 640 : index
    %47 = vector.load %arg7[%c0_28, %c640] : memref<1x1920xf32, #tpu.memory_space<vmem>>, vector<1x640xf32>
    %48 = vector.broadcast %47 : vector<1x640xf32> to vector<2x640xf32>
    %49 = arith.addf %46, %48 : vector<2x640xf32>
    %c0_29 = arith.constant 0 : index
    %c0_30 = arith.constant 0 : index
    %c640_31 = arith.constant 640 : index
    %50 = vector.load %arg8[%c0_29, %c0_30, %c640_31] : memref<1x2x1920xf32, #tpu.memory_space<vmem>>, vector<1x2x640xf32>
    %51 = vector.shape_cast %50 : vector<1x2x640xf32> to vector<2x640xf32>
    %52 = vector.shape_cast %49 : vector<2x640xf32> to vector<1x2x640xf32>
    tpu.vector_store %arg8[%c0_29, %c0_30, %c640_31], %52 {strides = array<i32>} : memref<1x2x1920xf32, #tpu.memory_space<vmem>>, vector<1x2x640xf32>,
    %53 = vector.extract_strided_slice %30 {offsets = [0, 1280], sizes = [2, 640], strides = [1, 1]} : vector<2x1920xf32> to vector<2x640xf32>
    %c2 = arith.constant 2 : index
    %c0_32 = arith.constant 0 : index
    %c0_33 = arith.constant 0 : index
    %54 = vector.load %arg6[%c2, %c0_32, %c0_33] : memref<3x640x640xbf16, #tpu.memory_space<vmem>>, vector<1x640x640xbf16>
    %55 = vector.shape_cast %54 : vector<1x640x640xbf16> to vector<640x640xbf16>
    %56 = arith.truncf %53 : vector<2x640xf32> to vector<2x640xbf16>
    %cst_34 = arith.constant dense<0.000000e+00> : vector<2x640xf32>
    %57 = tpu.matmul %56, %55, %cst_34 {dimension_numbers = #tpu.dot_dimension_numbers<[1], [0], [0], [1], [0, 0, 1, 1], [], []>} : vector<2x640xbf16>, vector<640x640xbf16>, vector<2x640xf32> -> vector<2x640xf32>
    %c0_35 = arith.constant 0 : index
    %c1280 = arith.constant 1280 : index
    %58 = vector.load %arg7[%c0_35, %c1280] : memref<1x1920xf32, #tpu.memory_space<vmem>>, vector<1x640xf32>
    %59 = vector.broadcast %58 : vector<1x640xf32> to vector<2x640xf32>
    %60 = arith.addf %57, %59 : vector<2x640xf32>
    %c0_36 = arith.constant 0 : index
    %c0_37 = arith.constant 0 : index
    %c1280_38 = arith.constant 1280 : index
    %61 = vector.load %arg8[%c0_36, %c0_37, %c1280_38] : memref<1x2x1920xf32, #tpu.memory_space<vmem>>, vector<1x2x640xf32>
    %62 = vector.shape_cast %61 : vector<1x2x640xf32> to vector<2x640xf32>
    %63 = vector.shape_cast %60 : vector<2x640xf32> to vector<1x2x640xf32>
    tpu.vector_store %arg8[%c0_36, %c0_37, %c1280_38], %63 {strides = array<i32>} : memref<1x2x1920xf32, #tpu.memory_space<vmem>>, vector<1x2x640xf32>,
    return
  }
  func.func @transform_0(%arg0: i32) -> (i32, i32, i32) {
    %c0_i32 = arith.constant 0 : i32
    %c0_i32_0 = arith.constant 0 : i32
    %c0_i32_1 = arith.constant 0 : i32
    return %arg0, %c0_i32, %c0_i32_0 : i32, i32, i32
  }
  func.func @transform_1(%arg0: i32) -> (i32, i32) {
    %c0_i32 = arith.constant 0 : i32
    %c0_i32_0 = arith.constant 0 : i32
    %c0_i32_1 = arith.constant 0 : i32
    return %c0_i32, %c0_i32_0 : i32, i32
  }
  func.func @transform_2(%arg0: i32) -> (i32, i32) {
    %c0_i32 = arith.constant 0 : i32
    %c0_i32_0 = arith.constant 0 : i32
    %c0_i32_1 = arith.constant 0 : i32
    return %c0_i32, %c0_i32_0 : i32, i32
  }
  func.func @transform_3(%arg0: i32) -> (i32, i32) {
    %c0_i32 = arith.constant 0 : i32
    %c0_i32_0 = arith.constant 0 : i32
    %c0_i32_1 = arith.constant 0 : i32
    return %c0_i32, %c0_i32_0 : i32, i32
  }
  func.func @transform_4(%arg0: i32) -> (i32, i32) {
    %c0_i32 = arith.constant 0 : i32
    %c0_i32_0 = arith.constant 0 : i32
    %c0_i32_1 = arith.constant 0 : i32
    return %c0_i32, %c0_i32_0 : i32, i32
  }
  func.func @transform_5(%arg0: i32) -> (i32, i32, i32) {
    %c0_i32 = arith.constant 0 : i32
    %c0_i32_0 = arith.constant 0 : i32
    %c0_i32_1 = arith.constant 0 : i32
    %c0_i32_2 = arith.constant 0 : i32
    return %c0_i32, %c0_i32_0, %c0_i32_1 : i32, i32, i32
  }
  func.func @transform_6(%arg0: i32) -> (i32, i32) {
    %c0_i32 = arith.constant 0 : i32
    %c0_i32_0 = arith.constant 0 : i32
    %c0_i32_1 = arith.constant 0 : i32
    return %c0_i32, %c0_i32_0 : i32, i32
  }
  func.func @transform_7(%arg0: i32) -> (i32, i32, i32) {
    %c0_i32 = arith.constant 0 : i32
    %c0_i32_0 = arith.constant 0 : i32
    %c0_i32_1 = arith.constant 0 : i32
    return %arg0, %c0_i32, %c0_i32_0 : i32, i32, i32
  }
}

</mosaic_0001>

<llo_original>
// kernel: _lambda_.5
$region0: #{_lambda_.5}
  #allocation0 [shape = 'u32[]', space=smem, size = 0x4, offset = 0x4, fixed_abs, tag = 'smem constant byte address 0x4 - core index']
  #allocation1 [shape = 'u32[72,128]{1,0:T(1,128)}', space=vmem, size = 0x9000, scoped, tag = 'internal scratch']
  %s0 = inlined_call_operand.vmem [shape: bf16[6,64,256], index: 0, kind: input, shape index: {}]
  %s1 = inlined_call_operand.vmem [shape: bf16[256,128], index: 1, kind: input, shape index: {}]
  %s2 = inlined_call_operand.vmem [shape: bf16[128,128], index: 2, kind: input, shape index: {}]
  %s3 = inlined_call_operand.vmem [shape: f32[1,128], index: 3, kind: input, shape index: {}]
  %s4 = inlined_call_operand.vmem [shape: bf16[6,1,128], index: 4, kind: output, shape index: {}]
  %s5 = sld [smem:[#allocation0]]
  $region49: #{_lambda_.5} parent=0
    _
  %s7 = ssub.s32 1, %s5
  %s8 = scalar_select 0, %s7, %s5
  loop: start=0, step=1, limit=8
  $region2: #{_lambda_.5} parent=0 // loop_pre_header
    _
  $region3: #{_lambda_.5} parent=0 // loop_header
    %s10 = sphi 0, %s14
    %p11 = scmp.ge.s32.totalorder %s10, 8
    %s20 = sphi 0, %s22
    %s23 = sphi 0, %s20
    %s24 = sphi 0, %s23
    %s40 = sphi 0, %s24
    %s44 = sphi 0, %s44
    %s46 = sphi 0, %s44
    %s47 = sphi 0, %s46
    %s61 = sphi 0, %s47
    %s65 = sphi 0, %s65
    %s67 = sphi 0, %s65
    %s68 = sphi 0, %s67
    %s82 = sphi 0, %s68
    %s86 = sphi 0, %s86
    %s88 = sphi 0, %s86
    %s89 = sphi 0, %s88
    %s103 = sphi 0, %s89
    %s109 = sphi 0, %s111
    %s112 = sphi 0, %s109
    %s113 = sphi 0, %s112
    %s129 = sphi 0, %s113
  $region4: #{_lambda_.5} parent=0 // loop_header_branch
    %13 = sbr.rel (%p11) target = $region8
  $region5: #{_lambda_.5} parent=0 // loop_body
    %s15 = ssub.s32 %s10, 1
    %s16 = ssub.s32 %s10, 2
    %s17 = sadd.s32 %s10, 1
    %s18 = ssub.s32 %s10, %s17
    %p19 = scmp.eq.s32.totalorder %s18, 0
    %s21 = sadd.s32 %s20, 1
    %s22 = scalar_select %p19, %s20, %s21
    %p25 = pneg %p19
    %p26 = scmp.eq.s32.totalorder %s10, 5
    %p27 = por %p25, %p26
    %p28 = scmp.ne.s32.totalorder %s20, %s23
    %p29 = scmp.eq.s32.totalorder %s10, 0
    %p30 = por %p28, %p29
    %p31 = scmp.ne.s32.totalorder %s20, %s23
    %p32 = scmp.eq.s32.totalorder %s15, 5
    %p33 = por %p31, %p32
    %p34 = scmp.ne.s32.totalorder %s23, %s24
    %p35 = scmp.eq.s32.totalorder %s15, 0
    %p36 = por %p34, %p35
    %p37 = scmp.ne.s32.totalorder %s23, %s24
    %p38 = scmp.eq.s32.totalorder %s16, 5
    %p39 = por %p37, %p38
    %p41 = scmp.ne.s32.totalorder %s24, %s40
    %p42 = scmp.eq.s32.totalorder %s16, 0
    %p43 = por %p41, %p42
    %s45 = sadd.s32 %s44, 1
    %p48 = scmp.eq.s32.totalorder %s10, 5
    %p49 = scmp.ne.s32.totalorder %s44, %s46
    %p50 = scmp.eq.s32.totalorder %s10, 0
    %p51 = por %p49, %p50
    %p52 = scmp.ne.s32.totalorder %s44, %s46
    %p53 = scmp.eq.s32.totalorder %s15, 5
    %p54 = por %p52, %p53
    %p55 = scmp.ne.s32.totalorder %s46, %s47
    %p56 = scmp.eq.s32.totalorder %s15, 0
    %p57 = por %p55, %p56
    %p58 = scmp.ne.s32.totalorder %s46, %s47
    %p59 = scmp.eq.s32.totalorder %s16, 5
    %p60 = por %p58, %p59
    %p62 = scmp.ne.s32.totalorder %s47, %s61
    %p63 = scmp.eq.s32.totalorder %s16, 0
    %p64 = por %p62, %p63
    %s66 = sadd.s32 %s65, 1
    %p69 = scmp.eq.s32.totalorder %s10, 5
    %p70 = scmp.ne.s32.totalorder %s65, %s67
    %p71 = scmp.eq.s32.totalorder %s10, 0
    %p72 = por %p70, %p71
    %p73 = scmp.ne.s32.totalorder %s65, %s67
    %p74 = scmp.eq.s32.totalorder %s15, 5
    %p75 = por %p73, %p74
    %p76 = scmp.ne.s32.totalorder %s67, %s68
    %p77 = scmp.eq.s32.totalorder %s15, 0
    %p78 = por %p76, %p77
    %p79 = scmp.ne.s32.totalorder %s67, %s68
    %p80 = scmp.eq.s32.totalorder %s16, 5
    %p81 = por %p79, %p80
    %p83 = scmp.ne.s32.totalorder %s68, %s82
    %p84 = scmp.eq.s32.totalorder %s16, 0
    %p85 = por %p83, %p84
    %s87 = sadd.s32 %s86, 1
    %p90 = scmp.eq.s32.totalorder %s10, 5
    %p91 = scmp.ne.s32.totalorder %s86, %s88
    %p92 = scmp.eq.s32.totalorder %s10, 0
    %p93 = por %p91, %p92
    %p94 = scmp.ne.s32.totalorder %s86, %s88
    %p95 = scmp.eq.s32.totalorder %s15, 5
    %p96 = por %p94, %p95
    %p97 = scmp.ne.s32.totalorder %s88, %s89
    %p98 = scmp.eq.s32.totalorder %s15, 0
    %p99 = por %p97, %p98
    %p100 = scmp.ne.s32.totalorder %s88, %s89
    %p101 = scmp.eq.s32.totalorder %s16, 5
    %p102 = por %p100, %p101
    %p104 = scmp.ne.s32.totalorder %s89, %s103
    %p105 = scmp.eq.s32.totalorder %s16, 0
    %p106 = por %p104, %p105
    %s107 = ssub.s32 %s10, %s17
    %p108 = scmp.eq.s32.totalorder %s107, 0
    %s110 = sadd.s32 %s109, 1
    %s111 = scalar_select %p108, %s109, %s110
    %p114 = pneg %p108
    %p115 = scmp.eq.s32.totalorder %s10, 5
    %p116 = por %p114, %p115
    %p117 = scmp.ne.s32.totalorder %s109, %s112
    %p118 = scmp.eq.s32.totalorder %s10, 0
    %p119 = por %p117, %p118
    %p120 = scmp.ne.s32.totalorder %s109, %s112
    %p121 = scmp.eq.s32.totalorder %s15, 5
    %p122 = por %p120, %p121
    %p123 = scmp.ne.s32.totalorder %s112, %s113
    %p124 = scmp.eq.s32.totalorder %s15, 0
    %p125 = por %p123, %p124
    %p126 = scmp.ne.s32.totalorder %s112, %s113
    %p127 = scmp.eq.s32.totalorder %s16, 5
    %p128 = por %p126, %p127
    %p130 = scmp.ne.s32.totalorder %s113, %s129
    %p131 = scmp.eq.s32.totalorder %s16, 0
    %p132 = por %p130, %p131
    %p133 = scmp.le.s32.totalorder 1, %s10
    %p134 = scmp.lt.s32.totalorder %s10, 7
    %p135 = pnand %p133, %p134
    %p136 = pneg %p135
    // Predicated region
    $region9: #{_lambda_.5} parent=5 // pred_check
      _
    $region10: #{_lambda_.5} parent=5 // pred_check_branch
      %138 = sbr.rel (%p135) target = $region12
    $region11: #{_lambda_.5} parent=5 // pred_region
      %s139 = ssub.s32 %s10, 1
      // Predicated region
      $region13: #{_lambda_.5} parent=11 // pred_check
        %p140 = pneg %p57
      $region14: #{_lambda_.5} parent=11 // pred_check_branch
        %142 = sbr.rel (%p140) target = $region16
      $region15: #{_lambda_.5} parent=11 // pred_region
        _
      $region16: #{_lambda_.5} parent=11 // pred_fallthru
        _
      // Predicated region
      $region17: #{_lambda_.5} parent=11 // pred_check
        %p143 = pneg %p78
      $region18: #{_lambda_.5} parent=11 // pred_check_branch
        %145 = sbr.rel (%p143) target = $region20
      $region19: #{_lambda_.5} parent=11 // pred_region
        _
      $region20: #{_lambda_.5} parent=11 // pred_fallthru
        _
      // Predicated region
      $region21: #{_lambda_.5} parent=11 // pred_check
        %p146 = pneg %p99
      $region22: #{_lambda_.5} parent=11 // pred_check_branch
        %148 = sbr.rel (%p146) target = $region24
      $region23: #{_lambda_.5} parent=11 // pred_region
        _
      $region24: #{_lambda_.5} parent=11 // pred_fallthru
        _
    $region12: #{_lambda_.5} parent=5 // pred_fallthru
      _
    %p149 = scmp.lt.s32.totalorder %s10, 6
    // Predicated region
    $region25: #{_lambda_.5} parent=5 // pred_check
      %p150 = pneg %p149
    $region26: #{_lambda_.5} parent=5 // pred_check_branch
      %152 = sbr.rel (%p150) target = $region28
    $region27: #{_lambda_.5} parent=5 // pred_region
      // Predicated region
      $region29: #{_lambda_.5} parent=27 // pred_check
        %p153 = pneg %p30
      $region30: #{_lambda_.5} parent=27 // pred_check_branch
        %155 = sbr.rel (%p153) target = $region32
      $region31: #{_lambda_.5} parent=27 // pred_region
        %p156 = scmp.lt.s32.totalorder %s10, 5
        %s157 = scalar_select %p156, %s10, 5
        %s158 = smul.addr %s157, 16
        %s159 = smul.addr %s158, 4
        %s160 = scalar_lea.vmem %s0, %s159
      $region32: #{_lambda_.5} parent=27 // pred_fallthru
        _
    $region28: #{_lambda_.5} parent=5 // pred_fallthru
      _
    %p161 = scmp.le.s32.totalorder 1, %s10
    %p162 = scmp.lt.s32.totalorder %s10, 7
    %p163 = pnand %p161, %p162
    %p164 = pneg %p163
    // Predicated region
    $region33: #{_lambda_.5} parent=5 // pred_check
      _
    $region34: #{_lambda_.5} parent=5 // pred_check_branch
      %166 = sbr.rel (%p163) target = $region36
    $region35: #{_lambda_.5} parent=5 // pred_region
      %s167 = ssub.s32 %s10, 1
      %p168 = scmp.lt.s32.totalorder %s15, 5
      %s169 = scalar_select %p168, %s15, 5
      %s170 = smul.addr %s169, 16
      %s171 = smul.addr %s170, 4
      %s172 = scalar_lea.vmem %s0, %s171
      %p173 = pneg %p36
      %p174 = pneg %p33
      %p175 = pneg %p57
      %p176 = pneg %p54
      %p177 = pneg %p78
      %p178 = pneg %p75
      %p179 = pneg %p99
      %p180 = pneg %p96
      %p181 = pneg %p125
      %p182 = pneg %p122
      %p183 = scmp.lt.s32.totalorder %s15, 5
      %s184 = scalar_select %p183, %s15, 5
      %s185 = scalar_lea.vmem %s4, %s184
      %p186 = scmp.lt.s32.totalorder %s15, 5
      %s187 = scalar_select %p186, %s15, 5
      %s188 = smul.addr %s187, 16
      %s189 = smul.addr %s188, 4
      %s190 = scalar_lea.vmem %s0, %s189
      %p191 = scmp.lt.s32.totalorder %s15, 5
      %s192 = scalar_select %p191, %s15, 5
      %s193 = scalar_lea.vmem %s4, %s192
      %v194 = vld [vmem:[%s190] sm:$0xff]
      %v195 = vld [vmem:[%s190 + $0x8] sm:$0xff]
      %v196 = vld [vmem:[%s190 + $0x10] sm:$0xff]
      %v197 = vld [vmem:[%s190 + $0x18] sm:$0xff]
      %v198 = vld [vmem:[%s190 + $0x20] sm:$0xff]
      %v199 = vld [vmem:[%s190 + $0x28] sm:$0xff]
      %v200 = vld [vmem:[%s190 + $0x30] sm:$0xff]
      %v201 = vld [vmem:[%s190 + $0x38] sm:$0xff]
      %v202 = vld [vmem:[%s1] sm:$0xf]
      %v203 = vld [vmem:[%s1 + $0x4] sm:$0xf]
      %v204 = vld [vmem:[%s1 + $0x8] sm:$0xf]
      %v205 = vld [vmem:[%s1 + $0xc] sm:$0xf]
      %v206 = vld [vmem:[%s1 + $0x10] sm:$0xf]
      %v207 = vld [vmem:[%s1 + $0x14] sm:$0xf]
      %v208 = vld [vmem:[%s1 + $0x18] sm:$0xf]
      %v209 = vld [vmem:[%s1 + $0x1c] sm:$0xf]
      %v210 = vld [vmem:[%s1 + $0x20] sm:$0xf]
      %v211 = vld [vmem:[%s1 + $0x24] sm:$0xf]
      %v212 = vld [vmem:[%s1 + $0x28] sm:$0xf]
      %v213 = vld [vmem:[%s1 + $0x2c] sm:$0xf]
      %v214 = vld [vmem:[%s1 + $0x30] sm:$0xf]
      %v215 = vld [vmem:[%s1 + $0x34] sm:$0xf]
      %v216 = vld [vmem:[%s1 + $0x38] sm:$0xf]
      %v217 = vld [vmem:[%s1 + $0x3c] sm:$0xf]
      %v218 = vld [vmem:[%s1 + $0x40] sm:$0xf]
      %v219 = vld [vmem:[%s1 + $0x44] sm:$0xf]
      %v220 = vld [vmem:[%s1 + $0x48] sm:$0xf]
      %v221 = vld [vmem:[%s1 + $0x4c] sm:$0xf]
      %v222 = vld [vmem:[%s1 + $0x50] sm:$0xf]
      %v223 = vld [vmem:[%s1 + $0x54] sm:$0xf]
      %v224 = vld [vmem:[%s1 + $0x58] sm:$0xf]
      %v225 = vld [vmem:[%s1 + $0x5c] sm:$0xf]
      %v226 = vld [vmem:[%s1 + $0x60] sm:$0xf]
      %v227 = vld [vmem:[%s1 + $0x64] sm:$0xf]
      %v228 = vld [vmem:[%s1 + $0x68] sm:$0xf]
      %v229 = vld [vmem:[%s1 + $0x6c] sm:$0xf]
      %v230 = vld [vmem:[%s1 + $0x70] sm:$0xf]
      %v231 = vld [vmem:[%s1 + $0x74] sm:$0xf]
      %v232 = vld [vmem:[%s1 + $0x78] sm:$0xf]
      %v233 = vld [vmem:[%s1 + $0x7c] sm:$0xf]
      %v242 = vunpack.c.l.b16 %v194
      %v243 = vunpack.c.h.b16 %v194
      %v244 = vunpack.c.l.b16 %v195
      %v245 = vunpack.c.h.b16 %v195
      %v246 = vunpack.c.l.b16 %v196
      %v247 = vunpack.c.h.b16 %v196
      %v248 = vunpack.c.l.b16 %v197
      %v249 = vunpack.c.h.b16 %v197
      %v250 = vunpack.c.l.b16 %v198
      %v251 = vunpack.c.h.b16 %v198
      %v252 = vunpack.c.l.b16 %v199
      %v253 = vunpack.c.h.b16 %v199
      %v254 = vunpack.c.l.b16 %v200
      %v255 = vunpack.c.h.b16 %v200
      %v256 = vunpack.c.l.b16 %v201
      %v257 = vunpack.c.h.b16 %v201
      %v258 = vpack.c.b16 %v244, %v242
      %v259 = vpack.c.b16 %v245, %v243
      %v260 = vpack.c.b16 %v248, %v246
      %v261 = vpack.c.b16 %v249, %v247
      %v262 = vpack.c.b16 %v252, %v250
      %v263 = vpack.c.b16 %v253, %v251
      %v264 = vpack.c.b16 %v256, %v254
      %v265 = vpack.c.b16 %v257, %v255
      %v306 = vunpack.c.l.b16 %v202
      %v307 = vunpack.c.l.b16 %v203
      %v308 = vunpack.c.l.b16 %v204
      %v309 = vunpack.c.l.b16 %v205
      %v310 = vunpack.c.l.b16 %v206
      %v311 = vunpack.c.l.b16 %v207
      %v312 = vunpack.c.l.b16 %v208
      %v313 = vunpack.c.l.b16 %v209
      %v314 = vunpack.c.l.b16 %v210
      %v315 = vunpack.c.l.b16 %v211
      %v316 = vunpack.c.l.b16 %v212
      %v317 = vunpack.c.l.b16 %v213
      %v318 = vunpack.c.l.b16 %v214
      %v319 = vunpack.c.l.b16 %v215
      %v320 = vunpack.c.l.b16 %v216
      %v321 = vunpack.c.l.b16 %v217
      %v322 = vunpack.c.l.b16 %v218
      %v323 = vunpack.c.l.b16 %v219
      %v324 = vunpack.c.l.b16 %v220
      %v325 = vunpack.c.l.b16 %v221
      %v326 = vunpack.c.l.b16 %v222
      %v327 = vunpack.c.l.b16 %v223
      %v328 = vunpack.c.l.b16 %v224
      %v329 = vunpack.c.l.b16 %v225
      %v330 = vunpack.c.l.b16 %v226
      %v331 = vunpack.c.l.b16 %v227
      %v332 = vunpack.c.l.b16 %v228
      %v333 = vunpack.c.l.b16 %v229
      %v334 = vunpack.c.l.b16 %v230
      %v335 = vunpack.c.l.b16 %v231
      %v336 = vunpack.c.l.b16 %v232
      %v337 = vunpack.c.l.b16 %v233
      %v338 = vpack.c.b16 %v307, %v306
      %v339 = vpack.c.b16 %v309, %v308
      %v340 = vpack.c.b16 %v311, %v310
      %v341 = vpack.c.b16 %v313, %v312
      %v342 = vpack.c.b16 %v315, %v314
      %v343 = vpack.c.b16 %v317, %v316
      %v344 = vpack.c.b16 %v319, %v318
      %v345 = vpack.c.b16 %v321, %v320
      %v346 = vpack.c.b16 %v323, %v322
      %v347 = vpack.c.b16 %v325, %v324
      %v348 = vpack.c.b16 %v327, %v326
      %v349 = vpack.c.b16 %v329, %v328
      %v350 = vpack.c.b16 %v331, %v330
      %v351 = vpack.c.b16 %v333, %v332
      %v352 = vpack.c.b16 %v335, %v334
      %v353 = vpack.c.b16 %v337, %v336
      %370 = vmatpush.bf16.msra.mxu0 %v345
      %371 = vmatpush.bf16.msra.mxu0 %v344
      %372 = vmatpush.bf16.msra.mxu0 %v343
      %373 = vmatpush.bf16.msra.mxu0 %v342
      %374 = vmatpush.bf16.msra.mxu0 %v341
      %375 = vmatpush.bf16.msra.mxu0 %v340
      %376 = vmatpush.bf16.msra.mxu0 %v339
      %377 = vmatpush.bf16.msra.mxu0 %v338
      %378 = vmatmul.bf16.gmra.mxu0 %v258
      %v379 = vpop.f32.mrf.mxu0
      %v380 = vadd.f32 0.0, %v379
      %v381 = vpop.f32.mrf.mxu0
      %v382 = vadd.f32 0.0, %v381
      %383 = vmatmul.bf16.gmra.mxu0 %v260
      %v384 = vpop.f32.mrf.mxu0
      %v385 = vadd.f32 0.0, %v384
      %v386 = vpop.f32.mrf.mxu0
      %v387 = vadd.f32 0.0, %v386
      %388 = vmatmul.bf16.gmra.mxu0 %v262
      %v389 = vpop.f32.mrf.mxu0
      %v390 = vadd.f32 0.0, %v389
      %v391 = vpop.f32.mrf.mxu0
      %v392 = vadd.f32 0.0, %v391
      %393 = vmatmul.bf16.gmra.mxu0 %v264
      %v394 = vpop.f32.mrf.mxu0
      %v395 = vadd.f32 0.0, %v394
      %v396 = vpop.f32.mrf.mxu0
      %v397 = vadd.f32 0.0, %v396
      %398 = vdwg.mxu0
      %399 = vmatpush.bf16.msra.mxu0 %v353
      %400 = vmatpush.bf16.msra.mxu0 %v352
      %401 = vmatpush.bf16.msra.mxu0 %v351
      %402 = vmatpush.bf16.msra.mxu0 %v350
      %403 = vmatpush.bf16.msra.mxu0 %v349
      %404 = vmatpush.bf16.msra.mxu0 %v348
      %405 = vmatpush.bf16.msra.mxu0 %v347
      %406 = vmatpush.bf16.msra.mxu0 %v346
      %407 = vmatmul.bf16.gmra.mxu0 %v259
      %v408 = vpop.f32.mrf.mxu0
      %v409 = vadd.f32 %v380, %v408
      %v410 = vpop.f32.mrf.mxu0
      %v411 = vadd.f32 %v382, %v410
      %412 = vmatmul.bf16.gmra.mxu0 %v261
      %v413 = vpop.f32.mrf.mxu0
      %v414 = vadd.f32 %v385, %v413
      %v415 = vpop.f32.mrf.mxu0
      %v416 = vadd.f32 %v387, %v415
      %417 = vmatmul.bf16.gmra.mxu0 %v263
      %v418 = vpop.f32.mrf.mxu0
      %v419 = vadd.f32 %v390, %v418
      %v420 = vpop.f32.mrf.mxu0
      %v421 = vadd.f32 %v392, %v420
      %422 = vmatmul.bf16.gmra.mxu0 %v265
      %v423 = vpop.f32.mrf.mxu0
      %v424 = vadd.f32 %v395, %v423
      %v425 = vpop.f32.mrf.mxu0
      %v426 = vadd.f32 %v397, %v425
      %427 = vdwg.mxu0
      %v428 = vmax.f32 %v409, 0.0
      %v429 = vmax.f32 %v411, 0.0
      %v430 = vmax.f32 %v414, 0.0
      %v431 = vmax.f32 %v416, 0.0
      %v432 = vmax.f32 %v419, 0.0
      %v433 = vmax.f32 %v421, 0.0
      %v434 = vmax.f32 %v424, 0.0
      %v435 = vmax.f32 %v426, 0.0
      %v436 = vadd.f32 %v428, %v429
      %v437 = vadd.f32 %v436, %v430
      %v438 = vadd.f32 %v437, %v431
      %v439 = vadd.f32 %v438, %v432
      %v440 = vadd.f32 %v439, %v433
      %v441 = vadd.f32 %v440, %v434
      %v442 = vadd.f32 %v441, %v435
      %v443 = vrot.slane %v442, 4
      %v444 = vadd.f32 %v442, %v443
      %v445 = vrot.slane %v444, 2
      %v446 = vadd.f32 %v444, %v445
      %v447 = vrot.slane %v446, 1
      %v448 = vadd.f32 %v446, %v447
      %v449 = vrcp.pop 64.0
      %v450 = vmul.f32 64.0, %v449
      %v451 = vsub.f32 1.0, %v450
      %v452 = vmul.f32 %v449, %v451
      %v453 = vadd.f32 %v449, %v452
      %vm454 = vweird.f32 %v449
      %v455 = vsel %vm454, %v449, %v453
      %v456 = vmul.f32 %v448, %v455
      %v457 = vld [vmem:[%s2] sm:$0xf]
      %v458 = vld [vmem:[%s2 + $0x4] sm:$0xf]
      %v459 = vld [vmem:[%s2 + $0x8] sm:$0xf]
      %v460 = vld [vmem:[%s2 + $0xc] sm:$0xf]
      %v461 = vld [vmem:[%s2 + $0x10] sm:$0xf]
      %v462 = vld [vmem:[%s2 + $0x14] sm:$0xf]
      %v463 = vld [vmem:[%s2 + $0x18] sm:$0xf]
      %v464 = vld [vmem:[%s2 + $0x1c] sm:$0xf]
      %v465 = vld [vmem:[%s2 + $0x20] sm:$0xf]
      %v466 = vld [vmem:[%s2 + $0x24] sm:$0xf]
      %v467 = vld [vmem:[%s2 + $0x28] sm:$0xf]
      %v468 = vld [vmem:[%s2 + $0x2c] sm:$0xf]
      %v469 = vld [vmem:[%s2 + $0x30] sm:$0xf]
      %v470 = vld [vmem:[%s2 + $0x34] sm:$0xf]
      %v471 = vld [vmem:[%s2 + $0x38] sm:$0xf]
      %v472 = vld [vmem:[%s2 + $0x3c] sm:$0xf]
      %v473 = vpack.c.bf16 %v456, %v456
      %v474 = vld [vmem:[%s3] sm:$0x1]
      %v491 = vunpack.c.l.b16 %v457
      %v492 = vunpack.c.l.b16 %v458
      %v493 = vunpack.c.l.b16 %v459
      %v494 = vunpack.c.l.b16 %v460
      %v495 = vunpack.c.l.b16 %v461
      %v496 = vunpack.c.l.b16 %v462
      %v497 = vunpack.c.l.b16 %v463
      %v498 = vunpack.c.l.b16 %v464
      %v499 = vunpack.c.l.b16 %v465
      %v500 = vunpack.c.l.b16 %v466
      %v501 = vunpack.c.l.b16 %v467
      %v502 = vunpack.c.l.b16 %v468
      %v503 = vunpack.c.l.b16 %v469
      %v504 = vunpack.c.l.b16 %v470
      %v505 = vunpack.c.l.b16 %v471
      %v506 = vunpack.c.l.b16 %v472
      %v507 = vpack.c.b16 %v492, %v491
      %v508 = vpack.c.b16 %v494, %v493
      %v509 = vpack.c.b16 %v496, %v495
      %v510 = vpack.c.b16 %v498, %v497
      %v511 = vpack.c.b16 %v500, %v499
      %v512 = vpack.c.b16 %v502, %v501
      %v513 = vpack.c.b16 %v504, %v503
      %v514 = vpack.c.b16 %v506, %v505
      %523 = vmatpush.bf16.msra.mxu0 %v514
      %524 = vmatpush.bf16.msra.mxu0 %v513
      %525 = vmatpush.bf16.msra.mxu0 %v512
      %526 = vmatpush.bf16.msra.mxu0 %v511
      %527 = vmatpush.bf16.msra.mxu0 %v510
      %528 = vmatpush.bf16.msra.mxu0 %v509
      %529 = vmatpush.bf16.msra.mxu0 %v508
      %530 = vmatpush.bf16.msra.mxu0 %v507
      %531 = vmatmul.bf16.gmra.mxu0 %v473
      %v532 = vpop.f32.mrf.mxu0
      %v533 = vadd.f32 %v474, %v532
      %v534 = vpop.f32.mrf.mxu0
      %535 = vdwg.mxu0
      %v536 = vpack.c.bf16 %v533, %v533
      %vm537 = vcmask 1040384
      %vm538 = vsmask.f32 256
      %vm539 = vmand %vm537, %vm538
      %v540 = vld [vmem:[%s193] sm:$0x1]
      %v541 = vsel %vm539, %v536, %v540
      %542 = vst [vmem:[%s193] sm:$0x1] %v541
      %p543 = scmp.lt.s32.totalorder %s15, 5
      %s544 = scalar_select %p543, %s15, 5
      %s545 = scalar_lea.vmem %s4, %s544
      // Predicated region
      $region37: #{_lambda_.5} parent=35 // pred_check
        %p546 = pneg %p122
      $region38: #{_lambda_.5} parent=35 // pred_check_branch
        %548 = sbr.rel (%p546) target = $region40
      $region39: #{_lambda_.5} parent=35 // pred_region
        _
      $region40: #{_lambda_.5} parent=35 // pred_fallthru
        _
    $region36: #{_lambda_.5} parent=5 // pred_fallthru
      _
    %p549 = scmp.le.s32.totalorder 2, %s10
    // Predicated region
    $region41: #{_lambda_.5} parent=5 // pred_check
      %p550 = pneg %p549
    $region42: #{_lambda_.5} parent=5 // pred_check_branch
      %552 = sbr.rel (%p550) target = $region44
    $region43: #{_lambda_.5} parent=5 // pred_region
      %s553 = ssub.s32 %s10, 2
      // Predicated region
      $region45: #{_lambda_.5} parent=43 // pred_check
        %p554 = pneg %p128
      $region46: #{_lambda_.5} parent=43 // pred_check_branch
        %556 = sbr.rel (%p554) target = $region48
      $region47: #{_lambda_.5} parent=43 // pred_region
        %p557 = scmp.lt.s32.totalorder %s16, 5
        %s558 = scalar_select %p557, %s16, 5
        %s559 = scalar_lea.vmem %s4, %s558
      $region48: #{_lambda_.5} parent=43 // pred_fallthru
        _
    $region44: #{_lambda_.5} parent=5 // pred_fallthru
      _
  $region6: #{_lambda_.5} parent=0 // loop_footer
    %s14 = sadd.s32 1, %s10
  $region7: #{_lambda_.5} parent=0 // loop_footer_branch
    %9 = sbr.rel target = $region3
  $region8: #{_lambda_.5} parent=0 // loop_exit
    _

// kernel: _lambda_.8
$region0: #{_lambda_.8}
  #allocation0 [shape = 'u32[]', space=smem, size = 0x4, offset = 0x4, fixed_abs, tag = 'smem constant byte address 0x4 - core index']
  #allocation1 [shape = 'u32[72,128]{1,0:T(1,128)}', space=vmem, size = 0x9000, scoped, tag = 'internal scratch']
  %s0 = inlined_call_operand.vmem [shape: bf16[3,8,512], index: 0, kind: input, shape index: {}]
  %s1 = inlined_call_operand.vmem [shape: f32[8,128], index: 1, kind: input, shape index: {}]
  %s2 = inlined_call_operand.vmem [shape: f32[8,128], index: 2, kind: input, shape index: {}]
  %s3 = inlined_call_operand.vmem [shape: f32[8,128], index: 3, kind: input, shape index: {}]
  %s4 = inlined_call_operand.vmem [shape: f32[8,128], index: 4, kind: input, shape index: {}]
  %s5 = inlined_call_operand.vmem [shape: bf16[128,512], index: 5, kind: input, shape index: {}]
  %s6 = inlined_call_operand.vmem [shape: bf16[256,512], index: 6, kind: input, shape index: {}]
  %s7 = inlined_call_operand.vmem [shape: f32[1,512], index: 7, kind: input, shape index: {}]
  %s8 = inlined_call_operand.vmem [shape: bf16[3,8,128], index: 8, kind: output, shape index: {}]
  %s9 = sld [smem:[#allocation0]]
  $region49: #{_lambda_.8} parent=0
    _
  %s11 = ssub.s32 1, %s9
  %s12 = scalar_select 0, %s11, %s9
  // Predicated region
  $region2: #{_lambda_.8} parent=0 // pred_check
    _
  $region3: #{_lambda_.8} parent=0 // pred_check_branch
    %14 = sbr.rel (0) target = $region5
  $region4: #{_lambda_.8} parent=0 // pred_region
    _
  $region5: #{_lambda_.8} parent=0 // pred_fallthru
    _
  // Predicated region
  $region6: #{_lambda_.8} parent=0 // pred_check
    _
  $region7: #{_lambda_.8} parent=0 // pred_check_branch
    %16 = sbr.rel (0) target = $region9
  $region8: #{_lambda_.8} parent=0 // pred_region
    _
  $region9: #{_lambda_.8} parent=0 // pred_fallthru
    _
  // Predicated region
  $region10: #{_lambda_.8} parent=0 // pred_check
    _
  $region11: #{_lambda_.8} parent=0 // pred_check_branch
    %18 = sbr.rel (0) target = $region13
  $region12: #{_lambda_.8} parent=0 // pred_region
    _
  $region13: #{_lambda_.8} parent=0 // pred_fallthru
    _
  // Predicated region
  $region14: #{_lambda_.8} parent=0 // pred_check
    _
  $region15: #{_lambda_.8} parent=0 // pred_check_branch
    %20 = sbr.rel (0) target = $region17
  $region16: #{_lambda_.8} parent=0 // pred_region
    _
  $region17: #{_lambda_.8} parent=0 // pred_fallthru
    _
  // Predicated region
  $region18: #{_lambda_.8} parent=0 // pred_check
    _
  $region19: #{_lambda_.8} parent=0 // pred_check_branch
    %22 = sbr.rel (0) target = $region21
  $region20: #{_lambda_.8} parent=0 // pred_region
    _
  $region21: #{_lambda_.8} parent=0 // pred_fallthru
    _
  // Predicated region
  $region22: #{_lambda_.8} parent=0 // pred_check
    _
  $region23: #{_lambda_.8} parent=0 // pred_check_branch
    %24 = sbr.rel (0) target = $region25
  $region24: #{_lambda_.8} parent=0 // pred_region
    _
  $region25: #{_lambda_.8} parent=0 // pred_fallthru
    _
  // Predicated region
  $region26: #{_lambda_.8} parent=0 // pred_check
    _
  $region27: #{_lambda_.8} parent=0 // pred_check_branch
    %26 = sbr.rel (0) target = $region29
  $region28: #{_lambda_.8} parent=0 // pred_region
    _
  $region29: #{_lambda_.8} parent=0 // pred_fallthru
    _
  // Predicated region
  $region30: #{_lambda_.8} parent=0 // pred_check
    _
  $region31: #{_lambda_.8} parent=0 // pred_check_branch
    %28 = sbr.rel (0) target = $region33
  $region32: #{_lambda_.8} parent=0 // pred_region
    _
  $region33: #{_lambda_.8} parent=0 // pred_fallthru
    _
  %v29 = vld [vmem:[%s1] sm:$0xff]
  %v30 = vld [vmem:[%s2] sm:$0xff]
  %v31 = vld [vmem:[%s3] sm:$0xff]
  %v32 = vld [vmem:[%s4] sm:$0xff]
  loop: start=0, step=1, limit=3
  $region34: #{_lambda_.8} parent=0 // loop_pre_header
    _
  $region35: #{_lambda_.8} parent=0 // loop_header
    %s34 = sphi 0, %s38
    %p35 = scmp.ge.s32.totalorder %s34, 3
    %v39 = vphi %v29, %v363
    %v40 = vphi %v30, %v361
    %v41 = vphi %v31, %v926
    %v42 = vphi %v32, %v924
  $region36: #{_lambda_.8} parent=0 // loop_header_branch
    %37 = sbr.rel (%p35) target = $region40
  $region37: #{_lambda_.8} parent=0 // loop_body
    %s43 = smul.u32 %s34, 4
    %s44 = smul.addr %s43, 4
    %s45 = scalar_lea.vmem %s0, %s44
    %v46 = vld [vmem:[%s45] sm:$0xff]
    %v47 = vld [vmem:[%s45 + $0x8] sm:$0xff]
    %v48 = vunpack.c.l.bf16 %v46
    %v49 = vunpack.c.h.bf16 %v46
    %v50 = vunpack.c.l.bf16 %v47
    %v51 = vunpack.c.h.bf16 %v47
    %v52 = vld [vmem:[%s5] sm:$0xff]
    %v53 = vld [vmem:[%s5 + $0x8] sm:$0xff]
    %v54 = vld [vmem:[%s5 + $0x10] sm:$0xff]
    %v55 = vld [vmem:[%s5 + $0x18] sm:$0xff]
    %v56 = vld [vmem:[%s5 + $0x20] sm:$0xff]
    %v57 = vld [vmem:[%s5 + $0x28] sm:$0xff]
    %v58 = vld [vmem:[%s5 + $0x30] sm:$0xff]
    %v59 = vld [vmem:[%s5 + $0x38] sm:$0xff]
    %v60 = vld [vmem:[%s5 + $0x40] sm:$0xff]
    %v61 = vld [vmem:[%s5 + $0x48] sm:$0xff]
    %v62 = vld [vmem:[%s5 + $0x50] sm:$0xff]
    %v63 = vld [vmem:[%s5 + $0x58] sm:$0xff]
    %v64 = vld [vmem:[%s5 + $0x60] sm:$0xff]
    %v65 = vld [vmem:[%s5 + $0x68] sm:$0xff]
    %v66 = vld [vmem:[%s5 + $0x70] sm:$0xff]
    %v67 = vld [vmem:[%s5 + $0x78] sm:$0xff]
    %v68 = vld [vmem:[%s5 + $0x80] sm:$0xff]
    %v69 = vld [vmem:[%s5 + $0x88] sm:$0xff]
    %v70 = vld [vmem:[%s5 + $0x90] sm:$0xff]
    %v71 = vld [vmem:[%s5 + $0x98] sm:$0xff]
    %v72 = vld [vmem:[%s5 + $0xa0] sm:$0xff]
    %v73 = vld [vmem:[%s5 + $0xa8] sm:$0xff]
    %v74 = vld [vmem:[%s5 + $0xb0] sm:$0xff]
    %v75 = vld [vmem:[%s5 + $0xb8] sm:$0xff]
    %v76 = vld [vmem:[%s5 + $0xc0] sm:$0xff]
    %v77 = vld [vmem:[%s5 + $0xc8] sm:$0xff]
    %v78 = vld [vmem:[%s5 + $0xd0] sm:$0xff]
    %v79 = vld [vmem:[%s5 + $0xd8] sm:$0xff]
    %v80 = vld [vmem:[%s5 + $0xe0] sm:$0xff]
    %v81 = vld [vmem:[%s5 + $0xe8] sm:$0xff]
    %v82 = vld [vmem:[%s5 + $0xf0] sm:$0xff]
    %v83 = vld [vmem:[%s5 + $0xf8] sm:$0xff]
    %v84 = vpack.c.bf16 %v39, %v39
    %v117 = vunpack.c.l.b16 %v52
    %v118 = vunpack.c.h.b16 %v52
    %v119 = vunpack.c.l.b16 %v53
    %v120 = vunpack.c.h.b16 %v53
    %v121 = vunpack.c.l.b16 %v54
    %v122 = vunpack.c.h.b16 %v54
    %v123 = vunpack.c.l.b16 %v55
    %v124 = vunpack.c.h.b16 %v55
    %v125 = vunpack.c.l.b16 %v56
    %v126 = vunpack.c.h.b16 %v56
    %v127 = vunpack.c.l.b16 %v57
    %v128 = vunpack.c.h.b16 %v57
    %v129 = vunpack.c.l.b16 %v58
    %v130 = vunpack.c.h.b16 %v58
    %v131 = vunpack.c.l.b16 %v59
    %v132 = vunpack.c.h.b16 %v59
    %v133 = vunpack.c.l.b16 %v60
    %v134 = vunpack.c.h.b16 %v60
    %v135 = vunpack.c.l.b16 %v61
    %v136 = vunpack.c.h.b16 %v61
    %v137 = vunpack.c.l.b16 %v62
    %v138 = vunpack.c.h.b16 %v62
    %v139 = vunpack.c.l.b16 %v63
    %v140 = vunpack.c.h.b16 %v63
    %v141 = vunpack.c.l.b16 %v64
    %v142 = vunpack.c.h.b16 %v64
    %v143 = vunpack.c.l.b16 %v65
    %v144 = vunpack.c.h.b16 %v65
    %v145 = vunpack.c.l.b16 %v66
    %v146 = vunpack.c.h.b16 %v66
    %v147 = vunpack.c.l.b16 %v67
    %v148 = vunpack.c.h.b16 %v67
    %v149 = vunpack.c.l.b16 %v68
    %v150 = vunpack.c.h.b16 %v68
    %v151 = vunpack.c.l.b16 %v69
    %v152 = vunpack.c.h.b16 %v69
    %v153 = vunpack.c.l.b16 %v70
    %v154 = vunpack.c.h.b16 %v70
    %v155 = vunpack.c.l.b16 %v71
    %v156 = vunpack.c.h.b16 %v71
    %v157 = vunpack.c.l.b16 %v72
    %v158 = vunpack.c.h.b16 %v72
    %v159 = vunpack.c.l.b16 %v73
    %v160 = vunpack.c.h.b16 %v73
    %v161 = vunpack.c.l.b16 %v74
    %v162 = vunpack.c.h.b16 %v74
    %v163 = vunpack.c.l.b16 %v75
    %v164 = vunpack.c.h.b16 %v75
    %v165 = vunpack.c.l.b16 %v76
    %v166 = vunpack.c.h.b16 %v76
    %v167 = vunpack.c.l.b16 %v77
    %v168 = vunpack.c.h.b16 %v77
    %v169 = vunpack.c.l.b16 %v78
    %v170 = vunpack.c.h.b16 %v78
    %v171 = vunpack.c.l.b16 %v79
    %v172 = vunpack.c.h.b16 %v79
    %v173 = vunpack.c.l.b16 %v80
    %v174 = vunpack.c.h.b16 %v80
    %v175 = vunpack.c.l.b16 %v81
    %v176 = vunpack.c.h.b16 %v81
    %v177 = vunpack.c.l.b16 %v82
    %v178 = vunpack.c.h.b16 %v82
    %v179 = vunpack.c.l.b16 %v83
    %v180 = vunpack.c.h.b16 %v83
    %v181 = vpack.c.b16 %v121, %v117
    %v182 = vpack.c.b16 %v122, %v118
    %v183 = vpack.c.b16 %v123, %v119
    %v184 = vpack.c.b16 %v124, %v120
    %v185 = vpack.c.b16 %v129, %v125
    %v186 = vpack.c.b16 %v130, %v126
    %v187 = vpack.c.b16 %v131, %v127
    %v188 = vpack.c.b16 %v132, %v128
    %v189 = vpack.c.b16 %v137, %v133
    %v190 = vpack.c.b16 %v138, %v134
    %v191 = vpack.c.b16 %v139, %v135
    %v192 = vpack.c.b16 %v140, %v136
    %v193 = vpack.c.b16 %v145, %v141
    %v194 = vpack.c.b16 %v146, %v142
    %v195 = vpack.c.b16 %v147, %v143
    %v196 = vpack.c.b16 %v148, %v144
    %v197 = vpack.c.b16 %v153, %v149
    %v198 = vpack.c.b16 %v154, %v150
    %v199 = vpack.c.b16 %v155, %v151
    %v200 = vpack.c.b16 %v156, %v152
    %v201 = vpack.c.b16 %v161, %v157
    %v202 = vpack.c.b16 %v162, %v158
    %v203 = vpack.c.b16 %v163, %v159
    %v204 = vpack.c.b16 %v164, %v160
    %v205 = vpack.c.b16 %v169, %v165
    %v206 = vpack.c.b16 %v170, %v166
    %v207 = vpack.c.b16 %v171, %v167
    %v208 = vpack.c.b16 %v172, %v168
    %v209 = vpack.c.b16 %v177, %v173
    %v210 = vpack.c.b16 %v178, %v174
    %v211 = vpack.c.b16 %v179, %v175
    %v212 = vpack.c.b16 %v180, %v176
    %245 = vmatpush.bf16.msra.mxu0 %v209
    %246 = vmatpush.bf16.msra.mxu0 %v205
    %247 = vmatpush.bf16.msra.mxu0 %v201
    %248 = vmatpush.bf16.msra.mxu0 %v197
    %249 = vmatpush.bf16.msra.mxu0 %v193
    %250 = vmatpush.bf16.msra.mxu0 %v189
    %251 = vmatpush.bf16.msra.mxu0 %v185
    %252 = vmatpush.bf16.msra.mxu0 %v181
    %253 = vmatmul.bf16.gmra.mxu0 %v84
    %v254 = vpop.f32.mrf.mxu0
    %v255 = vadd.f32 0.0, %v254
    %v256 = vpop.f32.mrf.mxu0
    %257 = vdwg.mxu0
    %258 = vmatpush.bf16.msra.mxu0 %v210
    %259 = vmatpush.bf16.msra.mxu0 %v206
    %260 = vmatpush.bf16.msra.mxu0 %v202
    %261 = vmatpush.bf16.msra.mxu0 %v198
    %262 = vmatpush.bf16.msra.mxu0 %v194
    %263 = vmatpush.bf16.msra.mxu0 %v190
    %264 = vmatpush.bf16.msra.mxu0 %v186
    %265 = vmatpush.bf16.msra.mxu0 %v182
    %266 = vmatmul.bf16.gmra.mxu0 %v84
    %v267 = vpop.f32.mrf.mxu0
    %v268 = vadd.f32 0.0, %v267
    %v269 = vpop.f32.mrf.mxu0
    %270 = vdwg.mxu0
    %271 = vmatpush.bf16.msra.mxu0 %v211
    %272 = vmatpush.bf16.msra.mxu0 %v207
    %273 = vmatpush.bf16.msra.mxu0 %v203
    %274 = vmatpush.bf16.msra.mxu0 %v199
    %275 = vmatpush.bf16.msra.mxu0 %v195
    %276 = vmatpush.bf16.msra.mxu0 %v191
    %277 = vmatpush.bf16.msra.mxu0 %v187
    %278 = vmatpush.bf16.msra.mxu0 %v183
    %279 = vmatmul.bf16.gmra.mxu0 %v84
    %v280 = vpop.f32.mrf.mxu0
    %v281 = vadd.f32 0.0, %v280
    %v282 = vpop.f32.mrf.mxu0
    %283 = vdwg.mxu0
    %284 = vmatpush.bf16.msra.mxu0 %v212
    %285 = vmatpush.bf16.msra.mxu0 %v208
    %286 = vmatpush.bf16.msra.mxu0 %v204
    %287 = vmatpush.bf16.msra.mxu0 %v200
    %288 = vmatpush.bf16.msra.mxu0 %v196
    %289 = vmatpush.bf16.msra.mxu0 %v192
    %290 = vmatpush.bf16.msra.mxu0 %v188
    %291 = vmatpush.bf16.msra.mxu0 %v184
    %292 = vmatmul.bf16.gmra.mxu0 %v84
    %v293 = vpop.f32.mrf.mxu0
    %v294 = vadd.f32 0.0, %v293
    %v295 = vpop.f32.mrf.mxu0
    %296 = vdwg.mxu0
    %v297 = vadd.f32 %v48, %v255
    %v298 = vadd.f32 %v49, %v268
    %v299 = vadd.f32 %v50, %v281
    %v300 = vadd.f32 %v51, %v294
    %v301 = vxor.u32 %v297, 2147483648
    %v302 = vmul.f32 %v301, 1.442695
    %v303 = vpow.pop %v302
    %v304 = vadd.f32 %v303, 1.0
    %v305 = vrcp.pop %v304
    %v306 = vmul.f32 %v304, %v305
    %v307 = vsub.f32 1.0, %v306
    %v308 = vmul.f32 %v305, %v307
    %v309 = vadd.f32 %v305, %v308
    %vm310 = vweird.f32 %v304
    %vm311 = vweird.f32 %v305
    %vm312 = vmor %vm310, %vm311
    %v313 = vsel %vm312, %v305, %v309
    %v314 = vand.u32 2147483647, %v304
    %vm315 = vcmp.eq.f32.partialorder %v314, 8.507059e+37
    %v316 = vand.u32 %v304, 2147483648
    %v317 = vor.u32 1.1754944e-38, %v316
    %v318 = vsel %vm315, %v317, %v313
    %v319 = vmul.f32 1.0, %v318
    %v320 = vxor.u32 %v298, 2147483648
    %v321 = vmul.f32 %v320, 1.442695
    %v322 = vpow.pop %v321
    %v323 = vadd.f32 %v322, 1.0
    %v324 = vrcp.pop %v323
    %v325 = vmul.f32 %v323, %v324
    %v326 = vsub.f32 1.0, %v325
    %v327 = vmul.f32 %v324, %v326
    %v328 = vadd.f32 %v324, %v327
    %vm329 = vweird.f32 %v323
    %vm330 = vweird.f32 %v324
    %vm331 = vmor %vm329, %vm330
    %v332 = vsel %vm331, %v324, %v328
    %v333 = vand.u32 2147483647, %v323
    %vm334 = vcmp.eq.f32.partialorder %v333, 8.507059e+37
    %v335 = vand.u32 %v323, 2147483648
    %v336 = vor.u32 1.1754944e-38, %v335
    %v337 = vsel %vm334, %v336, %v332
    %v338 = vmul.f32 1.0, %v337
    %v339 = vtanh.pop %v299
    %v340 = vxor.u32 %v300, 2147483648
    %v341 = vmul.f32 %v340, 1.442695
    %v342 = vpow.pop %v341
    %v343 = vadd.f32 %v342, 1.0
    %v344 = vrcp.pop %v343
    %v345 = vmul.f32 %v343, %v344
    %v346 = vsub.f32 1.0, %v345
    %v347 = vmul.f32 %v344, %v346
    %v348 = vadd.f32 %v344, %v347
    %vm349 = vweird.f32 %v343
    %vm350 = vweird.f32 %v344
    %vm351 = vmor %vm349, %vm350
    %v352 = vsel %vm351, %v344, %v348
    %v353 = vand.u32 2147483647, %v343
    %vm354 = vcmp.eq.f32.partialorder %v353, 8.507059e+37
    %v355 = vand.u32 %v343, 2147483648
    %v356 = vor.u32 1.1754944e-38, %v355
    %v357 = vsel %vm354, %v356, %v352
    %v358 = vmul.f32 1.0, %v357
    %v359 = vmul.f32 %v338, %v40
    %v360 = vmul.f32 %v319, %v339
    %v361 = vadd.f32 %v359, %v360
    %v362 = vtanh.pop %v361
    %v363 = vmul.f32 %v358, %v362
    %v364 = vld [vmem:[%s6] sm:$0xff]
    %v365 = vld [vmem:[%s6 + $0x8] sm:$0xff]
    %v366 = vld [vmem:[%s6 + $0x10] sm:$0xff]
    %v367 = vld [vmem:[%s6 + $0x18] sm:$0xff]
    %v368 = vld [vmem:[%s6 + $0x20] sm:$0xff]
    %v369 = vld [vmem:[%s6 + $0x28] sm:$0xff]
    %v370 = vld [vmem:[%s6 + $0x30] sm:$0xff]
    %v371 = vld [vmem:[%s6 + $0x38] sm:$0xff]
    %v372 = vld [vmem:[%s6 + $0x40] sm:$0xff]
    %v373 = vld [vmem:[%s6 + $0x48] sm:$0xff]
    %v374 = vld [vmem:[%s6 + $0x50] sm:$0xff]
    %v375 = vld [vmem:[%s6 + $0x58] sm:$0xff]
    %v376 = vld [vmem:[%s6 + $0x60] sm:$0xff]
    %v377 = vld [vmem:[%s6 + $0x68] sm:$0xff]
    %v378 = vld [vmem:[%s6 + $0x70] sm:$0xff]
    %v379 = vld [vmem:[%s6 + $0x78] sm:$0xff]
    %v380 = vld [vmem:[%s6 + $0x80] sm:$0xff]
    %v381 = vld [vmem:[%s6 + $0x88] sm:$0xff]
    %v382 = vld [vmem:[%s6 + $0x90] sm:$0xff]
    %v383 = vld [vmem:[%s6 + $0x98] sm:$0xff]
    %v384 = vld [vmem:[%s6 + $0xa0] sm:$0xff]
    %v385 = vld [vmem:[%s6 + $0xa8] sm:$0xff]
    %v386 = vld [vmem:[%s6 + $0xb0] sm:$0xff]
    %v387 = vld [vmem:[%s6 + $0xb8] sm:$0xff]
    %v388 = vld [vmem:[%s6 + $0xc0] sm:$0xff]
    %v389 = vld [vmem:[%s6 + $0xc8] sm:$0xff]
    %v390 = vld [vmem:[%s6 + $0xd0] sm:$0xff]
    %v391 = vld [vmem:[%s6 + $0xd8] sm:$0xff]
    %v392 = vld [vmem:[%s6 + $0xe0] sm:$0xff]
    %v393 = vld [vmem:[%s6 + $0xe8] sm:$0xff]
    %v394 = vld [vmem:[%s6 + $0xf0] sm:$0xff]
    %v395 = vld [vmem:[%s6 + $0xf8] sm:$0xff]
    %v396 = vld [vmem:[%s6 + $0x100] sm:$0xff]
    %v397 = vld [vmem:[%s6 + $0x108] sm:$0xff]
    %v398 = vld [vmem:[%s6 + $0x110] sm:$0xff]
    %v399 = vld [vmem:[%s6 + $0x118] sm:$0xff]
    %v400 = vld [vmem:[%s6 + $0x120] sm:$0xff]
    %v401 = vld [vmem:[%s6 + $0x128] sm:$0xff]
    %v402 = vld [vmem:[%s6 + $0x130] sm:$0xff]
    %v403 = vld [vmem:[%s6 + $0x138] sm:$0xff]
    %v404 = vld [vmem:[%s6 + $0x140] sm:$0xff]
    %v405 = vld [vmem:[%s6 + $0x148] sm:$0xff]
    %v406 = vld [vmem:[%s6 + $0x150] sm:$0xff]
    %v407 = vld [vmem:[%s6 + $0x158] sm:$0xff]
    %v408 = vld [vmem:[%s6 + $0x160] sm:$0xff]
    %v409 = vld [vmem:[%s6 + $0x168] sm:$0xff]
    %v410 = vld [vmem:[%s6 + $0x170] sm:$0xff]
    %v411 = vld [vmem:[%s6 + $0x178] sm:$0xff]
    %v412 = vld [vmem:[%s6 + $0x180] sm:$0xff]
    %v413 = vld [vmem:[%s6 + $0x188] sm:$0xff]
    %v414 = vld [vmem:[%s6 + $0x190] sm:$0xff]
    %v415 = vld [vmem:[%s6 + $0x198] sm:$0xff]
    %v416 = vld [vmem:[%s6 + $0x1a0] sm:$0xff]
    %v417 = vld [vmem:[%s6 + $0x1a8] sm:$0xff]
    %v418 = vld [vmem:[%s6 + $0x1b0] sm:$0xff]
    %v419 = vld [vmem:[%s6 + $0x1b8] sm:$0xff]
    %v420 = vld [vmem:[%s6 + $0x1c0] sm:$0xff]
    %v421 = vld [vmem:[%s6 + $0x1c8] sm:$0xff]
    %v422 = vld [vmem:[%s6 + $0x1d0] sm:$0xff]
    %v423 = vld [vmem:[%s6 + $0x1d8] sm:$0xff]
    %v424 = vld [vmem:[%s6 + $0x1e0] sm:$0xff]
    %v425 = vld [vmem:[%s6 + $0x1e8] sm:$0xff]
    %v426 = vld [vmem:[%s6 + $0x1f0] sm:$0xff]
    %v427 = vld [vmem:[%s6 + $0x1f8] sm:$0xff]
    %v428 = vpack.c.bf16 %v363, %v363
    %v429 = vpack.c.bf16 %v41, %v41
    %v430 = vld [vmem:[%s7] sm:$0xf]
    %v432 = vperm.slane %v430, 0
    %v433 = vperm.slane %v430, 1
    %v434 = vperm.slane %v430, 2
    %v435 = vperm.slane %v430, 3
    %v504 = vunpack.c.l.b16 %v364
    %v505 = vunpack.c.h.b16 %v364
    %v506 = vunpack.c.l.b16 %v365
    %v507 = vunpack.c.h.b16 %v365
    %v508 = vunpack.c.l.b16 %v366
    %v509 = vunpack.c.h.b16 %v366
    %v510 = vunpack.c.l.b16 %v367
    %v511 = vunpack.c.h.b16 %v367
    %v512 = vunpack.c.l.b16 %v368
    %v513 = vunpack.c.h.b16 %v368
    %v514 = vunpack.c.l.b16 %v369
    %v515 = vunpack.c.h.b16 %v369
    %v516 = vunpack.c.l.b16 %v370
    %v517 = vunpack.c.h.b16 %v370
    %v518 = vunpack.c.l.b16 %v371
    %v519 = vunpack.c.h.b16 %v371
    %v520 = vunpack.c.l.b16 %v372
    %v521 = vunpack.c.h.b16 %v372
    %v522 = vunpack.c.l.b16 %v373
    %v523 = vunpack.c.h.b16 %v373
    %v524 = vunpack.c.l.b16 %v374
    %v525 = vunpack.c.h.b16 %v374
    %v526 = vunpack.c.l.b16 %v375
    %v527 = vunpack.c.h.b16 %v375
    %v528 = vunpack.c.l.b16 %v376
    %v529 = vunpack.c.h.b16 %v376
    %v530 = vunpack.c.l.b16 %v377
    %v531 = vunpack.c.h.b16 %v377
    %v532 = vunpack.c.l.b16 %v378
    %v533 = vunpack.c.h.b16 %v378
    %v534 = vunpack.c.l.b16 %v379
    %v535 = vunpack.c.h.b16 %v379
    %v536 = vunpack.c.l.b16 %v380
    %v537 = vunpack.c.h.b16 %v380
    %v538 = vunpack.c.l.b16 %v381
    %v539 = vunpack.c.h.b16 %v381
    %v540 = vunpack.c.l.b16 %v382
    %v541 = vunpack.c.h.b16 %v382
    %v542 = vunpack.c.l.b16 %v383
    %v543 = vunpack.c.h.b16 %v383
    %v544 = vunpack.c.l.b16 %v384
    %v545 = vunpack.c.h.b16 %v384
    %v546 = vunpack.c.l.b16 %v385
    %v547 = vunpack.c.h.b16 %v385
    %v548 = vunpack.c.l.b16 %v386
    %v549 = vunpack.c.h.b16 %v386
    %v550 = vunpack.c.l.b16 %v387
    %v551 = vunpack.c.h.b16 %v387
    %v552 = vunpack.c.l.b16 %v388
    %v553 = vunpack.c.h.b16 %v388
    %v554 = vunpack.c.l.b16 %v389
    %v555 = vunpack.c.h.b16 %v389
    %v556 = vunpack.c.l.b16 %v390
    %v557 = vunpack.c.h.b16 %v390
    %v558 = vunpack.c.l.b16 %v391
    %v559 = vunpack.c.h.b16 %v391
    %v560 = vunpack.c.l.b16 %v392
    %v561 = vunpack.c.h.b16 %v392
    %v562 = vunpack.c.l.b16 %v393
    %v563 = vunpack.c.h.b16 %v393
    %v564 = vunpack.c.l.b16 %v394
    %v565 = vunpack.c.h.b16 %v394
    %v566 = vunpack.c.l.b16 %v395
    %v567 = vunpack.c.h.b16 %v395
    %v568 = vunpack.c.l.b16 %v396
    %v569 = vunpack.c.h.b16 %v396
    %v570 = vunpack.c.l.b16 %v397
    %v571 = vunpack.c.h.b16 %v397
    %v572 = vunpack.c.l.b16 %v398
    %v573 = vunpack.c.h.b16 %v398
    %v574 = vunpack.c.l.b16 %v399
    %v575 = vunpack.c.h.b16 %v399
    %v576 = vunpack.c.l.b16 %v400
    %v577 = vunpack.c.h.b16 %v400
    %v578 = vunpack.c.l.b16 %v401
    %v579 = vunpack.c.h.b16 %v401
    %v580 = vunpack.c.l.b16 %v402
    %v581 = vunpack.c.h.b16 %v402
    %v582 = vunpack.c.l.b16 %v403
    %v583 = vunpack.c.h.b16 %v403
    %v584 = vunpack.c.l.b16 %v404
    %v585 = vunpack.c.h.b16 %v404
    %v586 = vunpack.c.l.b16 %v405
    %v587 = vunpack.c.h.b16 %v405
    %v588 = vunpack.c.l.b16 %v406
    %v589 = vunpack.c.h.b16 %v406
    %v590 = vunpack.c.l.b16 %v407
    %v591 = vunpack.c.h.b16 %v407
    %v592 = vunpack.c.l.b16 %v408
    %v593 = vunpack.c.h.b16 %v408
    %v594 = vunpack.c.l.b16 %v409
    %v595 = vunpack.c.h.b16 %v409
    %v596 = vunpack.c.l.b16 %v410
    %v597 = vunpack.c.h.b16 %v410
    %v598 = vunpack.c.l.b16 %v411
    %v599 = vunpack.c.h.b16 %v411
    %v600 = vunpack.c.l.b16 %v412
    %v601 = vunpack.c.h.b16 %v412
    %v602 = vunpack.c.l.b16 %v413
    %v603 = vunpack.c.h.b16 %v413
    %v604 = vunpack.c.l.b16 %v414
    %v605 = vunpack.c.h.b16 %v414
    %v606 = vunpack.c.l.b16 %v415
    %v607 = vunpack.c.h.b16 %v415
    %v608 = vunpack.c.l.b16 %v416
    %v609 = vunpack.c.h.b16 %v416
    %v610 = vunpack.c.l.b16 %v417
    %v611 = vunpack.c.h.b16 %v417
    %v612 = vunpack.c.l.b16 %v418
    %v613 = vunpack.c.h.b16 %v418
    %v614 = vunpack.c.l.b16 %v419
    %v615 = vunpack.c.h.b16 %v419
    %v616 = vunpack.c.l.b16 %v420
    %v617 = vunpack.c.h.b16 %v420
    %v618 = vunpack.c.l.b16 %v421
    %v619 = vunpack.c.h.b16 %v421
    %v620 = vunpack.c.l.b16 %v422
    %v621 = vunpack.c.h.b16 %v422
    %v622 = vunpack.c.l.b16 %v423
    %v623 = vunpack.c.h.b16 %v423
    %v624 = vunpack.c.l.b16 %v424
    %v625 = vunpack.c.h.b16 %v424
    %v626 = vunpack.c.l.b16 %v425
    %v627 = vunpack.c.h.b16 %v425
    %v628 = vunpack.c.l.b16 %v426
    %v629 = vunpack.c.h.b16 %v426
    %v630 = vunpack.c.l.b16 %v427
    %v631 = vunpack.c.h.b16 %v427
    %v632 = vpack.c.b16 %v508, %v504
    %v633 = vpack.c.b16 %v509, %v505
    %v634 = vpack.c.b16 %v510, %v506
    %v635 = vpack.c.b16 %v511, %v507
    %v636 = vpack.c.b16 %v516, %v512
    %v637 = vpack.c.b16 %v517, %v513
    %v638 = vpack.c.b16 %v518, %v514
    %v639 = vpack.c.b16 %v519, %v515
    %v640 = vpack.c.b16 %v524, %v520
    %v641 = vpack.c.b16 %v525, %v521
    %v642 = vpack.c.b16 %v526, %v522
    %v643 = vpack.c.b16 %v527, %v523
    %v644 = vpack.c.b16 %v532, %v528
    %v645 = vpack.c.b16 %v533, %v529
    %v646 = vpack.c.b16 %v534, %v530
    %v647 = vpack.c.b16 %v535, %v531
    %v648 = vpack.c.b16 %v540, %v536
    %v649 = vpack.c.b16 %v541, %v537
    %v650 = vpack.c.b16 %v542, %v538
    %v651 = vpack.c.b16 %v543, %v539
    %v652 = vpack.c.b16 %v548, %v544
    %v653 = vpack.c.b16 %v549, %v545
    %v654 = vpack.c.b16 %v550, %v546
    %v655 = vpack.c.b16 %v551, %v547
    %v656 = vpack.c.b16 %v556, %v552
    %v657 = vpack.c.b16 %v557, %v553
    %v658 = vpack.c.b16 %v558, %v554
    %v659 = vpack.c.b16 %v559, %v555
    %v660 = vpack.c.b16 %v564, %v560
    %v661 = vpack.c.b16 %v565, %v561
    %v662 = vpack.c.b16 %v566, %v562
    %v663 = vpack.c.b16 %v567, %v563
    %v664 = vpack.c.b16 %v572, %v568
    %v665 = vpack.c.b16 %v573, %v569
    %v666 = vpack.c.b16 %v574, %v570
    %v667 = vpack.c.b16 %v575, %v571
    %v668 = vpack.c.b16 %v580, %v576
    %v669 = vpack.c.b16 %v581, %v577
    %v670 = vpack.c.b16 %v582, %v578
    %v671 = vpack.c.b16 %v583, %v579
    %v672 = vpack.c.b16 %v588, %v584
    %v673 = vpack.c.b16 %v589, %v585
    %v674 = vpack.c.b16 %v590, %v586
    %v675 = vpack.c.b16 %v591, %v587
    %v676 = vpack.c.b16 %v596, %v592
    %v677 = vpack.c.b16 %v597, %v593
    %v678 = vpack.c.b16 %v598, %v594
    %v679 = vpack.c.b16 %v599, %v595
    %v680 = vpack.c.b16 %v604, %v600
    %v681 = vpack.c.b16 %v605, %v601
    %v682 = vpack.c.b16 %v606, %v602
    %v683 = vpack.c.b16 %v607, %v603
    %v684 = vpack.c.b16 %v612, %v608
    %v685 = vpack.c.b16 %v613, %v609
    %v686 = vpack.c.b16 %v614, %v610
    %v687 = vpack.c.b16 %v615, %v611
    %v688 = vpack.c.b16 %v620, %v616
    %v689 = vpack.c.b16 %v621, %v617
    %v690 = vpack.c.b16 %v622, %v618
    %v691 = vpack.c.b16 %v623, %v619
    %v692 = vpack.c.b16 %v628, %v624
    %v693 = vpack.c.b16 %v629, %v625
    %v694 = vpack.c.b16 %v630, %v626
    %v695 = vpack.c.b16 %v631, %v627
    %760 = vmatpush.bf16.msra.mxu0 %v660
    %761 = vmatpush.bf16.msra.mxu0 %v656
    %762 = vmatpush.bf16.msra.mxu0 %v652
    %763 = vmatpush.bf16.msra.mxu0 %v648
    %764 = vmatpush.bf16.msra.mxu0 %v644
    %765 = vmatpush.bf16.msra.mxu0 %v640
    %766 = vmatpush.bf16.msra.mxu0 %v636
    %767 = vmatpush.bf16.msra.mxu0 %v632
    %768 = vmatmul.bf16.gmra.mxu0 %v428
    %v769 = vpop.f32.mrf.mxu0
    %v770 = vadd.f32 %v432, %v769
    %v771 = vpop.f32.mrf.mxu0
    %772 = vdwg.mxu0
    %773 = vmatpush.bf16.msra.mxu0 %v692
    %774 = vmatpush.bf16.msra.mxu0 %v688
    %775 = vmatpush.bf16.msra.mxu0 %v684
    %776 = vmatpush.bf16.msra.mxu0 %v680
    %777 = vmatpush.bf16.msra.mxu0 %v676
    %778 = vmatpush.bf16.msra.mxu0 %v672
    %779 = vmatpush.bf16.msra.mxu0 %v668
    %780 = vmatpush.bf16.msra.mxu0 %v664
    %781 = vmatmul.bf16.gmra.mxu0 %v429
    %v782 = vpop.f32.mrf.mxu0
    %v783 = vadd.f32 %v770, %v782
    %v784 = vpop.f32.mrf.mxu0
    %785 = vdwg.mxu0
    %786 = vmatpush.bf16.msra.mxu0 %v661
    %787 = vmatpush.bf16.msra.mxu0 %v657
    %788 = vmatpush.bf16.msra.mxu0 %v653
    %789 = vmatpush.bf16.msra.mxu0 %v649
    %790 = vmatpush.bf16.msra.mxu0 %v645
    %791 = vmatpush.bf16.msra.mxu0 %v641
    %792 = vmatpush.bf16.msra.mxu0 %v637
    %793 = vmatpush.bf16.msra.mxu0 %v633
    %794 = vmatmul.bf16.gmra.mxu0 %v428
    %v795 = vpop.f32.mrf.mxu0
    %v796 = vadd.f32 %v433, %v795
    %v797 = vpop.f32.mrf.mxu0
    %798 = vdwg.mxu0
    %799 = vmatpush.bf16.msra.mxu0 %v693
    %800 = vmatpush.bf16.msra.mxu0 %v689
    %801 = vmatpush.bf16.msra.mxu0 %v685
    %802 = vmatpush.bf16.msra.mxu0 %v681
    %803 = vmatpush.bf16.msra.mxu0 %v677
    %804 = vmatpush.bf16.msra.mxu0 %v673
    %805 = vmatpush.bf16.msra.mxu0 %v669
    %806 = vmatpush.bf16.msra.mxu0 %v665
    %807 = vmatmul.bf16.gmra.mxu0 %v429
    %v808 = vpop.f32.mrf.mxu0
    %v809 = vadd.f32 %v796, %v808
    %v810 = vpop.f32.mrf.mxu0
    %811 = vdwg.mxu0
    %812 = vmatpush.bf16.msra.mxu0 %v662
    %813 = vmatpush.bf16.msra.mxu0 %v658
    %814 = vmatpush.bf16.msra.mxu0 %v654
    %815 = vmatpush.bf16.msra.mxu0 %v650
    %816 = vmatpush.bf16.msra.mxu0 %v646
    %817 = vmatpush.bf16.msra.mxu0 %v642
    %818 = vmatpush.bf16.msra.mxu0 %v638
    %819 = vmatpush.bf16.msra.mxu0 %v634
    %820 = vmatmul.bf16.gmra.mxu0 %v428
    %v821 = vpop.f32.mrf.mxu0
    %v822 = vadd.f32 %v434, %v821
    %v823 = vpop.f32.mrf.mxu0
    %824 = vdwg.mxu0
    %825 = vmatpush.bf16.msra.mxu0 %v694
    %826 = vmatpush.bf16.msra.mxu0 %v690
    %827 = vmatpush.bf16.msra.mxu0 %v686
    %828 = vmatpush.bf16.msra.mxu0 %v682
    %829 = vmatpush.bf16.msra.mxu0 %v678
    %830 = vmatpush.bf16.msra.mxu0 %v674
    %831 = vmatpush.bf16.msra.mxu0 %v670
    %832 = vmatpush.bf16.msra.mxu0 %v666
    %833 = vmatmul.bf16.gmra.mxu0 %v429
    %v834 = vpop.f32.mrf.mxu0
    %v835 = vadd.f32 %v822, %v834
    %v836 = vpop.f32.mrf.mxu0
    %837 = vdwg.mxu0
    %838 = vmatpush.bf16.msra.mxu0 %v663
    %839 = vmatpush.bf16.msra.mxu0 %v659
    %840 = vmatpush.bf16.msra.mxu0 %v655
    %841 = vmatpush.bf16.msra.mxu0 %v651
    %842 = vmatpush.bf16.msra.mxu0 %v647
    %843 = vmatpush.bf16.msra.mxu0 %v643
    %844 = vmatpush.bf16.msra.mxu0 %v639
    %845 = vmatpush.bf16.msra.mxu0 %v635
    %846 = vmatmul.bf16.gmra.mxu0 %v428
    %v847 = vpop.f32.mrf.mxu0
    %v848 = vadd.f32 %v435, %v847
    %v849 = vpop.f32.mrf.mxu0
    %850 = vdwg.mxu0
    %851 = vmatpush.bf16.msra.mxu0 %v695
    %852 = vmatpush.bf16.msra.mxu0 %v691
    %853 = vmatpush.bf16.msra.mxu0 %v687
    %854 = vmatpush.bf16.msra.mxu0 %v683
    %855 = vmatpush.bf16.msra.mxu0 %v679
    %856 = vmatpush.bf16.msra.mxu0 %v675
    %857 = vmatpush.bf16.msra.mxu0 %v671
    %858 = vmatpush.bf16.msra.mxu0 %v667
    %859 = vmatmul.bf16.gmra.mxu0 %v429
    %v860 = vpop.f32.mrf.mxu0
    %v861 = vadd.f32 %v848, %v860
    %v862 = vpop.f32.mrf.mxu0
    %863 = vdwg.mxu0
    %v864 = vxor.u32 %v783, 2147483648
    %v865 = vmul.f32 %v864, 1.442695
    %v866 = vpow.pop %v865
    %v867 = vadd.f32 %v866, 1.0
    %v868 = vrcp.pop %v867
    %v869 = vmul.f32 %v867, %v868
    %v870 = vsub.f32 1.0, %v869
    %v871 = vmul.f32 %v868, %v870
    %v872 = vadd.f32 %v868, %v871
    %vm873 = vweird.f32 %v867
    %vm874 = vweird.f32 %v868
    %vm875 = vmor %vm873, %vm874
    %v876 = vsel %vm875, %v868, %v872
    %v877 = vand.u32 2147483647, %v867
    %vm878 = vcmp.eq.f32.partialorder %v877, 8.507059e+37
    %v879 = vand.u32 %v867, 2147483648
    %v880 = vor.u32 1.1754944e-38, %v879
    %v881 = vsel %vm878, %v880, %v876
    %v882 = vmul.f32 1.0, %v881
    %v883 = vxor.u32 %v809, 2147483648
    %v884 = vmul.f32 %v883, 1.442695
    %v885 = vpow.pop %v884
    %v886 = vadd.f32 %v885, 1.0
    %v887 = vrcp.pop %v886
    %v888 = vmul.f32 %v886, %v887
    %v889 = vsub.f32 1.0, %v888
    %v890 = vmul.f32 %v887, %v889
    %v891 = vadd.f32 %v887, %v890
    %vm892 = vweird.f32 %v886
    %vm893 = vweird.f32 %v887
    %vm894 = vmor %vm892, %vm893
    %v895 = vsel %vm894, %v887, %v891
    %v896 = vand.u32 2147483647, %v886
    %vm897 = vcmp.eq.f32.partialorder %v896, 8.507059e+37
    %v898 = vand.u32 %v886, 2147483648
    %v899 = vor.u32 1.1754944e-38, %v898
    %v900 = vsel %vm897, %v899, %v895
    %v901 = vmul.f32 1.0, %v900
    %v902 = vtanh.pop %v835
    %v903 = vxor.u32 %v861, 2147483648
    %v904 = vmul.f32 %v903, 1.442695
    %v905 = vpow.pop %v904
    %v906 = vadd.f32 %v905, 1.0
    %v907 = vrcp.pop %v906
    %v908 = vmul.f32 %v906, %v907
    %v909 = vsub.f32 1.0, %v908
    %v910 = vmul.f32 %v907, %v909
    %v911 = vadd.f32 %v907, %v910
    %vm912 = vweird.f32 %v906
    %vm913 = vweird.f32 %v907
    %vm914 = vmor %vm912, %vm913
    %v915 = vsel %vm914, %v907, %v911
    %v916 = vand.u32 2147483647, %v906
    %vm917 = vcmp.eq.f32.partialorder %v916, 8.507059e+37
    %v918 = vand.u32 %v906, 2147483648
    %v919 = vor.u32 1.1754944e-38, %v918
    %v920 = vsel %vm917, %v919, %v915
    %v921 = vmul.f32 1.0, %v920
    %v922 = vmul.f32 %v901, %v42
    %v923 = vmul.f32 %v882, %v902
    %v924 = vadd.f32 %v922, %v923
    %v925 = vtanh.pop %v924
    %v926 = vmul.f32 %v921, %v925
    %v927 = vpack.c.bf16 %v926, %v926
    %s928 = smul.addr %s34, 4
    %s929 = scalar_lea.vmem %s8, %s928
    %930 = vst [vmem:[%s929] sm:$0xf] %v927
  $region38: #{_lambda_.8} parent=0 // loop_footer
    %s38 = sadd.s32 1, %s34
  $region39: #{_lambda_.8} parent=0 // loop_footer_branch
    %33 = sbr.rel target = $region35
  $region40: #{_lambda_.8} parent=0 // loop_exit
    _
  // Predicated region
  $region41: #{_lambda_.8} parent=0 // pred_check
    _
  $region42: #{_lambda_.8} parent=0 // pred_check_branch
    %932 = sbr.rel (0) target = $region44
  $region43: #{_lambda_.8} parent=0 // pred_region
    _
  $region44: #{_lambda_.8} parent=0 // pred_fallthru
    _
  // Predicated region
  $region45: #{_lambda_.8} parent=0 // pred_check
    _
  $region46: #{_lambda_.8} parent=0 // pred_check_branch
    %934 = sbr.rel (0) target = $region48
  $region47: #{_lambda_.8} parent=0 // pred_region
    _
  $region48: #{_lambda_.8} parent=0 // pred_fallthru
    _

// kernel: _lambda_.6
$region0: #{_lambda_.6}
  #allocation0 [shape = 'u32[]', space=smem, size = 0x4, offset = 0x4, fixed_abs, tag = 'smem constant byte address 0x4 - core index']
  #allocation1 [shape = 'u32[72,128]{1,0:T(1,128)}', space=vmem, size = 0x9000, scoped, tag = 'internal scratch']
  %s0 = inlined_call_operand.vmem [shape: bf16[3,2,128], index: 0, kind: input, shape index: {}]
  %s1 = inlined_call_operand.vmem [shape: bf16[3,2,128], index: 1, kind: input, shape index: {}]
  %s2 = inlined_call_operand.vmem [shape: bf16[128,256], index: 2, kind: input, shape index: {}]
  %s3 = inlined_call_operand.vmem [shape: f32[1,256], index: 3, kind: input, shape index: {}]
  %s4 = inlined_call_operand.vmem [shape: f32[1,256], index: 4, kind: input, shape index: {}]
  %s5 = inlined_call_operand.vmem [shape: f32[1,256], index: 5, kind: input, shape index: {}]
  %s6 = inlined_call_operand.vmem [shape: bf16[256,128], index: 6, kind: input, shape index: {}]
  %s7 = inlined_call_operand.vmem [shape: f32[1,128], index: 7, kind: input, shape index: {}]
  %s8 = inlined_call_operand.vmem [shape: bf16[128,128], index: 8, kind: input, shape index: {}]
  %s9 = inlined_call_operand.vmem [shape: bf16[128,128], index: 9, kind: input, shape index: {}]
  %s10 = inlined_call_operand.vmem [shape: f32[1,128], index: 10, kind: input, shape index: {}]
  %s11 = inlined_call_operand.vmem [shape: f32[1,128], index: 11, kind: input, shape index: {}]
  %s12 = inlined_call_operand.vmem [shape: f32[1,128], index: 12, kind: input, shape index: {}]
  %s13 = inlined_call_operand.vmem [shape: bf16[128,128], index: 13, kind: input, shape index: {}]
  %s14 = inlined_call_operand.vmem [shape: f32[1,128], index: 14, kind: input, shape index: {}]
  %s15 = inlined_call_operand.vmem [shape: bf16[128,512], index: 15, kind: input, shape index: {}]
  %s16 = inlined_call_operand.vmem [shape: f32[1,512], index: 16, kind: input, shape index: {}]
  %s17 = inlined_call_operand.vmem [shape: bf16[3,2,128], index: 17, kind: output, shape index: {0}]
  %s18 = inlined_call_operand.vmem [shape: bf16[3,2,512], index: 18, kind: output, shape index: {1}]
  %19 = xla_tuple %s17, %s18
  %s20 = sld [smem:[#allocation0]]
  $region109: #{_lambda_.6} parent=0
    _
  %s22 = ssub.s32 1, %s20
  %s23 = scalar_select 0, %s22, %s20
  loop: start=0, step=1, limit=5
  $region2: #{_lambda_.6} parent=0 // loop_pre_header
    _
  $region3: #{_lambda_.6} parent=0 // loop_header
    %s25 = sphi 0, %s29
    %p26 = scmp.ge.s32.totalorder %s25, 5
    %s35 = sphi 0, %s37
    %s38 = sphi 0, %s35
    %s39 = sphi 0, %s38
    %s55 = sphi 0, %s39
    %s61 = sphi 0, %s63
    %s64 = sphi 0, %s61
    %s65 = sphi 0, %s64
    %s81 = sphi 0, %s65
    %s85 = sphi 0, %s85
    %s87 = sphi 0, %s85
    %s88 = sphi 0, %s87
    %s102 = sphi 0, %s88
    %s106 = sphi 0, %s106
    %s108 = sphi 0, %s106
    %s109 = sphi 0, %s108
    %s123 = sphi 0, %s109
    %s127 = sphi 0, %s127
    %s129 = sphi 0, %s127
    %s130 = sphi 0, %s129
    %s144 = sphi 0, %s130
    %s148 = sphi 0, %s148
    %s150 = sphi 0, %s148
    %s151 = sphi 0, %s150
    %s165 = sphi 0, %s151
    %s169 = sphi 0, %s169
    %s171 = sphi 0, %s169
    %s172 = sphi 0, %s171
    %s186 = sphi 0, %s172
    %s190 = sphi 0, %s190
    %s192 = sphi 0, %s190
    %s193 = sphi 0, %s192
    %s207 = sphi 0, %s193
    %s211 = sphi 0, %s211
    %s213 = sphi 0, %s211
    %s214 = sphi 0, %s213
    %s228 = sphi 0, %s214
    %s232 = sphi 0, %s232
    %s234 = sphi 0, %s232
    %s235 = sphi 0, %s234
    %s249 = sphi 0, %s235
    %s253 = sphi 0, %s253
    %s255 = sphi 0, %s253
    %s256 = sphi 0, %s255
    %s270 = sphi 0, %s256
    %s274 = sphi 0, %s274
    %s276 = sphi 0, %s274
    %s277 = sphi 0, %s276
    %s291 = sphi 0, %s277
    %s295 = sphi 0, %s295
    %s297 = sphi 0, %s295
    %s298 = sphi 0, %s297
    %s312 = sphi 0, %s298
    %s316 = sphi 0, %s316
    %s318 = sphi 0, %s316
    %s319 = sphi 0, %s318
    %s333 = sphi 0, %s319
    %s337 = sphi 0, %s337
    %s339 = sphi 0, %s337
    %s340 = sphi 0, %s339
    %s354 = sphi 0, %s340
    %s358 = sphi 0, %s358
    %s360 = sphi 0, %s358
    %s361 = sphi 0, %s360
    %s375 = sphi 0, %s361
    %s379 = sphi 0, %s379
    %s381 = sphi 0, %s379
    %s382 = sphi 0, %s381
    %s396 = sphi 0, %s382
    %s402 = sphi 0, %s404
    %s405 = sphi 0, %s402
    %s406 = sphi 0, %s405
    %s422 = sphi 0, %s406
    %s428 = sphi 0, %s430
    %s431 = sphi 0, %s428
    %s432 = sphi 0, %s431
    %s448 = sphi 0, %s432
  $region4: #{_lambda_.6} parent=0 // loop_header_branch
    %28 = sbr.rel (%p26) target = $region8
  $region5: #{_lambda_.6} parent=0 // loop_body
    %s30 = ssub.s32 %s25, 1
    %s31 = ssub.s32 %s25, 2
    %s32 = sadd.s32 %s25, 1
    %s33 = ssub.s32 %s25, %s32
    %p34 = scmp.eq.s32.totalorder %s33, 0
    %s36 = sadd.s32 %s35, 1
    %s37 = scalar_select %p34, %s35, %s36
    %p40 = pneg %p34
    %p41 = scmp.eq.s32.totalorder %s25, 2
    %p42 = por %p40, %p41
    %p43 = scmp.ne.s32.totalorder %s35, %s38
    %p44 = scmp.eq.s32.totalorder %s25, 0
    %p45 = por %p43, %p44
    %p46 = scmp.ne.s32.totalorder %s35, %s38
    %p47 = scmp.eq.s32.totalorder %s30, 2
    %p48 = por %p46, %p47
    %p49 = scmp.ne.s32.totalorder %s38, %s39
    %p50 = scmp.eq.s32.totalorder %s30, 0
    %p51 = por %p49, %p50
    %p52 = scmp.ne.s32.totalorder %s38, %s39
    %p53 = scmp.eq.s32.totalorder %s31, 2
    %p54 = por %p52, %p53
    %p56 = scmp.ne.s32.totalorder %s39, %s55
    %p57 = scmp.eq.s32.totalorder %s31, 0
    %p58 = por %p56, %p57
    %s59 = ssub.s32 %s25, %s32
    %p60 = scmp.eq.s32.totalorder %s59, 0
    %s62 = sadd.s32 %s61, 1
    %s63 = scalar_select %p60, %s61, %s62
    %p66 = pneg %p60
    %p67 = scmp.eq.s32.totalorder %s25, 2
    %p68 = por %p66, %p67
    %p69 = scmp.ne.s32.totalorder %s61, %s64
    %p70 = scmp.eq.s32.totalorder %s25, 0
    %p71 = por %p69, %p70
    %p72 = scmp.ne.s32.totalorder %s61, %s64
    %p73 = scmp.eq.s32.totalorder %s30, 2
    %p74 = por %p72, %p73
    %p75 = scmp.ne.s32.totalorder %s64, %s65
    %p76 = scmp.eq.s32.totalorder %s30, 0
    %p77 = por %p75, %p76
    %p78 = scmp.ne.s32.totalorder %s64, %s65
    %p79 = scmp.eq.s32.totalorder %s31, 2
    %p80 = por %p78, %p79
    %p82 = scmp.ne.s32.totalorder %s65, %s81
    %p83 = scmp.eq.s32.totalorder %s31, 0
    %p84 = por %p82, %p83
    %s86 = sadd.s32 %s85, 1
    %p89 = scmp.eq.s32.totalorder %s25, 2
    %p90 = scmp.ne.s32.totalorder %s85, %s87
    %p91 = scmp.eq.s32.totalorder %s25, 0
    %p92 = por %p90, %p91
    %p93 = scmp.ne.s32.totalorder %s85, %s87
    %p94 = scmp.eq.s32.totalorder %s30, 2
    %p95 = por %p93, %p94
    %p96 = scmp.ne.s32.totalorder %s87, %s88
    %p97 = scmp.eq.s32.totalorder %s30, 0
    %p98 = por %p96, %p97
    %p99 = scmp.ne.s32.totalorder %s87, %s88
    %p100 = scmp.eq.s32.totalorder %s31, 2
    %p101 = por %p99, %p100
    %p103 = scmp.ne.s32.totalorder %s88, %s102
    %p104 = scmp.eq.s32.totalorder %s31, 0
    %p105 = por %p103, %p104
    %s107 = sadd.s32 %s106, 1
    %p110 = scmp.eq.s32.totalorder %s25, 2
    %p111 = scmp.ne.s32.totalorder %s106, %s108
    %p112 = scmp.eq.s32.totalorder %s25, 0
    %p113 = por %p111, %p112
    %p114 = scmp.ne.s32.totalorder %s106, %s108
    %p115 = scmp.eq.s32.totalorder %s30, 2
    %p116 = por %p114, %p115
    %p117 = scmp.ne.s32.totalorder %s108, %s109
    %p118 = scmp.eq.s32.totalorder %s30, 0
    %p119 = por %p117, %p118
    %p120 = scmp.ne.s32.totalorder %s108, %s109
    %p121 = scmp.eq.s32.totalorder %s31, 2
    %p122 = por %p120, %p121
    %p124 = scmp.ne.s32.totalorder %s109, %s123
    %p125 = scmp.eq.s32.totalorder %s31, 0
    %p126 = por %p124, %p125
    %s128 = sadd.s32 %s127, 1
    %p131 = scmp.eq.s32.totalorder %s25, 2
    %p132 = scmp.ne.s32.totalorder %s127, %s129
    %p133 = scmp.eq.s32.totalorder %s25, 0
    %p134 = por %p132, %p133
    %p135 = scmp.ne.s32.totalorder %s127, %s129
    %p136 = scmp.eq.s32.totalorder %s30, 2
    %p137 = por %p135, %p136
    %p138 = scmp.ne.s32.totalorder %s129, %s130
    %p139 = scmp.eq.s32.totalorder %s30, 0
    %p140 = por %p138, %p139
    %p141 = scmp.ne.s32.totalorder %s129, %s130
    %p142 = scmp.eq.s32.totalorder %s31, 2
    %p143 = por %p141, %p142
    %p145 = scmp.ne.s32.totalorder %s130, %s144
    %p146 = scmp.eq.s32.totalorder %s31, 0
    %p147 = por %p145, %p146
    %s149 = sadd.s32 %s148, 1
    %p152 = scmp.eq.s32.totalorder %s25, 2
    %p153 = scmp.ne.s32.totalorder %s148, %s150
    %p154 = scmp.eq.s32.totalorder %s25, 0
    %p155 = por %p153, %p154
    %p156 = scmp.ne.s32.totalorder %s148, %s150
    %p157 = scmp.eq.s32.totalorder %s30, 2
    %p158 = por %p156, %p157
    %p159 = scmp.ne.s32.totalorder %s150, %s151
    %p160 = scmp.eq.s32.totalorder %s30, 0
    %p161 = por %p159, %p160
    %p162 = scmp.ne.s32.totalorder %s150, %s151
    %p163 = scmp.eq.s32.totalorder %s31, 2
    %p164 = por %p162, %p163
    %p166 = scmp.ne.s32.totalorder %s151, %s165
    %p167 = scmp.eq.s32.totalorder %s31, 0
    %p168 = por %p166, %p167
    %s170 = sadd.s32 %s169, 1
    %p173 = scmp.eq.s32.totalorder %s25, 2
    %p174 = scmp.ne.s32.totalorder %s169, %s171
    %p175 = scmp.eq.s32.totalorder %s25, 0
    %p176 = por %p174, %p175
    %p177 = scmp.ne.s32.totalorder %s169, %s171
    %p178 = scmp.eq.s32.totalorder %s30, 2
    %p179 = por %p177, %p178
    %p180 = scmp.ne.s32.totalorder %s171, %s172
    %p181 = scmp.eq.s32.totalorder %s30, 0
    %p182 = por %p180, %p181
    %p183 = scmp.ne.s32.totalorder %s171, %s172
    %p184 = scmp.eq.s32.totalorder %s31, 2
    %p185 = por %p183, %p184
    %p187 = scmp.ne.s32.totalorder %s172, %s186
    %p188 = scmp.eq.s32.totalorder %s31, 0
    %p189 = por %p187, %p188
    %s191 = sadd.s32 %s190, 1
    %p194 = scmp.eq.s32.totalorder %s25, 2
    %p195 = scmp.ne.s32.totalorder %s190, %s192
    %p196 = scmp.eq.s32.totalorder %s25, 0
    %p197 = por %p195, %p196
    %p198 = scmp.ne.s32.totalorder %s190, %s192
    %p199 = scmp.eq.s32.totalorder %s30, 2
    %p200 = por %p198, %p199
    %p201 = scmp.ne.s32.totalorder %s192, %s193
    %p202 = scmp.eq.s32.totalorder %s30, 0
    %p203 = por %p201, %p202
    %p204 = scmp.ne.s32.totalorder %s192, %s193
    %p205 = scmp.eq.s32.totalorder %s31, 2
    %p206 = por %p204, %p205
    %p208 = scmp.ne.s32.totalorder %s193, %s207
    %p209 = scmp.eq.s32.totalorder %s31, 0
    %p210 = por %p208, %p209
    %s212 = sadd.s32 %s211, 1
    %p215 = scmp.eq.s32.totalorder %s25, 2
    %p216 = scmp.ne.s32.totalorder %s211, %s213
    %p217 = scmp.eq.s32.totalorder %s25, 0
    %p218 = por %p216, %p217
    %p219 = scmp.ne.s32.totalorder %s211, %s213
    %p220 = scmp.eq.s32.totalorder %s30, 2
    %p221 = por %p219, %p220
    %p222 = scmp.ne.s32.totalorder %s213, %s214
    %p223 = scmp.eq.s32.totalorder %s30, 0
    %p224 = por %p222, %p223
    %p225 = scmp.ne.s32.totalorder %s213, %s214
    %p226 = scmp.eq.s32.totalorder %s31, 2
    %p227 = por %p225, %p226
    %p229 = scmp.ne.s32.totalorder %s214, %s228
    %p230 = scmp.eq.s32.totalorder %s31, 0
    %p231 = por %p229, %p230
    %s233 = sadd.s32 %s232, 1
    %p236 = scmp.eq.s32.totalorder %s25, 2
    %p237 = scmp.ne.s32.totalorder %s232, %s234
    %p238 = scmp.eq.s32.totalorder %s25, 0
    %p239 = por %p237, %p238
    %p240 = scmp.ne.s32.totalorder %s232, %s234
    %p241 = scmp.eq.s32.totalorder %s30, 2
    %p242 = por %p240, %p241
    %p243 = scmp.ne.s32.totalorder %s234, %s235
    %p244 = scmp.eq.s32.totalorder %s30, 0
    %p245 = por %p243, %p244
    %p246 = scmp.ne.s32.totalorder %s234, %s235
    %p247 = scmp.eq.s32.totalorder %s31, 2
    %p248 = por %p246, %p247
    %p250 = scmp.ne.s32.totalorder %s235, %s249
    %p251 = scmp.eq.s32.totalorder %s31, 0
    %p252 = por %p250, %p251
    %s254 = sadd.s32 %s253, 1
    %p257 = scmp.eq.s32.totalorder %s25, 2
    %p258 = scmp.ne.s32.totalorder %s253, %s255
    %p259 = scmp.eq.s32.totalorder %s25, 0
    %p260 = por %p258, %p259
    %p261 = scmp.ne.s32.totalorder %s253, %s255
    %p262 = scmp.eq.s32.totalorder %s30, 2
    %p263 = por %p261, %p262
    %p264 = scmp.ne.s32.totalorder %s255, %s256
    %p265 = scmp.eq.s32.totalorder %s30, 0
    %p266 = por %p264, %p265
    %p267 = scmp.ne.s32.totalorder %s255, %s256
    %p268 = scmp.eq.s32.totalorder %s31, 2
    %p269 = por %p267, %p268
    %p271 = scmp.ne.s32.totalorder %s256, %s270
    %p272 = scmp.eq.s32.totalorder %s31, 0
    %p273 = por %p271, %p272
    %s275 = sadd.s32 %s274, 1
    %p278 = scmp.eq.s32.totalorder %s25, 2
    %p279 = scmp.ne.s32.totalorder %s274, %s276
    %p280 = scmp.eq.s32.totalorder %s25, 0
    %p281 = por %p279, %p280
    %p282 = scmp.ne.s32.totalorder %s274, %s276
    %p283 = scmp.eq.s32.totalorder %s30, 2
    %p284 = por %p282, %p283
    %p285 = scmp.ne.s32.totalorder %s276, %s277
    %p286 = scmp.eq.s32.totalorder %s30, 0
    %p287 = por %p285, %p286
    %p288 = scmp.ne.s32.totalorder %s276, %s277
    %p289 = scmp.eq.s32.totalorder %s31, 2
    %p290 = por %p288, %p289
    %p292 = scmp.ne.s32.totalorder %s277, %s291
    %p293 = scmp.eq.s32.totalorder %s31, 0
    %p294 = por %p292, %p293
    %s296 = sadd.s32 %s295, 1
    %p299 = scmp.eq.s32.totalorder %s25, 2
    %p300 = scmp.ne.s32.totalorder %s295, %s297
    %p301 = scmp.eq.s32.totalorder %s25, 0
    %p302 = por %p300, %p301
    %p303 = scmp.ne.s32.totalorder %s295, %s297
    %p304 = scmp.eq.s32.totalorder %s30, 2
    %p305 = por %p303, %p304
    %p306 = scmp.ne.s32.totalorder %s297, %s298
    %p307 = scmp.eq.s32.totalorder %s30, 0
    %p308 = por %p306, %p307
    %p309 = scmp.ne.s32.totalorder %s297, %s298
    %p310 = scmp.eq.s32.totalorder %s31, 2
    %p311 = por %p309, %p310
    %p313 = scmp.ne.s32.totalorder %s298, %s312
    %p314 = scmp.eq.s32.totalorder %s31, 0
    %p315 = por %p313, %p314
    %s317 = sadd.s32 %s316, 1
    %p320 = scmp.eq.s32.totalorder %s25, 2
    %p321 = scmp.ne.s32.totalorder %s316, %s318
    %p322 = scmp.eq.s32.totalorder %s25, 0
    %p323 = por %p321, %p322
    %p324 = scmp.ne.s32.totalorder %s316, %s318
    %p325 = scmp.eq.s32.totalorder %s30, 2
    %p326 = por %p324, %p325
    %p327 = scmp.ne.s32.totalorder %s318, %s319
    %p328 = scmp.eq.s32.totalorder %s30, 0
    %p329 = por %p327, %p328
    %p330 = scmp.ne.s32.totalorder %s318, %s319
    %p331 = scmp.eq.s32.totalorder %s31, 2
    %p332 = por %p330, %p331
    %p334 = scmp.ne.s32.totalorder %s319, %s333
    %p335 = scmp.eq.s32.totalorder %s31, 0
    %p336 = por %p334, %p335
    %s338 = sadd.s32 %s337, 1
    %p341 = scmp.eq.s32.totalorder %s25, 2
    %p342 = scmp.ne.s32.totalorder %s337, %s339
    %p343 = scmp.eq.s32.totalorder %s25, 0
    %p344 = por %p342, %p343
    %p345 = scmp.ne.s32.totalorder %s337, %s339
    %p346 = scmp.eq.s32.totalorder %s30, 2
    %p347 = por %p345, %p346
    %p348 = scmp.ne.s32.totalorder %s339, %s340
    %p349 = scmp.eq.s32.totalorder %s30, 0
    %p350 = por %p348, %p349
    %p351 = scmp.ne.s32.totalorder %s339, %s340
    %p352 = scmp.eq.s32.totalorder %s31, 2
    %p353 = por %p351, %p352
    %p355 = scmp.ne.s32.totalorder %s340, %s354
    %p356 = scmp.eq.s32.totalorder %s31, 0
    %p357 = por %p355, %p356
    %s359 = sadd.s32 %s358, 1
    %p362 = scmp.eq.s32.totalorder %s25, 2
    %p363 = scmp.ne.s32.totalorder %s358, %s360
    %p364 = scmp.eq.s32.totalorder %s25, 0
    %p365 = por %p363, %p364
    %p366 = scmp.ne.s32.totalorder %s358, %s360
    %p367 = scmp.eq.s32.totalorder %s30, 2
    %p368 = por %p366, %p367
    %p369 = scmp.ne.s32.totalorder %s360, %s361
    %p370 = scmp.eq.s32.totalorder %s30, 0
    %p371 = por %p369, %p370
    %p372 = scmp.ne.s32.totalorder %s360, %s361
    %p373 = scmp.eq.s32.totalorder %s31, 2
    %p374 = por %p372, %p373
    %p376 = scmp.ne.s32.totalorder %s361, %s375
    %p377 = scmp.eq.s32.totalorder %s31, 0
    %p378 = por %p376, %p377
    %s380 = sadd.s32 %s379, 1
    %p383 = scmp.eq.s32.totalorder %s25, 2
    %p384 = scmp.ne.s32.totalorder %s379, %s381
    %p385 = scmp.eq.s32.totalorder %s25, 0
    %p386 = por %p384, %p385
    %p387 = scmp.ne.s32.totalorder %s379, %s381
    %p388 = scmp.eq.s32.totalorder %s30, 2
    %p389 = por %p387, %p388
    %p390 = scmp.ne.s32.totalorder %s381, %s382
    %p391 = scmp.eq.s32.totalorder %s30, 0
    %p392 = por %p390, %p391
    %p393 = scmp.ne.s32.totalorder %s381, %s382
    %p394 = scmp.eq.s32.totalorder %s31, 2
    %p395 = por %p393, %p394
    %p397 = scmp.ne.s32.totalorder %s382, %s396
    %p398 = scmp.eq.s32.totalorder %s31, 0
    %p399 = por %p397, %p398
    %s400 = ssub.s32 %s25, %s32
    %p401 = scmp.eq.s32.totalorder %s400, 0
    %s403 = sadd.s32 %s402, 1
    %s404 = scalar_select %p401, %s402, %s403
    %p407 = pneg %p401
    %p408 = scmp.eq.s32.totalorder %s25, 2
    %p409 = por %p407, %p408
    %p410 = scmp.ne.s32.totalorder %s402, %s405
    %p411 = scmp.eq.s32.totalorder %s25, 0
    %p412 = por %p410, %p411
    %p413 = scmp.ne.s32.totalorder %s402, %s405
    %p414 = scmp.eq.s32.totalorder %s30, 2
    %p415 = por %p413, %p414
    %p416 = scmp.ne.s32.totalorder %s405, %s406
    %p417 = scmp.eq.s32.totalorder %s30, 0
    %p418 = por %p416, %p417
    %p419 = scmp.ne.s32.totalorder %s405, %s406
    %p420 = scmp.eq.s32.totalorder %s31, 2
    %p421 = por %p419, %p420
    %p423 = scmp.ne.s32.totalorder %s406, %s422
    %p424 = scmp.eq.s32.totalorder %s31, 0
    %p425 = por %p423, %p424
    %s426 = ssub.s32 %s25, %s32
    %p427 = scmp.eq.s32.totalorder %s426, 0
    %s429 = sadd.s32 %s428, 1
    %s430 = scalar_select %p427, %s428, %s429
    %p433 = pneg %p427
    %p434 = scmp.eq.s32.totalorder %s25, 2
    %p435 = por %p433, %p434
    %p436 = scmp.ne.s32.totalorder %s428, %s431
    %p437 = scmp.eq.s32.totalorder %s25, 0
    %p438 = por %p436, %p437
    %p439 = scmp.ne.s32.totalorder %s428, %s431
    %p440 = scmp.eq.s32.totalorder %s30, 2
    %p441 = por %p439, %p440
    %p442 = scmp.ne.s32.totalorder %s431, %s432
    %p443 = scmp.eq.s32.totalorder %s30, 0
    %p444 = por %p442, %p443
    %p445 = scmp.ne.s32.totalorder %s431, %s432
    %p446 = scmp.eq.s32.totalorder %s31, 2
    %p447 = por %p445, %p446
    %p449 = scmp.ne.s32.totalorder %s432, %s448
    %p450 = scmp.eq.s32.totalorder %s31, 0
    %p451 = por %p449, %p450
    %p452 = scmp.le.s32.totalorder 1, %s25
    %p453 = scmp.lt.s32.totalorder %s25, 4
    %p454 = pnand %p452, %p453
    %p455 = pneg %p454
    // Predicated region
    $region9: #{_lambda_.6} parent=5 // pred_check
      _
    $region10: #{_lambda_.6} parent=5 // pred_check_branch
      %457 = sbr.rel (%p454) target = $region12
    $region11: #{_lambda_.6} parent=5 // pred_region
      %s458 = ssub.s32 %s25, 1
      // Predicated region
      $region13: #{_lambda_.6} parent=11 // pred_check
        %p459 = pneg %p98
      $region14: #{_lambda_.6} parent=11 // pred_check_branch
        %461 = sbr.rel (%p459) target = $region16
      $region15: #{_lambda_.6} parent=11 // pred_region
        _
      $region16: #{_lambda_.6} parent=11 // pred_fallthru
        _
      // Predicated region
      $region17: #{_lambda_.6} parent=11 // pred_check
        %p462 = pneg %p119
      $region18: #{_lambda_.6} parent=11 // pred_check_branch
        %464 = sbr.rel (%p462) target = $region20
      $region19: #{_lambda_.6} parent=11 // pred_region
        _
      $region20: #{_lambda_.6} parent=11 // pred_fallthru
        _
      // Predicated region
      $region21: #{_lambda_.6} parent=11 // pred_check
        %p465 = pneg %p140
      $region22: #{_lambda_.6} parent=11 // pred_check_branch
        %467 = sbr.rel (%p465) target = $region24
      $region23: #{_lambda_.6} parent=11 // pred_region
        _
      $region24: #{_lambda_.6} parent=11 // pred_fallthru
        _
      // Predicated region
      $region25: #{_lambda_.6} parent=11 // pred_check
        %p468 = pneg %p161
      $region26: #{_lambda_.6} parent=11 // pred_check_branch
        %470 = sbr.rel (%p468) target = $region28
      $region27: #{_lambda_.6} parent=11 // pred_region
        _
      $region28: #{_lambda_.6} parent=11 // pred_fallthru
        _
      // Predicated region
      $region29: #{_lambda_.6} parent=11 // pred_check
        %p471 = pneg %p182
      $region30: #{_lambda_.6} parent=11 // pred_check_branch
        %473 = sbr.rel (%p471) target = $region32
      $region31: #{_lambda_.6} parent=11 // pred_region
        _
      $region32: #{_lambda_.6} parent=11 // pred_fallthru
        _
      // Predicated region
      $region33: #{_lambda_.6} parent=11 // pred_check
        %p474 = pneg %p203
      $region34: #{_lambda_.6} parent=11 // pred_check_branch
        %476 = sbr.rel (%p474) target = $region36
      $region35: #{_lambda_.6} parent=11 // pred_region
        _
      $region36: #{_lambda_.6} parent=11 // pred_fallthru
        _
      // Predicated region
      $region37: #{_lambda_.6} parent=11 // pred_check
        %p477 = pneg %p224
      $region38: #{_lambda_.6} parent=11 // pred_check_branch
        %479 = sbr.rel (%p477) target = $region40
      $region39: #{_lambda_.6} parent=11 // pred_region
        _
      $region40: #{_lambda_.6} parent=11 // pred_fallthru
        _
      // Predicated region
      $region41: #{_lambda_.6} parent=11 // pred_check
        %p480 = pneg %p245
      $region42: #{_lambda_.6} parent=11 // pred_check_branch
        %482 = sbr.rel (%p480) target = $region44
      $region43: #{_lambda_.6} parent=11 // pred_region
        _
      $region44: #{_lambda_.6} parent=11 // pred_fallthru
        _
      // Predicated region
      $region45: #{_lambda_.6} parent=11 // pred_check
        %p483 = pneg %p266
      $region46: #{_lambda_.6} parent=11 // pred_check_branch
        %485 = sbr.rel (%p483) target = $region48
      $region47: #{_lambda_.6} parent=11 // pred_region
        _
      $region48: #{_lambda_.6} parent=11 // pred_fallthru
        _
      // Predicated region
      $region49: #{_lambda_.6} parent=11 // pred_check
        %p486 = pneg %p287
      $region50: #{_lambda_.6} parent=11 // pred_check_branch
        %488 = sbr.rel (%p486) target = $region52
      $region51: #{_lambda_.6} parent=11 // pred_region
        _
      $region52: #{_lambda_.6} parent=11 // pred_fallthru
        _
      // Predicated region
      $region53: #{_lambda_.6} parent=11 // pred_check
        %p489 = pneg %p308
      $region54: #{_lambda_.6} parent=11 // pred_check_branch
        %491 = sbr.rel (%p489) target = $region56
      $region55: #{_lambda_.6} parent=11 // pred_region
        _
      $region56: #{_lambda_.6} parent=11 // pred_fallthru
        _
      // Predicated region
      $region57: #{_lambda_.6} parent=11 // pred_check
        %p492 = pneg %p329
      $region58: #{_lambda_.6} parent=11 // pred_check_branch
        %494 = sbr.rel (%p492) target = $region60
      $region59: #{_lambda_.6} parent=11 // pred_region
        _
      $region60: #{_lambda_.6} parent=11 // pred_fallthru
        _
      // Predicated region
      $region61: #{_lambda_.6} parent=11 // pred_check
        %p495 = pneg %p350
      $region62: #{_lambda_.6} parent=11 // pred_check_branch
        %497 = sbr.rel (%p495) target = $region64
      $region63: #{_lambda_.6} parent=11 // pred_region
        _
      $region64: #{_lambda_.6} parent=11 // pred_fallthru
        _
      // Predicated region
      $region65: #{_lambda_.6} parent=11 // pred_check
        %p498 = pneg %p371
      $region66: #{_lambda_.6} parent=11 // pred_check_branch
        %500 = sbr.rel (%p498) target = $region68
      $region67: #{_lambda_.6} parent=11 // pred_region
        _
      $region68: #{_lambda_.6} parent=11 // pred_fallthru
        _
      // Predicated region
      $region69: #{_lambda_.6} parent=11 // pred_check
        %p501 = pneg %p392
      $region70: #{_lambda_.6} parent=11 // pred_check_branch
        %503 = sbr.rel (%p501) target = $region72
      $region71: #{_lambda_.6} parent=11 // pred_region
        _
      $region72: #{_lambda_.6} parent=11 // pred_fallthru
        _
    $region12: #{_lambda_.6} parent=5 // pred_fallthru
      _
    %p504 = scmp.lt.s32.totalorder %s25, 3
    // Predicated region
    $region73: #{_lambda_.6} parent=5 // pred_check
      %p505 = pneg %p504
    $region74: #{_lambda_.6} parent=5 // pred_check_branch
      %507 = sbr.rel (%p505) target = $region76
    $region75: #{_lambda_.6} parent=5 // pred_region
      // Predicated region
      $region77: #{_lambda_.6} parent=75 // pred_check
        %p508 = pneg %p45
      $region78: #{_lambda_.6} parent=75 // pred_check_branch
        %510 = sbr.rel (%p508) target = $region80
      $region79: #{_lambda_.6} parent=75 // pred_region
        %p511 = scmp.lt.s32.totalorder %s25, 2
        %s512 = scalar_select %p511, %s25, 2
        %s513 = scalar_lea.vmem %s0, %s512
      $region80: #{_lambda_.6} parent=75 // pred_fallthru
        _
      // Predicated region
      $region81: #{_lambda_.6} parent=75 // pred_check
        %p514 = pneg %p71
      $region82: #{_lambda_.6} parent=75 // pred_check_branch
        %516 = sbr.rel (%p514) target = $region84
      $region83: #{_lambda_.6} parent=75 // pred_region
        %p517 = scmp.lt.s32.totalorder %s25, 2
        %s518 = scalar_select %p517, %s25, 2
        %s519 = scalar_lea.vmem %s1, %s518
      $region84: #{_lambda_.6} parent=75 // pred_fallthru
        _
    $region76: #{_lambda_.6} parent=5 // pred_fallthru
      _
    %p520 = scmp.le.s32.totalorder 1, %s25
    %p521 = scmp.lt.s32.totalorder %s25, 4
    %p522 = pnand %p520, %p521
    %p523 = pneg %p522
    // Predicated region
    $region85: #{_lambda_.6} parent=5 // pred_check
      _
    $region86: #{_lambda_.6} parent=5 // pred_check_branch
      %525 = sbr.rel (%p522) target = $region88
    $region87: #{_lambda_.6} parent=5 // pred_region
      %s526 = ssub.s32 %s25, 1
      %p527 = scmp.lt.s32.totalorder %s30, 2
      %s528 = scalar_select %p527, %s30, 2
      %s529 = scalar_lea.vmem %s0, %s528
      %p530 = pneg %p51
      %p531 = pneg %p48
      %p532 = scmp.lt.s32.totalorder %s30, 2
      %s533 = scalar_select %p532, %s30, 2
      %s534 = scalar_lea.vmem %s1, %s533
      %p535 = pneg %p77
      %p536 = pneg %p74
      %p537 = pneg %p98
      %p538 = pneg %p95
      %p539 = pneg %p119
      %p540 = pneg %p116
      %p541 = pneg %p140
      %p542 = pneg %p137
      %p543 = pneg %p161
      %p544 = pneg %p158
      %p545 = pneg %p182
      %p546 = pneg %p179
      %p547 = pneg %p203
      %p548 = pneg %p200
      %p549 = pneg %p224
      %p550 = pneg %p221
      %p551 = pneg %p245
      %p552 = pneg %p242
      %p553 = pneg %p266
      %p554 = pneg %p263
      %p555 = pneg %p287
      %p556 = pneg %p284
      %p557 = pneg %p308
      %p558 = pneg %p305
      %p559 = pneg %p329
      %p560 = pneg %p326
      %p561 = pneg %p350
      %p562 = pneg %p347
      %p563 = pneg %p371
      %p564 = pneg %p368
      %p565 = pneg %p392
      %p566 = pneg %p389
      %p567 = pneg %p418
      %p568 = pneg %p415
      %p569 = scmp.lt.s32.totalorder %s30, 2
      %s570 = scalar_select %p569, %s30, 2
      %s571 = scalar_lea.vmem %s17, %s570
      %p572 = pneg %p444
      %p573 = pneg %p441
      %p574 = scmp.lt.s32.totalorder %s30, 2
      %s575 = scalar_select %p574, %s30, 2
      %s576 = smul.addr %s575, 4
      %s577 = scalar_lea.vmem %s18, %s576
      %p578 = scmp.lt.s32.totalorder %s30, 2
      %s579 = scalar_select %p578, %s30, 2
      %s580 = scalar_lea.vmem %s0, %s579
      %p581 = scmp.lt.s32.totalorder %s30, 2
      %s582 = scalar_select %p581, %s30, 2
      %s583 = scalar_lea.vmem %s1, %s582
      %p584 = scmp.lt.s32.totalorder %s30, 2
      %s585 = scalar_select %p584, %s30, 2
      %s586 = scalar_lea.vmem %s17, %s585
      %p587 = scmp.lt.s32.totalorder %s30, 2
      %s588 = scalar_select %p587, %s30, 2
      %s589 = smul.addr %s588, 4
      %s590 = scalar_lea.vmem %s18, %s589
      %v591 = vld [vmem:[%s580] sm:$0x1]
      %v592 = vld [vmem:[%s583] sm:$0x1]
      %v593 = vld [vmem:[%s2] sm:$0xff]
      %v594 = vld [vmem:[%s2 + $0x8] sm:$0xff]
      %v595 = vld [vmem:[%s2 + $0x10] sm:$0xff]
      %v596 = vld [vmem:[%s2 + $0x18] sm:$0xff]
      %v597 = vld [vmem:[%s2 + $0x20] sm:$0xff]
      %v598 = vld [vmem:[%s2 + $0x28] sm:$0xff]
      %v599 = vld [vmem:[%s2 + $0x30] sm:$0xff]
      %v600 = vld [vmem:[%s2 + $0x38] sm:$0xff]
      %v601 = vld [vmem:[%s2 + $0x40] sm:$0xff]
      %v602 = vld [vmem:[%s2 + $0x48] sm:$0xff]
      %v603 = vld [vmem:[%s2 + $0x50] sm:$0xff]
      %v604 = vld [vmem:[%s2 + $0x58] sm:$0xff]
      %v605 = vld [vmem:[%s2 + $0x60] sm:$0xff]
      %v606 = vld [vmem:[%s2 + $0x68] sm:$0xff]
      %v607 = vld [vmem:[%s2 + $0x70] sm:$0xff]
      %v608 = vld [vmem:[%s2 + $0x78] sm:$0xff]
      %v609 = vld [vmem:[%s3] sm:$0x3]
      %v611 = vperm.slane %v609, 0
      %v612 = vperm.slane %v609, 1
      %v631 = vunpack.c.l.b16 %v593
      %v632 = vunpack.c.h.b16 %v593
      %v633 = vunpack.c.l.b16 %v594
      %v634 = vunpack.c.h.b16 %v594
      %v635 = vunpack.c.l.b16 %v595
      %v636 = vunpack.c.h.b16 %v595
      %v637 = vunpack.c.l.b16 %v596
      %v638 = vunpack.c.h.b16 %v596
      %v639 = vunpack.c.l.b16 %v597
      %v640 = vunpack.c.h.b16 %v597
      %v641 = vunpack.c.l.b16 %v598
      %v642 = vunpack.c.h.b16 %v598
      %v643 = vunpack.c.l.b16 %v599
      %v644 = vunpack.c.h.b16 %v599
      %v645 = vunpack.c.l.b16 %v600
      %v646 = vunpack.c.h.b16 %v600
      %v647 = vunpack.c.l.b16 %v601
      %v648 = vunpack.c.h.b16 %v601
      %v649 = vunpack.c.l.b16 %v602
      %v650 = vunpack.c.h.b16 %v602
      %v651 = vunpack.c.l.b16 %v603
      %v652 = vunpack.c.h.b16 %v603
      %v653 = vunpack.c.l.b16 %v604
      %v654 = vunpack.c.h.b16 %v604
      %v655 = vunpack.c.l.b16 %v605
      %v656 = vunpack.c.h.b16 %v605
      %v657 = vunpack.c.l.b16 %v606
      %v658 = vunpack.c.h.b16 %v606
      %v659 = vunpack.c.l.b16 %v607
      %v660 = vunpack.c.h.b16 %v607
      %v661 = vunpack.c.l.b16 %v608
      %v662 = vunpack.c.h.b16 %v608
      %v663 = vpack.c.b16 %v633, %v631
      %v664 = vpack.c.b16 %v634, %v632
      %v665 = vpack.c.b16 %v637, %v635
      %v666 = vpack.c.b16 %v638, %v636
      %v667 = vpack.c.b16 %v641, %v639
      %v668 = vpack.c.b16 %v642, %v640
      %v669 = vpack.c.b16 %v645, %v643
      %v670 = vpack.c.b16 %v646, %v644
      %v671 = vpack.c.b16 %v649, %v647
      %v672 = vpack.c.b16 %v650, %v648
      %v673 = vpack.c.b16 %v653, %v651
      %v674 = vpack.c.b16 %v654, %v652
      %v675 = vpack.c.b16 %v657, %v655
      %v676 = vpack.c.b16 %v658, %v656
      %v677 = vpack.c.b16 %v661, %v659
      %v678 = vpack.c.b16 %v662, %v660
      %695 = vmatpush.bf16.msra.mxu0 %v677
      %696 = vmatpush.bf16.msra.mxu0 %v675
      %697 = vmatpush.bf16.msra.mxu0 %v673
      %698 = vmatpush.bf16.msra.mxu0 %v671
      %699 = vmatpush.bf16.msra.mxu0 %v669
      %700 = vmatpush.bf16.msra.mxu0 %v667
      %701 = vmatpush.bf16.msra.mxu0 %v665
      %702 = vmatpush.bf16.msra.mxu0 %v663
      %703 = vmatmul.bf16.gmra.mxu0 %v591
      %v704 = vpop.f32.mrf.mxu0
      %v705 = vadd.f32 %v611, %v704
      %v706 = vpop.f32.mrf.mxu0
      %707 = vdwg.mxu0
      %708 = vmatpush.bf16.msra.mxu0 %v678
      %709 = vmatpush.bf16.msra.mxu0 %v676
      %710 = vmatpush.bf16.msra.mxu0 %v674
      %711 = vmatpush.bf16.msra.mxu0 %v672
      %712 = vmatpush.bf16.msra.mxu0 %v670
      %713 = vmatpush.bf16.msra.mxu0 %v668
      %714 = vmatpush.bf16.msra.mxu0 %v666
      %715 = vmatpush.bf16.msra.mxu0 %v664
      %716 = vmatmul.bf16.gmra.mxu0 %v591
      %v717 = vpop.f32.mrf.mxu0
      %v718 = vadd.f32 %v612, %v717
      %v719 = vpop.f32.mrf.mxu0
      %720 = vdwg.mxu0
      %v721 = vld [vmem:[%s4] sm:$0x3]
      %v722 = vld [vmem:[%s5] sm:$0x3]
      %vm723 = vcmask 1041408
      %v724 = vsel %vm723, %v705, 0.0
      %v725 = vrot.slane %v724, 4
      %v726 = vadd.f32 %v724, %v725
      %v727 = vrot.slane %v726, 2
      %v728 = vadd.f32 %v726, %v727
      %v729 = vrot.slane %v728, 1
      %v730 = vadd.f32 %v728, %v729
      %v731 = vsel %vm723, %v718, 0.0
      %v732 = vrot.slane %v731, 4
      %v733 = vadd.f32 %v731, %v732
      %v734 = vrot.slane %v733, 2
      %v735 = vadd.f32 %v733, %v734
      %v736 = vrot.slane %v735, 1
      %v737 = vadd.f32 %v735, %v736
      %v738 = vrcp.pop 2.0
      %v739 = vmul.f32 2.0, %v738
      %v740 = vsub.f32 1.0, %v739
      %v741 = vmul.f32 %v738, %v740
      %v742 = vadd.f32 %v738, %v741
      %vm743 = vweird.f32 %v738
      %v744 = vsel %vm743, %v738, %v742
      %v745 = vmul.f32 %v730, %v744
      %v746 = vmul.f32 %v737, %v744
      %v747 = vsub.f32 %v705, %v745
      %v748 = vsub.f32 %v718, %v746
      %v749 = vmul.f32 %v747, %v747
      %v750 = vmul.f32 %v748, %v748
      %v751 = vsel %vm723, %v749, 0.0
      %v752 = vrot.slane %v751, 4
      %v753 = vadd.f32 %v751, %v752
      %v754 = vrot.slane %v753, 2
      %v755 = vadd.f32 %v753, %v754
      %v756 = vrot.slane %v755, 1
      %v757 = vadd.f32 %v755, %v756
      %v758 = vsel %vm723, %v750, 0.0
      %v759 = vrot.slane %v758, 4
      %v760 = vadd.f32 %v758, %v759
      %v761 = vrot.slane %v760, 2
      %v762 = vadd.f32 %v760, %v761
      %v763 = vrot.slane %v762, 1
      %v764 = vadd.f32 %v762, %v763
      %v765 = vmul.f32 %v757, %v744
      %v766 = vmul.f32 %v764, %v744
      %v767 = vadd.f32 %v765, 1e-05
      %v768 = vadd.f32 %v766, 1e-05
      %v769 = vrsqrt.pop %v767
      %v770 = vmul.f32 %v769, %v767
      %v771 = vmul.f32 %v770, %v769
      %v772 = vmul.f32 0.5, %v771
      %v773 = vsub.f32 1.5, %v772
      %v774 = vmul.f32 %v769, %v773
      %vm775 = vweird.f32 %v767
      %vm776 = vweird.f32 %v769
      %vm777 = vmor %vm775, %vm776
      %v778 = vsel %vm777, %v769, %v774
      %v779 = vrsqrt.pop %v768
      %v780 = vmul.f32 %v779, %v768
      %v781 = vmul.f32 %v780, %v779
      %v782 = vmul.f32 0.5, %v781
      %v783 = vsub.f32 1.5, %v782
      %v784 = vmul.f32 %v779, %v783
      %vm785 = vweird.f32 %v768
      %vm786 = vweird.f32 %v779
      %vm787 = vmor %vm785, %vm786
      %v788 = vsel %vm787, %v779, %v784
      %v789 = vmul.f32 %v747, %v778
      %v790 = vmul.f32 %v748, %v788
      %v792 = vperm.slane %v721, 0
      %v793 = vperm.slane %v721, 1
      %v796 = vmul.f32 %v789, %v792
      %v797 = vmul.f32 %v790, %v793
      %v799 = vperm.slane %v722, 0
      %v800 = vperm.slane %v722, 1
      %v803 = vadd.f32 %v796, %v799
      %v804 = vadd.f32 %v797, %v800
      %v805 = vmax.f32 %v803, 0.0
      %v806 = vmax.f32 %v804, 0.0
      %v807 = vld [vmem:[%s6] sm:$0xf]
      %v808 = vld [vmem:[%s6 + $0x4] sm:$0xf]
      %v809 = vld [vmem:[%s6 + $0x8] sm:$0xf]
      %v810 = vld [vmem:[%s6 + $0xc] sm:$0xf]
      %v811 = vld [vmem:[%s6 + $0x10] sm:$0xf]
      %v812 = vld [vmem:[%s6 + $0x14] sm:$0xf]
      %v813 = vld [vmem:[%s6 + $0x18] sm:$0xf]
      %v814 = vld [vmem:[%s6 + $0x1c] sm:$0xf]
      %v815 = vld [vmem:[%s6 + $0x20] sm:$0xf]
      %v816 = vld [vmem:[%s6 + $0x24] sm:$0xf]
      %v817 = vld [vmem:[%s6 + $0x28] sm:$0xf]
      %v818 = vld [vmem:[%s6 + $0x2c] sm:$0xf]
      %v819 = vld [vmem:[%s6 + $0x30] sm:$0xf]
      %v820 = vld [vmem:[%s6 + $0x34] sm:$0xf]
      %v821 = vld [vmem:[%s6 + $0x38] sm:$0xf]
      %v822 = vld [vmem:[%s6 + $0x3c] sm:$0xf]
      %v823 = vld [vmem:[%s6 + $0x40] sm:$0xf]
      %v824 = vld [vmem:[%s6 + $0x44] sm:$0xf]
      %v825 = vld [vmem:[%s6 + $0x48] sm:$0xf]
      %v826 = vld [vmem:[%s6 + $0x4c] sm:$0xf]
      %v827 = vld [vmem:[%s6 + $0x50] sm:$0xf]
      %v828 = vld [vmem:[%s6 + $0x54] sm:$0xf]
      %v829 = vld [vmem:[%s6 + $0x58] sm:$0xf]
      %v830 = vld [vmem:[%s6 + $0x5c] sm:$0xf]
      %v831 = vld [vmem:[%s6 + $0x60] sm:$0xf]
      %v832 = vld [vmem:[%s6 + $0x64] sm:$0xf]
      %v833 = vld [vmem:[%s6 + $0x68] sm:$0xf]
      %v834 = vld [vmem:[%s6 + $0x6c] sm:$0xf]
      %v835 = vld [vmem:[%s6 + $0x70] sm:$0xf]
      %v836 = vld [vmem:[%s6 + $0x74] sm:$0xf]
      %v837 = vld [vmem:[%s6 + $0x78] sm:$0xf]
      %v838 = vld [vmem:[%s6 + $0x7c] sm:$0xf]
      %v839 = vpack.c.bf16 %v805, %v805
      %v840 = vpack.c.bf16 %v806, %v806
      %v841 = vld [vmem:[%s7] sm:$0x1]
      %v843 = vperm.slane %v841, 0
      %v877 = vunpack.c.l.b16 %v807
      %v878 = vunpack.c.l.b16 %v808
      %v879 = vunpack.c.l.b16 %v809
      %v880 = vunpack.c.l.b16 %v810
      %v881 = vunpack.c.l.b16 %v811
      %v882 = vunpack.c.l.b16 %v812
      %v883 = vunpack.c.l.b16 %v813
      %v884 = vunpack.c.l.b16 %v814
      %v885 = vunpack.c.l.b16 %v815
      %v886 = vunpack.c.l.b16 %v816
      %v887 = vunpack.c.l.b16 %v817
      %v888 = vunpack.c.l.b16 %v818
      %v889 = vunpack.c.l.b16 %v819
      %v890 = vunpack.c.l.b16 %v820
      %v891 = vunpack.c.l.b16 %v821
      %v892 = vunpack.c.l.b16 %v822
      %v893 = vunpack.c.l.b16 %v823
      %v894 = vunpack.c.l.b16 %v824
      %v895 = vunpack.c.l.b16 %v825
      %v896 = vunpack.c.l.b16 %v826
      %v897 = vunpack.c.l.b16 %v827
      %v898 = vunpack.c.l.b16 %v828
      %v899 = vunpack.c.l.b16 %v829
      %v900 = vunpack.c.l.b16 %v830
      %v901 = vunpack.c.l.b16 %v831
      %v902 = vunpack.c.l.b16 %v832
      %v903 = vunpack.c.l.b16 %v833
      %v904 = vunpack.c.l.b16 %v834
      %v905 = vunpack.c.l.b16 %v835
      %v906 = vunpack.c.l.b16 %v836
      %v907 = vunpack.c.l.b16 %v837
      %v908 = vunpack.c.l.b16 %v838
      %v909 = vpack.c.b16 %v878, %v877
      %v910 = vpack.c.b16 %v880, %v879
      %v911 = vpack.c.b16 %v882, %v881
      %v912 = vpack.c.b16 %v884, %v883
      %v913 = vpack.c.b16 %v886, %v885
      %v914 = vpack.c.b16 %v888, %v887
      %v915 = vpack.c.b16 %v890, %v889
      %v916 = vpack.c.b16 %v892, %v891
      %v917 = vpack.c.b16 %v894, %v893
      %v918 = vpack.c.b16 %v896, %v895
      %v919 = vpack.c.b16 %v898, %v897
      %v920 = vpack.c.b16 %v900, %v899
      %v921 = vpack.c.b16 %v902, %v901
      %v922 = vpack.c.b16 %v904, %v903
      %v923 = vpack.c.b16 %v906, %v905
      %v924 = vpack.c.b16 %v908, %v907
      %941 = vmatpush.bf16.msra.mxu0 %v916
      %942 = vmatpush.bf16.msra.mxu0 %v915
      %943 = vmatpush.bf16.msra.mxu0 %v914
      %944 = vmatpush.bf16.msra.mxu0 %v913
      %945 = vmatpush.bf16.msra.mxu0 %v912
      %946 = vmatpush.bf16.msra.mxu0 %v911
      %947 = vmatpush.bf16.msra.mxu0 %v910
      %948 = vmatpush.bf16.msra.mxu0 %v909
      %949 = vmatmul.bf16.gmra.mxu0 %v839
      %v950 = vpop.f32.mrf.mxu0
      %v951 = vadd.f32 %v843, %v950
      %v952 = vpop.f32.mrf.mxu0
      %953 = vdwg.mxu0
      %954 = vmatpush.bf16.msra.mxu0 %v924
      %955 = vmatpush.bf16.msra.mxu0 %v923
      %956 = vmatpush.bf16.msra.mxu0 %v922
      %957 = vmatpush.bf16.msra.mxu0 %v921
      %958 = vmatpush.bf16.msra.mxu0 %v920
      %959 = vmatpush.bf16.msra.mxu0 %v919
      %960 = vmatpush.bf16.msra.mxu0 %v918
      %961 = vmatpush.bf16.msra.mxu0 %v917
      %962 = vmatmul.bf16.gmra.mxu0 %v840
      %v963 = vpop.f32.mrf.mxu0
      %v964 = vadd.f32 %v951, %v963
      %v965 = vpop.f32.mrf.mxu0
      %966 = vdwg.mxu0
      %v967 = vld [vmem:[%s8] sm:$0xf]
      %v968 = vld [vmem:[%s8 + $0x4] sm:$0xf]
      %v969 = vld [vmem:[%s8 + $0x8] sm:$0xf]
      %v970 = vld [vmem:[%s8 + $0xc] sm:$0xf]
      %v971 = vld [vmem:[%s8 + $0x10] sm:$0xf]
      %v972 = vld [vmem:[%s8 + $0x14] sm:$0xf]
      %v973 = vld [vmem:[%s8 + $0x18] sm:$0xf]
      %v974 = vld [vmem:[%s8 + $0x1c] sm:$0xf]
      %v975 = vld [vmem:[%s8 + $0x20] sm:$0xf]
      %v976 = vld [vmem:[%s8 + $0x24] sm:$0xf]
      %v977 = vld [vmem:[%s8 + $0x28] sm:$0xf]
      %v978 = vld [vmem:[%s8 + $0x2c] sm:$0xf]
      %v979 = vld [vmem:[%s8 + $0x30] sm:$0xf]
      %v980 = vld [vmem:[%s8 + $0x34] sm:$0xf]
      %v981 = vld [vmem:[%s8 + $0x38] sm:$0xf]
      %v982 = vld [vmem:[%s8 + $0x3c] sm:$0xf]
      %v983 = vld [vmem:[%s9] sm:$0xf]
      %v984 = vld [vmem:[%s9 + $0x4] sm:$0xf]
      %v985 = vld [vmem:[%s9 + $0x8] sm:$0xf]
      %v986 = vld [vmem:[%s9 + $0xc] sm:$0xf]
      %v987 = vld [vmem:[%s9 + $0x10] sm:$0xf]
      %v988 = vld [vmem:[%s9 + $0x14] sm:$0xf]
      %v989 = vld [vmem:[%s9 + $0x18] sm:$0xf]
      %v990 = vld [vmem:[%s9 + $0x1c] sm:$0xf]
      %v991 = vld [vmem:[%s9 + $0x20] sm:$0xf]
      %v992 = vld [vmem:[%s9 + $0x24] sm:$0xf]
      %v993 = vld [vmem:[%s9 + $0x28] sm:$0xf]
      %v994 = vld [vmem:[%s9 + $0x2c] sm:$0xf]
      %v995 = vld [vmem:[%s9 + $0x30] sm:$0xf]
      %v996 = vld [vmem:[%s9 + $0x34] sm:$0xf]
      %v997 = vld [vmem:[%s9 + $0x38] sm:$0xf]
      %v998 = vld [vmem:[%s9 + $0x3c] sm:$0xf]
      %v999 = vpack.c.bf16 %v964, %v964
      %v1016 = vunpack.c.l.b16 %v983
      %v1017 = vunpack.c.l.b16 %v984
      %v1018 = vunpack.c.l.b16 %v985
      %v1019 = vunpack.c.l.b16 %v986
      %v1020 = vunpack.c.l.b16 %v987
      %v1021 = vunpack.c.l.b16 %v988
      %v1022 = vunpack.c.l.b16 %v989
      %v1023 = vunpack.c.l.b16 %v990
      %v1024 = vunpack.c.l.b16 %v991
      %v1025 = vunpack.c.l.b16 %v992
      %v1026 = vunpack.c.l.b16 %v993
      %v1027 = vunpack.c.l.b16 %v994
      %v1028 = vunpack.c.l.b16 %v995
      %v1029 = vunpack.c.l.b16 %v996
      %v1030 = vunpack.c.l.b16 %v997
      %v1031 = vunpack.c.l.b16 %v998
      %v1032 = vpack.c.b16 %v1017, %v1016
      %v1033 = vpack.c.b16 %v1019, %v1018
      %v1034 = vpack.c.b16 %v1021, %v1020
      %v1035 = vpack.c.b16 %v1023, %v1022
      %v1036 = vpack.c.b16 %v1025, %v1024
      %v1037 = vpack.c.b16 %v1027, %v1026
      %v1038 = vpack.c.b16 %v1029, %v1028
      %v1039 = vpack.c.b16 %v1031, %v1030
      %1048 = vmatpush.bf16.msra.mxu0 %v1039
      %1049 = vmatpush.bf16.msra.mxu0 %v1038
      %1050 = vmatpush.bf16.msra.mxu0 %v1037
      %1051 = vmatpush.bf16.msra.mxu0 %v1036
      %1052 = vmatpush.bf16.msra.mxu0 %v1035
      %1053 = vmatpush.bf16.msra.mxu0 %v1034
      %1054 = vmatpush.bf16.msra.mxu0 %v1033
      %1055 = vmatpush.bf16.msra.mxu0 %v1032
      %1056 = vmatmul.bf16.gmra.mxu0 %v999
      %v1057 = vpop.f32.mrf.mxu0
      %v1058 = vadd.f32 0.0, %v1057
      %v1059 = vpop.f32.mrf.mxu0
      %1060 = vdwg.mxu0
      %v1077 = vunpack.c.l.b16 %v967
      %v1078 = vunpack.c.l.b16 %v968
      %v1079 = vunpack.c.l.b16 %v969
      %v1080 = vunpack.c.l.b16 %v970
      %v1081 = vunpack.c.l.b16 %v971
      %v1082 = vunpack.c.l.b16 %v972
      %v1083 = vunpack.c.l.b16 %v973
      %v1084 = vunpack.c.l.b16 %v974
      %v1085 = vunpack.c.l.b16 %v975
      %v1086 = vunpack.c.l.b16 %v976
      %v1087 = vunpack.c.l.b16 %v977
      %v1088 = vunpack.c.l.b16 %v978
      %v1089 = vunpack.c.l.b16 %v979
      %v1090 = vunpack.c.l.b16 %v980
      %v1091 = vunpack.c.l.b16 %v981
      %v1092 = vunpack.c.l.b16 %v982
      %v1093 = vpack.c.b16 %v1078, %v1077
      %v1094 = vpack.c.b16 %v1080, %v1079
      %v1095 = vpack.c.b16 %v1082, %v1081
      %v1096 = vpack.c.b16 %v1084, %v1083
      %v1097 = vpack.c.b16 %v1086, %v1085
      %v1098 = vpack.c.b16 %v1088, %v1087
      %v1099 = vpack.c.b16 %v1090, %v1089
      %v1100 = vpack.c.b16 %v1092, %v1091
      %1109 = vmatpush.bf16.msra.mxu0 %v1100
      %1110 = vmatpush.bf16.msra.mxu0 %v1099
      %1111 = vmatpush.bf16.msra.mxu0 %v1098
      %1112 = vmatpush.bf16.msra.mxu0 %v1097
      %1113 = vmatpush.bf16.msra.mxu0 %v1096
      %1114 = vmatpush.bf16.msra.mxu0 %v1095
      %1115 = vmatpush.bf16.msra.mxu0 %v1094
      %1116 = vmatpush.bf16.msra.mxu0 %v1093
      %1117 = vmatmul.bf16.gmra.mxu0 %v592
      %v1118 = vpop.f32.mrf.mxu0
      %v1119 = vadd.f32 %v1058, %v1118
      %v1120 = vpop.f32.mrf.mxu0
      %1121 = vdwg.mxu0
      %v1122 = vld [vmem:[%s10] sm:$0x1]
      %v1124 = vperm.slane %v1122, 0
      %v1126 = vadd.f32 %v1119, %v1124
      %v1127 = vld [vmem:[%s11] sm:$0x1]
      %v1128 = vld [vmem:[%s12] sm:$0x1]
      %v1129 = vsel %vm723, %v1126, 0.0
      %v1130 = vrot.slane %v1129, 4
      %v1131 = vadd.f32 %v1129, %v1130
      %v1132 = vrot.slane %v1131, 2
      %v1133 = vadd.f32 %v1131, %v1132
      %v1134 = vrot.slane %v1133, 1
      %v1135 = vadd.f32 %v1133, %v1134
      %v1136 = vmul.f32 %v1135, %v744
      %v1137 = vsub.f32 %v1126, %v1136
      %v1138 = vmul.f32 %v1137, %v1137
      %v1139 = vsel %vm723, %v1138, 0.0
      %v1140 = vrot.slane %v1139, 4
      %v1141 = vadd.f32 %v1139, %v1140
      %v1142 = vrot.slane %v1141, 2
      %v1143 = vadd.f32 %v1141, %v1142
      %v1144 = vrot.slane %v1143, 1
      %v1145 = vadd.f32 %v1143, %v1144
      %v1146 = vmul.f32 %v1145, %v744
      %v1147 = vadd.f32 %v1146, 1e-05
      %v1148 = vrsqrt.pop %v1147
      %v1149 = vmul.f32 %v1148, %v1147
      %v1150 = vmul.f32 %v1149, %v1148
      %v1151 = vmul.f32 0.5, %v1150
      %v1152 = vsub.f32 1.5, %v1151
      %v1153 = vmul.f32 %v1148, %v1152
      %vm1154 = vweird.f32 %v1147
      %vm1155 = vweird.f32 %v1148
      %vm1156 = vmor %vm1154, %vm1155
      %v1157 = vsel %vm1156, %v1148, %v1153
      %v1158 = vmul.f32 %v1137, %v1157
      %v1160 = vperm.slane %v1127, 0
      %v1162 = vmul.f32 %v1158, %v1160
      %v1164 = vperm.slane %v1128, 0
      %v1166 = vadd.f32 %v1162, %v1164
      %v1167 = vmax.f32 %v1166, 0.0
      %v1168 = vld [vmem:[%s13] sm:$0xf]
      %v1169 = vld [vmem:[%s13 + $0x4] sm:$0xf]
      %v1170 = vld [vmem:[%s13 + $0x8] sm:$0xf]
      %v1171 = vld [vmem:[%s13 + $0xc] sm:$0xf]
      %v1172 = vld [vmem:[%s13 + $0x10] sm:$0xf]
      %v1173 = vld [vmem:[%s13 + $0x14] sm:$0xf]
      %v1174 = vld [vmem:[%s13 + $0x18] sm:$0xf]
      %v1175 = vld [vmem:[%s13 + $0x1c] sm:$0xf]
      %v1176 = vld [vmem:[%s13 + $0x20] sm:$0xf]
      %v1177 = vld [vmem:[%s13 + $0x24] sm:$0xf]
      %v1178 = vld [vmem:[%s13 + $0x28] sm:$0xf]
      %v1179 = vld [vmem:[%s13 + $0x2c] sm:$0xf]
      %v1180 = vld [vmem:[%s13 + $0x30] sm:$0xf]
      %v1181 = vld [vmem:[%s13 + $0x34] sm:$0xf]
      %v1182 = vld [vmem:[%s13 + $0x38] sm:$0xf]
      %v1183 = vld [vmem:[%s13 + $0x3c] sm:$0xf]
      %v1184 = vpack.c.bf16 %v1167, %v1167
      %v1185 = vld [vmem:[%s14] sm:$0x1]
      %v1187 = vperm.slane %v1185, 0
      %v1205 = vunpack.c.l.b16 %v1168
      %v1206 = vunpack.c.l.b16 %v1169
      %v1207 = vunpack.c.l.b16 %v1170
      %v1208 = vunpack.c.l.b16 %v1171
      %v1209 = vunpack.c.l.b16 %v1172
      %v1210 = vunpack.c.l.b16 %v1173
      %v1211 = vunpack.c.l.b16 %v1174
      %v1212 = vunpack.c.l.b16 %v1175
      %v1213 = vunpack.c.l.b16 %v1176
      %v1214 = vunpack.c.l.b16 %v1177
      %v1215 = vunpack.c.l.b16 %v1178
      %v1216 = vunpack.c.l.b16 %v1179
      %v1217 = vunpack.c.l.b16 %v1180
      %v1218 = vunpack.c.l.b16 %v1181
      %v1219 = vunpack.c.l.b16 %v1182
      %v1220 = vunpack.c.l.b16 %v1183
      %v1221 = vpack.c.b16 %v1206, %v1205
      %v1222 = vpack.c.b16 %v1208, %v1207
      %v1223 = vpack.c.b16 %v1210, %v1209
      %v1224 = vpack.c.b16 %v1212, %v1211
      %v1225 = vpack.c.b16 %v1214, %v1213
      %v1226 = vpack.c.b16 %v1216, %v1215
      %v1227 = vpack.c.b16 %v1218, %v1217
      %v1228 = vpack.c.b16 %v1220, %v1219
      %1237 = vmatpush.bf16.msra.mxu0 %v1228
      %1238 = vmatpush.bf16.msra.mxu0 %v1227
      %1239 = vmatpush.bf16.msra.mxu0 %v1226
      %1240 = vmatpush.bf16.msra.mxu0 %v1225
      %1241 = vmatpush.bf16.msra.mxu0 %v1224
      %1242 = vmatpush.bf16.msra.mxu0 %v1223
      %1243 = vmatpush.bf16.msra.mxu0 %v1222
      %1244 = vmatpush.bf16.msra.mxu0 %v1221
      %1245 = vmatmul.bf16.gmra.mxu0 %v1184
      %v1246 = vpop.f32.mrf.mxu0
      %v1247 = vadd.f32 %v1187, %v1246
      %v1248 = vpop.f32.mrf.mxu0
      %1249 = vdwg.mxu0
      %v1250 = vpack.c.bf16 %v1247, %v1247
      %1251 = vst [vmem:[%s586] sm:$0x1] %v1250
      %v1252 = vld [vmem:[%s15] sm:$0xff]
      %v1253 = vld [vmem:[%s15 + $0x8] sm:$0xff]
      %v1254 = vld [vmem:[%s15 + $0x10] sm:$0xff]
      %v1255 = vld [vmem:[%s15 + $0x18] sm:$0xff]
      %v1256 = vld [vmem:[%s15 + $0x20] sm:$0xff]
      %v1257 = vld [vmem:[%s15 + $0x28] sm:$0xff]
      %v1258 = vld [vmem:[%s15 + $0x30] sm:$0xff]
      %v1259 = vld [vmem:[%s15 + $0x38] sm:$0xff]
      %v1260 = vld [vmem:[%s15 + $0x40] sm:$0xff]
      %v1261 = vld [vmem:[%s15 + $0x48] sm:$0xff]
      %v1262 = vld [vmem:[%s15 + $0x50] sm:$0xff]
      %v1263 = vld [vmem:[%s15 + $0x58] sm:$0xff]
      %v1264 = vld [vmem:[%s15 + $0x60] sm:$0xff]
      %v1265 = vld [vmem:[%s15 + $0x68] sm:$0xff]
      %v1266 = vld [vmem:[%s15 + $0x70] sm:$0xff]
      %v1267 = vld [vmem:[%s15 + $0x78] sm:$0xff]
      %v1268 = vld [vmem:[%s15 + $0x80] sm:$0xff]
      %v1269 = vld [vmem:[%s15 + $0x88] sm:$0xff]
      %v1270 = vld [vmem:[%s15 + $0x90] sm:$0xff]
      %v1271 = vld [vmem:[%s15 + $0x98] sm:$0xff]
      %v1272 = vld [vmem:[%s15 + $0xa0] sm:$0xff]
      %v1273 = vld [vmem:[%s15 + $0xa8] sm:$0xff]
      %v1274 = vld [vmem:[%s15 + $0xb0] sm:$0xff]
      %v1275 = vld [vmem:[%s15 + $0xb8] sm:$0xff]
      %v1276 = vld [vmem:[%s15 + $0xc0] sm:$0xff]
      %v1277 = vld [vmem:[%s15 + $0xc8] sm:$0xff]
      %v1278 = vld [vmem:[%s15 + $0xd0] sm:$0xff]
      %v1279 = vld [vmem:[%s15 + $0xd8] sm:$0xff]
      %v1280 = vld [vmem:[%s15 + $0xe0] sm:$0xff]
      %v1281 = vld [vmem:[%s15 + $0xe8] sm:$0xff]
      %v1282 = vld [vmem:[%s15 + $0xf0] sm:$0xff]
      %v1283 = vld [vmem:[%s15 + $0xf8] sm:$0xff]
      %v1284 = vld [vmem:[%s16] sm:$0xf]
      %v1286 = vperm.slane %v1284, 0
      %v1287 = vperm.slane %v1284, 1
      %v1288 = vperm.slane %v1284, 2
      %v1289 = vperm.slane %v1284, 3
      %v1326 = vunpack.c.l.b16 %v1252
      %v1327 = vunpack.c.h.b16 %v1252
      %v1328 = vunpack.c.l.b16 %v1253
      %v1329 = vunpack.c.h.b16 %v1253
      %v1330 = vunpack.c.l.b16 %v1254
      %v1331 = vunpack.c.h.b16 %v1254
      %v1332 = vunpack.c.l.b16 %v1255
      %v1333 = vunpack.c.h.b16 %v1255
      %v1334 = vunpack.c.l.b16 %v1256
      %v1335 = vunpack.c.h.b16 %v1256
      %v1336 = vunpack.c.l.b16 %v1257
      %v1337 = vunpack.c.h.b16 %v1257
      %v1338 = vunpack.c.l.b16 %v1258
      %v1339 = vunpack.c.h.b16 %v1258
      %v1340 = vunpack.c.l.b16 %v1259
      %v1341 = vunpack.c.h.b16 %v1259
      %v1342 = vunpack.c.l.b16 %v1260
      %v1343 = vunpack.c.h.b16 %v1260
      %v1344 = vunpack.c.l.b16 %v1261
      %v1345 = vunpack.c.h.b16 %v1261
      %v1346 = vunpack.c.l.b16 %v1262
      %v1347 = vunpack.c.h.b16 %v1262
      %v1348 = vunpack.c.l.b16 %v1263
      %v1349 = vunpack.c.h.b16 %v1263
      %v1350 = vunpack.c.l.b16 %v1264
      %v1351 = vunpack.c.h.b16 %v1264
      %v1352 = vunpack.c.l.b16 %v1265
      %v1353 = vunpack.c.h.b16 %v1265
      %v1354 = vunpack.c.l.b16 %v1266
      %v1355 = vunpack.c.h.b16 %v1266
      %v1356 = vunpack.c.l.b16 %v1267
      %v1357 = vunpack.c.h.b16 %v1267
      %v1358 = vunpack.c.l.b16 %v1268
      %v1359 = vunpack.c.h.b16 %v1268
      %v1360 = vunpack.c.l.b16 %v1269
      %v1361 = vunpack.c.h.b16 %v1269
      %v1362 = vunpack.c.l.b16 %v1270
      %v1363 = vunpack.c.h.b16 %v1270
      %v1364 = vunpack.c.l.b16 %v1271
      %v1365 = vunpack.c.h.b16 %v1271
      %v1366 = vunpack.c.l.b16 %v1272
      %v1367 = vunpack.c.h.b16 %v1272
      %v1368 = vunpack.c.l.b16 %v1273
      %v1369 = vunpack.c.h.b16 %v1273
      %v1370 = vunpack.c.l.b16 %v1274
      %v1371 = vunpack.c.h.b16 %v1274
      %v1372 = vunpack.c.l.b16 %v1275
      %v1373 = vunpack.c.h.b16 %v1275
      %v1374 = vunpack.c.l.b16 %v1276
      %v1375 = vunpack.c.h.b16 %v1276
      %v1376 = vunpack.c.l.b16 %v1277
      %v1377 = vunpack.c.h.b16 %v1277
      %v1378 = vunpack.c.l.b16 %v1278
      %v1379 = vunpack.c.h.b16 %v1278
      %v1380 = vunpack.c.l.b16 %v1279
      %v1381 = vunpack.c.h.b16 %v1279
      %v1382 = vunpack.c.l.b16 %v1280
      %v1383 = vunpack.c.h.b16 %v1280
      %v1384 = vunpack.c.l.b16 %v1281
      %v1385 = vunpack.c.h.b16 %v1281
      %v1386 = vunpack.c.l.b16 %v1282
      %v1387 = vunpack.c.h.b16 %v1282
      %v1388 = vunpack.c.l.b16 %v1283
      %v1389 = vunpack.c.h.b16 %v1283
      %v1390 = vpack.c.b16 %v1330, %v1326
      %v1391 = vpack.c.b16 %v1331, %v1327
      %v1392 = vpack.c.b16 %v1332, %v1328
      %v1393 = vpack.c.b16 %v1333, %v1329
      %v1394 = vpack.c.b16 %v1338, %v1334
      %v1395 = vpack.c.b16 %v1339, %v1335
      %v1396 = vpack.c.b16 %v1340, %v1336
      %v1397 = vpack.c.b16 %v1341, %v1337
      %v1398 = vpack.c.b16 %v1346, %v1342
      %v1399 = vpack.c.b16 %v1347, %v1343
      %v1400 = vpack.c.b16 %v1348, %v1344
      %v1401 = vpack.c.b16 %v1349, %v1345
      %v1402 = vpack.c.b16 %v1354, %v1350
      %v1403 = vpack.c.b16 %v1355, %v1351
      %v1404 = vpack.c.b16 %v1356, %v1352
      %v1405 = vpack.c.b16 %v1357, %v1353
      %v1406 = vpack.c.b16 %v1362, %v1358
      %v1407 = vpack.c.b16 %v1363, %v1359
      %v1408 = vpack.c.b16 %v1364, %v1360
      %v1409 = vpack.c.b16 %v1365, %v1361
      %v1410 = vpack.c.b16 %v1370, %v1366
      %v1411 = vpack.c.b16 %v1371, %v1367
      %v1412 = vpack.c.b16 %v1372, %v1368
      %v1413 = vpack.c.b16 %v1373, %v1369
      %v1414 = vpack.c.b16 %v1378, %v1374
      %v1415 = vpack.c.b16 %v1379, %v1375
      %v1416 = vpack.c.b16 %v1380, %v1376
      %v1417 = vpack.c.b16 %v1381, %v1377
      %v1418 = vpack.c.b16 %v1386, %v1382
      %v1419 = vpack.c.b16 %v1387, %v1383
      %v1420 = vpack.c.b16 %v1388, %v1384
      %v1421 = vpack.c.b16 %v1389, %v1385
      %1454 = vmatpush.bf16.msra.mxu0 %v1418
      %1455 = vmatpush.bf16.msra.mxu0 %v1414
      %1456 = vmatpush.bf16.msra.mxu0 %v1410
      %1457 = vmatpush.bf16.msra.mxu0 %v1406
      %1458 = vmatpush.bf16.msra.mxu0 %v1402
      %1459 = vmatpush.bf16.msra.mxu0 %v1398
      %1460 = vmatpush.bf16.msra.mxu0 %v1394
      %1461 = vmatpush.bf16.msra.mxu0 %v1390
      %1462 = vmatmul.bf16.gmra.mxu0 %v1250
      %v1463 = vpop.f32.mrf.mxu0
      %v1464 = vadd.f32 %v1286, %v1463
      %v1465 = vpop.f32.mrf.mxu0
      %1466 = vdwg.mxu0
      %1467 = vmatpush.bf16.msra.mxu0 %v1419
      %1468 = vmatpush.bf16.msra.mxu0 %v1415
      %1469 = vmatpush.bf16.msra.mxu0 %v1411
      %1470 = vmatpush.bf16.msra.mxu0 %v1407
      %1471 = vmatpush.bf16.msra.mxu0 %v1403
      %1472 = vmatpush.bf16.msra.mxu0 %v1399
      %1473 = vmatpush.bf16.msra.mxu0 %v1395
      %1474 = vmatpush.bf16.msra.mxu0 %v1391
      %1475 = vmatmul.bf16.gmra.mxu0 %v1250
      %v1476 = vpop.f32.mrf.mxu0
      %v1477 = vadd.f32 %v1287, %v1476
      %v1478 = vpop.f32.mrf.mxu0
      %1479 = vdwg.mxu0
      %1480 = vmatpush.bf16.msra.mxu0 %v1420
      %1481 = vmatpush.bf16.msra.mxu0 %v1416
      %1482 = vmatpush.bf16.msra.mxu0 %v1412
      %1483 = vmatpush.bf16.msra.mxu0 %v1408
      %1484 = vmatpush.bf16.msra.mxu0 %v1404
      %1485 = vmatpush.bf16.msra.mxu0 %v1400
      %1486 = vmatpush.bf16.msra.mxu0 %v1396
      %1487 = vmatpush.bf16.msra.mxu0 %v1392
      %1488 = vmatmul.bf16.gmra.mxu0 %v1250
      %v1489 = vpop.f32.mrf.mxu0
      %v1490 = vadd.f32 %v1288, %v1489
      %v1491 = vpop.f32.mrf.mxu0
      %1492 = vdwg.mxu0
      %1493 = vmatpush.bf16.msra.mxu0 %v1421
      %1494 = vmatpush.bf16.msra.mxu0 %v1417
      %1495 = vmatpush.bf16.msra.mxu0 %v1413
      %1496 = vmatpush.bf16.msra.mxu0 %v1409
      %1497 = vmatpush.bf16.msra.mxu0 %v1405
      %1498 = vmatpush.bf16.msra.mxu0 %v1401
      %1499 = vmatpush.bf16.msra.mxu0 %v1397
      %1500 = vmatpush.bf16.msra.mxu0 %v1393
      %1501 = vmatmul.bf16.gmra.mxu0 %v1250
      %v1502 = vpop.f32.mrf.mxu0
      %v1503 = vadd.f32 %v1289, %v1502
      %v1504 = vpop.f32.mrf.mxu0
      %1505 = vdwg.mxu0
      %v1506 = vpack.c.bf16 %v1477, %v1464
      %v1507 = vpack.c.bf16 %v1503, %v1490
      %v1510 = vrot.slane %v1506, 3
      %v1511 = vrot.slane %v1507, 6
      %v1512 = vrot.slane %v1507, 1
      %vm1513 = vcmask 1040384
      %v1516 = vsel %vm1513, %v1506, %v1510
      %vm1517 = vcmask 1042434
      %v1520 = vsel %vm1517, %v1511, %v1512
      %v1521 = vsel %vm723, %v1516, %v1520
      %1523 = vst [vmem:[%s590] sm:$0xf] %v1521
      %p1524 = scmp.lt.s32.totalorder %s30, 2
      %s1525 = scalar_select %p1524, %s30, 2
      %s1526 = scalar_lea.vmem %s17, %s1525
      %p1527 = scmp.lt.s32.totalorder %s30, 2
      %s1528 = scalar_select %p1527, %s30, 2
      %s1529 = smul.addr %s1528, 4
      %s1530 = scalar_lea.vmem %s18, %s1529
      // Predicated region
      $region89: #{_lambda_.6} parent=87 // pred_check
        %p1531 = pneg %p415
      $region90: #{_lambda_.6} parent=87 // pred_check_branch
        %1533 = sbr.rel (%p1531) target = $region92
      $region91: #{_lambda_.6} parent=87 // pred_region
        _
      $region92: #{_lambda_.6} parent=87 // pred_fallthru
        _
      // Predicated region
      $region93: #{_lambda_.6} parent=87 // pred_check
        %p1534 = pneg %p441
      $region94: #{_lambda_.6} parent=87 // pred_check_branch
        %1536 = sbr.rel (%p1534) target = $region96
      $region95: #{_lambda_.6} parent=87 // pred_region
        _
      $region96: #{_lambda_.6} parent=87 // pred_fallthru
        _
    $region88: #{_lambda_.6} parent=5 // pred_fallthru
      _
    %p1537 = scmp.le.s32.totalorder 2, %s25
    // Predicated region
    $region97: #{_lambda_.6} parent=5 // pred_check
      %p1538 = pneg %p1537
    $region98: #{_lambda_.6} parent=5 // pred_check_branch
      %1540 = sbr.rel (%p1538) target = $region100
    $region99: #{_lambda_.6} parent=5 // pred_region
      %s1541 = ssub.s32 %s25, 2
      // Predicated region
      $region101: #{_lambda_.6} parent=99 // pred_check
        %p1542 = pneg %p421
      $region102: #{_lambda_.6} parent=99 // pred_check_branch
        %1544 = sbr.rel (%p1542) target = $region104
      $region103: #{_lambda_.6} parent=99 // pred_region
        %p1545 = scmp.lt.s32.totalorder %s31, 2
        %s1546 = scalar_select %p1545, %s31, 2
        %s1547 = scalar_lea.vmem %s17, %s1546
      $region104: #{_lambda_.6} parent=99 // pred_fallthru
        _
      // Predicated region
      $region105: #{_lambda_.6} parent=99 // pred_check
        %p1548 = pneg %p447
      $region106: #{_lambda_.6} parent=99 // pred_check_branch
        %1550 = sbr.rel (%p1548) target = $region108
      $region107: #{_lambda_.6} parent=99 // pred_region
        %p1551 = scmp.lt.s32.totalorder %s31, 2
        %s1552 = scalar_select %p1551, %s31, 2
        %s1553 = smul.addr %s1552, 4
        %s1554 = scalar_lea.vmem %s18, %s1553
      $region108: #{_lambda_.6} parent=99 // pred_fallthru
        _
    $region100: #{_lambda_.6} parent=5 // pred_fallthru
      _
  $region6: #{_lambda_.6} parent=0 // loop_footer
    %s29 = sadd.s32 1, %s25
  $region7: #{_lambda_.6} parent=0 // loop_footer_branch
    %24 = sbr.rel target = $region3
  $region8: #{_lambda_.6} parent=0 // loop_exit
    _

// kernel: _lambda_.7
$region0: #{_lambda_.7}
  #allocation0 [shape = 'u32[]', space=smem, size = 0x4, offset = 0x4, fixed_abs, tag = 'smem constant byte address 0x4 - core index']
  #allocation1 [shape = 'u32[72,128]{1,0:T(1,128)}', space=vmem, size = 0x9000, scoped, tag = 'internal scratch']
  %s0 = inlined_call_operand.vmem [shape: bf16[2,128], index: 0, kind: input, shape index: {}]
  %s1 = inlined_call_operand.vmem [shape: bf16[128,1280], index: 1, kind: input, shape index: {}]
  %s2 = inlined_call_operand.vmem [shape: f32[1,1280], index: 2, kind: input, shape index: {}]
  %s3 = inlined_call_operand.vmem [shape: f32[1,1280], index: 3, kind: input, shape index: {}]
  %s4 = inlined_call_operand.vmem [shape: f32[1,1280], index: 4, kind: input, shape index: {}]
  %s5 = inlined_call_operand.vmem [shape: bf16[256,128], index: 5, kind: input, shape index: {}]
  %s6 = inlined_call_operand.vmem [shape: bf16[256,128], index: 6, kind: input, shape index: {}]
  %s7 = inlined_call_operand.vmem [shape: bf16[384,128], index: 7, kind: input, shape index: {}]
  %s8 = inlined_call_operand.vmem [shape: bf16[384,128], index: 8, kind: input, shape index: {}]
  %s9 = inlined_call_operand.vmem [shape: f32[1,512], index: 9, kind: input, shape index: {}]
  %s10 = inlined_call_operand.vmem [shape: f32[2,512], index: 10, kind: output, shape index: {}]
  %s11 = sld [smem:[#allocation0]]
  $region50: #{_lambda_.7} parent=0
    _
  %s13 = ssub.s32 1, %s11
  %s14 = scalar_select 0, %s13, %s11
  // Predicated region
  $region2: #{_lambda_.7} parent=0 // pred_check
    _
  $region3: #{_lambda_.7} parent=0 // pred_check_branch
    %16 = sbr.rel (0) target = $region5
  $region4: #{_lambda_.7} parent=0 // pred_region
    _
  $region5: #{_lambda_.7} parent=0 // pred_fallthru
    _
  // Predicated region
  $region6: #{_lambda_.7} parent=0 // pred_check
    _
  $region7: #{_lambda_.7} parent=0 // pred_check_branch
    %18 = sbr.rel (0) target = $region9
  $region8: #{_lambda_.7} parent=0 // pred_region
    _
  $region9: #{_lambda_.7} parent=0 // pred_fallthru
    _
  // Predicated region
  $region10: #{_lambda_.7} parent=0 // pred_check
    _
  $region11: #{_lambda_.7} parent=0 // pred_check_branch
    %20 = sbr.rel (0) target = $region13
  $region12: #{_lambda_.7} parent=0 // pred_region
    _
  $region13: #{_lambda_.7} parent=0 // pred_fallthru
    _
  // Predicated region
  $region14: #{_lambda_.7} parent=0 // pred_check
    _
  $region15: #{_lambda_.7} parent=0 // pred_check_branch
    %22 = sbr.rel (0) target = $region17
  $region16: #{_lambda_.7} parent=0 // pred_region
    _
  $region17: #{_lambda_.7} parent=0 // pred_fallthru
    _
  // Predicated region
  $region18: #{_lambda_.7} parent=0 // pred_check
    _
  $region19: #{_lambda_.7} parent=0 // pred_check_branch
    %24 = sbr.rel (0) target = $region21
  $region20: #{_lambda_.7} parent=0 // pred_region
    _
  $region21: #{_lambda_.7} parent=0 // pred_fallthru
    _
  // Predicated region
  $region22: #{_lambda_.7} parent=0 // pred_check
    _
  $region23: #{_lambda_.7} parent=0 // pred_check_branch
    %26 = sbr.rel (0) target = $region25
  $region24: #{_lambda_.7} parent=0 // pred_region
    _
  $region25: #{_lambda_.7} parent=0 // pred_fallthru
    _
  // Predicated region
  $region26: #{_lambda_.7} parent=0 // pred_check
    _
  $region27: #{_lambda_.7} parent=0 // pred_check_branch
    %28 = sbr.rel (0) target = $region29
  $region28: #{_lambda_.7} parent=0 // pred_region
    _
  $region29: #{_lambda_.7} parent=0 // pred_fallthru
    _
  // Predicated region
  $region30: #{_lambda_.7} parent=0 // pred_check
    _
  $region31: #{_lambda_.7} parent=0 // pred_check_branch
    %30 = sbr.rel (0) target = $region33
  $region32: #{_lambda_.7} parent=0 // pred_region
    _
  $region33: #{_lambda_.7} parent=0 // pred_fallthru
    _
  // Predicated region
  $region34: #{_lambda_.7} parent=0 // pred_check
    _
  $region35: #{_lambda_.7} parent=0 // pred_check_branch
    %32 = sbr.rel (0) target = $region37
  $region36: #{_lambda_.7} parent=0 // pred_region
    _
  $region37: #{_lambda_.7} parent=0 // pred_fallthru
    _
  // Predicated region
  $region38: #{_lambda_.7} parent=0 // pred_check
    _
  $region39: #{_lambda_.7} parent=0 // pred_check_branch
    %34 = sbr.rel (0) target = $region41
  $region40: #{_lambda_.7} parent=0 // pred_region
    _
  $region41: #{_lambda_.7} parent=0 // pred_fallthru
    _
  %v35 = vld [vmem:[%s0] sm:$0x1]
  %v36 = vld [vmem:[%s1] sm:$0xff]
  %v37 = vld [vmem:[%s1 + $0x8] sm:$0xff]
  %v38 = vld [vmem:[%s1 + $0x10] sm:$0xff]
  %v39 = vld [vmem:[%s1 + $0x18] sm:$0xff]
  %v40 = vld [vmem:[%s1 + $0x20] sm:$0xff]
  %v41 = vld [vmem:[%s1 + $0x28] sm:$0xff]
  %v42 = vld [vmem:[%s1 + $0x30] sm:$0xff]
  %v43 = vld [vmem:[%s1 + $0x38] sm:$0xff]
  %v44 = vld [vmem:[%s1 + $0x40] sm:$0xff]
  %v45 = vld [vmem:[%s1 + $0x48] sm:$0xff]
  %v46 = vld [vmem:[%s1 + $0x50] sm:$0xff]
  %v47 = vld [vmem:[%s1 + $0x58] sm:$0xff]
  %v48 = vld [vmem:[%s1 + $0x60] sm:$0xff]
  %v49 = vld [vmem:[%s1 + $0x68] sm:$0xff]
  %v50 = vld [vmem:[%s1 + $0x70] sm:$0xff]
  %v51 = vld [vmem:[%s1 + $0x78] sm:$0xff]
  %v52 = vld [vmem:[%s1 + $0x80] sm:$0xff]
  %v53 = vld [vmem:[%s1 + $0x88] sm:$0xff]
  %v54 = vld [vmem:[%s1 + $0x90] sm:$0xff]
  %v55 = vld [vmem:[%s1 + $0x98] sm:$0xff]
  %v56 = vld [vmem:[%s1 + $0xa0] sm:$0xff]
  %v57 = vld [vmem:[%s1 + $0xa8] sm:$0xff]
  %v58 = vld [vmem:[%s1 + $0xb0] sm:$0xff]
  %v59 = vld [vmem:[%s1 + $0xb8] sm:$0xff]
  %v60 = vld [vmem:[%s1 + $0xc0] sm:$0xff]
  %v61 = vld [vmem:[%s1 + $0xc8] sm:$0xff]
  %v62 = vld [vmem:[%s1 + $0xd0] sm:$0xff]
  %v63 = vld [vmem:[%s1 + $0xd8] sm:$0xff]
  %v64 = vld [vmem:[%s1 + $0xe0] sm:$0xff]
  %v65 = vld [vmem:[%s1 + $0xe8] sm:$0xff]
  %v66 = vld [vmem:[%s1 + $0xf0] sm:$0xff]
  %v67 = vld [vmem:[%s1 + $0xf8] sm:$0xff]
  %v68 = vld [vmem:[%s1 + $0x100] sm:$0xff]
  %v69 = vld [vmem:[%s1 + $0x108] sm:$0xff]
  %v70 = vld [vmem:[%s1 + $0x110] sm:$0xff]
  %v71 = vld [vmem:[%s1 + $0x118] sm:$0xff]
  %v72 = vld [vmem:[%s1 + $0x120] sm:$0xff]
  %v73 = vld [vmem:[%s1 + $0x128] sm:$0xff]
  %v74 = vld [vmem:[%s1 + $0x130] sm:$0xff]
  %v75 = vld [vmem:[%s1 + $0x138] sm:$0xff]
  %v76 = vld [vmem:[%s1 + $0x140] sm:$0xff]
  %v77 = vld [vmem:[%s1 + $0x148] sm:$0xff]
  %v78 = vld [vmem:[%s1 + $0x150] sm:$0xff]
  %v79 = vld [vmem:[%s1 + $0x158] sm:$0xff]
  %v80 = vld [vmem:[%s1 + $0x160] sm:$0xff]
  %v81 = vld [vmem:[%s1 + $0x168] sm:$0xff]
  %v82 = vld [vmem:[%s1 + $0x170] sm:$0xff]
  %v83 = vld [vmem:[%s1 + $0x178] sm:$0xff]
  %v84 = vld [vmem:[%s1 + $0x180] sm:$0xff]
  %v85 = vld [vmem:[%s1 + $0x188] sm:$0xff]
  %v86 = vld [vmem:[%s1 + $0x190] sm:$0xff]
  %v87 = vld [vmem:[%s1 + $0x198] sm:$0xff]
  %v88 = vld [vmem:[%s1 + $0x1a0] sm:$0xff]
  %v89 = vld [vmem:[%s1 + $0x1a8] sm:$0xff]
  %v90 = vld [vmem:[%s1 + $0x1b0] sm:$0xff]
  %v91 = vld [vmem:[%s1 + $0x1b8] sm:$0xff]
  %v92 = vld [vmem:[%s1 + $0x1c0] sm:$0xff]
  %v93 = vld [vmem:[%s1 + $0x1c8] sm:$0xff]
  %v94 = vld [vmem:[%s1 + $0x1d0] sm:$0xff]
  %v95 = vld [vmem:[%s1 + $0x1d8] sm:$0xff]
  %v96 = vld [vmem:[%s1 + $0x1e0] sm:$0xff]
  %v97 = vld [vmem:[%s1 + $0x1e8] sm:$0xff]
  %v98 = vld [vmem:[%s1 + $0x1f0] sm:$0xff]
  %v99 = vld [vmem:[%s1 + $0x1f8] sm:$0xff]
  %v100 = vld [vmem:[%s1 + $0x200] sm:$0xff]
  %v101 = vld [vmem:[%s1 + $0x208] sm:$0xff]
  %v102 = vld [vmem:[%s1 + $0x210] sm:$0xff]
  %v103 = vld [vmem:[%s1 + $0x218] sm:$0xff]
  %v104 = vld [vmem:[%s1 + $0x220] sm:$0xff]
  %v105 = vld [vmem:[%s1 + $0x228] sm:$0xff]
  %v106 = vld [vmem:[%s1 + $0x230] sm:$0xff]
  %v107 = vld [vmem:[%s1 + $0x238] sm:$0xff]
  %v108 = vld [vmem:[%s1 + $0x240] sm:$0xff]
  %v109 = vld [vmem:[%s1 + $0x248] sm:$0xff]
  %v110 = vld [vmem:[%s1 + $0x250] sm:$0xff]
  %v111 = vld [vmem:[%s1 + $0x258] sm:$0xff]
  %v112 = vld [vmem:[%s1 + $0x260] sm:$0xff]
  %v113 = vld [vmem:[%s1 + $0x268] sm:$0xff]
  %v114 = vld [vmem:[%s1 + $0x270] sm:$0xff]
  %v115 = vld [vmem:[%s1 + $0x278] sm:$0xff]
  %v116 = vld [vmem:[%s2] sm:$0xff]
  %v117 = vld [vmem:[%s2 + $0x8] sm:$0x3]
  %v120 = vperm.slane %v116, 0
  %v121 = vperm.slane %v116, 1
  %v122 = vperm.slane %v116, 2
  %v123 = vperm.slane %v116, 3
  %v124 = vperm.slane %v116, 4
  %v125 = vperm.slane %v116, 5
  %v126 = vperm.slane %v116, 6
  %v127 = vperm.slane %v116, 7
  %v128 = vperm.slane %v117, 0
  %v129 = vperm.slane %v117, 1
  %v220 = vunpack.c.l.b16 %v36
  %v221 = vunpack.c.h.b16 %v36
  %v222 = vunpack.c.l.b16 %v37
  %v223 = vunpack.c.h.b16 %v37
  %v224 = vunpack.c.l.b16 %v38
  %v225 = vunpack.c.h.b16 %v38
  %v226 = vunpack.c.l.b16 %v39
  %v227 = vunpack.c.h.b16 %v39
  %v228 = vunpack.c.l.b16 %v40
  %v229 = vunpack.c.h.b16 %v40
  %v230 = vunpack.c.l.b16 %v41
  %v231 = vunpack.c.h.b16 %v41
  %v232 = vunpack.c.l.b16 %v42
  %v233 = vunpack.c.h.b16 %v42
  %v234 = vunpack.c.l.b16 %v43
  %v235 = vunpack.c.h.b16 %v43
  %v236 = vunpack.c.l.b16 %v44
  %v237 = vunpack.c.h.b16 %v44
  %v238 = vunpack.c.l.b16 %v45
  %v239 = vunpack.c.h.b16 %v45
  %v240 = vunpack.c.l.b16 %v46
  %v241 = vunpack.c.h.b16 %v46
  %v242 = vunpack.c.l.b16 %v47
  %v243 = vunpack.c.h.b16 %v47
  %v244 = vunpack.c.l.b16 %v48
  %v245 = vunpack.c.h.b16 %v48
  %v246 = vunpack.c.l.b16 %v49
  %v247 = vunpack.c.h.b16 %v49
  %v248 = vunpack.c.l.b16 %v50
  %v249 = vunpack.c.h.b16 %v50
  %v250 = vunpack.c.l.b16 %v51
  %v251 = vunpack.c.h.b16 %v51
  %v252 = vunpack.c.l.b16 %v52
  %v253 = vunpack.c.h.b16 %v52
  %v254 = vunpack.c.l.b16 %v53
  %v255 = vunpack.c.h.b16 %v53
  %v256 = vunpack.c.l.b16 %v54
  %v257 = vunpack.c.h.b16 %v54
  %v258 = vunpack.c.l.b16 %v55
  %v259 = vunpack.c.h.b16 %v55
  %v260 = vunpack.c.l.b16 %v56
  %v261 = vunpack.c.h.b16 %v56
  %v262 = vunpack.c.l.b16 %v57
  %v263 = vunpack.c.h.b16 %v57
  %v264 = vunpack.c.l.b16 %v58
  %v265 = vunpack.c.h.b16 %v58
  %v266 = vunpack.c.l.b16 %v59
  %v267 = vunpack.c.h.b16 %v59
  %v268 = vunpack.c.l.b16 %v60
  %v269 = vunpack.c.h.b16 %v60
  %v270 = vunpack.c.l.b16 %v61
  %v271 = vunpack.c.h.b16 %v61
  %v272 = vunpack.c.l.b16 %v62
  %v273 = vunpack.c.h.b16 %v62
  %v274 = vunpack.c.l.b16 %v63
  %v275 = vunpack.c.h.b16 %v63
  %v276 = vunpack.c.l.b16 %v64
  %v277 = vunpack.c.h.b16 %v64
  %v278 = vunpack.c.l.b16 %v65
  %v279 = vunpack.c.h.b16 %v65
  %v280 = vunpack.c.l.b16 %v66
  %v281 = vunpack.c.h.b16 %v66
  %v282 = vunpack.c.l.b16 %v67
  %v283 = vunpack.c.h.b16 %v67
  %v284 = vunpack.c.l.b16 %v68
  %v285 = vunpack.c.h.b16 %v68
  %v286 = vunpack.c.l.b16 %v69
  %v287 = vunpack.c.h.b16 %v69
  %v288 = vunpack.c.l.b16 %v70
  %v289 = vunpack.c.h.b16 %v70
  %v290 = vunpack.c.l.b16 %v71
  %v291 = vunpack.c.h.b16 %v71
  %v292 = vunpack.c.l.b16 %v72
  %v293 = vunpack.c.h.b16 %v72
  %v294 = vunpack.c.l.b16 %v73
  %v295 = vunpack.c.h.b16 %v73
  %v296 = vunpack.c.l.b16 %v74
  %v297 = vunpack.c.h.b16 %v74
  %v298 = vunpack.c.l.b16 %v75
  %v299 = vunpack.c.h.b16 %v75
  %v300 = vunpack.c.l.b16 %v76
  %v301 = vunpack.c.h.b16 %v76
  %v302 = vunpack.c.l.b16 %v77
  %v303 = vunpack.c.h.b16 %v77
  %v304 = vunpack.c.l.b16 %v78
  %v305 = vunpack.c.h.b16 %v78
  %v306 = vunpack.c.l.b16 %v79
  %v307 = vunpack.c.h.b16 %v79
  %v308 = vunpack.c.l.b16 %v80
  %v309 = vunpack.c.h.b16 %v80
  %v310 = vunpack.c.l.b16 %v81
  %v311 = vunpack.c.h.b16 %v81
  %v312 = vunpack.c.l.b16 %v82
  %v313 = vunpack.c.h.b16 %v82
  %v314 = vunpack.c.l.b16 %v83
  %v315 = vunpack.c.h.b16 %v83
  %v316 = vunpack.c.l.b16 %v84
  %v317 = vunpack.c.h.b16 %v84
  %v318 = vunpack.c.l.b16 %v85
  %v319 = vunpack.c.h.b16 %v85
  %v320 = vunpack.c.l.b16 %v86
  %v321 = vunpack.c.h.b16 %v86
  %v322 = vunpack.c.l.b16 %v87
  %v323 = vunpack.c.h.b16 %v87
  %v324 = vunpack.c.l.b16 %v88
  %v325 = vunpack.c.h.b16 %v88
  %v326 = vunpack.c.l.b16 %v89
  %v327 = vunpack.c.h.b16 %v89
  %v328 = vunpack.c.l.b16 %v90
  %v329 = vunpack.c.h.b16 %v90
  %v330 = vunpack.c.l.b16 %v91
  %v331 = vunpack.c.h.b16 %v91
  %v332 = vunpack.c.l.b16 %v92
  %v333 = vunpack.c.h.b16 %v92
  %v334 = vunpack.c.l.b16 %v93
  %v335 = vunpack.c.h.b16 %v93
  %v336 = vunpack.c.l.b16 %v94
  %v337 = vunpack.c.h.b16 %v94
  %v338 = vunpack.c.l.b16 %v95
  %v339 = vunpack.c.h.b16 %v95
  %v340 = vunpack.c.l.b16 %v96
  %v341 = vunpack.c.h.b16 %v96
  %v342 = vunpack.c.l.b16 %v97
  %v343 = vunpack.c.h.b16 %v97
  %v344 = vunpack.c.l.b16 %v98
  %v345 = vunpack.c.h.b16 %v98
  %v346 = vunpack.c.l.b16 %v99
  %v347 = vunpack.c.h.b16 %v99
  %v348 = vunpack.c.l.b16 %v100
  %v349 = vunpack.c.h.b16 %v100
  %v350 = vunpack.c.l.b16 %v101
  %v351 = vunpack.c.h.b16 %v101
  %v352 = vunpack.c.l.b16 %v102
  %v353 = vunpack.c.h.b16 %v102
  %v354 = vunpack.c.l.b16 %v103
  %v355 = vunpack.c.h.b16 %v103
  %v356 = vunpack.c.l.b16 %v104
  %v357 = vunpack.c.h.b16 %v104
  %v358 = vunpack.c.l.b16 %v105
  %v359 = vunpack.c.h.b16 %v105
  %v360 = vunpack.c.l.b16 %v106
  %v361 = vunpack.c.h.b16 %v106
  %v362 = vunpack.c.l.b16 %v107
  %v363 = vunpack.c.h.b16 %v107
  %v364 = vunpack.c.l.b16 %v108
  %v365 = vunpack.c.h.b16 %v108
  %v366 = vunpack.c.l.b16 %v109
  %v367 = vunpack.c.h.b16 %v109
  %v368 = vunpack.c.l.b16 %v110
  %v369 = vunpack.c.h.b16 %v110
  %v370 = vunpack.c.l.b16 %v111
  %v371 = vunpack.c.h.b16 %v111
  %v372 = vunpack.c.l.b16 %v112
  %v373 = vunpack.c.h.b16 %v112
  %v374 = vunpack.c.l.b16 %v113
  %v375 = vunpack.c.h.b16 %v113
  %v376 = vunpack.c.l.b16 %v114
  %v377 = vunpack.c.h.b16 %v114
  %v378 = vunpack.c.l.b16 %v115
  %v379 = vunpack.c.h.b16 %v115
  %v380 = vpack.c.b16 %v230, %v220
  %v381 = vpack.c.b16 %v231, %v221
  %v382 = vpack.c.b16 %v232, %v222
  %v383 = vpack.c.b16 %v233, %v223
  %v384 = vpack.c.b16 %v234, %v224
  %v385 = vpack.c.b16 %v235, %v225
  %v386 = vpack.c.b16 %v236, %v226
  %v387 = vpack.c.b16 %v237, %v227
  %v388 = vpack.c.b16 %v238, %v228
  %v389 = vpack.c.b16 %v239, %v229
  %v390 = vpack.c.b16 %v250, %v240
  %v391 = vpack.c.b16 %v251, %v241
  %v392 = vpack.c.b16 %v252, %v242
  %v393 = vpack.c.b16 %v253, %v243
  %v394 = vpack.c.b16 %v254, %v244
  %v395 = vpack.c.b16 %v255, %v245
  %v396 = vpack.c.b16 %v256, %v246
  %v397 = vpack.c.b16 %v257, %v247
  %v398 = vpack.c.b16 %v258, %v248
  %v399 = vpack.c.b16 %v259, %v249
  %v400 = vpack.c.b16 %v270, %v260
  %v401 = vpack.c.b16 %v271, %v261
  %v402 = vpack.c.b16 %v272, %v262
  %v403 = vpack.c.b16 %v273, %v263
  %v404 = vpack.c.b16 %v274, %v264
  %v405 = vpack.c.b16 %v275, %v265
  %v406 = vpack.c.b16 %v276, %v266
  %v407 = vpack.c.b16 %v277, %v267
  %v408 = vpack.c.b16 %v278, %v268
  %v409 = vpack.c.b16 %v279, %v269
  %v410 = vpack.c.b16 %v290, %v280
  %v411 = vpack.c.b16 %v291, %v281
  %v412 = vpack.c.b16 %v292, %v282
  %v413 = vpack.c.b16 %v293, %v283
  %v414 = vpack.c.b16 %v294, %v284
  %v415 = vpack.c.b16 %v295, %v285
  %v416 = vpack.c.b16 %v296, %v286
  %v417 = vpack.c.b16 %v297, %v287
  %v418 = vpack.c.b16 %v298, %v288
  %v419 = vpack.c.b16 %v299, %v289
  %v420 = vpack.c.b16 %v310, %v300
  %v421 = vpack.c.b16 %v311, %v301
  %v422 = vpack.c.b16 %v312, %v302
  %v423 = vpack.c.b16 %v313, %v303
  %v424 = vpack.c.b16 %v314, %v304
  %v425 = vpack.c.b16 %v315, %v305
  %v426 = vpack.c.b16 %v316, %v306
  %v427 = vpack.c.b16 %v317, %v307
  %v428 = vpack.c.b16 %v318, %v308
  %v429 = vpack.c.b16 %v319, %v309
  %v430 = vpack.c.b16 %v330, %v320
  %v431 = vpack.c.b16 %v331, %v321
  %v432 = vpack.c.b16 %v332, %v322
  %v433 = vpack.c.b16 %v333, %v323
  %v434 = vpack.c.b16 %v334, %v324
  %v435 = vpack.c.b16 %v335, %v325
  %v436 = vpack.c.b16 %v336, %v326
  %v437 = vpack.c.b16 %v337, %v327
  %v438 = vpack.c.b16 %v338, %v328
  %v439 = vpack.c.b16 %v339, %v329
  %v440 = vpack.c.b16 %v350, %v340
  %v441 = vpack.c.b16 %v351, %v341
  %v442 = vpack.c.b16 %v352, %v342
  %v443 = vpack.c.b16 %v353, %v343
  %v444 = vpack.c.b16 %v354, %v344
  %v445 = vpack.c.b16 %v355, %v345
  %v446 = vpack.c.b16 %v356, %v346
  %v447 = vpack.c.b16 %v357, %v347
  %v448 = vpack.c.b16 %v358, %v348
  %v449 = vpack.c.b16 %v359, %v349
  %v450 = vpack.c.b16 %v370, %v360
  %v451 = vpack.c.b16 %v371, %v361
  %v452 = vpack.c.b16 %v372, %v362
  %v453 = vpack.c.b16 %v373, %v363
  %v454 = vpack.c.b16 %v374, %v364
  %v455 = vpack.c.b16 %v375, %v365
  %v456 = vpack.c.b16 %v376, %v366
  %v457 = vpack.c.b16 %v377, %v367
  %v458 = vpack.c.b16 %v378, %v368
  %v459 = vpack.c.b16 %v379, %v369
  %540 = vmatpush.bf16.msra.mxu0 %v450
  %541 = vmatpush.bf16.msra.mxu0 %v440
  %542 = vmatpush.bf16.msra.mxu0 %v430
  %543 = vmatpush.bf16.msra.mxu0 %v420
  %544 = vmatpush.bf16.msra.mxu0 %v410
  %545 = vmatpush.bf16.msra.mxu0 %v400
  %546 = vmatpush.bf16.msra.mxu0 %v390
  %547 = vmatpush.bf16.msra.mxu0 %v380
  %548 = vmatmul.bf16.gmra.mxu0 %v35
  %v549 = vpop.f32.mrf.mxu0
  %v550 = vadd.f32 %v120, %v549
  %v551 = vpop.f32.mrf.mxu0
  %552 = vdwg.mxu0
  %553 = vmatpush.bf16.msra.mxu0 %v451
  %554 = vmatpush.bf16.msra.mxu0 %v441
  %555 = vmatpush.bf16.msra.mxu0 %v431
  %556 = vmatpush.bf16.msra.mxu0 %v421
  %557 = vmatpush.bf16.msra.mxu0 %v411
  %558 = vmatpush.bf16.msra.mxu0 %v401
  %559 = vmatpush.bf16.msra.mxu0 %v391
  %560 = vmatpush.bf16.msra.mxu0 %v381
  %561 = vmatmul.bf16.gmra.mxu0 %v35
  %v562 = vpop.f32.mrf.mxu0
  %v563 = vadd.f32 %v121, %v562
  %v564 = vpop.f32.mrf.mxu0
  %565 = vdwg.mxu0
  %566 = vmatpush.bf16.msra.mxu0 %v452
  %567 = vmatpush.bf16.msra.mxu0 %v442
  %568 = vmatpush.bf16.msra.mxu0 %v432
  %569 = vmatpush.bf16.msra.mxu0 %v422
  %570 = vmatpush.bf16.msra.mxu0 %v412
  %571 = vmatpush.bf16.msra.mxu0 %v402
  %572 = vmatpush.bf16.msra.mxu0 %v392
  %573 = vmatpush.bf16.msra.mxu0 %v382
  %574 = vmatmul.bf16.gmra.mxu0 %v35
  %v575 = vpop.f32.mrf.mxu0
  %v576 = vadd.f32 %v122, %v575
  %v577 = vpop.f32.mrf.mxu0
  %578 = vdwg.mxu0
  %579 = vmatpush.bf16.msra.mxu0 %v453
  %580 = vmatpush.bf16.msra.mxu0 %v443
  %581 = vmatpush.bf16.msra.mxu0 %v433
  %582 = vmatpush.bf16.msra.mxu0 %v423
  %583 = vmatpush.bf16.msra.mxu0 %v413
  %584 = vmatpush.bf16.msra.mxu0 %v403
  %585 = vmatpush.bf16.msra.mxu0 %v393
  %586 = vmatpush.bf16.msra.mxu0 %v383
  %587 = vmatmul.bf16.gmra.mxu0 %v35
  %v588 = vpop.f32.mrf.mxu0
  %v589 = vadd.f32 %v123, %v588
  %v590 = vpop.f32.mrf.mxu0
  %591 = vdwg.mxu0
  %592 = vmatpush.bf16.msra.mxu0 %v454
  %593 = vmatpush.bf16.msra.mxu0 %v444
  %594 = vmatpush.bf16.msra.mxu0 %v434
  %595 = vmatpush.bf16.msra.mxu0 %v424
  %596 = vmatpush.bf16.msra.mxu0 %v414
  %597 = vmatpush.bf16.msra.mxu0 %v404
  %598 = vmatpush.bf16.msra.mxu0 %v394
  %599 = vmatpush.bf16.msra.mxu0 %v384
  %600 = vmatmul.bf16.gmra.mxu0 %v35
  %v601 = vpop.f32.mrf.mxu0
  %v602 = vadd.f32 %v124, %v601
  %v603 = vpop.f32.mrf.mxu0
  %604 = vdwg.mxu0
  %605 = vmatpush.bf16.msra.mxu0 %v455
  %606 = vmatpush.bf16.msra.mxu0 %v445
  %607 = vmatpush.bf16.msra.mxu0 %v435
  %608 = vmatpush.bf16.msra.mxu0 %v425
  %609 = vmatpush.bf16.msra.mxu0 %v415
  %610 = vmatpush.bf16.msra.mxu0 %v405
  %611 = vmatpush.bf16.msra.mxu0 %v395
  %612 = vmatpush.bf16.msra.mxu0 %v385
  %613 = vmatmul.bf16.gmra.mxu0 %v35
  %v614 = vpop.f32.mrf.mxu0
  %v615 = vadd.f32 %v125, %v614
  %v616 = vpop.f32.mrf.mxu0
  %617 = vdwg.mxu0
  %618 = vmatpush.bf16.msra.mxu0 %v456
  %619 = vmatpush.bf16.msra.mxu0 %v446
  %620 = vmatpush.bf16.msra.mxu0 %v436
  %621 = vmatpush.bf16.msra.mxu0 %v426
  %622 = vmatpush.bf16.msra.mxu0 %v416
  %623 = vmatpush.bf16.msra.mxu0 %v406
  %624 = vmatpush.bf16.msra.mxu0 %v396
  %625 = vmatpush.bf16.msra.mxu0 %v386
  %626 = vmatmul.bf16.gmra.mxu0 %v35
  %v627 = vpop.f32.mrf.mxu0
  %v628 = vadd.f32 %v126, %v627
  %v629 = vpop.f32.mrf.mxu0
  %630 = vdwg.mxu0
  %631 = vmatpush.bf16.msra.mxu0 %v457
  %632 = vmatpush.bf16.msra.mxu0 %v447
  %633 = vmatpush.bf16.msra.mxu0 %v437
  %634 = vmatpush.bf16.msra.mxu0 %v427
  %635 = vmatpush.bf16.msra.mxu0 %v417
  %636 = vmatpush.bf16.msra.mxu0 %v407
  %637 = vmatpush.bf16.msra.mxu0 %v397
  %638 = vmatpush.bf16.msra.mxu0 %v387
  %639 = vmatmul.bf16.gmra.mxu0 %v35
  %v640 = vpop.f32.mrf.mxu0
  %v641 = vadd.f32 %v127, %v640
  %v642 = vpop.f32.mrf.mxu0
  %643 = vdwg.mxu0
  %644 = vmatpush.bf16.msra.mxu0 %v458
  %645 = vmatpush.bf16.msra.mxu0 %v448
  %646 = vmatpush.bf16.msra.mxu0 %v438
  %647 = vmatpush.bf16.msra.mxu0 %v428
  %648 = vmatpush.bf16.msra.mxu0 %v418
  %649 = vmatpush.bf16.msra.mxu0 %v408
  %650 = vmatpush.bf16.msra.mxu0 %v398
  %651 = vmatpush.bf16.msra.mxu0 %v388
  %652 = vmatmul.bf16.gmra.mxu0 %v35
  %v653 = vpop.f32.mrf.mxu0
  %v654 = vadd.f32 %v128, %v653
  %v655 = vpop.f32.mrf.mxu0
  %656 = vdwg.mxu0
  %657 = vmatpush.bf16.msra.mxu0 %v459
  %658 = vmatpush.bf16.msra.mxu0 %v449
  %659 = vmatpush.bf16.msra.mxu0 %v439
  %660 = vmatpush.bf16.msra.mxu0 %v429
  %661 = vmatpush.bf16.msra.mxu0 %v419
  %662 = vmatpush.bf16.msra.mxu0 %v409
  %663 = vmatpush.bf16.msra.mxu0 %v399
  %664 = vmatpush.bf16.msra.mxu0 %v389
  %665 = vmatmul.bf16.gmra.mxu0 %v35
  %v666 = vpop.f32.mrf.mxu0
  %v667 = vadd.f32 %v129, %v666
  %v668 = vpop.f32.mrf.mxu0
  %669 = vdwg.mxu0
  %v670 = vld [vmem:[%s3] sm:$0xff]
  %v671 = vld [vmem:[%s3 + $0x8] sm:$0x3]
  %v672 = vld [vmem:[%s4] sm:$0xff]
  %v673 = vld [vmem:[%s4 + $0x8] sm:$0x3]
  %vm674 = vcmask 1041408
  %v675 = vsel %vm674, %v550, 0.0
  %v676 = vrot.slane %v675, 4
  %v677 = vadd.f32 %v675, %v676
  %v678 = vrot.slane %v677, 2
  %v679 = vadd.f32 %v677, %v678
  %v680 = vrot.slane %v679, 1
  %v681 = vadd.f32 %v679, %v680
  %v682 = vsel %vm674, %v563, 0.0
  %v683 = vrot.slane %v682, 4
  %v684 = vadd.f32 %v682, %v683
  %v685 = vrot.slane %v684, 2
  %v686 = vadd.f32 %v684, %v685
  %v687 = vrot.slane %v686, 1
  %v688 = vadd.f32 %v686, %v687
  %v689 = vsel %vm674, %v576, 0.0
  %v690 = vrot.slane %v689, 4
  %v691 = vadd.f32 %v689, %v690
  %v692 = vrot.slane %v691, 2
  %v693 = vadd.f32 %v691, %v692
  %v694 = vrot.slane %v693, 1
  %v695 = vadd.f32 %v693, %v694
  %v696 = vsel %vm674, %v589, 0.0
  %v697 = vrot.slane %v696, 4
  %v698 = vadd.f32 %v696, %v697
  %v699 = vrot.slane %v698, 2
  %v700 = vadd.f32 %v698, %v699
  %v701 = vrot.slane %v700, 1
  %v702 = vadd.f32 %v700, %v701
  %v703 = vsel %vm674, %v602, 0.0
  %v704 = vrot.slane %v703, 4
  %v705 = vadd.f32 %v703, %v704
  %v706 = vrot.slane %v705, 2
  %v707 = vadd.f32 %v705, %v706
  %v708 = vrot.slane %v707, 1
  %v709 = vadd.f32 %v707, %v708
  %v710 = vsel %vm674, %v615, 0.0
  %v711 = vrot.slane %v710, 4
  %v712 = vadd.f32 %v710, %v711
  %v713 = vrot.slane %v712, 2
  %v714 = vadd.f32 %v712, %v713
  %v715 = vrot.slane %v714, 1
  %v716 = vadd.f32 %v714, %v715
  %v717 = vsel %vm674, %v628, 0.0
  %v718 = vrot.slane %v717, 4
  %v719 = vadd.f32 %v717, %v718
  %v720 = vrot.slane %v719, 2
  %v721 = vadd.f32 %v719, %v720
  %v722 = vrot.slane %v721, 1
  %v723 = vadd.f32 %v721, %v722
  %v724 = vsel %vm674, %v641, 0.0
  %v725 = vrot.slane %v724, 4
  %v726 = vadd.f32 %v724, %v725
  %v727 = vrot.slane %v726, 2
  %v728 = vadd.f32 %v726, %v727
  %v729 = vrot.slane %v728, 1
  %v730 = vadd.f32 %v728, %v729
  %v731 = vsel %vm674, %v654, 0.0
  %v732 = vrot.slane %v731, 4
  %v733 = vadd.f32 %v731, %v732
  %v734 = vrot.slane %v733, 2
  %v735 = vadd.f32 %v733, %v734
  %v736 = vrot.slane %v735, 1
  %v737 = vadd.f32 %v735, %v736
  %v738 = vsel %vm674, %v667, 0.0
  %v739 = vrot.slane %v738, 4
  %v740 = vadd.f32 %v738, %v739
  %v741 = vrot.slane %v740, 2
  %v742 = vadd.f32 %v740, %v741
  %v743 = vrot.slane %v742, 1
  %v744 = vadd.f32 %v742, %v743
  %v745 = vrcp.pop 2.0
  %v746 = vmul.f32 2.0, %v745
  %v747 = vsub.f32 1.0, %v746
  %v748 = vmul.f32 %v745, %v747
  %v749 = vadd.f32 %v745, %v748
  %vm750 = vweird.f32 %v745
  %v751 = vsel %vm750, %v745, %v749
  %v752 = vmul.f32 %v681, %v751
  %v753 = vmul.f32 %v688, %v751
  %v754 = vmul.f32 %v695, %v751
  %v755 = vmul.f32 %v702, %v751
  %v756 = vmul.f32 %v709, %v751
  %v757 = vmul.f32 %v716, %v751
  %v758 = vmul.f32 %v723, %v751
  %v759 = vmul.f32 %v730, %v751
  %v760 = vmul.f32 %v737, %v751
  %v761 = vmul.f32 %v744, %v751
  %v762 = vsub.f32 %v550, %v752
  %v763 = vsub.f32 %v563, %v753
  %v764 = vsub.f32 %v576, %v754
  %v765 = vsub.f32 %v589, %v755
  %v766 = vsub.f32 %v602, %v756
  %v767 = vsub.f32 %v615, %v757
  %v768 = vsub.f32 %v628, %v758
  %v769 = vsub.f32 %v641, %v759
  %v770 = vsub.f32 %v654, %v760
  %v771 = vsub.f32 %v667, %v761
  %v772 = vmul.f32 %v762, %v762
  %v773 = vmul.f32 %v763, %v763
  %v774 = vmul.f32 %v764, %v764
  %v775 = vmul.f32 %v765, %v765
  %v776 = vmul.f32 %v766, %v766
  %v777 = vmul.f32 %v767, %v767
  %v778 = vmul.f32 %v768, %v768
  %v779 = vmul.f32 %v769, %v769
  %v780 = vmul.f32 %v770, %v770
  %v781 = vmul.f32 %v771, %v771
  %v782 = vsel %vm674, %v772, 0.0
  %v783 = vrot.slane %v782, 4
  %v784 = vadd.f32 %v782, %v783
  %v785 = vrot.slane %v784, 2
  %v786 = vadd.f32 %v784, %v785
  %v787 = vrot.slane %v786, 1
  %v788 = vadd.f32 %v786, %v787
  %v789 = vsel %vm674, %v773, 0.0
  %v790 = vrot.slane %v789, 4
  %v791 = vadd.f32 %v789, %v790
  %v792 = vrot.slane %v791, 2
  %v793 = vadd.f32 %v791, %v792
  %v794 = vrot.slane %v793, 1
  %v795 = vadd.f32 %v793, %v794
  %v796 = vsel %vm674, %v774, 0.0
  %v797 = vrot.slane %v796, 4
  %v798 = vadd.f32 %v796, %v797
  %v799 = vrot.slane %v798, 2
  %v800 = vadd.f32 %v798, %v799
  %v801 = vrot.slane %v800, 1
  %v802 = vadd.f32 %v800, %v801
  %v803 = vsel %vm674, %v775, 0.0
  %v804 = vrot.slane %v803, 4
  %v805 = vadd.f32 %v803, %v804
  %v806 = vrot.slane %v805, 2
  %v807 = vadd.f32 %v805, %v806
  %v808 = vrot.slane %v807, 1
  %v809 = vadd.f32 %v807, %v808
  %v810 = vsel %vm674, %v776, 0.0
  %v811 = vrot.slane %v810, 4
  %v812 = vadd.f32 %v810, %v811
  %v813 = vrot.slane %v812, 2
  %v814 = vadd.f32 %v812, %v813
  %v815 = vrot.slane %v814, 1
  %v816 = vadd.f32 %v814, %v815
  %v817 = vsel %vm674, %v777, 0.0
  %v818 = vrot.slane %v817, 4
  %v819 = vadd.f32 %v817, %v818
  %v820 = vrot.slane %v819, 2
  %v821 = vadd.f32 %v819, %v820
  %v822 = vrot.slane %v821, 1
  %v823 = vadd.f32 %v821, %v822
  %v824 = vsel %vm674, %v778, 0.0
  %v825 = vrot.slane %v824, 4
  %v826 = vadd.f32 %v824, %v825
  %v827 = vrot.slane %v826, 2
  %v828 = vadd.f32 %v826, %v827
  %v829 = vrot.slane %v828, 1
  %v830 = vadd.f32 %v828, %v829
  %v831 = vsel %vm674, %v779, 0.0
  %v832 = vrot.slane %v831, 4
  %v833 = vadd.f32 %v831, %v832
  %v834 = vrot.slane %v833, 2
  %v835 = vadd.f32 %v833, %v834
  %v836 = vrot.slane %v835, 1
  %v837 = vadd.f32 %v835, %v836
  %v838 = vsel %vm674, %v780, 0.0
  %v839 = vrot.slane %v838, 4
  %v840 = vadd.f32 %v838, %v839
  %v841 = vrot.slane %v840, 2
  %v842 = vadd.f32 %v840, %v841
  %v843 = vrot.slane %v842, 1
  %v844 = vadd.f32 %v842, %v843
  %v845 = vsel %vm674, %v781, 0.0
  %v846 = vrot.slane %v845, 4
  %v847 = vadd.f32 %v845, %v846
  %v848 = vrot.slane %v847, 2
  %v849 = vadd.f32 %v847, %v848
  %v850 = vrot.slane %v849, 1
  %v851 = vadd.f32 %v849, %v850
  %v852 = vmul.f32 %v788, %v751
  %v853 = vmul.f32 %v795, %v751
  %v854 = vmul.f32 %v802, %v751
  %v855 = vmul.f32 %v809, %v751
  %v856 = vmul.f32 %v816, %v751
  %v857 = vmul.f32 %v823, %v751
  %v858 = vmul.f32 %v830, %v751
  %v859 = vmul.f32 %v837, %v751
  %v860 = vmul.f32 %v844, %v751
  %v861 = vmul.f32 %v851, %v751
  %v862 = vadd.f32 %v852, 1e-05
  %v863 = vadd.f32 %v853, 1e-05
  %v864 = vadd.f32 %v854, 1e-05
  %v865 = vadd.f32 %v855, 1e-05
  %v866 = vadd.f32 %v856, 1e-05
  %v867 = vadd.f32 %v857, 1e-05
  %v868 = vadd.f32 %v858, 1e-05
  %v869 = vadd.f32 %v859, 1e-05
  %v870 = vadd.f32 %v860, 1e-05
  %v871 = vadd.f32 %v861, 1e-05
  %v872 = vrsqrt.pop %v862
  %v873 = vmul.f32 %v872, %v862
  %v874 = vmul.f32 %v873, %v872
  %v875 = vmul.f32 0.5, %v874
  %v876 = vsub.f32 1.5, %v875
  %v877 = vmul.f32 %v872, %v876
  %vm878 = vweird.f32 %v862
  %vm879 = vweird.f32 %v872
  %vm880 = vmor %vm878, %vm879
  %v881 = vsel %vm880, %v872, %v877
  %v882 = vrsqrt.pop %v863
  %v883 = vmul.f32 %v882, %v863
  %v884 = vmul.f32 %v883, %v882
  %v885 = vmul.f32 0.5, %v884
  %v886 = vsub.f32 1.5, %v885
  %v887 = vmul.f32 %v882, %v886
  %vm888 = vweird.f32 %v863
  %vm889 = vweird.f32 %v882
  %vm890 = vmor %vm888, %vm889
  %v891 = vsel %vm890, %v882, %v887
  %v892 = vrsqrt.pop %v864
  %v893 = vmul.f32 %v892, %v864
  %v894 = vmul.f32 %v893, %v892
  %v895 = vmul.f32 0.5, %v894
  %v896 = vsub.f32 1.5, %v895
  %v897 = vmul.f32 %v892, %v896
  %vm898 = vweird.f32 %v864
  %vm899 = vweird.f32 %v892
  %vm900 = vmor %vm898, %vm899
  %v901 = vsel %vm900, %v892, %v897
  %v902 = vrsqrt.pop %v865
  %v903 = vmul.f32 %v902, %v865
  %v904 = vmul.f32 %v903, %v902
  %v905 = vmul.f32 0.5, %v904
  %v906 = vsub.f32 1.5, %v905
  %v907 = vmul.f32 %v902, %v906
  %vm908 = vweird.f32 %v865
  %vm909 = vweird.f32 %v902
  %vm910 = vmor %vm908, %vm909
  %v911 = vsel %vm910, %v902, %v907
  %v912 = vrsqrt.pop %v866
  %v913 = vmul.f32 %v912, %v866
  %v914 = vmul.f32 %v913, %v912
  %v915 = vmul.f32 0.5, %v914
  %v916 = vsub.f32 1.5, %v915
  %v917 = vmul.f32 %v912, %v916
  %vm918 = vweird.f32 %v866
  %vm919 = vweird.f32 %v912
  %vm920 = vmor %vm918, %vm919
  %v921 = vsel %vm920, %v912, %v917
  %v922 = vrsqrt.pop %v867
  %v923 = vmul.f32 %v922, %v867
  %v924 = vmul.f32 %v923, %v922
  %v925 = vmul.f32 0.5, %v924
  %v926 = vsub.f32 1.5, %v925
  %v927 = vmul.f32 %v922, %v926
  %vm928 = vweird.f32 %v867
  %vm929 = vweird.f32 %v922
  %vm930 = vmor %vm928, %vm929
  %v931 = vsel %vm930, %v922, %v927
  %v932 = vrsqrt.pop %v868
  %v933 = vmul.f32 %v932, %v868
  %v934 = vmul.f32 %v933, %v932
  %v935 = vmul.f32 0.5, %v934
  %v936 = vsub.f32 1.5, %v935
  %v937 = vmul.f32 %v932, %v936
  %vm938 = vweird.f32 %v868
  %vm939 = vweird.f32 %v932
  %vm940 = vmor %vm938, %vm939
  %v941 = vsel %vm940, %v932, %v937
  %v942 = vrsqrt.pop %v869
  %v943 = vmul.f32 %v942, %v869
  %v944 = vmul.f32 %v943, %v942
  %v945 = vmul.f32 0.5, %v944
  %v946 = vsub.f32 1.5, %v945
  %v947 = vmul.f32 %v942, %v946
  %vm948 = vweird.f32 %v869
  %vm949 = vweird.f32 %v942
  %vm950 = vmor %vm948, %vm949
  %v951 = vsel %vm950, %v942, %v947
  %v952 = vrsqrt.pop %v870
  %v953 = vmul.f32 %v952, %v870
  %v954 = vmul.f32 %v953, %v952
  %v955 = vmul.f32 0.5, %v954
  %v956 = vsub.f32 1.5, %v955
  %v957 = vmul.f32 %v952, %v956
  %vm958 = vweird.f32 %v870
  %vm959 = vweird.f32 %v952
  %vm960 = vmor %vm958, %vm959
  %v961 = vsel %vm960, %v952, %v957
  %v962 = vrsqrt.pop %v871
  %v963 = vmul.f32 %v962, %v871
  %v964 = vmul.f32 %v963, %v962
  %v965 = vmul.f32 0.5, %v964
  %v966 = vsub.f32 1.5, %v965
  %v967 = vmul.f32 %v962, %v966
  %vm968 = vweird.f32 %v871
  %vm969 = vweird.f32 %v962
  %vm970 = vmor %vm968, %vm969
  %v971 = vsel %vm970, %v962, %v967
  %v972 = vmul.f32 %v762, %v881
  %v973 = vmul.f32 %v763, %v891
  %v974 = vmul.f32 %v764, %v901
  %v975 = vmul.f32 %v765, %v911
  %v976 = vmul.f32 %v766, %v921
  %v977 = vmul.f32 %v767, %v931
  %v978 = vmul.f32 %v768, %v941
  %v979 = vmul.f32 %v769, %v951
  %v980 = vmul.f32 %v770, %v961
  %v981 = vmul.f32 %v771, %v971
  %v984 = vperm.slane %v670, 0
  %v985 = vperm.slane %v670, 1
  %v986 = vperm.slane %v670, 2
  %v987 = vperm.slane %v670, 3
  %v988 = vperm.slane %v670, 4
  %v989 = vperm.slane %v670, 5
  %v990 = vperm.slane %v670, 6
  %v991 = vperm.slane %v670, 7
  %v992 = vperm.slane %v671, 0
  %v993 = vperm.slane %v671, 1
  %v1004 = vmul.f32 %v972, %v984
  %v1005 = vmul.f32 %v973, %v985
  %v1006 = vmul.f32 %v974, %v986
  %v1007 = vmul.f32 %v975, %v987
  %v1008 = vmul.f32 %v976, %v988
  %v1009 = vmul.f32 %v977, %v989
  %v1010 = vmul.f32 %v978, %v990
  %v1011 = vmul.f32 %v979, %v991
  %v1012 = vmul.f32 %v980, %v992
  %v1013 = vmul.f32 %v981, %v993
  %v1016 = vperm.slane %v672, 0
  %v1017 = vperm.slane %v672, 1
  %v1018 = vperm.slane %v672, 2
  %v1019 = vperm.slane %v672, 3
  %v1020 = vperm.slane %v672, 4
  %v1021 = vperm.slane %v672, 5
  %v1022 = vperm.slane %v672, 6
  %v1023 = vperm.slane %v672, 7
  %v1024 = vperm.slane %v673, 0
  %v1025 = vperm.slane %v673, 1
  %v1036 = vadd.f32 %v1004, %v1016
  %v1037 = vadd.f32 %v1005, %v1017
  %v1038 = vadd.f32 %v1006, %v1018
  %v1039 = vadd.f32 %v1007, %v1019
  %v1040 = vadd.f32 %v1008, %v1020
  %v1041 = vadd.f32 %v1009, %v1021
  %v1042 = vadd.f32 %v1010, %v1022
  %v1043 = vadd.f32 %v1011, %v1023
  %v1044 = vadd.f32 %v1012, %v1024
  %v1045 = vadd.f32 %v1013, %v1025
  %v1046 = vmax.f32 %v1036, 0.0
  %v1047 = vmax.f32 %v1037, 0.0
  %v1048 = vmax.f32 %v1038, 0.0
  %v1049 = vmax.f32 %v1039, 0.0
  %v1050 = vmax.f32 %v1040, 0.0
  %v1051 = vmax.f32 %v1041, 0.0
  %v1052 = vmax.f32 %v1042, 0.0
  %v1053 = vmax.f32 %v1043, 0.0
  %v1054 = vmax.f32 %v1044, 0.0
  %v1055 = vmax.f32 %v1045, 0.0
  %v1056 = vld [vmem:[%s5] sm:$0xf]
  %v1057 = vld [vmem:[%s5 + $0x4] sm:$0xf]
  %v1058 = vld [vmem:[%s5 + $0x8] sm:$0xf]
  %v1059 = vld [vmem:[%s5 + $0xc] sm:$0xf]
  %v1060 = vld [vmem:[%s5 + $0x10] sm:$0xf]
  %v1061 = vld [vmem:[%s5 + $0x14] sm:$0xf]
  %v1062 = vld [vmem:[%s5 + $0x18] sm:$0xf]
  %v1063 = vld [vmem:[%s5 + $0x1c] sm:$0xf]
  %v1064 = vld [vmem:[%s5 + $0x20] sm:$0xf]
  %v1065 = vld [vmem:[%s5 + $0x24] sm:$0xf]
  %v1066 = vld [vmem:[%s5 + $0x28] sm:$0xf]
  %v1067 = vld [vmem:[%s5 + $0x2c] sm:$0xf]
  %v1068 = vld [vmem:[%s5 + $0x30] sm:$0xf]
  %v1069 = vld [vmem:[%s5 + $0x34] sm:$0xf]
  %v1070 = vld [vmem:[%s5 + $0x38] sm:$0xf]
  %v1071 = vld [vmem:[%s5 + $0x3c] sm:$0xf]
  %v1072 = vld [vmem:[%s5 + $0x40] sm:$0xf]
  %v1073 = vld [vmem:[%s5 + $0x44] sm:$0xf]
  %v1074 = vld [vmem:[%s5 + $0x48] sm:$0xf]
  %v1075 = vld [vmem:[%s5 + $0x4c] sm:$0xf]
  %v1076 = vld [vmem:[%s5 + $0x50] sm:$0xf]
  %v1077 = vld [vmem:[%s5 + $0x54] sm:$0xf]
  %v1078 = vld [vmem:[%s5 + $0x58] sm:$0xf]
  %v1079 = vld [vmem:[%s5 + $0x5c] sm:$0xf]
  %v1080 = vld [vmem:[%s5 + $0x60] sm:$0xf]
  %v1081 = vld [vmem:[%s5 + $0x64] sm:$0xf]
  %v1082 = vld [vmem:[%s5 + $0x68] sm:$0xf]
  %v1083 = vld [vmem:[%s5 + $0x6c] sm:$0xf]
  %v1084 = vld [vmem:[%s5 + $0x70] sm:$0xf]
  %v1085 = vld [vmem:[%s5 + $0x74] sm:$0xf]
  %v1086 = vld [vmem:[%s5 + $0x78] sm:$0xf]
  %v1087 = vld [vmem:[%s5 + $0x7c] sm:$0xf]
  %v1088 = vpack.c.bf16 %v1046, %v1046
  %v1089 = vpack.c.bf16 %v1047, %v1047
  %v1090 = vld [vmem:[%s9] sm:$0x1]
  %v1092 = vperm.slane %v1090, 0
  %v1126 = vunpack.c.l.b16 %v1056
  %v1127 = vunpack.c.l.b16 %v1057
  %v1128 = vunpack.c.l.b16 %v1058
  %v1129 = vunpack.c.l.b16 %v1059
  %v1130 = vunpack.c.l.b16 %v1060
  %v1131 = vunpack.c.l.b16 %v1061
  %v1132 = vunpack.c.l.b16 %v1062
  %v1133 = vunpack.c.l.b16 %v1063
  %v1134 = vunpack.c.l.b16 %v1064
  %v1135 = vunpack.c.l.b16 %v1065
  %v1136 = vunpack.c.l.b16 %v1066
  %v1137 = vunpack.c.l.b16 %v1067
  %v1138 = vunpack.c.l.b16 %v1068
  %v1139 = vunpack.c.l.b16 %v1069
  %v1140 = vunpack.c.l.b16 %v1070
  %v1141 = vunpack.c.l.b16 %v1071
  %v1142 = vunpack.c.l.b16 %v1072
  %v1143 = vunpack.c.l.b16 %v1073
  %v1144 = vunpack.c.l.b16 %v1074
  %v1145 = vunpack.c.l.b16 %v1075
  %v1146 = vunpack.c.l.b16 %v1076
  %v1147 = vunpack.c.l.b16 %v1077
  %v1148 = vunpack.c.l.b16 %v1078
  %v1149 = vunpack.c.l.b16 %v1079
  %v1150 = vunpack.c.l.b16 %v1080
  %v1151 = vunpack.c.l.b16 %v1081
  %v1152 = vunpack.c.l.b16 %v1082
  %v1153 = vunpack.c.l.b16 %v1083
  %v1154 = vunpack.c.l.b16 %v1084
  %v1155 = vunpack.c.l.b16 %v1085
  %v1156 = vunpack.c.l.b16 %v1086
  %v1157 = vunpack.c.l.b16 %v1087
  %v1158 = vpack.c.b16 %v1127, %v1126
  %v1159 = vpack.c.b16 %v1129, %v1128
  %v1160 = vpack.c.b16 %v1131, %v1130
  %v1161 = vpack.c.b16 %v1133, %v1132
  %v1162 = vpack.c.b16 %v1135, %v1134
  %v1163 = vpack.c.b16 %v1137, %v1136
  %v1164 = vpack.c.b16 %v1139, %v1138
  %v1165 = vpack.c.b16 %v1141, %v1140
  %v1166 = vpack.c.b16 %v1143, %v1142
  %v1167 = vpack.c.b16 %v1145, %v1144
  %v1168 = vpack.c.b16 %v1147, %v1146
  %v1169 = vpack.c.b16 %v1149, %v1148
  %v1170 = vpack.c.b16 %v1151, %v1150
  %v1171 = vpack.c.b16 %v1153, %v1152
  %v1172 = vpack.c.b16 %v1155, %v1154
  %v1173 = vpack.c.b16 %v1157, %v1156
  %1190 = vmatpush.bf16.msra.mxu0 %v1165
  %1191 = vmatpush.bf16.msra.mxu0 %v1164
  %1192 = vmatpush.bf16.msra.mxu0 %v1163
  %1193 = vmatpush.bf16.msra.mxu0 %v1162
  %1194 = vmatpush.bf16.msra.mxu0 %v1161
  %1195 = vmatpush.bf16.msra.mxu0 %v1160
  %1196 = vmatpush.bf16.msra.mxu0 %v1159
  %1197 = vmatpush.bf16.msra.mxu0 %v1158
  %1198 = vmatmul.bf16.gmra.mxu0 %v1088
  %v1199 = vpop.f32.mrf.mxu0
  %v1200 = vadd.f32 %v1092, %v1199
  %v1201 = vpop.f32.mrf.mxu0
  %1202 = vdwg.mxu0
  %1203 = vmatpush.bf16.msra.mxu0 %v1173
  %1204 = vmatpush.bf16.msra.mxu0 %v1172
  %1205 = vmatpush.bf16.msra.mxu0 %v1171
  %1206 = vmatpush.bf16.msra.mxu0 %v1170
  %1207 = vmatpush.bf16.msra.mxu0 %v1169
  %1208 = vmatpush.bf16.msra.mxu0 %v1168
  %1209 = vmatpush.bf16.msra.mxu0 %v1167
  %1210 = vmatpush.bf16.msra.mxu0 %v1166
  %1211 = vmatmul.bf16.gmra.mxu0 %v1089
  %v1212 = vpop.f32.mrf.mxu0
  %v1213 = vadd.f32 %v1200, %v1212
  %v1214 = vpop.f32.mrf.mxu0
  %1215 = vdwg.mxu0
  %1216 = vst [vmem:[%s10] sm:$0x3] %v1213
  %v1217 = vld [vmem:[%s6] sm:$0xf]
  %v1218 = vld [vmem:[%s6 + $0x4] sm:$0xf]
  %v1219 = vld [vmem:[%s6 + $0x8] sm:$0xf]
  %v1220 = vld [vmem:[%s6 + $0xc] sm:$0xf]
  %v1221 = vld [vmem:[%s6 + $0x10] sm:$0xf]
  %v1222 = vld [vmem:[%s6 + $0x14] sm:$0xf]
  %v1223 = vld [vmem:[%s6 + $0x18] sm:$0xf]
  %v1224 = vld [vmem:[%s6 + $0x1c] sm:$0xf]
  %v1225 = vld [vmem:[%s6 + $0x20] sm:$0xf]
  %v1226 = vld [vmem:[%s6 + $0x24] sm:$0xf]
  %v1227 = vld [vmem:[%s6 + $0x28] sm:$0xf]
  %v1228 = vld [vmem:[%s6 + $0x2c] sm:$0xf]
  %v1229 = vld [vmem:[%s6 + $0x30] sm:$0xf]
  %v1230 = vld [vmem:[%s6 + $0x34] sm:$0xf]
  %v1231 = vld [vmem:[%s6 + $0x38] sm:$0xf]
  %v1232 = vld [vmem:[%s6 + $0x3c] sm:$0xf]
  %v1233 = vld [vmem:[%s6 + $0x40] sm:$0xf]
  %v1234 = vld [vmem:[%s6 + $0x44] sm:$0xf]
  %v1235 = vld [vmem:[%s6 + $0x48] sm:$0xf]
  %v1236 = vld [vmem:[%s6 + $0x4c] sm:$0xf]
  %v1237 = vld [vmem:[%s6 + $0x50] sm:$0xf]
  %v1238 = vld [vmem:[%s6 + $0x54] sm:$0xf]
  %v1239 = vld [vmem:[%s6 + $0x58] sm:$0xf]
  %v1240 = vld [vmem:[%s6 + $0x5c] sm:$0xf]
  %v1241 = vld [vmem:[%s6 + $0x60] sm:$0xf]
  %v1242 = vld [vmem:[%s6 + $0x64] sm:$0xf]
  %v1243 = vld [vmem:[%s6 + $0x68] sm:$0xf]
  %v1244 = vld [vmem:[%s6 + $0x6c] sm:$0xf]
  %v1245 = vld [vmem:[%s6 + $0x70] sm:$0xf]
  %v1246 = vld [vmem:[%s6 + $0x74] sm:$0xf]
  %v1247 = vld [vmem:[%s6 + $0x78] sm:$0xf]
  %v1248 = vld [vmem:[%s6 + $0x7c] sm:$0xf]
  %v1249 = vpack.c.bf16 %v1048, %v1048
  %v1250 = vpack.c.bf16 %v1049, %v1049
  %v1251 = vld [vmem:[%s9 + $0x1] sm:$0x1]
  %v1253 = vperm.slane %v1251, 0
  %v1287 = vunpack.c.l.b16 %v1217
  %v1288 = vunpack.c.l.b16 %v1218
  %v1289 = vunpack.c.l.b16 %v1219
  %v1290 = vunpack.c.l.b16 %v1220
  %v1291 = vunpack.c.l.b16 %v1221
  %v1292 = vunpack.c.l.b16 %v1222
  %v1293 = vunpack.c.l.b16 %v1223
  %v1294 = vunpack.c.l.b16 %v1224
  %v1295 = vunpack.c.l.b16 %v1225
  %v1296 = vunpack.c.l.b16 %v1226
  %v1297 = vunpack.c.l.b16 %v1227
  %v1298 = vunpack.c.l.b16 %v1228
  %v1299 = vunpack.c.l.b16 %v1229
  %v1300 = vunpack.c.l.b16 %v1230
  %v1301 = vunpack.c.l.b16 %v1231
  %v1302 = vunpack.c.l.b16 %v1232
  %v1303 = vunpack.c.l.b16 %v1233
  %v1304 = vunpack.c.l.b16 %v1234
  %v1305 = vunpack.c.l.b16 %v1235
  %v1306 = vunpack.c.l.b16 %v1236
  %v1307 = vunpack.c.l.b16 %v1237
  %v1308 = vunpack.c.l.b16 %v1238
  %v1309 = vunpack.c.l.b16 %v1239
  %v1310 = vunpack.c.l.b16 %v1240
  %v1311 = vunpack.c.l.b16 %v1241
  %v1312 = vunpack.c.l.b16 %v1242
  %v1313 = vunpack.c.l.b16 %v1243
  %v1314 = vunpack.c.l.b16 %v1244
  %v1315 = vunpack.c.l.b16 %v1245
  %v1316 = vunpack.c.l.b16 %v1246
  %v1317 = vunpack.c.l.b16 %v1247
  %v1318 = vunpack.c.l.b16 %v1248
  %v1319 = vpack.c.b16 %v1288, %v1287
  %v1320 = vpack.c.b16 %v1290, %v1289
  %v1321 = vpack.c.b16 %v1292, %v1291
  %v1322 = vpack.c.b16 %v1294, %v1293
  %v1323 = vpack.c.b16 %v1296, %v1295
  %v1324 = vpack.c.b16 %v1298, %v1297
  %v1325 = vpack.c.b16 %v1300, %v1299
  %v1326 = vpack.c.b16 %v1302, %v1301
  %v1327 = vpack.c.b16 %v1304, %v1303
  %v1328 = vpack.c.b16 %v1306, %v1305
  %v1329 = vpack.c.b16 %v1308, %v1307
  %v1330 = vpack.c.b16 %v1310, %v1309
  %v1331 = vpack.c.b16 %v1312, %v1311
  %v1332 = vpack.c.b16 %v1314, %v1313
  %v1333 = vpack.c.b16 %v1316, %v1315
  %v1334 = vpack.c.b16 %v1318, %v1317
  %1351 = vmatpush.bf16.msra.mxu0 %v1326
  %1352 = vmatpush.bf16.msra.mxu0 %v1325
  %1353 = vmatpush.bf16.msra.mxu0 %v1324
  %1354 = vmatpush.bf16.msra.mxu0 %v1323
  %1355 = vmatpush.bf16.msra.mxu0 %v1322
  %1356 = vmatpush.bf16.msra.mxu0 %v1321
  %1357 = vmatpush.bf16.msra.mxu0 %v1320
  %1358 = vmatpush.bf16.msra.mxu0 %v1319
  %1359 = vmatmul.bf16.gmra.mxu0 %v1249
  %v1360 = vpop.f32.mrf.mxu0
  %v1361 = vadd.f32 %v1253, %v1360
  %v1362 = vpop.f32.mrf.mxu0
  %1363 = vdwg.mxu0
  %1364 = vmatpush.bf16.msra.mxu0 %v1334
  %1365 = vmatpush.bf16.msra.mxu0 %v1333
  %1366 = vmatpush.bf16.msra.mxu0 %v1332
  %1367 = vmatpush.bf16.msra.mxu0 %v1331
  %1368 = vmatpush.bf16.msra.mxu0 %v1330
  %1369 = vmatpush.bf16.msra.mxu0 %v1329
  %1370 = vmatpush.bf16.msra.mxu0 %v1328
  %1371 = vmatpush.bf16.msra.mxu0 %v1327
  %1372 = vmatmul.bf16.gmra.mxu0 %v1250
  %v1373 = vpop.f32.mrf.mxu0
  %v1374 = vadd.f32 %v1361, %v1373
  %v1375 = vpop.f32.mrf.mxu0
  %1376 = vdwg.mxu0
  %1377 = vst [vmem:[%s10 + $0x2] sm:$0x3] %v1374
  %v1378 = vld [vmem:[%s7] sm:$0xf]
  %v1379 = vld [vmem:[%s7 + $0x4] sm:$0xf]
  %v1380 = vld [vmem:[%s7 + $0x8] sm:$0xf]
  %v1381 = vld [vmem:[%s7 + $0xc] sm:$0xf]
  %v1382 = vld [vmem:[%s7 + $0x10] sm:$0xf]
  %v1383 = vld [vmem:[%s7 + $0x14] sm:$0xf]
  %v1384 = vld [vmem:[%s7 + $0x18] sm:$0xf]
  %v1385 = vld [vmem:[%s7 + $0x1c] sm:$0xf]
  %v1386 = vld [vmem:[%s7 + $0x20] sm:$0xf]
  %v1387 = vld [vmem:[%s7 + $0x24] sm:$0xf]
  %v1388 = vld [vmem:[%s7 + $0x28] sm:$0xf]
  %v1389 = vld [vmem:[%s7 + $0x2c] sm:$0xf]
  %v1390 = vld [vmem:[%s7 + $0x30] sm:$0xf]
  %v1391 = vld [vmem:[%s7 + $0x34] sm:$0xf]
  %v1392 = vld [vmem:[%s7 + $0x38] sm:$0xf]
  %v1393 = vld [vmem:[%s7 + $0x3c] sm:$0xf]
  %v1394 = vld [vmem:[%s7 + $0x40] sm:$0xf]
  %v1395 = vld [vmem:[%s7 + $0x44] sm:$0xf]
  %v1396 = vld [vmem:[%s7 + $0x48] sm:$0xf]
  %v1397 = vld [vmem:[%s7 + $0x4c] sm:$0xf]
  %v1398 = vld [vmem:[%s7 + $0x50] sm:$0xf]
  %v1399 = vld [vmem:[%s7 + $0x54] sm:$0xf]
  %v1400 = vld [vmem:[%s7 + $0x58] sm:$0xf]
  %v1401 = vld [vmem:[%s7 + $0x5c] sm:$0xf]
  %v1402 = vld [vmem:[%s7 + $0x60] sm:$0xf]
  %v1403 = vld [vmem:[%s7 + $0x64] sm:$0xf]
  %v1404 = vld [vmem:[%s7 + $0x68] sm:$0xf]
  %v1405 = vld [vmem:[%s7 + $0x6c] sm:$0xf]
  %v1406 = vld [vmem:[%s7 + $0x70] sm:$0xf]
  %v1407 = vld [vmem:[%s7 + $0x74] sm:$0xf]
  %v1408 = vld [vmem:[%s7 + $0x78] sm:$0xf]
  %v1409 = vld [vmem:[%s7 + $0x7c] sm:$0xf]
  %v1410 = vld [vmem:[%s7 + $0x80] sm:$0xf]
  %v1411 = vld [vmem:[%s7 + $0x84] sm:$0xf]
  %v1412 = vld [vmem:[%s7 + $0x88] sm:$0xf]
  %v1413 = vld [vmem:[%s7 + $0x8c] sm:$0xf]
  %v1414 = vld [vmem:[%s7 + $0x90] sm:$0xf]
  %v1415 = vld [vmem:[%s7 + $0x94] sm:$0xf]
  %v1416 = vld [vmem:[%s7 + $0x98] sm:$0xf]
  %v1417 = vld [vmem:[%s7 + $0x9c] sm:$0xf]
  %v1418 = vld [vmem:[%s7 + $0xa0] sm:$0xf]
  %v1419 = vld [vmem:[%s7 + $0xa4] sm:$0xf]
  %v1420 = vld [vmem:[%s7 + $0xa8] sm:$0xf]
  %v1421 = vld [vmem:[%s7 + $0xac] sm:$0xf]
  %v1422 = vld [vmem:[%s7 + $0xb0] sm:$0xf]
  %v1423 = vld [vmem:[%s7 + $0xb4] sm:$0xf]
  %v1424 = vld [vmem:[%s7 + $0xb8] sm:$0xf]
  %v1425 = vld [vmem:[%s7 + $0xbc] sm:$0xf]
  %v1426 = vpack.c.bf16 %v1050, %v1050
  %v1427 = vpack.c.bf16 %v1051, %v1051
  %v1428 = vpack.c.bf16 %v1052, %v1052
  %v1429 = vld [vmem:[%s9 + $0x2] sm:$0x1]
  %v1431 = vperm.slane %v1429, 0
  %v1481 = vunpack.c.l.b16 %v1378
  %v1482 = vunpack.c.l.b16 %v1379
  %v1483 = vunpack.c.l.b16 %v1380
  %v1484 = vunpack.c.l.b16 %v1381
  %v1485 = vunpack.c.l.b16 %v1382
  %v1486 = vunpack.c.l.b16 %v1383
  %v1487 = vunpack.c.l.b16 %v1384
  %v1488 = vunpack.c.l.b16 %v1385
  %v1489 = vunpack.c.l.b16 %v1386
  %v1490 = vunpack.c.l.b16 %v1387
  %v1491 = vunpack.c.l.b16 %v1388
  %v1492 = vunpack.c.l.b16 %v1389
  %v1493 = vunpack.c.l.b16 %v1390
  %v1494 = vunpack.c.l.b16 %v1391
  %v1495 = vunpack.c.l.b16 %v1392
  %v1496 = vunpack.c.l.b16 %v1393
  %v1497 = vunpack.c.l.b16 %v1394
  %v1498 = vunpack.c.l.b16 %v1395
  %v1499 = vunpack.c.l.b16 %v1396
  %v1500 = vunpack.c.l.b16 %v1397
  %v1501 = vunpack.c.l.b16 %v1398
  %v1502 = vunpack.c.l.b16 %v1399
  %v1503 = vunpack.c.l.b16 %v1400
  %v1504 = vunpack.c.l.b16 %v1401
  %v1505 = vunpack.c.l.b16 %v1402
  %v1506 = vunpack.c.l.b16 %v1403
  %v1507 = vunpack.c.l.b16 %v1404
  %v1508 = vunpack.c.l.b16 %v1405
  %v1509 = vunpack.c.l.b16 %v1406
  %v1510 = vunpack.c.l.b16 %v1407
  %v1511 = vunpack.c.l.b16 %v1408
  %v1512 = vunpack.c.l.b16 %v1409
  %v1513 = vunpack.c.l.b16 %v1410
  %v1514 = vunpack.c.l.b16 %v1411
  %v1515 = vunpack.c.l.b16 %v1412
  %v1516 = vunpack.c.l.b16 %v1413
  %v1517 = vunpack.c.l.b16 %v1414
  %v1518 = vunpack.c.l.b16 %v1415
  %v1519 = vunpack.c.l.b16 %v1416
  %v1520 = vunpack.c.l.b16 %v1417
  %v1521 = vunpack.c.l.b16 %v1418
  %v1522 = vunpack.c.l.b16 %v1419
  %v1523 = vunpack.c.l.b16 %v1420
  %v1524 = vunpack.c.l.b16 %v1421
  %v1525 = vunpack.c.l.b16 %v1422
  %v1526 = vunpack.c.l.b16 %v1423
  %v1527 = vunpack.c.l.b16 %v1424
  %v1528 = vunpack.c.l.b16 %v1425
  %v1529 = vpack.c.b16 %v1482, %v1481
  %v1530 = vpack.c.b16 %v1484, %v1483
  %v1531 = vpack.c.b16 %v1486, %v1485
  %v1532 = vpack.c.b16 %v1488, %v1487
  %v1533 = vpack.c.b16 %v1490, %v1489
  %v1534 = vpack.c.b16 %v1492, %v1491
  %v1535 = vpack.c.b16 %v1494, %v1493
  %v1536 = vpack.c.b16 %v1496, %v1495
  %v1537 = vpack.c.b16 %v1498, %v1497
  %v1538 = vpack.c.b16 %v1500, %v1499
  %v1539 = vpack.c.b16 %v1502, %v1501
  %v1540 = vpack.c.b16 %v1504, %v1503
  %v1541 = vpack.c.b16 %v1506, %v1505
  %v1542 = vpack.c.b16 %v1508, %v1507
  %v1543 = vpack.c.b16 %v1510, %v1509
  %v1544 = vpack.c.b16 %v1512, %v1511
  %v1545 = vpack.c.b16 %v1514, %v1513
  %v1546 = vpack.c.b16 %v1516, %v1515
  %v1547 = vpack.c.b16 %v1518, %v1517
  %v1548 = vpack.c.b16 %v1520, %v1519
  %v1549 = vpack.c.b16 %v1522, %v1521
  %v1550 = vpack.c.b16 %v1524, %v1523
  %v1551 = vpack.c.b16 %v1526, %v1525
  %v1552 = vpack.c.b16 %v1528, %v1527
  %1577 = vmatpush.bf16.msra.mxu0 %v1536
  %1578 = vmatpush.bf16.msra.mxu0 %v1535
  %1579 = vmatpush.bf16.msra.mxu0 %v1534
  %1580 = vmatpush.bf16.msra.mxu0 %v1533
  %1581 = vmatpush.bf16.msra.mxu0 %v1532
  %1582 = vmatpush.bf16.msra.mxu0 %v1531
  %1583 = vmatpush.bf16.msra.mxu0 %v1530
  %1584 = vmatpush.bf16.msra.mxu0 %v1529
  %1585 = vmatmul.bf16.gmra.mxu0 %v1426
  %v1586 = vpop.f32.mrf.mxu0
  %v1587 = vadd.f32 %v1431, %v1586
  %v1588 = vpop.f32.mrf.mxu0
  %1589 = vdwg.mxu0
  %1590 = vmatpush.bf16.msra.mxu0 %v1544
  %1591 = vmatpush.bf16.msra.mxu0 %v1543
  %1592 = vmatpush.bf16.msra.mxu0 %v1542
  %1593 = vmatpush.bf16.msra.mxu0 %v1541
  %1594 = vmatpush.bf16.msra.mxu0 %v1540
  %1595 = vmatpush.bf16.msra.mxu0 %v1539
  %1596 = vmatpush.bf16.msra.mxu0 %v1538
  %1597 = vmatpush.bf16.msra.mxu0 %v1537
  %1598 = vmatmul.bf16.gmra.mxu0 %v1427
  %v1599 = vpop.f32.mrf.mxu0
  %v1600 = vadd.f32 %v1587, %v1599
  %v1601 = vpop.f32.mrf.mxu0
  %1602 = vdwg.mxu0
  %1603 = vmatpush.bf16.msra.mxu0 %v1552
  %1604 = vmatpush.bf16.msra.mxu0 %v1551
  %1605 = vmatpush.bf16.msra.mxu0 %v1550
  %1606 = vmatpush.bf16.msra.mxu0 %v1549
  %1607 = vmatpush.bf16.msra.mxu0 %v1548
  %1608 = vmatpush.bf16.msra.mxu0 %v1547
  %1609 = vmatpush.bf16.msra.mxu0 %v1546
  %1610 = vmatpush.bf16.msra.mxu0 %v1545
  %1611 = vmatmul.bf16.gmra.mxu0 %v1428
  %v1612 = vpop.f32.mrf.mxu0
  %v1613 = vadd.f32 %v1600, %v1612
  %v1614 = vpop.f32.mrf.mxu0
  %1615 = vdwg.mxu0
  %1616 = vst [vmem:[%s10 + $0x4] sm:$0x3] %v1613
  %v1617 = vld [vmem:[%s8] sm:$0xf]
  %v1618 = vld [vmem:[%s8 + $0x4] sm:$0xf]
  %v1619 = vld [vmem:[%s8 + $0x8] sm:$0xf]
  %v1620 = vld [vmem:[%s8 + $0xc] sm:$0xf]
  %v1621 = vld [vmem:[%s8 + $0x10] sm:$0xf]
  %v1622 = vld [vmem:[%s8 + $0x14] sm:$0xf]
  %v1623 = vld [vmem:[%s8 + $0x18] sm:$0xf]
  %v1624 = vld [vmem:[%s8 + $0x1c] sm:$0xf]
  %v1625 = vld [vmem:[%s8 + $0x20] sm:$0xf]
  %v1626 = vld [vmem:[%s8 + $0x24] sm:$0xf]
  %v1627 = vld [vmem:[%s8 + $0x28] sm:$0xf]
  %v1628 = vld [vmem:[%s8 + $0x2c] sm:$0xf]
  %v1629 = vld [vmem:[%s8 + $0x30] sm:$0xf]
  %v1630 = vld [vmem:[%s8 + $0x34] sm:$0xf]
  %v1631 = vld [vmem:[%s8 + $0x38] sm:$0xf]
  %v1632 = vld [vmem:[%s8 + $0x3c] sm:$0xf]
  %v1633 = vld [vmem:[%s8 + $0x40] sm:$0xf]
  %v1634 = vld [vmem:[%s8 + $0x44] sm:$0xf]
  %v1635 = vld [vmem:[%s8 + $0x48] sm:$0xf]
  %v1636 = vld [vmem:[%s8 + $0x4c] sm:$0xf]
  %v1637 = vld [vmem:[%s8 + $0x50] sm:$0xf]
  %v1638 = vld [vmem:[%s8 + $0x54] sm:$0xf]
  %v1639 = vld [vmem:[%s8 + $0x58] sm:$0xf]
  %v1640 = vld [vmem:[%s8 + $0x5c] sm:$0xf]
  %v1641 = vld [vmem:[%s8 + $0x60] sm:$0xf]
  %v1642 = vld [vmem:[%s8 + $0x64] sm:$0xf]
  %v1643 = vld [vmem:[%s8 + $0x68] sm:$0xf]
  %v1644 = vld [vmem:[%s8 + $0x6c] sm:$0xf]
  %v1645 = vld [vmem:[%s8 + $0x70] sm:$0xf]
  %v1646 = vld [vmem:[%s8 + $0x74] sm:$0xf]
  %v1647 = vld [vmem:[%s8 + $0x78] sm:$0xf]
  %v1648 = vld [vmem:[%s8 + $0x7c] sm:$0xf]
  %v1649 = vld [vmem:[%s8 + $0x80] sm:$0xf]
  %v1650 = vld [vmem:[%s8 + $0x84] sm:$0xf]
  %v1651 = vld [vmem:[%s8 + $0x88] sm:$0xf]
  %v1652 = vld [vmem:[%s8 + $0x8c] sm:$0xf]
  %v1653 = vld [vmem:[%s8 + $0x90] sm:$0xf]
  %v1654 = vld [vmem:[%s8 + $0x94] sm:$0xf]
  %v1655 = vld [vmem:[%s8 + $0x98] sm:$0xf]
  %v1656 = vld [vmem:[%s8 + $0x9c] sm:$0xf]
  %v1657 = vld [vmem:[%s8 + $0xa0] sm:$0xf]
  %v1658 = vld [vmem:[%s8 + $0xa4] sm:$0xf]
  %v1659 = vld [vmem:[%s8 + $0xa8] sm:$0xf]
  %v1660 = vld [vmem:[%s8 + $0xac] sm:$0xf]
  %v1661 = vld [vmem:[%s8 + $0xb0] sm:$0xf]
  %v1662 = vld [vmem:[%s8 + $0xb4] sm:$0xf]
  %v1663 = vld [vmem:[%s8 + $0xb8] sm:$0xf]
  %v1664 = vld [vmem:[%s8 + $0xbc] sm:$0xf]
  %v1665 = vpack.c.bf16 %v1053, %v1053
  %v1666 = vpack.c.bf16 %v1054, %v1054
  %v1667 = vpack.c.bf16 %v1055, %v1055
  %v1668 = vld [vmem:[%s9 + $0x3] sm:$0x1]
  %v1670 = vperm.slane %v1668, 0
  %v1720 = vunpack.c.l.b16 %v1617
  %v1721 = vunpack.c.l.b16 %v1618
  %v1722 = vunpack.c.l.b16 %v1619
  %v1723 = vunpack.c.l.b16 %v1620
  %v1724 = vunpack.c.l.b16 %v1621
  %v1725 = vunpack.c.l.b16 %v1622
  %v1726 = vunpack.c.l.b16 %v1623
  %v1727 = vunpack.c.l.b16 %v1624
  %v1728 = vunpack.c.l.b16 %v1625
  %v1729 = vunpack.c.l.b16 %v1626
  %v1730 = vunpack.c.l.b16 %v1627
  %v1731 = vunpack.c.l.b16 %v1628
  %v1732 = vunpack.c.l.b16 %v1629
  %v1733 = vunpack.c.l.b16 %v1630
  %v1734 = vunpack.c.l.b16 %v1631
  %v1735 = vunpack.c.l.b16 %v1632
  %v1736 = vunpack.c.l.b16 %v1633
  %v1737 = vunpack.c.l.b16 %v1634
  %v1738 = vunpack.c.l.b16 %v1635
  %v1739 = vunpack.c.l.b16 %v1636
  %v1740 = vunpack.c.l.b16 %v1637
  %v1741 = vunpack.c.l.b16 %v1638
  %v1742 = vunpack.c.l.b16 %v1639
  %v1743 = vunpack.c.l.b16 %v1640
  %v1744 = vunpack.c.l.b16 %v1641
  %v1745 = vunpack.c.l.b16 %v1642
  %v1746 = vunpack.c.l.b16 %v1643
  %v1747 = vunpack.c.l.b16 %v1644
  %v1748 = vunpack.c.l.b16 %v1645
  %v1749 = vunpack.c.l.b16 %v1646
  %v1750 = vunpack.c.l.b16 %v1647
  %v1751 = vunpack.c.l.b16 %v1648
  %v1752 = vunpack.c.l.b16 %v1649
  %v1753 = vunpack.c.l.b16 %v1650
  %v1754 = vunpack.c.l.b16 %v1651
  %v1755 = vunpack.c.l.b16 %v1652
  %v1756 = vunpack.c.l.b16 %v1653
  %v1757 = vunpack.c.l.b16 %v1654
  %v1758 = vunpack.c.l.b16 %v1655
  %v1759 = vunpack.c.l.b16 %v1656
  %v1760 = vunpack.c.l.b16 %v1657
  %v1761 = vunpack.c.l.b16 %v1658
  %v1762 = vunpack.c.l.b16 %v1659
  %v1763 = vunpack.c.l.b16 %v1660
  %v1764 = vunpack.c.l.b16 %v1661
  %v1765 = vunpack.c.l.b16 %v1662
  %v1766 = vunpack.c.l.b16 %v1663
  %v1767 = vunpack.c.l.b16 %v1664
  %v1768 = vpack.c.b16 %v1721, %v1720
  %v1769 = vpack.c.b16 %v1723, %v1722
  %v1770 = vpack.c.b16 %v1725, %v1724
  %v1771 = vpack.c.b16 %v1727, %v1726
  %v1772 = vpack.c.b16 %v1729, %v1728
  %v1773 = vpack.c.b16 %v1731, %v1730
  %v1774 = vpack.c.b16 %v1733, %v1732
  %v1775 = vpack.c.b16 %v1735, %v1734
  %v1776 = vpack.c.b16 %v1737, %v1736
  %v1777 = vpack.c.b16 %v1739, %v1738
  %v1778 = vpack.c.b16 %v1741, %v1740
  %v1779 = vpack.c.b16 %v1743, %v1742
  %v1780 = vpack.c.b16 %v1745, %v1744
  %v1781 = vpack.c.b16 %v1747, %v1746
  %v1782 = vpack.c.b16 %v1749, %v1748
  %v1783 = vpack.c.b16 %v1751, %v1750
  %v1784 = vpack.c.b16 %v1753, %v1752
  %v1785 = vpack.c.b16 %v1755, %v1754
  %v1786 = vpack.c.b16 %v1757, %v1756
  %v1787 = vpack.c.b16 %v1759, %v1758
  %v1788 = vpack.c.b16 %v1761, %v1760
  %v1789 = vpack.c.b16 %v1763, %v1762
  %v1790 = vpack.c.b16 %v1765, %v1764
  %v1791 = vpack.c.b16 %v1767, %v1766
  %1816 = vmatpush.bf16.msra.mxu0 %v1775
  %1817 = vmatpush.bf16.msra.mxu0 %v1774
  %1818 = vmatpush.bf16.msra.mxu0 %v1773
  %1819 = vmatpush.bf16.msra.mxu0 %v1772
  %1820 = vmatpush.bf16.msra.mxu0 %v1771
  %1821 = vmatpush.bf16.msra.mxu0 %v1770
  %1822 = vmatpush.bf16.msra.mxu0 %v1769
  %1823 = vmatpush.bf16.msra.mxu0 %v1768
  %1824 = vmatmul.bf16.gmra.mxu0 %v1665
  %v1825 = vpop.f32.mrf.mxu0
  %v1826 = vadd.f32 %v1670, %v1825
  %v1827 = vpop.f32.mrf.mxu0
  %1828 = vdwg.mxu0
  %1829 = vmatpush.bf16.msra.mxu0 %v1783
  %1830 = vmatpush.bf16.msra.mxu0 %v1782
  %1831 = vmatpush.bf16.msra.mxu0 %v1781
  %1832 = vmatpush.bf16.msra.mxu0 %v1780
  %1833 = vmatpush.bf16.msra.mxu0 %v1779
  %1834 = vmatpush.bf16.msra.mxu0 %v1778
  %1835 = vmatpush.bf16.msra.mxu0 %v1777
  %1836 = vmatpush.bf16.msra.mxu0 %v1776
  %1837 = vmatmul.bf16.gmra.mxu0 %v1666
  %v1838 = vpop.f32.mrf.mxu0
  %v1839 = vadd.f32 %v1826, %v1838
  %v1840 = vpop.f32.mrf.mxu0
  %1841 = vdwg.mxu0
  %1842 = vmatpush.bf16.msra.mxu0 %v1791
  %1843 = vmatpush.bf16.msra.mxu0 %v1790
  %1844 = vmatpush.bf16.msra.mxu0 %v1789
  %1845 = vmatpush.bf16.msra.mxu0 %v1788
  %1846 = vmatpush.bf16.msra.mxu0 %v1787
  %1847 = vmatpush.bf16.msra.mxu0 %v1786
  %1848 = vmatpush.bf16.msra.mxu0 %v1785
  %1849 = vmatpush.bf16.msra.mxu0 %v1784
  %1850 = vmatmul.bf16.gmra.mxu0 %v1667
  %v1851 = vpop.f32.mrf.mxu0
  %v1852 = vadd.f32 %v1839, %v1851
  %v1853 = vpop.f32.mrf.mxu0
  %1854 = vdwg.mxu0
  %1855 = vst [vmem:[%s10 + $0x6] sm:$0x3] %v1852
  // Predicated region
  $region42: #{_lambda_.7} parent=0 // pred_check
    _
  $region43: #{_lambda_.7} parent=0 // pred_check_branch
    %1857 = sbr.rel (0) target = $region45
  $region44: #{_lambda_.7} parent=0 // pred_region
    _
  $region45: #{_lambda_.7} parent=0 // pred_fallthru
    _
  // Predicated region
  $region46: #{_lambda_.7} parent=0 // pred_check
    _
  $region47: #{_lambda_.7} parent=0 // pred_check_branch
    %1859 = sbr.rel (0) target = $region49
  $region48: #{_lambda_.7} parent=0 // pred_region
    _
  $region49: #{_lambda_.7} parent=0 // pred_fallthru
    _

// kernel: _lambda_.9
$region0: #{_lambda_.9}
  #allocation0 [shape = 'u32[]', space=smem, size = 0x4, offset = 0x4, fixed_abs, tag = 'smem constant byte address 0x4 - core index']
  #allocation1 [shape = 'u32[72,128]{1,0:T(1,128)}', space=vmem, size = 0x9000, scoped, tag = 'internal scratch']
  %s0 = inlined_call_operand.vmem [shape: bf16[3,2,128], index: 0, kind: input, shape index: {}]
  %s1 = inlined_call_operand.vmem [shape: bf16[128,1920], index: 1, kind: input, shape index: {}]
  %s2 = inlined_call_operand.vmem [shape: f32[1,1920], index: 2, kind: input, shape index: {}]
  %s3 = inlined_call_operand.vmem [shape: f32[1,1920], index: 3, kind: input, shape index: {}]
  %s4 = inlined_call_operand.vmem [shape: f32[1,1920], index: 4, kind: input, shape index: {}]
  %s5 = inlined_call_operand.vmem [shape: bf16[3,640,640], index: 5, kind: input, shape index: {}]
  %s6 = inlined_call_operand.vmem [shape: f32[1,1920], index: 6, kind: input, shape index: {}]
  %s7 = inlined_call_operand.hbm [shape: f32[3,2,1920], index: 7, kind: output, shape index: {}]
  %s8 = sld [smem:[#allocation0]]
  $region61: #{_lambda_.9} parent=0
    _
  %s10 = ssub.s32 1, %s8
  %s11 = scalar_select 0, %s10, %s8
  $region1: #{_lambda_.9} parent=0
    #allocation2 [shape = 'u8[30720]{0}', space=vmem, size = 0x7800, scoped, tag = 'output window, operand 0']
    #allocation3 [shape = 's32[2]{0}', space=sflag, size = 0x8, scoped, tag = 'scoped memory for _lambda_.9']
    %12 = vsyncpa [#allocation3], 0
    %s13 = scalar_lea.sflag [#allocation3], 1
    %14 = vsyncpa %s13, 0
    loop: start=0, step=1, limit=5
    $region2: #{_lambda_.9} parent=1 // loop_pre_header
      _
    $region3: #{_lambda_.9} parent=1 // loop_header
      %s16 = sphi 0, %s20
      %p17 = scmp.ge.s32.totalorder %s16, 5
      %s26 = sphi 0, %s28
      %s29 = sphi 0, %s26
      %s30 = sphi 0, %s29
      %s46 = sphi 0, %s30
      %s50 = sphi 0, %s50
      %s52 = sphi 0, %s50
      %s53 = sphi 0, %s52
      %s67 = sphi 0, %s53
      %s71 = sphi 0, %s71
      %s73 = sphi 0, %s71
      %s74 = sphi 0, %s73
      %s88 = sphi 0, %s74
      %s92 = sphi 0, %s92
      %s94 = sphi 0, %s92
      %s95 = sphi 0, %s94
      %s109 = sphi 0, %s95
      %s113 = sphi 0, %s113
      %s115 = sphi 0, %s113
      %s116 = sphi 0, %s115
      %s130 = sphi 0, %s116
      %s134 = sphi 0, %s134
      %s136 = sphi 0, %s134
      %s137 = sphi 0, %s136
      %s151 = sphi 0, %s137
      %s155 = sphi 0, %s155
      %s157 = sphi 0, %s155
      %s158 = sphi 0, %s157
      %s172 = sphi 0, %s158
      %s178 = sphi 0, %s180
      %s181 = sphi 0, %s178
      %s182 = sphi 0, %s181
      %s198 = sphi 0, %s182
    $region4: #{_lambda_.9} parent=1 // loop_header_branch
      %19 = sbr.rel (%p17) target = $region8
    $region5: #{_lambda_.9} parent=1 // loop_body
      %s21 = ssub.s32 %s16, 1
      %s22 = ssub.s32 %s16, 2
      %s23 = sadd.s32 %s16, 1
      %s24 = ssub.s32 %s16, %s23
      %p25 = scmp.eq.s32.totalorder %s24, 0
      %s27 = sadd.s32 %s26, 1
      %s28 = scalar_select %p25, %s26, %s27
      %p31 = pneg %p25
      %p32 = scmp.eq.s32.totalorder %s16, 2
      %p33 = por %p31, %p32
      %p34 = scmp.ne.s32.totalorder %s26, %s29
      %p35 = scmp.eq.s32.totalorder %s16, 0
      %p36 = por %p34, %p35
      %p37 = scmp.ne.s32.totalorder %s26, %s29
      %p38 = scmp.eq.s32.totalorder %s21, 2
      %p39 = por %p37, %p38
      %p40 = scmp.ne.s32.totalorder %s29, %s30
      %p41 = scmp.eq.s32.totalorder %s21, 0
      %p42 = por %p40, %p41
      %p43 = scmp.ne.s32.totalorder %s29, %s30
      %p44 = scmp.eq.s32.totalorder %s22, 2
      %p45 = por %p43, %p44
      %p47 = scmp.ne.s32.totalorder %s30, %s46
      %p48 = scmp.eq.s32.totalorder %s22, 0
      %p49 = por %p47, %p48
      %s51 = sadd.s32 %s50, 1
      %p54 = scmp.eq.s32.totalorder %s16, 2
      %p55 = scmp.ne.s32.totalorder %s50, %s52
      %p56 = scmp.eq.s32.totalorder %s16, 0
      %p57 = por %p55, %p56
      %p58 = scmp.ne.s32.totalorder %s50, %s52
      %p59 = scmp.eq.s32.totalorder %s21, 2
      %p60 = por %p58, %p59
      %p61 = scmp.ne.s32.totalorder %s52, %s53
      %p62 = scmp.eq.s32.totalorder %s21, 0
      %p63 = por %p61, %p62
      %p64 = scmp.ne.s32.totalorder %s52, %s53
      %p65 = scmp.eq.s32.totalorder %s22, 2
      %p66 = por %p64, %p65
      %p68 = scmp.ne.s32.totalorder %s53, %s67
      %p69 = scmp.eq.s32.totalorder %s22, 0
      %p70 = por %p68, %p69
      %s72 = sadd.s32 %s71, 1
      %p75 = scmp.eq.s32.totalorder %s16, 2
      %p76 = scmp.ne.s32.totalorder %s71, %s73
      %p77 = scmp.eq.s32.totalorder %s16, 0
      %p78 = por %p76, %p77
      %p79 = scmp.ne.s32.totalorder %s71, %s73
      %p80 = scmp.eq.s32.totalorder %s21, 2
      %p81 = por %p79, %p80
      %p82 = scmp.ne.s32.totalorder %s73, %s74
      %p83 = scmp.eq.s32.totalorder %s21, 0
      %p84 = por %p82, %p83
      %p85 = scmp.ne.s32.totalorder %s73, %s74
      %p86 = scmp.eq.s32.totalorder %s22, 2
      %p87 = por %p85, %p86
      %p89 = scmp.ne.s32.totalorder %s74, %s88
      %p90 = scmp.eq.s32.totalorder %s22, 0
      %p91 = por %p89, %p90
      %s93 = sadd.s32 %s92, 1
      %p96 = scmp.eq.s32.totalorder %s16, 2
      %p97 = scmp.ne.s32.totalorder %s92, %s94
      %p98 = scmp.eq.s32.totalorder %s16, 0
      %p99 = por %p97, %p98
      %p100 = scmp.ne.s32.totalorder %s92, %s94
      %p101 = scmp.eq.s32.totalorder %s21, 2
      %p102 = por %p100, %p101
      %p103 = scmp.ne.s32.totalorder %s94, %s95
      %p104 = scmp.eq.s32.totalorder %s21, 0
      %p105 = por %p103, %p104
      %p106 = scmp.ne.s32.totalorder %s94, %s95
      %p107 = scmp.eq.s32.totalorder %s22, 2
      %p108 = por %p106, %p107
      %p110 = scmp.ne.s32.totalorder %s95, %s109
      %p111 = scmp.eq.s32.totalorder %s22, 0
      %p112 = por %p110, %p111
      %s114 = sadd.s32 %s113, 1
      %p117 = scmp.eq.s32.totalorder %s16, 2
      %p118 = scmp.ne.s32.totalorder %s113, %s115
      %p119 = scmp.eq.s32.totalorder %s16, 0
      %p120 = por %p118, %p119
      %p121 = scmp.ne.s32.totalorder %s113, %s115
      %p122 = scmp.eq.s32.totalorder %s21, 2
      %p123 = por %p121, %p122
      %p124 = scmp.ne.s32.totalorder %s115, %s116
      %p125 = scmp.eq.s32.totalorder %s21, 0
      %p126 = por %p124, %p125
      %p127 = scmp.ne.s32.totalorder %s115, %s116
      %p128 = scmp.eq.s32.totalorder %s22, 2
      %p129 = por %p127, %p128
      %p131 = scmp.ne.s32.totalorder %s116, %s130
      %p132 = scmp.eq.s32.totalorder %s22, 0
      %p133 = por %p131, %p132
      %s135 = sadd.s32 %s134, 1
      %p138 = scmp.eq.s32.totalorder %s16, 2
      %p139 = scmp.ne.s32.totalorder %s134, %s136
      %p140 = scmp.eq.s32.totalorder %s16, 0
      %p141 = por %p139, %p140
      %p142 = scmp.ne.s32.totalorder %s134, %s136
      %p143 = scmp.eq.s32.totalorder %s21, 2
      %p144 = por %p142, %p143
      %p145 = scmp.ne.s32.totalorder %s136, %s137
      %p146 = scmp.eq.s32.totalorder %s21, 0
      %p147 = por %p145, %p146
      %p148 = scmp.ne.s32.totalorder %s136, %s137
      %p149 = scmp.eq.s32.totalorder %s22, 2
      %p150 = por %p148, %p149
      %p152 = scmp.ne.s32.totalorder %s137, %s151
      %p153 = scmp.eq.s32.totalorder %s22, 0
      %p154 = por %p152, %p153
      %s156 = sadd.s32 %s155, 1
      %p159 = scmp.eq.s32.totalorder %s16, 2
      %p160 = scmp.ne.s32.totalorder %s155, %s157
      %p161 = scmp.eq.s32.totalorder %s16, 0
      %p162 = por %p160, %p161
      %p163 = scmp.ne.s32.totalorder %s155, %s157
      %p164 = scmp.eq.s32.totalorder %s21, 2
      %p165 = por %p163, %p164
      %p166 = scmp.ne.s32.totalorder %s157, %s158
      %p167 = scmp.eq.s32.totalorder %s21, 0
      %p168 = por %p166, %p167
      %p169 = scmp.ne.s32.totalorder %s157, %s158
      %p170 = scmp.eq.s32.totalorder %s22, 2
      %p171 = por %p169, %p170
      %p173 = scmp.ne.s32.totalorder %s158, %s172
      %p174 = scmp.eq.s32.totalorder %s22, 0
      %p175 = por %p173, %p174
      %s176 = ssub.s32 %s16, %s23
      %p177 = scmp.eq.s32.totalorder %s176, 0
      %s179 = sadd.s32 %s178, 1
      %s180 = scalar_select %p177, %s178, %s179
      %p183 = pneg %p177
      %p184 = scmp.eq.s32.totalorder %s16, 2
      %p185 = por %p183, %p184
      %p186 = scmp.ne.s32.totalorder %s178, %s181
      %p187 = scmp.eq.s32.totalorder %s16, 0
      %p188 = por %p186, %p187
      %p189 = scmp.ne.s32.totalorder %s178, %s181
      %p190 = scmp.eq.s32.totalorder %s21, 2
      %p191 = por %p189, %p190
      %p192 = scmp.ne.s32.totalorder %s181, %s182
      %p193 = scmp.eq.s32.totalorder %s21, 0
      %p194 = por %p192, %p193
      %p195 = scmp.ne.s32.totalorder %s181, %s182
      %p196 = scmp.eq.s32.totalorder %s22, 2
      %p197 = por %p195, %p196
      %p199 = scmp.ne.s32.totalorder %s182, %s198
      %p200 = scmp.eq.s32.totalorder %s22, 0
      %p201 = por %p199, %p200
      %p202 = scmp.le.s32.totalorder 1, %s16
      %p203 = scmp.lt.s32.totalorder %s16, 4
      %p204 = pnand %p202, %p203
      %p205 = pneg %p204
      // Predicated region
      $region9: #{_lambda_.9} parent=5 // pred_check
        _
      $region10: #{_lambda_.9} parent=5 // pred_check_branch
        %207 = sbr.rel (%p204) target = $region12
      $region11: #{_lambda_.9} parent=5 // pred_region
        %s208 = ssub.s32 %s16, 1
        // Predicated region
        $region13: #{_lambda_.9} parent=11 // pred_check
          %p209 = pneg %p63
        $region14: #{_lambda_.9} parent=11 // pred_check_branch
          %211 = sbr.rel (%p209) target = $region16
        $region15: #{_lambda_.9} parent=11 // pred_region
          _
        $region16: #{_lambda_.9} parent=11 // pred_fallthru
          _
        // Predicated region
        $region17: #{_lambda_.9} parent=11 // pred_check
          %p212 = pneg %p84
        $region18: #{_lambda_.9} parent=11 // pred_check_branch
          %214 = sbr.rel (%p212) target = $region20
        $region19: #{_lambda_.9} parent=11 // pred_region
          _
        $region20: #{_lambda_.9} parent=11 // pred_fallthru
          _
        // Predicated region
        $region21: #{_lambda_.9} parent=11 // pred_check
          %p215 = pneg %p105
        $region22: #{_lambda_.9} parent=11 // pred_check_branch
          %217 = sbr.rel (%p215) target = $region24
        $region23: #{_lambda_.9} parent=11 // pred_region
          _
        $region24: #{_lambda_.9} parent=11 // pred_fallthru
          _
        // Predicated region
        $region25: #{_lambda_.9} parent=11 // pred_check
          %p218 = pneg %p126
        $region26: #{_lambda_.9} parent=11 // pred_check_branch
          %220 = sbr.rel (%p218) target = $region28
        $region27: #{_lambda_.9} parent=11 // pred_region
          _
        $region28: #{_lambda_.9} parent=11 // pred_fallthru
          _
        // Predicated region
        $region29: #{_lambda_.9} parent=11 // pred_check
          %p221 = pneg %p147
        $region30: #{_lambda_.9} parent=11 // pred_check_branch
          %223 = sbr.rel (%p221) target = $region32
        $region31: #{_lambda_.9} parent=11 // pred_region
          _
        $region32: #{_lambda_.9} parent=11 // pred_fallthru
          _
        // Predicated region
        $region33: #{_lambda_.9} parent=11 // pred_check
          %p224 = pneg %p168
        $region34: #{_lambda_.9} parent=11 // pred_check_branch
          %226 = sbr.rel (%p224) target = $region36
        $region35: #{_lambda_.9} parent=11 // pred_region
          _
        $region36: #{_lambda_.9} parent=11 // pred_fallthru
          _
      $region12: #{_lambda_.9} parent=5 // pred_fallthru
        _
      %p227 = scmp.lt.s32.totalorder %s16, 3
      // Predicated region
      $region37: #{_lambda_.9} parent=5 // pred_check
        %p228 = pneg %p227
      $region38: #{_lambda_.9} parent=5 // pred_check_branch
        %230 = sbr.rel (%p228) target = $region40
      $region39: #{_lambda_.9} parent=5 // pred_region
        // Predicated region
        $region41: #{_lambda_.9} parent=39 // pred_check
          %p231 = pneg %p36
        $region42: #{_lambda_.9} parent=39 // pred_check_branch
          %233 = sbr.rel (%p231) target = $region44
        $region43: #{_lambda_.9} parent=39 // pred_region
          %p234 = scmp.lt.s32.totalorder %s16, 2
          %s235 = scalar_select %p234, %s16, 2
          %s236 = scalar_lea.vmem %s0, %s235
        $region44: #{_lambda_.9} parent=39 // pred_fallthru
          _
      $region40: #{_lambda_.9} parent=5 // pred_fallthru
        _
      %p237 = scmp.le.s32.totalorder 1, %s16
      %p238 = scmp.lt.s32.totalorder %s16, 4
      %p239 = pnand %p237, %p238
      %p240 = pneg %p239
      // Predicated region
      $region45: #{_lambda_.9} parent=5 // pred_check
        _
      $region46: #{_lambda_.9} parent=5 // pred_check_branch
        %242 = sbr.rel (%p239) target = $region48
      $region47: #{_lambda_.9} parent=5 // pred_region
        %s243 = ssub.s32 %s16, 1
        %p244 = scmp.lt.s32.totalorder %s21, 2
        %s245 = scalar_select %p244, %s21, 2
        %s246 = scalar_lea.vmem %s0, %s245
        %p247 = pneg %p42
        %p248 = pneg %p39
        %p249 = pneg %p63
        %p250 = pneg %p60
        %p251 = pneg %p84
        %p252 = pneg %p81
        %p253 = pneg %p105
        %p254 = pneg %p102
        %p255 = pneg %p126
        %p256 = pneg %p123
        %p257 = pneg %p147
        %p258 = pneg %p144
        %p259 = pneg %p168
        %p260 = pneg %p165
        %p261 = pneg %p194
        %p262 = pneg %p191
        %s263 = sand.u32 %s181, 1
        %s264 = scalar_lea.sflag [#allocation3], %s263
        %s265 = sand.u32 %s181, 1
        %s266 = smul.addr %s265, 30
        %s267 = scalar_lea.vmem [#allocation2], %s266
        %p268 = scmp.lt.s32.totalorder %s21, 2
        %s269 = scalar_select %p268, %s21, 2
        %s270 = scalar_lea.vmem %s0, %s269
        %v271 = vld [vmem:[%s270] sm:$0x1]
        %v272 = vld [vmem:[%s1] sm:$0xff]
        %v273 = vld [vmem:[%s1 + $0x8] sm:$0xff]
        %v274 = vld [vmem:[%s1 + $0x10] sm:$0xff]
        %v275 = vld [vmem:[%s1 + $0x18] sm:$0xff]
        %v276 = vld [vmem:[%s1 + $0x20] sm:$0xff]
        %v277 = vld [vmem:[%s1 + $0x28] sm:$0xff]
        %v278 = vld [vmem:[%s1 + $0x30] sm:$0xff]
        %v279 = vld [vmem:[%s1 + $0x38] sm:$0xf]
        %v280 = vld [vmem:[%s1 + $0x3c] sm:$0xff]
        %v281 = vld [vmem:[%s1 + $0x44] sm:$0xff]
        %v282 = vld [vmem:[%s1 + $0x4c] sm:$0xff]
        %v283 = vld [vmem:[%s1 + $0x54] sm:$0xff]
        %v284 = vld [vmem:[%s1 + $0x5c] sm:$0xff]
        %v285 = vld [vmem:[%s1 + $0x64] sm:$0xff]
        %v286 = vld [vmem:[%s1 + $0x6c] sm:$0xff]
        %v287 = vld [vmem:[%s1 + $0x74] sm:$0xf]
        %v288 = vld [vmem:[%s1 + $0x78] sm:$0xff]
        %v289 = vld [vmem:[%s1 + $0x80] sm:$0xff]
        %v290 = vld [vmem:[%s1 + $0x88] sm:$0xff]
        %v291 = vld [vmem:[%s1 + $0x90] sm:$0xff]
        %v292 = vld [vmem:[%s1 + $0x98] sm:$0xff]
        %v293 = vld [vmem:[%s1 + $0xa0] sm:$0xff]
        %v294 = vld [vmem:[%s1 + $0xa8] sm:$0xff]
        %v295 = vld [vmem:[%s1 + $0xb0] sm:$0xf]
        %v296 = vld [vmem:[%s1 + $0xb4] sm:$0xff]
        %v297 = vld [vmem:[%s1 + $0xbc] sm:$0xff]
        %v298 = vld [vmem:[%s1 + $0xc4] sm:$0xff]
        %v299 = vld [vmem:[%s1 + $0xcc] sm:$0xff]
        %v300 = vld [vmem:[%s1 + $0xd4] sm:$0xff]
        %v301 = vld [vmem:[%s1 + $0xdc] sm:$0xff]
        %v302 = vld [vmem:[%s1 + $0xe4] sm:$0xff]
        %v303 = vld [vmem:[%s1 + $0xec] sm:$0xf]
        %v304 = vld [vmem:[%s1 + $0xf0] sm:$0xff]
        %v305 = vld [vmem:[%s1 + $0xf8] sm:$0xff]
        %v306 = vld [vmem:[%s1 + $0x100] sm:$0xff]
        %v307 = vld [vmem:[%s1 + $0x108] sm:$0xff]
        %v308 = vld [vmem:[%s1 + $0x110] sm:$0xff]
        %v309 = vld [vmem:[%s1 + $0x118] sm:$0xff]
        %v310 = vld [vmem:[%s1 + $0x120] sm:$0xff]
        %v311 = vld [vmem:[%s1 + $0x128] sm:$0xf]
        %v312 = vld [vmem:[%s1 + $0x12c] sm:$0xff]
        %v313 = vld [vmem:[%s1 + $0x134] sm:$0xff]
        %v314 = vld [vmem:[%s1 + $0x13c] sm:$0xff]
        %v315 = vld [vmem:[%s1 + $0x144] sm:$0xff]
        %v316 = vld [vmem:[%s1 + $0x14c] sm:$0xff]
        %v317 = vld [vmem:[%s1 + $0x154] sm:$0xff]
        %v318 = vld [vmem:[%s1 + $0x15c] sm:$0xff]
        %v319 = vld [vmem:[%s1 + $0x164] sm:$0xf]
        %v320 = vld [vmem:[%s1 + $0x168] sm:$0xff]
        %v321 = vld [vmem:[%s1 + $0x170] sm:$0xff]
        %v322 = vld [vmem:[%s1 + $0x178] sm:$0xff]
        %v323 = vld [vmem:[%s1 + $0x180] sm:$0xff]
        %v324 = vld [vmem:[%s1 + $0x188] sm:$0xff]
        %v325 = vld [vmem:[%s1 + $0x190] sm:$0xff]
        %v326 = vld [vmem:[%s1 + $0x198] sm:$0xff]
        %v327 = vld [vmem:[%s1 + $0x1a0] sm:$0xf]
        %v328 = vld [vmem:[%s1 + $0x1a4] sm:$0xff]
        %v329 = vld [vmem:[%s1 + $0x1ac] sm:$0xff]
        %v330 = vld [vmem:[%s1 + $0x1b4] sm:$0xff]
        %v331 = vld [vmem:[%s1 + $0x1bc] sm:$0xff]
        %v332 = vld [vmem:[%s1 + $0x1c4] sm:$0xff]
        %v333 = vld [vmem:[%s1 + $0x1cc] sm:$0xff]
        %v334 = vld [vmem:[%s1 + $0x1d4] sm:$0xff]
        %v335 = vld [vmem:[%s1 + $0x1dc] sm:$0xf]
        %v336 = vld [vmem:[%s1 + $0x1e0] sm:$0xff]
        %v337 = vld [vmem:[%s1 + $0x1e8] sm:$0xff]
        %v338 = vld [vmem:[%s1 + $0x1f0] sm:$0xff]
        %v339 = vld [vmem:[%s1 + $0x1f8] sm:$0xff]
        %v340 = vld [vmem:[%s1 + $0x200] sm:$0xff]
        %v341 = vld [vmem:[%s1 + $0x208] sm:$0xff]
        %v342 = vld [vmem:[%s1 + $0x210] sm:$0xff]
        %v343 = vld [vmem:[%s1 + $0x218] sm:$0xf]
        %v344 = vld [vmem:[%s1 + $0x21c] sm:$0xff]
        %v345 = vld [vmem:[%s1 + $0x224] sm:$0xff]
        %v346 = vld [vmem:[%s1 + $0x22c] sm:$0xff]
        %v347 = vld [vmem:[%s1 + $0x234] sm:$0xff]
        %v348 = vld [vmem:[%s1 + $0x23c] sm:$0xff]
        %v349 = vld [vmem:[%s1 + $0x244] sm:$0xff]
        %v350 = vld [vmem:[%s1 + $0x24c] sm:$0xff]
        %v351 = vld [vmem:[%s1 + $0x254] sm:$0xf]
        %v352 = vld [vmem:[%s1 + $0x258] sm:$0xff]
        %v353 = vld [vmem:[%s1 + $0x260] sm:$0xff]
        %v354 = vld [vmem:[%s1 + $0x268] sm:$0xff]
        %v355 = vld [vmem:[%s1 + $0x270] sm:$0xff]
        %v356 = vld [vmem:[%s1 + $0x278] sm:$0xff]
        %v357 = vld [vmem:[%s1 + $0x280] sm:$0xff]
        %v358 = vld [vmem:[%s1 + $0x288] sm:$0xff]
        %v359 = vld [vmem:[%s1 + $0x290] sm:$0xf]
        %v360 = vld [vmem:[%s1 + $0x294] sm:$0xff]
        %v361 = vld [vmem:[%s1 + $0x29c] sm:$0xff]
        %v362 = vld [vmem:[%s1 + $0x2a4] sm:$0xff]
        %v363 = vld [vmem:[%s1 + $0x2ac] sm:$0xff]
        %v364 = vld [vmem:[%s1 + $0x2b4] sm:$0xff]
        %v365 = vld [vmem:[%s1 + $0x2bc] sm:$0xff]
        %v366 = vld [vmem:[%s1 + $0x2c4] sm:$0xff]
        %v367 = vld [vmem:[%s1 + $0x2cc] sm:$0xf]
        %v368 = vld [vmem:[%s1 + $0x2d0] sm:$0xff]
        %v369 = vld [vmem:[%s1 + $0x2d8] sm:$0xff]
        %v370 = vld [vmem:[%s1 + $0x2e0] sm:$0xff]
        %v371 = vld [vmem:[%s1 + $0x2e8] sm:$0xff]
        %v372 = vld [vmem:[%s1 + $0x2f0] sm:$0xff]
        %v373 = vld [vmem:[%s1 + $0x2f8] sm:$0xff]
        %v374 = vld [vmem:[%s1 + $0x300] sm:$0xff]
        %v375 = vld [vmem:[%s1 + $0x308] sm:$0xf]
        %v376 = vld [vmem:[%s1 + $0x30c] sm:$0xff]
        %v377 = vld [vmem:[%s1 + $0x314] sm:$0xff]
        %v378 = vld [vmem:[%s1 + $0x31c] sm:$0xff]
        %v379 = vld [vmem:[%s1 + $0x324] sm:$0xff]
        %v380 = vld [vmem:[%s1 + $0x32c] sm:$0xff]
        %v381 = vld [vmem:[%s1 + $0x334] sm:$0xff]
        %v382 = vld [vmem:[%s1 + $0x33c] sm:$0xff]
        %v383 = vld [vmem:[%s1 + $0x344] sm:$0xf]
        %v384 = vld [vmem:[%s1 + $0x348] sm:$0xff]
        %v385 = vld [vmem:[%s1 + $0x350] sm:$0xff]
        %v386 = vld [vmem:[%s1 + $0x358] sm:$0xff]
        %v387 = vld [vmem:[%s1 + $0x360] sm:$0xff]
        %v388 = vld [vmem:[%s1 + $0x368] sm:$0xff]
        %v389 = vld [vmem:[%s1 + $0x370] sm:$0xff]
        %v390 = vld [vmem:[%s1 + $0x378] sm:$0xff]
        %v391 = vld [vmem:[%s1 + $0x380] sm:$0xf]
        %v392 = vld [vmem:[%s1 + $0x384] sm:$0xff]
        %v393 = vld [vmem:[%s1 + $0x38c] sm:$0xff]
        %v394 = vld [vmem:[%s1 + $0x394] sm:$0xff]
        %v395 = vld [vmem:[%s1 + $0x39c] sm:$0xff]
        %v396 = vld [vmem:[%s1 + $0x3a4] sm:$0xff]
        %v397 = vld [vmem:[%s1 + $0x3ac] sm:$0xff]
        %v398 = vld [vmem:[%s1 + $0x3b4] sm:$0xff]
        %v399 = vld [vmem:[%s1 + $0x3bc] sm:$0xf]
        %v400 = vld [vmem:[%s2] sm:$0xff]
        %v401 = vld [vmem:[%s2 + $0x8] sm:$0xff]
        %v404 = vperm.slane %v400, 0
        %v405 = vperm.slane %v400, 1
        %v406 = vperm.slane %v400, 2
        %v407 = vperm.slane %v400, 3
        %v408 = vperm.slane %v400, 4
        %v409 = vperm.slane %v400, 5
        %v410 = vperm.slane %v400, 6
        %v411 = vperm.slane %v400, 7
        %v412 = vperm.slane %v401, 0
        %v413 = vperm.slane %v401, 1
        %v414 = vperm.slane %v401, 2
        %v415 = vperm.slane %v401, 3
        %v416 = vperm.slane %v401, 4
        %v417 = vperm.slane %v401, 5
        %v418 = vperm.slane %v401, 6
        %v562 = vunpack.c.l.b16 %v272
        %v563 = vunpack.c.h.b16 %v272
        %v564 = vunpack.c.l.b16 %v273
        %v565 = vunpack.c.h.b16 %v273
        %v566 = vunpack.c.l.b16 %v274
        %v567 = vunpack.c.h.b16 %v274
        %v568 = vunpack.c.l.b16 %v275
        %v569 = vunpack.c.h.b16 %v275
        %v570 = vunpack.c.l.b16 %v276
        %v571 = vunpack.c.h.b16 %v276
        %v572 = vunpack.c.l.b16 %v277
        %v573 = vunpack.c.h.b16 %v277
        %v574 = vunpack.c.l.b16 %v278
        %v575 = vunpack.c.h.b16 %v278
        %v576 = vunpack.c.l.b16 %v279
        %v577 = vunpack.c.l.b16 %v280
        %v578 = vunpack.c.h.b16 %v280
        %v579 = vunpack.c.l.b16 %v281
        %v580 = vunpack.c.h.b16 %v281
        %v581 = vunpack.c.l.b16 %v282
        %v582 = vunpack.c.h.b16 %v282
        %v583 = vunpack.c.l.b16 %v283
        %v584 = vunpack.c.h.b16 %v283
        %v585 = vunpack.c.l.b16 %v284
        %v586 = vunpack.c.h.b16 %v284
        %v587 = vunpack.c.l.b16 %v285
        %v588 = vunpack.c.h.b16 %v285
        %v589 = vunpack.c.l.b16 %v286
        %v590 = vunpack.c.h.b16 %v286
        %v591 = vunpack.c.l.b16 %v287
        %v592 = vunpack.c.l.b16 %v288
        %v593 = vunpack.c.h.b16 %v288
        %v594 = vunpack.c.l.b16 %v289
        %v595 = vunpack.c.h.b16 %v289
        %v596 = vunpack.c.l.b16 %v290
        %v597 = vunpack.c.h.b16 %v290
        %v598 = vunpack.c.l.b16 %v291
        %v599 = vunpack.c.h.b16 %v291
        %v600 = vunpack.c.l.b16 %v292
        %v601 = vunpack.c.h.b16 %v292
        %v602 = vunpack.c.l.b16 %v293
        %v603 = vunpack.c.h.b16 %v293
        %v604 = vunpack.c.l.b16 %v294
        %v605 = vunpack.c.h.b16 %v294
        %v606 = vunpack.c.l.b16 %v295
        %v607 = vunpack.c.l.b16 %v296
        %v608 = vunpack.c.h.b16 %v296
        %v609 = vunpack.c.l.b16 %v297
        %v610 = vunpack.c.h.b16 %v297
        %v611 = vunpack.c.l.b16 %v298
        %v612 = vunpack.c.h.b16 %v298
        %v613 = vunpack.c.l.b16 %v299
        %v614 = vunpack.c.h.b16 %v299
        %v615 = vunpack.c.l.b16 %v300
        %v616 = vunpack.c.h.b16 %v300
        %v617 = vunpack.c.l.b16 %v301
        %v618 = vunpack.c.h.b16 %v301
        %v619 = vunpack.c.l.b16 %v302
        %v620 = vunpack.c.h.b16 %v302
        %v621 = vunpack.c.l.b16 %v303
        %v622 = vunpack.c.l.b16 %v304
        %v623 = vunpack.c.h.b16 %v304
        %v624 = vunpack.c.l.b16 %v305
        %v625 = vunpack.c.h.b16 %v305
        %v626 = vunpack.c.l.b16 %v306
        %v627 = vunpack.c.h.b16 %v306
        %v628 = vunpack.c.l.b16 %v307
        %v629 = vunpack.c.h.b16 %v307
        %v630 = vunpack.c.l.b16 %v308
        %v631 = vunpack.c.h.b16 %v308
        %v632 = vunpack.c.l.b16 %v309
        %v633 = vunpack.c.h.b16 %v309
        %v634 = vunpack.c.l.b16 %v310
        %v635 = vunpack.c.h.b16 %v310
        %v636 = vunpack.c.l.b16 %v311
        %v637 = vunpack.c.l.b16 %v312
        %v638 = vunpack.c.h.b16 %v312
        %v639 = vunpack.c.l.b16 %v313
        %v640 = vunpack.c.h.b16 %v313
        %v641 = vunpack.c.l.b16 %v314
        %v642 = vunpack.c.h.b16 %v314
        %v643 = vunpack.c.l.b16 %v315
        %v644 = vunpack.c.h.b16 %v315
        %v645 = vunpack.c.l.b16 %v316
        %v646 = vunpack.c.h.b16 %v316
        %v647 = vunpack.c.l.b16 %v317
        %v648 = vunpack.c.h.b16 %v317
        %v649 = vunpack.c.l.b16 %v318
        %v650 = vunpack.c.h.b16 %v318
        %v651 = vunpack.c.l.b16 %v319
        %v652 = vunpack.c.l.b16 %v320
        %v653 = vunpack.c.h.b16 %v320
        %v654 = vunpack.c.l.b16 %v321
        %v655 = vunpack.c.h.b16 %v321
        %v656 = vunpack.c.l.b16 %v322
        %v657 = vunpack.c.h.b16 %v322
        %v658 = vunpack.c.l.b16 %v323
        %v659 = vunpack.c.h.b16 %v323
        %v660 = vunpack.c.l.b16 %v324
        %v661 = vunpack.c.h.b16 %v324
        %v662 = vunpack.c.l.b16 %v325
        %v663 = vunpack.c.h.b16 %v325
        %v664 = vunpack.c.l.b16 %v326
        %v665 = vunpack.c.h.b16 %v326
        %v666 = vunpack.c.l.b16 %v327
        %v667 = vunpack.c.l.b16 %v328
        %v668 = vunpack.c.h.b16 %v328
        %v669 = vunpack.c.l.b16 %v329
        %v670 = vunpack.c.h.b16 %v329
        %v671 = vunpack.c.l.b16 %v330
        %v672 = vunpack.c.h.b16 %v330
        %v673 = vunpack.c.l.b16 %v331
        %v674 = vunpack.c.h.b16 %v331
        %v675 = vunpack.c.l.b16 %v332
        %v676 = vunpack.c.h.b16 %v332
        %v677 = vunpack.c.l.b16 %v333
        %v678 = vunpack.c.h.b16 %v333
        %v679 = vunpack.c.l.b16 %v334
        %v680 = vunpack.c.h.b16 %v334
        %v681 = vunpack.c.l.b16 %v335
        %v682 = vunpack.c.l.b16 %v336
        %v683 = vunpack.c.h.b16 %v336
        %v684 = vunpack.c.l.b16 %v337
        %v685 = vunpack.c.h.b16 %v337
        %v686 = vunpack.c.l.b16 %v338
        %v687 = vunpack.c.h.b16 %v338
        %v688 = vunpack.c.l.b16 %v339
        %v689 = vunpack.c.h.b16 %v339
        %v690 = vunpack.c.l.b16 %v340
        %v691 = vunpack.c.h.b16 %v340
        %v692 = vunpack.c.l.b16 %v341
        %v693 = vunpack.c.h.b16 %v341
        %v694 = vunpack.c.l.b16 %v342
        %v695 = vunpack.c.h.b16 %v342
        %v696 = vunpack.c.l.b16 %v343
        %v697 = vunpack.c.l.b16 %v344
        %v698 = vunpack.c.h.b16 %v344
        %v699 = vunpack.c.l.b16 %v345
        %v700 = vunpack.c.h.b16 %v345
        %v701 = vunpack.c.l.b16 %v346
        %v702 = vunpack.c.h.b16 %v346
        %v703 = vunpack.c.l.b16 %v347
        %v704 = vunpack.c.h.b16 %v347
        %v705 = vunpack.c.l.b16 %v348
        %v706 = vunpack.c.h.b16 %v348
        %v707 = vunpack.c.l.b16 %v349
        %v708 = vunpack.c.h.b16 %v349
        %v709 = vunpack.c.l.b16 %v350
        %v710 = vunpack.c.h.b16 %v350
        %v711 = vunpack.c.l.b16 %v351
        %v712 = vunpack.c.l.b16 %v352
        %v713 = vunpack.c.h.b16 %v352
        %v714 = vunpack.c.l.b16 %v353
        %v715 = vunpack.c.h.b16 %v353
        %v716 = vunpack.c.l.b16 %v354
        %v717 = vunpack.c.h.b16 %v354
        %v718 = vunpack.c.l.b16 %v355
        %v719 = vunpack.c.h.b16 %v355
        %v720 = vunpack.c.l.b16 %v356
        %v721 = vunpack.c.h.b16 %v356
        %v722 = vunpack.c.l.b16 %v357
        %v723 = vunpack.c.h.b16 %v357
        %v724 = vunpack.c.l.b16 %v358
        %v725 = vunpack.c.h.b16 %v358
        %v726 = vunpack.c.l.b16 %v359
        %v727 = vunpack.c.l.b16 %v360
        %v728 = vunpack.c.h.b16 %v360
        %v729 = vunpack.c.l.b16 %v361
        %v730 = vunpack.c.h.b16 %v361
        %v731 = vunpack.c.l.b16 %v362
        %v732 = vunpack.c.h.b16 %v362
        %v733 = vunpack.c.l.b16 %v363
        %v734 = vunpack.c.h.b16 %v363
        %v735 = vunpack.c.l.b16 %v364
        %v736 = vunpack.c.h.b16 %v364
        %v737 = vunpack.c.l.b16 %v365
        %v738 = vunpack.c.h.b16 %v365
        %v739 = vunpack.c.l.b16 %v366
        %v740 = vunpack.c.h.b16 %v366
        %v741 = vunpack.c.l.b16 %v367
        %v742 = vunpack.c.l.b16 %v368
        %v743 = vunpack.c.h.b16 %v368
        %v744 = vunpack.c.l.b16 %v369
        %v745 = vunpack.c.h.b16 %v369
        %v746 = vunpack.c.l.b16 %v370
        %v747 = vunpack.c.h.b16 %v370
        %v748 = vunpack.c.l.b16 %v371
        %v749 = vunpack.c.h.b16 %v371
        %v750 = vunpack.c.l.b16 %v372
        %v751 = vunpack.c.h.b16 %v372
        %v752 = vunpack.c.l.b16 %v373
        %v753 = vunpack.c.h.b16 %v373
        %v754 = vunpack.c.l.b16 %v374
        %v755 = vunpack.c.h.b16 %v374
        %v756 = vunpack.c.l.b16 %v375
        %v757 = vunpack.c.l.b16 %v376
        %v758 = vunpack.c.h.b16 %v376
        %v759 = vunpack.c.l.b16 %v377
        %v760 = vunpack.c.h.b16 %v377
        %v761 = vunpack.c.l.b16 %v378
        %v762 = vunpack.c.h.b16 %v378
        %v763 = vunpack.c.l.b16 %v379
        %v764 = vunpack.c.h.b16 %v379
        %v765 = vunpack.c.l.b16 %v380
        %v766 = vunpack.c.h.b16 %v380
        %v767 = vunpack.c.l.b16 %v381
        %v768 = vunpack.c.h.b16 %v381
        %v769 = vunpack.c.l.b16 %v382
        %v770 = vunpack.c.h.b16 %v382
        %v771 = vunpack.c.l.b16 %v383
        %v772 = vunpack.c.l.b16 %v384
        %v773 = vunpack.c.h.b16 %v384
        %v774 = vunpack.c.l.b16 %v385
        %v775 = vunpack.c.h.b16 %v385
        %v776 = vunpack.c.l.b16 %v386
        %v777 = vunpack.c.h.b16 %v386
        %v778 = vunpack.c.l.b16 %v387
        %v779 = vunpack.c.h.b16 %v387
        %v780 = vunpack.c.l.b16 %v388
        %v781 = vunpack.c.h.b16 %v388
        %v782 = vunpack.c.l.b16 %v389
        %v783 = vunpack.c.h.b16 %v389
        %v784 = vunpack.c.l.b16 %v390
        %v785 = vunpack.c.h.b16 %v390
        %v786 = vunpack.c.l.b16 %v391
        %v787 = vunpack.c.l.b16 %v392
        %v788 = vunpack.c.h.b16 %v392
        %v789 = vunpack.c.l.b16 %v393
        %v790 = vunpack.c.h.b16 %v393
        %v791 = vunpack.c.l.b16 %v394
        %v792 = vunpack.c.h.b16 %v394
        %v793 = vunpack.c.l.b16 %v395
        %v794 = vunpack.c.h.b16 %v395
        %v795 = vunpack.c.l.b16 %v396
        %v796 = vunpack.c.h.b16 %v396
        %v797 = vunpack.c.l.b16 %v397
        %v798 = vunpack.c.h.b16 %v397
        %v799 = vunpack.c.l.b16 %v398
        %v800 = vunpack.c.h.b16 %v398
        %v801 = vunpack.c.l.b16 %v399
        %v802 = vpack.c.b16 %v577, %v562
        %v803 = vpack.c.b16 %v578, %v563
        %v804 = vpack.c.b16 %v579, %v564
        %v805 = vpack.c.b16 %v580, %v565
        %v806 = vpack.c.b16 %v581, %v566
        %v807 = vpack.c.b16 %v582, %v567
        %v808 = vpack.c.b16 %v583, %v568
        %v809 = vpack.c.b16 %v584, %v569
        %v810 = vpack.c.b16 %v585, %v570
        %v811 = vpack.c.b16 %v586, %v571
        %v812 = vpack.c.b16 %v587, %v572
        %v813 = vpack.c.b16 %v588, %v573
        %v814 = vpack.c.b16 %v589, %v574
        %v815 = vpack.c.b16 %v590, %v575
        %v816 = vpack.c.b16 %v591, %v576
        %v817 = vpack.c.b16 %v607, %v592
        %v818 = vpack.c.b16 %v608, %v593
        %v819 = vpack.c.b16 %v609, %v594
        %v820 = vpack.c.b16 %v610, %v595
        %v821 = vpack.c.b16 %v611, %v596
        %v822 = vpack.c.b16 %v612, %v597
        %v823 = vpack.c.b16 %v613, %v598
        %v824 = vpack.c.b16 %v614, %v599
        %v825 = vpack.c.b16 %v615, %v600
        %v826 = vpack.c.b16 %v616, %v601
        %v827 = vpack.c.b16 %v617, %v602
        %v828 = vpack.c.b16 %v618, %v603
        %v829 = vpack.c.b16 %v619, %v604
        %v830 = vpack.c.b16 %v620, %v605
        %v831 = vpack.c.b16 %v621, %v606
        %v832 = vpack.c.b16 %v637, %v622
        %v833 = vpack.c.b16 %v638, %v623
        %v834 = vpack.c.b16 %v639, %v624
        %v835 = vpack.c.b16 %v640, %v625
        %v836 = vpack.c.b16 %v641, %v626
        %v837 = vpack.c.b16 %v642, %v627
        %v838 = vpack.c.b16 %v643, %v628
        %v839 = vpack.c.b16 %v644, %v629
        %v840 = vpack.c.b16 %v645, %v630
        %v841 = vpack.c.b16 %v646, %v631
        %v842 = vpack.c.b16 %v647, %v632
        %v843 = vpack.c.b16 %v648, %v633
        %v844 = vpack.c.b16 %v649, %v634
        %v845 = vpack.c.b16 %v650, %v635
        %v846 = vpack.c.b16 %v651, %v636
        %v847 = vpack.c.b16 %v667, %v652
        %v848 = vpack.c.b16 %v668, %v653
        %v849 = vpack.c.b16 %v669, %v654
        %v850 = vpack.c.b16 %v670, %v655
        %v851 = vpack.c.b16 %v671, %v656
        %v852 = vpack.c.b16 %v672, %v657
        %v853 = vpack.c.b16 %v673, %v658
        %v854 = vpack.c.b16 %v674, %v659
        %v855 = vpack.c.b16 %v675, %v660
        %v856 = vpack.c.b16 %v676, %v661
        %v857 = vpack.c.b16 %v677, %v662
        %v858 = vpack.c.b16 %v678, %v663
        %v859 = vpack.c.b16 %v679, %v664
        %v860 = vpack.c.b16 %v680, %v665
        %v861 = vpack.c.b16 %v681, %v666
        %v862 = vpack.c.b16 %v697, %v682
        %v863 = vpack.c.b16 %v698, %v683
        %v864 = vpack.c.b16 %v699, %v684
        %v865 = vpack.c.b16 %v700, %v685
        %v866 = vpack.c.b16 %v701, %v686
        %v867 = vpack.c.b16 %v702, %v687
        %v868 = vpack.c.b16 %v703, %v688
        %v869 = vpack.c.b16 %v704, %v689
        %v870 = vpack.c.b16 %v705, %v690
        %v871 = vpack.c.b16 %v706, %v691
        %v872 = vpack.c.b16 %v707, %v692
        %v873 = vpack.c.b16 %v708, %v693
        %v874 = vpack.c.b16 %v709, %v694
        %v875 = vpack.c.b16 %v710, %v695
        %v876 = vpack.c.b16 %v711, %v696
        %v877 = vpack.c.b16 %v727, %v712
        %v878 = vpack.c.b16 %v728, %v713
        %v879 = vpack.c.b16 %v729, %v714
        %v880 = vpack.c.b16 %v730, %v715
        %v881 = vpack.c.b16 %v731, %v716
        %v882 = vpack.c.b16 %v732, %v717
        %v883 = vpack.c.b16 %v733, %v718
        %v884 = vpack.c.b16 %v734, %v719
        %v885 = vpack.c.b16 %v735, %v720
        %v886 = vpack.c.b16 %v736, %v721
        %v887 = vpack.c.b16 %v737, %v722
        %v888 = vpack.c.b16 %v738, %v723
        %v889 = vpack.c.b16 %v739, %v724
        %v890 = vpack.c.b16 %v740, %v725
        %v891 = vpack.c.b16 %v741, %v726
        %v892 = vpack.c.b16 %v757, %v742
        %v893 = vpack.c.b16 %v758, %v743
        %v894 = vpack.c.b16 %v759, %v744
        %v895 = vpack.c.b16 %v760, %v745
        %v896 = vpack.c.b16 %v761, %v746
        %v897 = vpack.c.b16 %v762, %v747
        %v898 = vpack.c.b16 %v763, %v748
        %v899 = vpack.c.b16 %v764, %v749
        %v900 = vpack.c.b16 %v765, %v750
        %v901 = vpack.c.b16 %v766, %v751
        %v902 = vpack.c.b16 %v767, %v752
        %v903 = vpack.c.b16 %v768, %v753
        %v904 = vpack.c.b16 %v769, %v754
        %v905 = vpack.c.b16 %v770, %v755
        %v906 = vpack.c.b16 %v771, %v756
        %v907 = vpack.c.b16 %v787, %v772
        %v908 = vpack.c.b16 %v788, %v773
        %v909 = vpack.c.b16 %v789, %v774
        %v910 = vpack.c.b16 %v790, %v775
        %v911 = vpack.c.b16 %v791, %v776
        %v912 = vpack.c.b16 %v792, %v777
        %v913 = vpack.c.b16 %v793, %v778
        %v914 = vpack.c.b16 %v794, %v779
        %v915 = vpack.c.b16 %v795, %v780
        %v916 = vpack.c.b16 %v796, %v781
        %v917 = vpack.c.b16 %v797, %v782
        %v918 = vpack.c.b16 %v798, %v783
        %v919 = vpack.c.b16 %v799, %v784
        %v920 = vpack.c.b16 %v800, %v785
        %v921 = vpack.c.b16 %v801, %v786
        %1042 = vmatpush.bf16.msra.mxu0 %v907
        %1043 = vmatpush.bf16.msra.mxu0 %v892
        %1044 = vmatpush.bf16.msra.mxu0 %v877
        %1045 = vmatpush.bf16.msra.mxu0 %v862
        %1046 = vmatpush.bf16.msra.mxu0 %v847
        %1047 = vmatpush.bf16.msra.mxu0 %v832
        %1048 = vmatpush.bf16.msra.mxu0 %v817
        %1049 = vmatpush.bf16.msra.mxu0 %v802
        %1050 = vmatmul.bf16.gmra.mxu0 %v271
        %v1051 = vpop.f32.mrf.mxu0
        %v1052 = vadd.f32 %v404, %v1051
        %v1053 = vpop.f32.mrf.mxu0
        %1054 = vdwg.mxu0
        %1055 = vmatpush.bf16.msra.mxu0 %v908
        %1056 = vmatpush.bf16.msra.mxu0 %v893
        %1057 = vmatpush.bf16.msra.mxu0 %v878
        %1058 = vmatpush.bf16.msra.mxu0 %v863
        %1059 = vmatpush.bf16.msra.mxu0 %v848
        %1060 = vmatpush.bf16.msra.mxu0 %v833
        %1061 = vmatpush.bf16.msra.mxu0 %v818
        %1062 = vmatpush.bf16.msra.mxu0 %v803
        %1063 = vmatmul.bf16.gmra.mxu0 %v271
        %v1064 = vpop.f32.mrf.mxu0
        %v1065 = vadd.f32 %v405, %v1064
        %v1066 = vpop.f32.mrf.mxu0
        %1067 = vdwg.mxu0
        %1068 = vmatpush.bf16.msra.mxu0 %v909
        %1069 = vmatpush.bf16.msra.mxu0 %v894
        %1070 = vmatpush.bf16.msra.mxu0 %v879
        %1071 = vmatpush.bf16.msra.mxu0 %v864
        %1072 = vmatpush.bf16.msra.mxu0 %v849
        %1073 = vmatpush.bf16.msra.mxu0 %v834
        %1074 = vmatpush.bf16.msra.mxu0 %v819
        %1075 = vmatpush.bf16.msra.mxu0 %v804
        %1076 = vmatmul.bf16.gmra.mxu0 %v271
        %v1077 = vpop.f32.mrf.mxu0
        %v1078 = vadd.f32 %v406, %v1077
        %v1079 = vpop.f32.mrf.mxu0
        %1080 = vdwg.mxu0
        %1081 = vmatpush.bf16.msra.mxu0 %v910
        %1082 = vmatpush.bf16.msra.mxu0 %v895
        %1083 = vmatpush.bf16.msra.mxu0 %v880
        %1084 = vmatpush.bf16.msra.mxu0 %v865
        %1085 = vmatpush.bf16.msra.mxu0 %v850
        %1086 = vmatpush.bf16.msra.mxu0 %v835
        %1087 = vmatpush.bf16.msra.mxu0 %v820
        %1088 = vmatpush.bf16.msra.mxu0 %v805
        %1089 = vmatmul.bf16.gmra.mxu0 %v271
        %v1090 = vpop.f32.mrf.mxu0
        %v1091 = vadd.f32 %v407, %v1090
        %v1092 = vpop.f32.mrf.mxu0
        %1093 = vdwg.mxu0
        %1094 = vmatpush.bf16.msra.mxu0 %v911
        %1095 = vmatpush.bf16.msra.mxu0 %v896
        %1096 = vmatpush.bf16.msra.mxu0 %v881
        %1097 = vmatpush.bf16.msra.mxu0 %v866
        %1098 = vmatpush.bf16.msra.mxu0 %v851
        %1099 = vmatpush.bf16.msra.mxu0 %v836
        %1100 = vmatpush.bf16.msra.mxu0 %v821
        %1101 = vmatpush.bf16.msra.mxu0 %v806
        %1102 = vmatmul.bf16.gmra.mxu0 %v271
        %v1103 = vpop.f32.mrf.mxu0
        %v1104 = vadd.f32 %v408, %v1103
        %v1105 = vpop.f32.mrf.mxu0
        %1106 = vdwg.mxu0
        %1107 = vmatpush.bf16.msra.mxu0 %v912
        %1108 = vmatpush.bf16.msra.mxu0 %v897
        %1109 = vmatpush.bf16.msra.mxu0 %v882
        %1110 = vmatpush.bf16.msra.mxu0 %v867
        %1111 = vmatpush.bf16.msra.mxu0 %v852
        %1112 = vmatpush.bf16.msra.mxu0 %v837
        %1113 = vmatpush.bf16.msra.mxu0 %v822
        %1114 = vmatpush.bf16.msra.mxu0 %v807
        %1115 = vmatmul.bf16.gmra.mxu0 %v271
        %v1116 = vpop.f32.mrf.mxu0
        %v1117 = vadd.f32 %v409, %v1116
        %v1118 = vpop.f32.mrf.mxu0
        %1119 = vdwg.mxu0
        %1120 = vmatpush.bf16.msra.mxu0 %v913
        %1121 = vmatpush.bf16.msra.mxu0 %v898
        %1122 = vmatpush.bf16.msra.mxu0 %v883
        %1123 = vmatpush.bf16.msra.mxu0 %v868
        %1124 = vmatpush.bf16.msra.mxu0 %v853
        %1125 = vmatpush.bf16.msra.mxu0 %v838
        %1126 = vmatpush.bf16.msra.mxu0 %v823
        %1127 = vmatpush.bf16.msra.mxu0 %v808
        %1128 = vmatmul.bf16.gmra.mxu0 %v271
        %v1129 = vpop.f32.mrf.mxu0
        %v1130 = vadd.f32 %v410, %v1129
        %v1131 = vpop.f32.mrf.mxu0
        %1132 = vdwg.mxu0
        %1133 = vmatpush.bf16.msra.mxu0 %v914
        %1134 = vmatpush.bf16.msra.mxu0 %v899
        %1135 = vmatpush.bf16.msra.mxu0 %v884
        %1136 = vmatpush.bf16.msra.mxu0 %v869
        %1137 = vmatpush.bf16.msra.mxu0 %v854
        %1138 = vmatpush.bf16.msra.mxu0 %v839
        %1139 = vmatpush.bf16.msra.mxu0 %v824
        %1140 = vmatpush.bf16.msra.mxu0 %v809
        %1141 = vmatmul.bf16.gmra.mxu0 %v271
        %v1142 = vpop.f32.mrf.mxu0
        %v1143 = vadd.f32 %v411, %v1142
        %v1144 = vpop.f32.mrf.mxu0
        %1145 = vdwg.mxu0
        %1146 = vmatpush.bf16.msra.mxu0 %v915
        %1147 = vmatpush.bf16.msra.mxu0 %v900
        %1148 = vmatpush.bf16.msra.mxu0 %v885
        %1149 = vmatpush.bf16.msra.mxu0 %v870
        %1150 = vmatpush.bf16.msra.mxu0 %v855
        %1151 = vmatpush.bf16.msra.mxu0 %v840
        %1152 = vmatpush.bf16.msra.mxu0 %v825
        %1153 = vmatpush.bf16.msra.mxu0 %v810
        %1154 = vmatmul.bf16.gmra.mxu0 %v271
        %v1155 = vpop.f32.mrf.mxu0
        %v1156 = vadd.f32 %v412, %v1155
        %v1157 = vpop.f32.mrf.mxu0
        %1158 = vdwg.mxu0
        %1159 = vmatpush.bf16.msra.mxu0 %v916
        %1160 = vmatpush.bf16.msra.mxu0 %v901
        %1161 = vmatpush.bf16.msra.mxu0 %v886
        %1162 = vmatpush.bf16.msra.mxu0 %v871
        %1163 = vmatpush.bf16.msra.mxu0 %v856
        %1164 = vmatpush.bf16.msra.mxu0 %v841
        %1165 = vmatpush.bf16.msra.mxu0 %v826
        %1166 = vmatpush.bf16.msra.mxu0 %v811
        %1167 = vmatmul.bf16.gmra.mxu0 %v271
        %v1168 = vpop.f32.mrf.mxu0
        %v1169 = vadd.f32 %v413, %v1168
        %v1170 = vpop.f32.mrf.mxu0
        %1171 = vdwg.mxu0
        %1172 = vmatpush.bf16.msra.mxu0 %v917
        %1173 = vmatpush.bf16.msra.mxu0 %v902
        %1174 = vmatpush.bf16.msra.mxu0 %v887
        %1175 = vmatpush.bf16.msra.mxu0 %v872
        %1176 = vmatpush.bf16.msra.mxu0 %v857
        %1177 = vmatpush.bf16.msra.mxu0 %v842
        %1178 = vmatpush.bf16.msra.mxu0 %v827
        %1179 = vmatpush.bf16.msra.mxu0 %v812
        %1180 = vmatmul.bf16.gmra.mxu0 %v271
        %v1181 = vpop.f32.mrf.mxu0
        %v1182 = vadd.f32 %v414, %v1181
        %v1183 = vpop.f32.mrf.mxu0
        %1184 = vdwg.mxu0
        %1185 = vmatpush.bf16.msra.mxu0 %v918
        %1186 = vmatpush.bf16.msra.mxu0 %v903
        %1187 = vmatpush.bf16.msra.mxu0 %v888
        %1188 = vmatpush.bf16.msra.mxu0 %v873
        %1189 = vmatpush.bf16.msra.mxu0 %v858
        %1190 = vmatpush.bf16.msra.mxu0 %v843
        %1191 = vmatpush.bf16.msra.mxu0 %v828
        %1192 = vmatpush.bf16.msra.mxu0 %v813
        %1193 = vmatmul.bf16.gmra.mxu0 %v271
        %v1194 = vpop.f32.mrf.mxu0
        %v1195 = vadd.f32 %v415, %v1194
        %v1196 = vpop.f32.mrf.mxu0
        %1197 = vdwg.mxu0
        %1198 = vmatpush.bf16.msra.mxu0 %v919
        %1199 = vmatpush.bf16.msra.mxu0 %v904
        %1200 = vmatpush.bf16.msra.mxu0 %v889
        %1201 = vmatpush.bf16.msra.mxu0 %v874
        %1202 = vmatpush.bf16.msra.mxu0 %v859
        %1203 = vmatpush.bf16.msra.mxu0 %v844
        %1204 = vmatpush.bf16.msra.mxu0 %v829
        %1205 = vmatpush.bf16.msra.mxu0 %v814
        %1206 = vmatmul.bf16.gmra.mxu0 %v271
        %v1207 = vpop.f32.mrf.mxu0
        %v1208 = vadd.f32 %v416, %v1207
        %v1209 = vpop.f32.mrf.mxu0
        %1210 = vdwg.mxu0
        %1211 = vmatpush.bf16.msra.mxu0 %v920
        %1212 = vmatpush.bf16.msra.mxu0 %v905
        %1213 = vmatpush.bf16.msra.mxu0 %v890
        %1214 = vmatpush.bf16.msra.mxu0 %v875
        %1215 = vmatpush.bf16.msra.mxu0 %v860
        %1216 = vmatpush.bf16.msra.mxu0 %v845
        %1217 = vmatpush.bf16.msra.mxu0 %v830
        %1218 = vmatpush.bf16.msra.mxu0 %v815
        %1219 = vmatmul.bf16.gmra.mxu0 %v271
        %v1220 = vpop.f32.mrf.mxu0
        %v1221 = vadd.f32 %v417, %v1220
        %v1222 = vpop.f32.mrf.mxu0
        %1223 = vdwg.mxu0
        %1224 = vmatpush.bf16.msra.mxu0 %v921
        %1225 = vmatpush.bf16.msra.mxu0 %v906
        %1226 = vmatpush.bf16.msra.mxu0 %v891
        %1227 = vmatpush.bf16.msra.mxu0 %v876
        %1228 = vmatpush.bf16.msra.mxu0 %v861
        %1229 = vmatpush.bf16.msra.mxu0 %v846
        %1230 = vmatpush.bf16.msra.mxu0 %v831
        %1231 = vmatpush.bf16.msra.mxu0 %v816
        %1232 = vmatmul.bf16.gmra.mxu0 %v271
        %v1233 = vpop.f32.mrf.mxu0
        %v1234 = vadd.f32 %v418, %v1233
        %v1235 = vpop.f32.mrf.mxu0
        %1236 = vdwg.mxu0
        %v1237 = vld [vmem:[%s3] sm:$0xff]
        %v1238 = vld [vmem:[%s3 + $0x8] sm:$0xff]
        %v1239 = vld [vmem:[%s4] sm:$0xff]
        %v1240 = vld [vmem:[%s4 + $0x8] sm:$0xff]
        %vm1241 = vcmask 1041408
        %v1242 = vsel %vm1241, %v1052, 0.0
        %v1243 = vrot.slane %v1242, 4
        %v1244 = vadd.f32 %v1242, %v1243
        %v1245 = vrot.slane %v1244, 2
        %v1246 = vadd.f32 %v1244, %v1245
        %v1247 = vrot.slane %v1246, 1
        %v1248 = vadd.f32 %v1246, %v1247
        %v1249 = vsel %vm1241, %v1065, 0.0
        %v1250 = vrot.slane %v1249, 4
        %v1251 = vadd.f32 %v1249, %v1250
        %v1252 = vrot.slane %v1251, 2
        %v1253 = vadd.f32 %v1251, %v1252
        %v1254 = vrot.slane %v1253, 1
        %v1255 = vadd.f32 %v1253, %v1254
        %v1256 = vsel %vm1241, %v1078, 0.0
        %v1257 = vrot.slane %v1256, 4
        %v1258 = vadd.f32 %v1256, %v1257
        %v1259 = vrot.slane %v1258, 2
        %v1260 = vadd.f32 %v1258, %v1259
        %v1261 = vrot.slane %v1260, 1
        %v1262 = vadd.f32 %v1260, %v1261
        %v1263 = vsel %vm1241, %v1091, 0.0
        %v1264 = vrot.slane %v1263, 4
        %v1265 = vadd.f32 %v1263, %v1264
        %v1266 = vrot.slane %v1265, 2
        %v1267 = vadd.f32 %v1265, %v1266
        %v1268 = vrot.slane %v1267, 1
        %v1269 = vadd.f32 %v1267, %v1268
        %v1270 = vsel %vm1241, %v1104, 0.0
        %v1271 = vrot.slane %v1270, 4
        %v1272 = vadd.f32 %v1270, %v1271
        %v1273 = vrot.slane %v1272, 2
        %v1274 = vadd.f32 %v1272, %v1273
        %v1275 = vrot.slane %v1274, 1
        %v1276 = vadd.f32 %v1274, %v1275
        %v1277 = vsel %vm1241, %v1117, 0.0
        %v1278 = vrot.slane %v1277, 4
        %v1279 = vadd.f32 %v1277, %v1278
        %v1280 = vrot.slane %v1279, 2
        %v1281 = vadd.f32 %v1279, %v1280
        %v1282 = vrot.slane %v1281, 1
        %v1283 = vadd.f32 %v1281, %v1282
        %v1284 = vsel %vm1241, %v1130, 0.0
        %v1285 = vrot.slane %v1284, 4
        %v1286 = vadd.f32 %v1284, %v1285
        %v1287 = vrot.slane %v1286, 2
        %v1288 = vadd.f32 %v1286, %v1287
        %v1289 = vrot.slane %v1288, 1
        %v1290 = vadd.f32 %v1288, %v1289
        %v1291 = vsel %vm1241, %v1143, 0.0
        %v1292 = vrot.slane %v1291, 4
        %v1293 = vadd.f32 %v1291, %v1292
        %v1294 = vrot.slane %v1293, 2
        %v1295 = vadd.f32 %v1293, %v1294
        %v1296 = vrot.slane %v1295, 1
        %v1297 = vadd.f32 %v1295, %v1296
        %v1298 = vsel %vm1241, %v1156, 0.0
        %v1299 = vrot.slane %v1298, 4
        %v1300 = vadd.f32 %v1298, %v1299
        %v1301 = vrot.slane %v1300, 2
        %v1302 = vadd.f32 %v1300, %v1301
        %v1303 = vrot.slane %v1302, 1
        %v1304 = vadd.f32 %v1302, %v1303
        %v1305 = vsel %vm1241, %v1169, 0.0
        %v1306 = vrot.slane %v1305, 4
        %v1307 = vadd.f32 %v1305, %v1306
        %v1308 = vrot.slane %v1307, 2
        %v1309 = vadd.f32 %v1307, %v1308
        %v1310 = vrot.slane %v1309, 1
        %v1311 = vadd.f32 %v1309, %v1310
        %v1312 = vsel %vm1241, %v1182, 0.0
        %v1313 = vrot.slane %v1312, 4
        %v1314 = vadd.f32 %v1312, %v1313
        %v1315 = vrot.slane %v1314, 2
        %v1316 = vadd.f32 %v1314, %v1315
        %v1317 = vrot.slane %v1316, 1
        %v1318 = vadd.f32 %v1316, %v1317
        %v1319 = vsel %vm1241, %v1195, 0.0
        %v1320 = vrot.slane %v1319, 4
        %v1321 = vadd.f32 %v1319, %v1320
        %v1322 = vrot.slane %v1321, 2
        %v1323 = vadd.f32 %v1321, %v1322
        %v1324 = vrot.slane %v1323, 1
        %v1325 = vadd.f32 %v1323, %v1324
        %v1326 = vsel %vm1241, %v1208, 0.0
        %v1327 = vrot.slane %v1326, 4
        %v1328 = vadd.f32 %v1326, %v1327
        %v1329 = vrot.slane %v1328, 2
        %v1330 = vadd.f32 %v1328, %v1329
        %v1331 = vrot.slane %v1330, 1
        %v1332 = vadd.f32 %v1330, %v1331
        %v1333 = vsel %vm1241, %v1221, 0.0
        %v1334 = vrot.slane %v1333, 4
        %v1335 = vadd.f32 %v1333, %v1334
        %v1336 = vrot.slane %v1335, 2
        %v1337 = vadd.f32 %v1335, %v1336
        %v1338 = vrot.slane %v1337, 1
        %v1339 = vadd.f32 %v1337, %v1338
        %v1340 = vsel %vm1241, %v1234, 0.0
        %v1341 = vrot.slane %v1340, 4
        %v1342 = vadd.f32 %v1340, %v1341
        %v1343 = vrot.slane %v1342, 2
        %v1344 = vadd.f32 %v1342, %v1343
        %v1345 = vrot.slane %v1344, 1
        %v1346 = vadd.f32 %v1344, %v1345
        %v1347 = vrcp.pop 2.0
        %v1348 = vmul.f32 2.0, %v1347
        %v1349 = vsub.f32 1.0, %v1348
        %v1350 = vmul.f32 %v1347, %v1349
        %v1351 = vadd.f32 %v1347, %v1350
        %vm1352 = vweird.f32 %v1347
        %v1353 = vsel %vm1352, %v1347, %v1351
        %v1354 = vmul.f32 %v1248, %v1353
        %v1355 = vmul.f32 %v1255, %v1353
        %v1356 = vmul.f32 %v1262, %v1353
        %v1357 = vmul.f32 %v1269, %v1353
        %v1358 = vmul.f32 %v1276, %v1353
        %v1359 = vmul.f32 %v1283, %v1353
        %v1360 = vmul.f32 %v1290, %v1353
        %v1361 = vmul.f32 %v1297, %v1353
        %v1362 = vmul.f32 %v1304, %v1353
        %v1363 = vmul.f32 %v1311, %v1353
        %v1364 = vmul.f32 %v1318, %v1353
        %v1365 = vmul.f32 %v1325, %v1353
        %v1366 = vmul.f32 %v1332, %v1353
        %v1367 = vmul.f32 %v1339, %v1353
        %v1368 = vmul.f32 %v1346, %v1353
        %v1369 = vsub.f32 %v1052, %v1354
        %v1370 = vsub.f32 %v1065, %v1355
        %v1371 = vsub.f32 %v1078, %v1356
        %v1372 = vsub.f32 %v1091, %v1357
        %v1373 = vsub.f32 %v1104, %v1358
        %v1374 = vsub.f32 %v1117, %v1359
        %v1375 = vsub.f32 %v1130, %v1360
        %v1376 = vsub.f32 %v1143, %v1361
        %v1377 = vsub.f32 %v1156, %v1362
        %v1378 = vsub.f32 %v1169, %v1363
        %v1379 = vsub.f32 %v1182, %v1364
        %v1380 = vsub.f32 %v1195, %v1365
        %v1381 = vsub.f32 %v1208, %v1366
        %v1382 = vsub.f32 %v1221, %v1367
        %v1383 = vsub.f32 %v1234, %v1368
        %v1384 = vmul.f32 %v1369, %v1369
        %v1385 = vmul.f32 %v1370, %v1370
        %v1386 = vmul.f32 %v1371, %v1371
        %v1387 = vmul.f32 %v1372, %v1372
        %v1388 = vmul.f32 %v1373, %v1373
        %v1389 = vmul.f32 %v1374, %v1374
        %v1390 = vmul.f32 %v1375, %v1375
        %v1391 = vmul.f32 %v1376, %v1376
        %v1392 = vmul.f32 %v1377, %v1377
        %v1393 = vmul.f32 %v1378, %v1378
        %v1394 = vmul.f32 %v1379, %v1379
        %v1395 = vmul.f32 %v1380, %v1380
        %v1396 = vmul.f32 %v1381, %v1381
        %v1397 = vmul.f32 %v1382, %v1382
        %v1398 = vmul.f32 %v1383, %v1383
        %v1399 = vsel %vm1241, %v1384, 0.0
        %v1400 = vrot.slane %v1399, 4
        %v1401 = vadd.f32 %v1399, %v1400
        %v1402 = vrot.slane %v1401, 2
        %v1403 = vadd.f32 %v1401, %v1402
        %v1404 = vrot.slane %v1403, 1
        %v1405 = vadd.f32 %v1403, %v1404
        %v1406 = vsel %vm1241, %v1385, 0.0
        %v1407 = vrot.slane %v1406, 4
        %v1408 = vadd.f32 %v1406, %v1407
        %v1409 = vrot.slane %v1408, 2
        %v1410 = vadd.f32 %v1408, %v1409
        %v1411 = vrot.slane %v1410, 1
        %v1412 = vadd.f32 %v1410, %v1411
        %v1413 = vsel %vm1241, %v1386, 0.0
        %v1414 = vrot.slane %v1413, 4
        %v1415 = vadd.f32 %v1413, %v1414
        %v1416 = vrot.slane %v1415, 2
        %v1417 = vadd.f32 %v1415, %v1416
        %v1418 = vrot.slane %v1417, 1
        %v1419 = vadd.f32 %v1417, %v1418
        %v1420 = vsel %vm1241, %v1387, 0.0
        %v1421 = vrot.slane %v1420, 4
        %v1422 = vadd.f32 %v1420, %v1421
        %v1423 = vrot.slane %v1422, 2
        %v1424 = vadd.f32 %v1422, %v1423
        %v1425 = vrot.slane %v1424, 1
        %v1426 = vadd.f32 %v1424, %v1425
        %v1427 = vsel %vm1241, %v1388, 0.0
        %v1428 = vrot.slane %v1427, 4
        %v1429 = vadd.f32 %v1427, %v1428
        %v1430 = vrot.slane %v1429, 2
        %v1431 = vadd.f32 %v1429, %v1430
        %v1432 = vrot.slane %v1431, 1
        %v1433 = vadd.f32 %v1431, %v1432
        %v1434 = vsel %vm1241, %v1389, 0.0
        %v1435 = vrot.slane %v1434, 4
        %v1436 = vadd.f32 %v1434, %v1435
        %v1437 = vrot.slane %v1436, 2
        %v1438 = vadd.f32 %v1436, %v1437
        %v1439 = vrot.slane %v1438, 1
        %v1440 = vadd.f32 %v1438, %v1439
        %v1441 = vsel %vm1241, %v1390, 0.0
        %v1442 = vrot.slane %v1441, 4
        %v1443 = vadd.f32 %v1441, %v1442
        %v1444 = vrot.slane %v1443, 2
        %v1445 = vadd.f32 %v1443, %v1444
        %v1446 = vrot.slane %v1445, 1
        %v1447 = vadd.f32 %v1445, %v1446
        %v1448 = vsel %vm1241, %v1391, 0.0
        %v1449 = vrot.slane %v1448, 4
        %v1450 = vadd.f32 %v1448, %v1449
        %v1451 = vrot.slane %v1450, 2
        %v1452 = vadd.f32 %v1450, %v1451
        %v1453 = vrot.slane %v1452, 1
        %v1454 = vadd.f32 %v1452, %v1453
        %v1455 = vsel %vm1241, %v1392, 0.0
        %v1456 = vrot.slane %v1455, 4
        %v1457 = vadd.f32 %v1455, %v1456
        %v1458 = vrot.slane %v1457, 2
        %v1459 = vadd.f32 %v1457, %v1458
        %v1460 = vrot.slane %v1459, 1
        %v1461 = vadd.f32 %v1459, %v1460
        %v1462 = vsel %vm1241, %v1393, 0.0
        %v1463 = vrot.slane %v1462, 4
        %v1464 = vadd.f32 %v1462, %v1463
        %v1465 = vrot.slane %v1464, 2
        %v1466 = vadd.f32 %v1464, %v1465
        %v1467 = vrot.slane %v1466, 1
        %v1468 = vadd.f32 %v1466, %v1467
        %v1469 = vsel %vm1241, %v1394, 0.0
        %v1470 = vrot.slane %v1469, 4
        %v1471 = vadd.f32 %v1469, %v1470
        %v1472 = vrot.slane %v1471, 2
        %v1473 = vadd.f32 %v1471, %v1472
        %v1474 = vrot.slane %v1473, 1
        %v1475 = vadd.f32 %v1473, %v1474
        %v1476 = vsel %vm1241, %v1395, 0.0
        %v1477 = vrot.slane %v1476, 4
        %v1478 = vadd.f32 %v1476, %v1477
        %v1479 = vrot.slane %v1478, 2
        %v1480 = vadd.f32 %v1478, %v1479
        %v1481 = vrot.slane %v1480, 1
        %v1482 = vadd.f32 %v1480, %v1481
        %v1483 = vsel %vm1241, %v1396, 0.0
        %v1484 = vrot.slane %v1483, 4
        %v1485 = vadd.f32 %v1483, %v1484
        %v1486 = vrot.slane %v1485, 2
        %v1487 = vadd.f32 %v1485, %v1486
        %v1488 = vrot.slane %v1487, 1
        %v1489 = vadd.f32 %v1487, %v1488
        %v1490 = vsel %vm1241, %v1397, 0.0
        %v1491 = vrot.slane %v1490, 4
        %v1492 = vadd.f32 %v1490, %v1491
        %v1493 = vrot.slane %v1492, 2
        %v1494 = vadd.f32 %v1492, %v1493
        %v1495 = vrot.slane %v1494, 1
        %v1496 = vadd.f32 %v1494, %v1495
        %v1497 = vsel %vm1241, %v1398, 0.0
        %v1498 = vrot.slane %v1497, 4
        %v1499 = vadd.f32 %v1497, %v1498
        %v1500 = vrot.slane %v1499, 2
        %v1501 = vadd.f32 %v1499, %v1500
        %v1502 = vrot.slane %v1501, 1
        %v1503 = vadd.f32 %v1501, %v1502
        %v1504 = vmul.f32 %v1405, %v1353
        %v1505 = vmul.f32 %v1412, %v1353
        %v1506 = vmul.f32 %v1419, %v1353
        %v1507 = vmul.f32 %v1426, %v1353
        %v1508 = vmul.f32 %v1433, %v1353
        %v1509 = vmul.f32 %v1440, %v1353
        %v1510 = vmul.f32 %v1447, %v1353
        %v1511 = vmul.f32 %v1454, %v1353
        %v1512 = vmul.f32 %v1461, %v1353
        %v1513 = vmul.f32 %v1468, %v1353
        %v1514 = vmul.f32 %v1475, %v1353
        %v1515 = vmul.f32 %v1482, %v1353
        %v1516 = vmul.f32 %v1489, %v1353
        %v1517 = vmul.f32 %v1496, %v1353
        %v1518 = vmul.f32 %v1503, %v1353
        %v1519 = vadd.f32 %v1504, 1e-05
        %v1520 = vadd.f32 %v1505, 1e-05
        %v1521 = vadd.f32 %v1506, 1e-05
        %v1522 = vadd.f32 %v1507, 1e-05
        %v1523 = vadd.f32 %v1508, 1e-05
        %v1524 = vadd.f32 %v1509, 1e-05
        %v1525 = vadd.f32 %v1510, 1e-05
        %v1526 = vadd.f32 %v1511, 1e-05
        %v1527 = vadd.f32 %v1512, 1e-05
        %v1528 = vadd.f32 %v1513, 1e-05
        %v1529 = vadd.f32 %v1514, 1e-05
        %v1530 = vadd.f32 %v1515, 1e-05
        %v1531 = vadd.f32 %v1516, 1e-05
        %v1532 = vadd.f32 %v1517, 1e-05
        %v1533 = vadd.f32 %v1518, 1e-05
        %v1534 = vrsqrt.pop %v1519
        %v1535 = vmul.f32 %v1534, %v1519
        %v1536 = vmul.f32 %v1535, %v1534
        %v1537 = vmul.f32 0.5, %v1536
        %v1538 = vsub.f32 1.5, %v1537
        %v1539 = vmul.f32 %v1534, %v1538
        %vm1540 = vweird.f32 %v1519
        %vm1541 = vweird.f32 %v1534
        %vm1542 = vmor %vm1540, %vm1541
        %v1543 = vsel %vm1542, %v1534, %v1539
        %v1544 = vrsqrt.pop %v1520
        %v1545 = vmul.f32 %v1544, %v1520
        %v1546 = vmul.f32 %v1545, %v1544
        %v1547 = vmul.f32 0.5, %v1546
        %v1548 = vsub.f32 1.5, %v1547
        %v1549 = vmul.f32 %v1544, %v1548
        %vm1550 = vweird.f32 %v1520
        %vm1551 = vweird.f32 %v1544
        %vm1552 = vmor %vm1550, %vm1551
        %v1553 = vsel %vm1552, %v1544, %v1549
        %v1554 = vrsqrt.pop %v1521
        %v1555 = vmul.f32 %v1554, %v1521
        %v1556 = vmul.f32 %v1555, %v1554
        %v1557 = vmul.f32 0.5, %v1556
        %v1558 = vsub.f32 1.5, %v1557
        %v1559 = vmul.f32 %v1554, %v1558
        %vm1560 = vweird.f32 %v1521
        %vm1561 = vweird.f32 %v1554
        %vm1562 = vmor %vm1560, %vm1561
        %v1563 = vsel %vm1562, %v1554, %v1559
        %v1564 = vrsqrt.pop %v1522
        %v1565 = vmul.f32 %v1564, %v1522
        %v1566 = vmul.f32 %v1565, %v1564
        %v1567 = vmul.f32 0.5, %v1566
        %v1568 = vsub.f32 1.5, %v1567
        %v1569 = vmul.f32 %v1564, %v1568
        %vm1570 = vweird.f32 %v1522
        %vm1571 = vweird.f32 %v1564
        %vm1572 = vmor %vm1570, %vm1571
        %v1573 = vsel %vm1572, %v1564, %v1569
        %v1574 = vrsqrt.pop %v1523
        %v1575 = vmul.f32 %v1574, %v1523
        %v1576 = vmul.f32 %v1575, %v1574
        %v1577 = vmul.f32 0.5, %v1576
        %v1578 = vsub.f32 1.5, %v1577
        %v1579 = vmul.f32 %v1574, %v1578
        %vm1580 = vweird.f32 %v1523
        %vm1581 = vweird.f32 %v1574
        %vm1582 = vmor %vm1580, %vm1581
        %v1583 = vsel %vm1582, %v1574, %v1579
        %v1584 = vrsqrt.pop %v1524
        %v1585 = vmul.f32 %v1584, %v1524
        %v1586 = vmul.f32 %v1585, %v1584
        %v1587 = vmul.f32 0.5, %v1586
        %v1588 = vsub.f32 1.5, %v1587
        %v1589 = vmul.f32 %v1584, %v1588
        %vm1590 = vweird.f32 %v1524
        %vm1591 = vweird.f32 %v1584
        %vm1592 = vmor %vm1590, %vm1591
        %v1593 = vsel %vm1592, %v1584, %v1589
        %v1594 = vrsqrt.pop %v1525
        %v1595 = vmul.f32 %v1594, %v1525
        %v1596 = vmul.f32 %v1595, %v1594
        %v1597 = vmul.f32 0.5, %v1596
        %v1598 = vsub.f32 1.5, %v1597
        %v1599 = vmul.f32 %v1594, %v1598
        %vm1600 = vweird.f32 %v1525
        %vm1601 = vweird.f32 %v1594
        %vm1602 = vmor %vm1600, %vm1601
        %v1603 = vsel %vm1602, %v1594, %v1599
        %v1604 = vrsqrt.pop %v1526
        %v1605 = vmul.f32 %v1604, %v1526
        %v1606 = vmul.f32 %v1605, %v1604
        %v1607 = vmul.f32 0.5, %v1606
        %v1608 = vsub.f32 1.5, %v1607
        %v1609 = vmul.f32 %v1604, %v1608
        %vm1610 = vweird.f32 %v1526
        %vm1611 = vweird.f32 %v1604
        %vm1612 = vmor %vm1610, %vm1611
        %v1613 = vsel %vm1612, %v1604, %v1609
        %v1614 = vrsqrt.pop %v1527
        %v1615 = vmul.f32 %v1614, %v1527
        %v1616 = vmul.f32 %v1615, %v1614
        %v1617 = vmul.f32 0.5, %v1616
        %v1618 = vsub.f32 1.5, %v1617
        %v1619 = vmul.f32 %v1614, %v1618
        %vm1620 = vweird.f32 %v1527
        %vm1621 = vweird.f32 %v1614
        %vm1622 = vmor %vm1620, %vm1621
        %v1623 = vsel %vm1622, %v1614, %v1619
        %v1624 = vrsqrt.pop %v1528
        %v1625 = vmul.f32 %v1624, %v1528
        %v1626 = vmul.f32 %v1625, %v1624
        %v1627 = vmul.f32 0.5, %v1626
        %v1628 = vsub.f32 1.5, %v1627
        %v1629 = vmul.f32 %v1624, %v1628
        %vm1630 = vweird.f32 %v1528
        %vm1631 = vweird.f32 %v1624
        %vm1632 = vmor %vm1630, %vm1631
        %v1633 = vsel %vm1632, %v1624, %v1629
        %v1634 = vrsqrt.pop %v1529
        %v1635 = vmul.f32 %v1634, %v1529
        %v1636 = vmul.f32 %v1635, %v1634
        %v1637 = vmul.f32 0.5, %v1636
        %v1638 = vsub.f32 1.5, %v1637
        %v1639 = vmul.f32 %v1634, %v1638
        %vm1640 = vweird.f32 %v1529
        %vm1641 = vweird.f32 %v1634
        %vm1642 = vmor %vm1640, %vm1641
        %v1643 = vsel %vm1642, %v1634, %v1639
        %v1644 = vrsqrt.pop %v1530
        %v1645 = vmul.f32 %v1644, %v1530
        %v1646 = vmul.f32 %v1645, %v1644
        %v1647 = vmul.f32 0.5, %v1646
        %v1648 = vsub.f32 1.5, %v1647
        %v1649 = vmul.f32 %v1644, %v1648
        %vm1650 = vweird.f32 %v1530
        %vm1651 = vweird.f32 %v1644
        %vm1652 = vmor %vm1650, %vm1651
        %v1653 = vsel %vm1652, %v1644, %v1649
        %v1654 = vrsqrt.pop %v1531
        %v1655 = vmul.f32 %v1654, %v1531
        %v1656 = vmul.f32 %v1655, %v1654
        %v1657 = vmul.f32 0.5, %v1656
        %v1658 = vsub.f32 1.5, %v1657
        %v1659 = vmul.f32 %v1654, %v1658
        %vm1660 = vweird.f32 %v1531
        %vm1661 = vweird.f32 %v1654
        %vm1662 = vmor %vm1660, %vm1661
        %v1663 = vsel %vm1662, %v1654, %v1659
        %v1664 = vrsqrt.pop %v1532
        %v1665 = vmul.f32 %v1664, %v1532
        %v1666 = vmul.f32 %v1665, %v1664
        %v1667 = vmul.f32 0.5, %v1666
        %v1668 = vsub.f32 1.5, %v1667
        %v1669 = vmul.f32 %v1664, %v1668
        %vm1670 = vweird.f32 %v1532
        %vm1671 = vweird.f32 %v1664
        %vm1672 = vmor %vm1670, %vm1671
        %v1673 = vsel %vm1672, %v1664, %v1669
        %v1674 = vrsqrt.pop %v1533
        %v1675 = vmul.f32 %v1674, %v1533
        %v1676 = vmul.f32 %v1675, %v1674
        %v1677 = vmul.f32 0.5, %v1676
        %v1678 = vsub.f32 1.5, %v1677
        %v1679 = vmul.f32 %v1674, %v1678
        %vm1680 = vweird.f32 %v1533
        %vm1681 = vweird.f32 %v1674
        %vm1682 = vmor %vm1680, %vm1681
        %v1683 = vsel %vm1682, %v1674, %v1679
        %v1684 = vmul.f32 %v1369, %v1543
        %v1685 = vmul.f32 %v1370, %v1553
        %v1686 = vmul.f32 %v1371, %v1563
        %v1687 = vmul.f32 %v1372, %v1573
        %v1688 = vmul.f32 %v1373, %v1583
        %v1689 = vmul.f32 %v1374, %v1593
        %v1690 = vmul.f32 %v1375, %v1603
        %v1691 = vmul.f32 %v1376, %v1613
        %v1692 = vmul.f32 %v1377, %v1623
        %v1693 = vmul.f32 %v1378, %v1633
        %v1694 = vmul.f32 %v1379, %v1643
        %v1695 = vmul.f32 %v1380, %v1653
        %v1696 = vmul.f32 %v1381, %v1663
        %v1697 = vmul.f32 %v1382, %v1673
        %v1698 = vmul.f32 %v1383, %v1683
        %v1701 = vperm.slane %v1237, 0
        %v1702 = vperm.slane %v1237, 1
        %v1703 = vperm.slane %v1237, 2
        %v1704 = vperm.slane %v1237, 3
        %v1705 = vperm.slane %v1237, 4
        %v1706 = vperm.slane %v1237, 5
        %v1707 = vperm.slane %v1237, 6
        %v1708 = vperm.slane %v1237, 7
        %v1709 = vperm.slane %v1238, 0
        %v1710 = vperm.slane %v1238, 1
        %v1711 = vperm.slane %v1238, 2
        %v1712 = vperm.slane %v1238, 3
        %v1713 = vperm.slane %v1238, 4
        %v1714 = vperm.slane %v1238, 5
        %v1715 = vperm.slane %v1238, 6
        %v1731 = vmul.f32 %v1684, %v1701
        %v1732 = vmul.f32 %v1685, %v1702
        %v1733 = vmul.f32 %v1686, %v1703
        %v1734 = vmul.f32 %v1687, %v1704
        %v1735 = vmul.f32 %v1688, %v1705
        %v1736 = vmul.f32 %v1689, %v1706
        %v1737 = vmul.f32 %v1690, %v1707
        %v1738 = vmul.f32 %v1691, %v1708
        %v1739 = vmul.f32 %v1692, %v1709
        %v1740 = vmul.f32 %v1693, %v1710
        %v1741 = vmul.f32 %v1694, %v1711
        %v1742 = vmul.f32 %v1695, %v1712
        %v1743 = vmul.f32 %v1696, %v1713
        %v1744 = vmul.f32 %v1697, %v1714
        %v1745 = vmul.f32 %v1698, %v1715
        %v1748 = vperm.slane %v1239, 0
        %v1749 = vperm.slane %v1239, 1
        %v1750 = vperm.slane %v1239, 2
        %v1751 = vperm.slane %v1239, 3
        %v1752 = vperm.slane %v1239, 4
        %v1753 = vperm.slane %v1239, 5
        %v1754 = vperm.slane %v1239, 6
        %v1755 = vperm.slane %v1239, 7
        %v1756 = vperm.slane %v1240, 0
        %v1757 = vperm.slane %v1240, 1
        %v1758 = vperm.slane %v1240, 2
        %v1759 = vperm.slane %v1240, 3
        %v1760 = vperm.slane %v1240, 4
        %v1761 = vperm.slane %v1240, 5
        %v1762 = vperm.slane %v1240, 6
        %v1778 = vadd.f32 %v1731, %v1748
        %v1779 = vadd.f32 %v1732, %v1749
        %v1780 = vadd.f32 %v1733, %v1750
        %v1781 = vadd.f32 %v1734, %v1751
        %v1782 = vadd.f32 %v1735, %v1752
        %v1783 = vadd.f32 %v1736, %v1753
        %v1784 = vadd.f32 %v1737, %v1754
        %v1785 = vadd.f32 %v1738, %v1755
        %v1786 = vadd.f32 %v1739, %v1756
        %v1787 = vadd.f32 %v1740, %v1757
        %v1788 = vadd.f32 %v1741, %v1758
        %v1789 = vadd.f32 %v1742, %v1759
        %v1790 = vadd.f32 %v1743, %v1760
        %v1791 = vadd.f32 %v1744, %v1761
        %v1792 = vadd.f32 %v1745, %v1762
        %v1793 = vmax.f32 %v1778, 0.0
        %v1794 = vmax.f32 %v1779, 0.0
        %v1795 = vmax.f32 %v1780, 0.0
        %v1796 = vmax.f32 %v1781, 0.0
        %v1797 = vmax.f32 %v1782, 0.0
        %v1798 = vmax.f32 %v1783, 0.0
        %v1799 = vmax.f32 %v1784, 0.0
        %v1800 = vmax.f32 %v1785, 0.0
        %v1801 = vmax.f32 %v1786, 0.0
        %v1802 = vmax.f32 %v1787, 0.0
        %v1803 = vmax.f32 %v1788, 0.0
        %v1804 = vmax.f32 %v1789, 0.0
        %v1805 = vmax.f32 %v1790, 0.0
        %v1806 = vmax.f32 %v1791, 0.0
        %v1807 = vmax.f32 %v1792, 0.0
        %v1808 = vld [vmem:[%s5] sm:$0xff]
        %v1809 = vld [vmem:[%s5 + $0x8] sm:$0xff]
        %v1810 = vld [vmem:[%s5 + $0x10] sm:$0xf]
        %v1811 = vld [vmem:[%s5 + $0x14] sm:$0xff]
        %v1812 = vld [vmem:[%s5 + $0x1c] sm:$0xff]
        %v1813 = vld [vmem:[%s5 + $0x24] sm:$0xf]
        %v1814 = vld [vmem:[%s5 + $0x28] sm:$0xff]
        %v1815 = vld [vmem:[%s5 + $0x30] sm:$0xff]
        %v1816 = vld [vmem:[%s5 + $0x38] sm:$0xf]
        %v1817 = vld [vmem:[%s5 + $0x3c] sm:$0xff]
        %v1818 = vld [vmem:[%s5 + $0x44] sm:$0xff]
        %v1819 = vld [vmem:[%s5 + $0x4c] sm:$0xf]
        %v1820 = vld [vmem:[%s5 + $0x50] sm:$0xff]
        %v1821 = vld [vmem:[%s5 + $0x58] sm:$0xff]
        %v1822 = vld [vmem:[%s5 + $0x60] sm:$0xf]
        %v1823 = vld [vmem:[%s5 + $0x64] sm:$0xff]
        %v1824 = vld [vmem:[%s5 + $0x6c] sm:$0xff]
        %v1825 = vld [vmem:[%s5 + $0x74] sm:$0xf]
        %v1826 = vld [vmem:[%s5 + $0x78] sm:$0xff]
        %v1827 = vld [vmem:[%s5 + $0x80] sm:$0xff]
        %v1828 = vld [vmem:[%s5 + $0x88] sm:$0xf]
        %v1829 = vld [vmem:[%s5 + $0x8c] sm:$0xff]
        %v1830 = vld [vmem:[%s5 + $0x94] sm:$0xff]
        %v1831 = vld [vmem:[%s5 + $0x9c] sm:$0xf]
        %v1832 = vld [vmem:[%s5 + $0xa0] sm:$0xff]
        %v1833 = vld [vmem:[%s5 + $0xa8] sm:$0xff]
        %v1834 = vld [vmem:[%s5 + $0xb0] sm:$0xf]
        %v1835 = vld [vmem:[%s5 + $0xb4] sm:$0xff]
        %v1836 = vld [vmem:[%s5 + $0xbc] sm:$0xff]
        %v1837 = vld [vmem:[%s5 + $0xc4] sm:$0xf]
        %v1838 = vld [vmem:[%s5 + $0xc8] sm:$0xff]
        %v1839 = vld [vmem:[%s5 + $0xd0] sm:$0xff]
        %v1840 = vld [vmem:[%s5 + $0xd8] sm:$0xf]
        %v1841 = vld [vmem:[%s5 + $0xdc] sm:$0xff]
        %v1842 = vld [vmem:[%s5 + $0xe4] sm:$0xff]
        %v1843 = vld [vmem:[%s5 + $0xec] sm:$0xf]
        %v1844 = vld [vmem:[%s5 + $0xf0] sm:$0xff]
        %v1845 = vld [vmem:[%s5 + $0xf8] sm:$0xff]
        %v1846 = vld [vmem:[%s5 + $0x100] sm:$0xf]
        %v1847 = vld [vmem:[%s5 + $0x104] sm:$0xff]
        %v1848 = vld [vmem:[%s5 + $0x10c] sm:$0xff]
        %v1849 = vld [vmem:[%s5 + $0x114] sm:$0xf]
        %v1850 = vld [vmem:[%s5 + $0x118] sm:$0xff]
        %v1851 = vld [vmem:[%s5 + $0x120] sm:$0xff]
        %v1852 = vld [vmem:[%s5 + $0x128] sm:$0xf]
        %v1853 = vld [vmem:[%s5 + $0x12c] sm:$0xff]
        %v1854 = vld [vmem:[%s5 + $0x134] sm:$0xff]
        %v1855 = vld [vmem:[%s5 + $0x13c] sm:$0xf]
        %v1856 = vld [vmem:[%s5 + $0x140] sm:$0xff]
        %v1857 = vld [vmem:[%s5 + $0x148] sm:$0xff]
        %v1858 = vld [vmem:[%s5 + $0x150] sm:$0xf]
        %v1859 = vld [vmem:[%s5 + $0x154] sm:$0xff]
        %v1860 = vld [vmem:[%s5 + $0x15c] sm:$0xff]
        %v1861 = vld [vmem:[%s5 + $0x164] sm:$0xf]
        %v1862 = vld [vmem:[%s5 + $0x168] sm:$0xff]
        %v1863 = vld [vmem:[%s5 + $0x170] sm:$0xff]
        %v1864 = vld [vmem:[%s5 + $0x178] sm:$0xf]
        %v1865 = vld [vmem:[%s5 + $0x17c] sm:$0xff]
        %v1866 = vld [vmem:[%s5 + $0x184] sm:$0xff]
        %v1867 = vld [vmem:[%s5 + $0x18c] sm:$0xf]
        %v1868 = vld [vmem:[%s5 + $0x190] sm:$0xff]
        %v1869 = vld [vmem:[%s5 + $0x198] sm:$0xff]
        %v1870 = vld [vmem:[%s5 + $0x1a0] sm:$0xf]
        %v1871 = vld [vmem:[%s5 + $0x1a4] sm:$0xff]
        %v1872 = vld [vmem:[%s5 + $0x1ac] sm:$0xff]
        %v1873 = vld [vmem:[%s5 + $0x1b4] sm:$0xf]
        %v1874 = vld [vmem:[%s5 + $0x1b8] sm:$0xff]
        %v1875 = vld [vmem:[%s5 + $0x1c0] sm:$0xff]
        %v1876 = vld [vmem:[%s5 + $0x1c8] sm:$0xf]
        %v1877 = vld [vmem:[%s5 + $0x1cc] sm:$0xff]
        %v1878 = vld [vmem:[%s5 + $0x1d4] sm:$0xff]
        %v1879 = vld [vmem:[%s5 + $0x1dc] sm:$0xf]
        %v1880 = vld [vmem:[%s5 + $0x1e0] sm:$0xff]
        %v1881 = vld [vmem:[%s5 + $0x1e8] sm:$0xff]
        %v1882 = vld [vmem:[%s5 + $0x1f0] sm:$0xf]
        %v1883 = vld [vmem:[%s5 + $0x1f4] sm:$0xff]
        %v1884 = vld [vmem:[%s5 + $0x1fc] sm:$0xff]
        %v1885 = vld [vmem:[%s5 + $0x204] sm:$0xf]
        %v1886 = vld [vmem:[%s5 + $0x208] sm:$0xff]
        %v1887 = vld [vmem:[%s5 + $0x210] sm:$0xff]
        %v1888 = vld [vmem:[%s5 + $0x218] sm:$0xf]
        %v1889 = vld [vmem:[%s5 + $0x21c] sm:$0xff]
        %v1890 = vld [vmem:[%s5 + $0x224] sm:$0xff]
        %v1891 = vld [vmem:[%s5 + $0x22c] sm:$0xf]
        %v1892 = vld [vmem:[%s5 + $0x230] sm:$0xff]
        %v1893 = vld [vmem:[%s5 + $0x238] sm:$0xff]
        %v1894 = vld [vmem:[%s5 + $0x240] sm:$0xf]
        %v1895 = vld [vmem:[%s5 + $0x244] sm:$0xff]
        %v1896 = vld [vmem:[%s5 + $0x24c] sm:$0xff]
        %v1897 = vld [vmem:[%s5 + $0x254] sm:$0xf]
        %v1898 = vld [vmem:[%s5 + $0x258] sm:$0xff]
        %v1899 = vld [vmem:[%s5 + $0x260] sm:$0xff]
        %v1900 = vld [vmem:[%s5 + $0x268] sm:$0xf]
        %v1901 = vld [vmem:[%s5 + $0x26c] sm:$0xff]
        %v1902 = vld [vmem:[%s5 + $0x274] sm:$0xff]
        %v1903 = vld [vmem:[%s5 + $0x27c] sm:$0xf]
        %v1904 = vld [vmem:[%s5 + $0x280] sm:$0xff]
        %v1905 = vld [vmem:[%s5 + $0x288] sm:$0xff]
        %v1906 = vld [vmem:[%s5 + $0x290] sm:$0xf]
        %v1907 = vld [vmem:[%s5 + $0x294] sm:$0xff]
        %v1908 = vld [vmem:[%s5 + $0x29c] sm:$0xff]
        %v1909 = vld [vmem:[%s5 + $0x2a4] sm:$0xf]
        %v1910 = vld [vmem:[%s5 + $0x2a8] sm:$0xff]
        %v1911 = vld [vmem:[%s5 + $0x2b0] sm:$0xff]
        %v1912 = vld [vmem:[%s5 + $0x2b8] sm:$0xf]
        %v1913 = vld [vmem:[%s5 + $0x2bc] sm:$0xff]
        %v1914 = vld [vmem:[%s5 + $0x2c4] sm:$0xff]
        %v1915 = vld [vmem:[%s5 + $0x2cc] sm:$0xf]
        %v1916 = vld [vmem:[%s5 + $0x2d0] sm:$0xff]
        %v1917 = vld [vmem:[%s5 + $0x2d8] sm:$0xff]
        %v1918 = vld [vmem:[%s5 + $0x2e0] sm:$0xf]
        %v1919 = vld [vmem:[%s5 + $0x2e4] sm:$0xff]
        %v1920 = vld [vmem:[%s5 + $0x2ec] sm:$0xff]
        %v1921 = vld [vmem:[%s5 + $0x2f4] sm:$0xf]
        %v1922 = vld [vmem:[%s5 + $0x2f8] sm:$0xff]
        %v1923 = vld [vmem:[%s5 + $0x300] sm:$0xff]
        %v1924 = vld [vmem:[%s5 + $0x308] sm:$0xf]
        %v1925 = vld [vmem:[%s5 + $0x30c] sm:$0xff]
        %v1926 = vld [vmem:[%s5 + $0x314] sm:$0xff]
        %v1927 = vld [vmem:[%s5 + $0x31c] sm:$0xf]
        %v1928 = vld [vmem:[%s5 + $0x320] sm:$0xff]
        %v1929 = vld [vmem:[%s5 + $0x328] sm:$0xff]
        %v1930 = vld [vmem:[%s5 + $0x330] sm:$0xf]
        %v1931 = vld [vmem:[%s5 + $0x334] sm:$0xff]
        %v1932 = vld [vmem:[%s5 + $0x33c] sm:$0xff]
        %v1933 = vld [vmem:[%s5 + $0x344] sm:$0xf]
        %v1934 = vld [vmem:[%s5 + $0x348] sm:$0xff]
        %v1935 = vld [vmem:[%s5 + $0x350] sm:$0xff]
        %v1936 = vld [vmem:[%s5 + $0x358] sm:$0xf]
        %v1937 = vld [vmem:[%s5 + $0x35c] sm:$0xff]
        %v1938 = vld [vmem:[%s5 + $0x364] sm:$0xff]
        %v1939 = vld [vmem:[%s5 + $0x36c] sm:$0xf]
        %v1940 = vld [vmem:[%s5 + $0x370] sm:$0xff]
        %v1941 = vld [vmem:[%s5 + $0x378] sm:$0xff]
        %v1942 = vld [vmem:[%s5 + $0x380] sm:$0xf]
        %v1943 = vld [vmem:[%s5 + $0x384] sm:$0xff]
        %v1944 = vld [vmem:[%s5 + $0x38c] sm:$0xff]
        %v1945 = vld [vmem:[%s5 + $0x394] sm:$0xf]
        %v1946 = vld [vmem:[%s5 + $0x398] sm:$0xff]
        %v1947 = vld [vmem:[%s5 + $0x3a0] sm:$0xff]
        %v1948 = vld [vmem:[%s5 + $0x3a8] sm:$0xf]
        %v1949 = vld [vmem:[%s5 + $0x3ac] sm:$0xff]
        %v1950 = vld [vmem:[%s5 + $0x3b4] sm:$0xff]
        %v1951 = vld [vmem:[%s5 + $0x3bc] sm:$0xf]
        %v1952 = vld [vmem:[%s5 + $0x3c0] sm:$0xff]
        %v1953 = vld [vmem:[%s5 + $0x3c8] sm:$0xff]
        %v1954 = vld [vmem:[%s5 + $0x3d0] sm:$0xf]
        %v1955 = vld [vmem:[%s5 + $0x3d4] sm:$0xff]
        %v1956 = vld [vmem:[%s5 + $0x3dc] sm:$0xff]
        %v1957 = vld [vmem:[%s5 + $0x3e4] sm:$0xf]
        %v1958 = vld [vmem:[%s5 + $0x3e8] sm:$0xff]
        %v1959 = vld [vmem:[%s5 + $0x3f0] sm:$0xff]
        %v1960 = vld [vmem:[%s5 + $0x3f8] sm:$0xf]
        %v1961 = vld [vmem:[%s5 + $0x3fc] sm:$0xff]
        %v1962 = vld [vmem:[%s5 + $0x404] sm:$0xff]
        %v1963 = vld [vmem:[%s5 + $0x40c] sm:$0xf]
        %v1964 = vld [vmem:[%s5 + $0x410] sm:$0xff]
        %v1965 = vld [vmem:[%s5 + $0x418] sm:$0xff]
        %v1966 = vld [vmem:[%s5 + $0x420] sm:$0xf]
        %v1967 = vld [vmem:[%s5 + $0x424] sm:$0xff]
        %v1968 = vld [vmem:[%s5 + $0x42c] sm:$0xff]
        %v1969 = vld [vmem:[%s5 + $0x434] sm:$0xf]
        %v1970 = vld [vmem:[%s5 + $0x438] sm:$0xff]
        %v1971 = vld [vmem:[%s5 + $0x440] sm:$0xff]
        %v1972 = vld [vmem:[%s5 + $0x448] sm:$0xf]
        %v1973 = vld [vmem:[%s5 + $0x44c] sm:$0xff]
        %v1974 = vld [vmem:[%s5 + $0x454] sm:$0xff]
        %v1975 = vld [vmem:[%s5 + $0x45c] sm:$0xf]
        %v1976 = vld [vmem:[%s5 + $0x460] sm:$0xff]
        %v1977 = vld [vmem:[%s5 + $0x468] sm:$0xff]
        %v1978 = vld [vmem:[%s5 + $0x470] sm:$0xf]
        %v1979 = vld [vmem:[%s5 + $0x474] sm:$0xff]
        %v1980 = vld [vmem:[%s5 + $0x47c] sm:$0xff]
        %v1981 = vld [vmem:[%s5 + $0x484] sm:$0xf]
        %v1982 = vld [vmem:[%s5 + $0x488] sm:$0xff]
        %v1983 = vld [vmem:[%s5 + $0x490] sm:$0xff]
        %v1984 = vld [vmem:[%s5 + $0x498] sm:$0xf]
        %v1985 = vld [vmem:[%s5 + $0x49c] sm:$0xff]
        %v1986 = vld [vmem:[%s5 + $0x4a4] sm:$0xff]
        %v1987 = vld [vmem:[%s5 + $0x4ac] sm:$0xf]
        %v1988 = vld [vmem:[%s5 + $0x4b0] sm:$0xff]
        %v1989 = vld [vmem:[%s5 + $0x4b8] sm:$0xff]
        %v1990 = vld [vmem:[%s5 + $0x4c0] sm:$0xf]
        %v1991 = vld [vmem:[%s5 + $0x4c4] sm:$0xff]
        %v1992 = vld [vmem:[%s5 + $0x4cc] sm:$0xff]
        %v1993 = vld [vmem:[%s5 + $0x4d4] sm:$0xf]
        %v1994 = vld [vmem:[%s5 + $0x4d8] sm:$0xff]
        %v1995 = vld [vmem:[%s5 + $0x4e0] sm:$0xff]
        %v1996 = vld [vmem:[%s5 + $0x4e8] sm:$0xf]
        %v1997 = vld [vmem:[%s5 + $0x4ec] sm:$0xff]
        %v1998 = vld [vmem:[%s5 + $0x4f4] sm:$0xff]
        %v1999 = vld [vmem:[%s5 + $0x4fc] sm:$0xf]
        %v2000 = vld [vmem:[%s5 + $0x500] sm:$0xff]
        %v2001 = vld [vmem:[%s5 + $0x508] sm:$0xff]
        %v2002 = vld [vmem:[%s5 + $0x510] sm:$0xf]
        %v2003 = vld [vmem:[%s5 + $0x514] sm:$0xff]
        %v2004 = vld [vmem:[%s5 + $0x51c] sm:$0xff]
        %v2005 = vld [vmem:[%s5 + $0x524] sm:$0xf]
        %v2006 = vld [vmem:[%s5 + $0x528] sm:$0xff]
        %v2007 = vld [vmem:[%s5 + $0x530] sm:$0xff]
        %v2008 = vld [vmem:[%s5 + $0x538] sm:$0xf]
        %v2009 = vld [vmem:[%s5 + $0x53c] sm:$0xff]
        %v2010 = vld [vmem:[%s5 + $0x544] sm:$0xff]
        %v2011 = vld [vmem:[%s5 + $0x54c] sm:$0xf]
        %v2012 = vld [vmem:[%s5 + $0x550] sm:$0xff]
        %v2013 = vld [vmem:[%s5 + $0x558] sm:$0xff]
        %v2014 = vld [vmem:[%s5 + $0x560] sm:$0xf]
        %v2015 = vld [vmem:[%s5 + $0x564] sm:$0xff]
        %v2016 = vld [vmem:[%s5 + $0x56c] sm:$0xff]
        %v2017 = vld [vmem:[%s5 + $0x574] sm:$0xf]
        %v2018 = vld [vmem:[%s5 + $0x578] sm:$0xff]
        %v2019 = vld [vmem:[%s5 + $0x580] sm:$0xff]
        %v2020 = vld [vmem:[%s5 + $0x588] sm:$0xf]
        %v2021 = vld [vmem:[%s5 + $0x58c] sm:$0xff]
        %v2022 = vld [vmem:[%s5 + $0x594] sm:$0xff]
        %v2023 = vld [vmem:[%s5 + $0x59c] sm:$0xf]
        %v2024 = vld [vmem:[%s5 + $0x5a0] sm:$0xff]
        %v2025 = vld [vmem:[%s5 + $0x5a8] sm:$0xff]
        %v2026 = vld [vmem:[%s5 + $0x5b0] sm:$0xf]
        %v2027 = vld [vmem:[%s5 + $0x5b4] sm:$0xff]
        %v2028 = vld [vmem:[%s5 + $0x5bc] sm:$0xff]
        %v2029 = vld [vmem:[%s5 + $0x5c4] sm:$0xf]
        %v2030 = vld [vmem:[%s5 + $0x5c8] sm:$0xff]
        %v2031 = vld [vmem:[%s5 + $0x5d0] sm:$0xff]
        %v2032 = vld [vmem:[%s5 + $0x5d8] sm:$0xf]
        %v2033 = vld [vmem:[%s5 + $0x5dc] sm:$0xff]
        %v2034 = vld [vmem:[%s5 + $0x5e4] sm:$0xff]
        %v2035 = vld [vmem:[%s5 + $0x5ec] sm:$0xf]
        %v2036 = vld [vmem:[%s5 + $0x5f0] sm:$0xff]
        %v2037 = vld [vmem:[%s5 + $0x5f8] sm:$0xff]
        %v2038 = vld [vmem:[%s5 + $0x600] sm:$0xf]
        %v2039 = vld [vmem:[%s5 + $0x604] sm:$0xff]
        %v2040 = vld [vmem:[%s5 + $0x60c] sm:$0xff]
        %v2041 = vld [vmem:[%s5 + $0x614] sm:$0xf]
        %v2042 = vld [vmem:[%s5 + $0x618] sm:$0xff]
        %v2043 = vld [vmem:[%s5 + $0x620] sm:$0xff]
        %v2044 = vld [vmem:[%s5 + $0x628] sm:$0xf]
        %v2045 = vld [vmem:[%s5 + $0x62c] sm:$0xff]
        %v2046 = vld [vmem:[%s5 + $0x634] sm:$0xff]
        %v2047 = vld [vmem:[%s5 + $0x63c] sm:$0xf]
        %v2048 = vpack.c.bf16 %v1793, %v1793
        %v2049 = vpack.c.bf16 %v1794, %v1794
        %v2050 = vpack.c.bf16 %v1795, %v1795
        %v2051 = vpack.c.bf16 %v1796, %v1796
        %v2052 = vpack.c.bf16 %v1797, %v1797
        %v2053 = vld [vmem:[%s6] sm:$0x1f]
        %v2055 = vperm.slane %v2053, 0
        %v2056 = vperm.slane %v2053, 1
        %v2057 = vperm.slane %v2053, 2
        %v2058 = vperm.slane %v2053, 3
        %v2059 = vperm.slane %v2053, 4
        %v2305 = vunpack.c.l.b16 %v1808
        %v2306 = vunpack.c.h.b16 %v1808
        %v2307 = vunpack.c.l.b16 %v1809
        %v2308 = vunpack.c.h.b16 %v1809
        %v2309 = vunpack.c.l.b16 %v1810
        %v2310 = vunpack.c.l.b16 %v1811
        %v2311 = vunpack.c.h.b16 %v1811
        %v2312 = vunpack.c.l.b16 %v1812
        %v2313 = vunpack.c.h.b16 %v1812
        %v2314 = vunpack.c.l.b16 %v1813
        %v2315 = vunpack.c.l.b16 %v1814
        %v2316 = vunpack.c.h.b16 %v1814
        %v2317 = vunpack.c.l.b16 %v1815
        %v2318 = vunpack.c.h.b16 %v1815
        %v2319 = vunpack.c.l.b16 %v1816
        %v2320 = vunpack.c.l.b16 %v1817
        %v2321 = vunpack.c.h.b16 %v1817
        %v2322 = vunpack.c.l.b16 %v1818
        %v2323 = vunpack.c.h.b16 %v1818
        %v2324 = vunpack.c.l.b16 %v1819
        %v2325 = vunpack.c.l.b16 %v1820
        %v2326 = vunpack.c.h.b16 %v1820
        %v2327 = vunpack.c.l.b16 %v1821
        %v2328 = vunpack.c.h.b16 %v1821
        %v2329 = vunpack.c.l.b16 %v1822
        %v2330 = vunpack.c.l.b16 %v1823
        %v2331 = vunpack.c.h.b16 %v1823
        %v2332 = vunpack.c.l.b16 %v1824
        %v2333 = vunpack.c.h.b16 %v1824
        %v2334 = vunpack.c.l.b16 %v1825
        %v2335 = vunpack.c.l.b16 %v1826
        %v2336 = vunpack.c.h.b16 %v1826
        %v2337 = vunpack.c.l.b16 %v1827
        %v2338 = vunpack.c.h.b16 %v1827
        %v2339 = vunpack.c.l.b16 %v1828
        %v2340 = vunpack.c.l.b16 %v1829
        %v2341 = vunpack.c.h.b16 %v1829
        %v2342 = vunpack.c.l.b16 %v1830
        %v2343 = vunpack.c.h.b16 %v1830
        %v2344 = vunpack.c.l.b16 %v1831
        %v2345 = vunpack.c.l.b16 %v1832
        %v2346 = vunpack.c.h.b16 %v1832
        %v2347 = vunpack.c.l.b16 %v1833
        %v2348 = vunpack.c.h.b16 %v1833
        %v2349 = vunpack.c.l.b16 %v1834
        %v2350 = vunpack.c.l.b16 %v1835
        %v2351 = vunpack.c.h.b16 %v1835
        %v2352 = vunpack.c.l.b16 %v1836
        %v2353 = vunpack.c.h.b16 %v1836
        %v2354 = vunpack.c.l.b16 %v1837
        %v2355 = vunpack.c.l.b16 %v1838
        %v2356 = vunpack.c.h.b16 %v1838
        %v2357 = vunpack.c.l.b16 %v1839
        %v2358 = vunpack.c.h.b16 %v1839
        %v2359 = vunpack.c.l.b16 %v1840
        %v2360 = vunpack.c.l.b16 %v1841
        %v2361 = vunpack.c.h.b16 %v1841
        %v2362 = vunpack.c.l.b16 %v1842
        %v2363 = vunpack.c.h.b16 %v1842
        %v2364 = vunpack.c.l.b16 %v1843
        %v2365 = vunpack.c.l.b16 %v1844
        %v2366 = vunpack.c.h.b16 %v1844
        %v2367 = vunpack.c.l.b16 %v1845
        %v2368 = vunpack.c.h.b16 %v1845
        %v2369 = vunpack.c.l.b16 %v1846
        %v2370 = vunpack.c.l.b16 %v1847
        %v2371 = vunpack.c.h.b16 %v1847
        %v2372 = vunpack.c.l.b16 %v1848
        %v2373 = vunpack.c.h.b16 %v1848
        %v2374 = vunpack.c.l.b16 %v1849
        %v2375 = vunpack.c.l.b16 %v1850
        %v2376 = vunpack.c.h.b16 %v1850
        %v2377 = vunpack.c.l.b16 %v1851
        %v2378 = vunpack.c.h.b16 %v1851
        %v2379 = vunpack.c.l.b16 %v1852
        %v2380 = vunpack.c.l.b16 %v1853
        %v2381 = vunpack.c.h.b16 %v1853
        %v2382 = vunpack.c.l.b16 %v1854
        %v2383 = vunpack.c.h.b16 %v1854
        %v2384 = vunpack.c.l.b16 %v1855
        %v2385 = vunpack.c.l.b16 %v1856
        %v2386 = vunpack.c.h.b16 %v1856
        %v2387 = vunpack.c.l.b16 %v1857
        %v2388 = vunpack.c.h.b16 %v1857
        %v2389 = vunpack.c.l.b16 %v1858
        %v2390 = vunpack.c.l.b16 %v1859
        %v2391 = vunpack.c.h.b16 %v1859
        %v2392 = vunpack.c.l.b16 %v1860
        %v2393 = vunpack.c.h.b16 %v1860
        %v2394 = vunpack.c.l.b16 %v1861
        %v2395 = vunpack.c.l.b16 %v1862
        %v2396 = vunpack.c.h.b16 %v1862
        %v2397 = vunpack.c.l.b16 %v1863
        %v2398 = vunpack.c.h.b16 %v1863
        %v2399 = vunpack.c.l.b16 %v1864
        %v2400 = vunpack.c.l.b16 %v1865
        %v2401 = vunpack.c.h.b16 %v1865
        %v2402 = vunpack.c.l.b16 %v1866
        %v2403 = vunpack.c.h.b16 %v1866
        %v2404 = vunpack.c.l.b16 %v1867
        %v2405 = vunpack.c.l.b16 %v1868
        %v2406 = vunpack.c.h.b16 %v1868
        %v2407 = vunpack.c.l.b16 %v1869
        %v2408 = vunpack.c.h.b16 %v1869
        %v2409 = vunpack.c.l.b16 %v1870
        %v2410 = vunpack.c.l.b16 %v1871
        %v2411 = vunpack.c.h.b16 %v1871
        %v2412 = vunpack.c.l.b16 %v1872
        %v2413 = vunpack.c.h.b16 %v1872
        %v2414 = vunpack.c.l.b16 %v1873
        %v2415 = vunpack.c.l.b16 %v1874
        %v2416 = vunpack.c.h.b16 %v1874
        %v2417 = vunpack.c.l.b16 %v1875
        %v2418 = vunpack.c.h.b16 %v1875
        %v2419 = vunpack.c.l.b16 %v1876
        %v2420 = vunpack.c.l.b16 %v1877
        %v2421 = vunpack.c.h.b16 %v1877
        %v2422 = vunpack.c.l.b16 %v1878
        %v2423 = vunpack.c.h.b16 %v1878
        %v2424 = vunpack.c.l.b16 %v1879
        %v2425 = vunpack.c.l.b16 %v1880
        %v2426 = vunpack.c.h.b16 %v1880
        %v2427 = vunpack.c.l.b16 %v1881
        %v2428 = vunpack.c.h.b16 %v1881
        %v2429 = vunpack.c.l.b16 %v1882
        %v2430 = vunpack.c.l.b16 %v1883
        %v2431 = vunpack.c.h.b16 %v1883
        %v2432 = vunpack.c.l.b16 %v1884
        %v2433 = vunpack.c.h.b16 %v1884
        %v2434 = vunpack.c.l.b16 %v1885
        %v2435 = vunpack.c.l.b16 %v1886
        %v2436 = vunpack.c.h.b16 %v1886
        %v2437 = vunpack.c.l.b16 %v1887
        %v2438 = vunpack.c.h.b16 %v1887
        %v2439 = vunpack.c.l.b16 %v1888
        %v2440 = vunpack.c.l.b16 %v1889
        %v2441 = vunpack.c.h.b16 %v1889
        %v2442 = vunpack.c.l.b16 %v1890
        %v2443 = vunpack.c.h.b16 %v1890
        %v2444 = vunpack.c.l.b16 %v1891
        %v2445 = vunpack.c.l.b16 %v1892
        %v2446 = vunpack.c.h.b16 %v1892
        %v2447 = vunpack.c.l.b16 %v1893
        %v2448 = vunpack.c.h.b16 %v1893
        %v2449 = vunpack.c.l.b16 %v1894
        %v2450 = vunpack.c.l.b16 %v1895
        %v2451 = vunpack.c.h.b16 %v1895
        %v2452 = vunpack.c.l.b16 %v1896
        %v2453 = vunpack.c.h.b16 %v1896
        %v2454 = vunpack.c.l.b16 %v1897
        %v2455 = vunpack.c.l.b16 %v1898
        %v2456 = vunpack.c.h.b16 %v1898
        %v2457 = vunpack.c.l.b16 %v1899
        %v2458 = vunpack.c.h.b16 %v1899
        %v2459 = vunpack.c.l.b16 %v1900
        %v2460 = vunpack.c.l.b16 %v1901
        %v2461 = vunpack.c.h.b16 %v1901
        %v2462 = vunpack.c.l.b16 %v1902
        %v2463 = vunpack.c.h.b16 %v1902
        %v2464 = vunpack.c.l.b16 %v1903
        %v2465 = vunpack.c.l.b16 %v1904
        %v2466 = vunpack.c.h.b16 %v1904
        %v2467 = vunpack.c.l.b16 %v1905
        %v2468 = vunpack.c.h.b16 %v1905
        %v2469 = vunpack.c.l.b16 %v1906
        %v2470 = vunpack.c.l.b16 %v1907
        %v2471 = vunpack.c.h.b16 %v1907
        %v2472 = vunpack.c.l.b16 %v1908
        %v2473 = vunpack.c.h.b16 %v1908
        %v2474 = vunpack.c.l.b16 %v1909
        %v2475 = vunpack.c.l.b16 %v1910
        %v2476 = vunpack.c.h.b16 %v1910
        %v2477 = vunpack.c.l.b16 %v1911
        %v2478 = vunpack.c.h.b16 %v1911
        %v2479 = vunpack.c.l.b16 %v1912
        %v2480 = vunpack.c.l.b16 %v1913
        %v2481 = vunpack.c.h.b16 %v1913
        %v2482 = vunpack.c.l.b16 %v1914
        %v2483 = vunpack.c.h.b16 %v1914
        %v2484 = vunpack.c.l.b16 %v1915
        %v2485 = vunpack.c.l.b16 %v1916
        %v2486 = vunpack.c.h.b16 %v1916
        %v2487 = vunpack.c.l.b16 %v1917
        %v2488 = vunpack.c.h.b16 %v1917
        %v2489 = vunpack.c.l.b16 %v1918
        %v2490 = vunpack.c.l.b16 %v1919
        %v2491 = vunpack.c.h.b16 %v1919
        %v2492 = vunpack.c.l.b16 %v1920
        %v2493 = vunpack.c.h.b16 %v1920
        %v2494 = vunpack.c.l.b16 %v1921
        %v2495 = vunpack.c.l.b16 %v1922
        %v2496 = vunpack.c.h.b16 %v1922
        %v2497 = vunpack.c.l.b16 %v1923
        %v2498 = vunpack.c.h.b16 %v1923
        %v2499 = vunpack.c.l.b16 %v1924
        %v2500 = vunpack.c.l.b16 %v1925
        %v2501 = vunpack.c.h.b16 %v1925
        %v2502 = vunpack.c.l.b16 %v1926
        %v2503 = vunpack.c.h.b16 %v1926
        %v2504 = vunpack.c.l.b16 %v1927
        %v2505 = vunpack.c.l.b16 %v1928
        %v2506 = vunpack.c.h.b16 %v1928
        %v2507 = vunpack.c.l.b16 %v1929
        %v2508 = vunpack.c.h.b16 %v1929
        %v2509 = vunpack.c.l.b16 %v1930
        %v2510 = vunpack.c.l.b16 %v1931
        %v2511 = vunpack.c.h.b16 %v1931
        %v2512 = vunpack.c.l.b16 %v1932
        %v2513 = vunpack.c.h.b16 %v1932
        %v2514 = vunpack.c.l.b16 %v1933
        %v2515 = vunpack.c.l.b16 %v1934
        %v2516 = vunpack.c.h.b16 %v1934
        %v2517 = vunpack.c.l.b16 %v1935
        %v2518 = vunpack.c.h.b16 %v1935
        %v2519 = vunpack.c.l.b16 %v1936
        %v2520 = vunpack.c.l.b16 %v1937
        %v2521 = vunpack.c.h.b16 %v1937
        %v2522 = vunpack.c.l.b16 %v1938
        %v2523 = vunpack.c.h.b16 %v1938
        %v2524 = vunpack.c.l.b16 %v1939
        %v2525 = vunpack.c.l.b16 %v1940
        %v2526 = vunpack.c.h.b16 %v1940
        %v2527 = vunpack.c.l.b16 %v1941
        %v2528 = vunpack.c.h.b16 %v1941
        %v2529 = vunpack.c.l.b16 %v1942
        %v2530 = vunpack.c.l.b16 %v1943
        %v2531 = vunpack.c.h.b16 %v1943
        %v2532 = vunpack.c.l.b16 %v1944
        %v2533 = vunpack.c.h.b16 %v1944
        %v2534 = vunpack.c.l.b16 %v1945
        %v2535 = vunpack.c.l.b16 %v1946
        %v2536 = vunpack.c.h.b16 %v1946
        %v2537 = vunpack.c.l.b16 %v1947
        %v2538 = vunpack.c.h.b16 %v1947
        %v2539 = vunpack.c.l.b16 %v1948
        %v2540 = vunpack.c.l.b16 %v1949
        %v2541 = vunpack.c.h.b16 %v1949
        %v2542 = vunpack.c.l.b16 %v1950
        %v2543 = vunpack.c.h.b16 %v1950
        %v2544 = vunpack.c.l.b16 %v1951
        %v2545 = vunpack.c.l.b16 %v1952
        %v2546 = vunpack.c.h.b16 %v1952
        %v2547 = vunpack.c.l.b16 %v1953
        %v2548 = vunpack.c.h.b16 %v1953
        %v2549 = vunpack.c.l.b16 %v1954
        %v2550 = vunpack.c.l.b16 %v1955
        %v2551 = vunpack.c.h.b16 %v1955
        %v2552 = vunpack.c.l.b16 %v1956
        %v2553 = vunpack.c.h.b16 %v1956
        %v2554 = vunpack.c.l.b16 %v1957
        %v2555 = vunpack.c.l.b16 %v1958
        %v2556 = vunpack.c.h.b16 %v1958
        %v2557 = vunpack.c.l.b16 %v1959
        %v2558 = vunpack.c.h.b16 %v1959
        %v2559 = vunpack.c.l.b16 %v1960
        %v2560 = vunpack.c.l.b16 %v1961
        %v2561 = vunpack.c.h.b16 %v1961
        %v2562 = vunpack.c.l.b16 %v1962
        %v2563 = vunpack.c.h.b16 %v1962
        %v2564 = vunpack.c.l.b16 %v1963
        %v2565 = vunpack.c.l.b16 %v1964
        %v2566 = vunpack.c.h.b16 %v1964
        %v2567 = vunpack.c.l.b16 %v1965
        %v2568 = vunpack.c.h.b16 %v1965
        %v2569 = vunpack.c.l.b16 %v1966
        %v2570 = vunpack.c.l.b16 %v1967
        %v2571 = vunpack.c.h.b16 %v1967
        %v2572 = vunpack.c.l.b16 %v1968
        %v2573 = vunpack.c.h.b16 %v1968
        %v2574 = vunpack.c.l.b16 %v1969
        %v2575 = vunpack.c.l.b16 %v1970
        %v2576 = vunpack.c.h.b16 %v1970
        %v2577 = vunpack.c.l.b16 %v1971
        %v2578 = vunpack.c.h.b16 %v1971
        %v2579 = vunpack.c.l.b16 %v1972
        %v2580 = vunpack.c.l.b16 %v1973
        %v2581 = vunpack.c.h.b16 %v1973
        %v2582 = vunpack.c.l.b16 %v1974
        %v2583 = vunpack.c.h.b16 %v1974
        %v2584 = vunpack.c.l.b16 %v1975
        %v2585 = vunpack.c.l.b16 %v1976
        %v2586 = vunpack.c.h.b16 %v1976
        %v2587 = vunpack.c.l.b16 %v1977
        %v2588 = vunpack.c.h.b16 %v1977
        %v2589 = vunpack.c.l.b16 %v1978
        %v2590 = vunpack.c.l.b16 %v1979
        %v2591 = vunpack.c.h.b16 %v1979
        %v2592 = vunpack.c.l.b16 %v1980
        %v2593 = vunpack.c.h.b16 %v1980
        %v2594 = vunpack.c.l.b16 %v1981
        %v2595 = vunpack.c.l.b16 %v1982
        %v2596 = vunpack.c.h.b16 %v1982
        %v2597 = vunpack.c.l.b16 %v1983
        %v2598 = vunpack.c.h.b16 %v1983
        %v2599 = vunpack.c.l.b16 %v1984
        %v2600 = vunpack.c.l.b16 %v1985
        %v2601 = vunpack.c.h.b16 %v1985
        %v2602 = vunpack.c.l.b16 %v1986
        %v2603 = vunpack.c.h.b16 %v1986
        %v2604 = vunpack.c.l.b16 %v1987
        %v2605 = vunpack.c.l.b16 %v1988
        %v2606 = vunpack.c.h.b16 %v1988
        %v2607 = vunpack.c.l.b16 %v1989
        %v2608 = vunpack.c.h.b16 %v1989
        %v2609 = vunpack.c.l.b16 %v1990
        %v2610 = vunpack.c.l.b16 %v1991
        %v2611 = vunpack.c.h.b16 %v1991
        %v2612 = vunpack.c.l.b16 %v1992
        %v2613 = vunpack.c.h.b16 %v1992
        %v2614 = vunpack.c.l.b16 %v1993
        %v2615 = vunpack.c.l.b16 %v1994
        %v2616 = vunpack.c.h.b16 %v1994
        %v2617 = vunpack.c.l.b16 %v1995
        %v2618 = vunpack.c.h.b16 %v1995
        %v2619 = vunpack.c.l.b16 %v1996
        %v2620 = vunpack.c.l.b16 %v1997
        %v2621 = vunpack.c.h.b16 %v1997
        %v2622 = vunpack.c.l.b16 %v1998
        %v2623 = vunpack.c.h.b16 %v1998
        %v2624 = vunpack.c.l.b16 %v1999
        %v2625 = vunpack.c.l.b16 %v2000
        %v2626 = vunpack.c.h.b16 %v2000
        %v2627 = vunpack.c.l.b16 %v2001
        %v2628 = vunpack.c.h.b16 %v2001
        %v2629 = vunpack.c.l.b16 %v2002
        %v2630 = vunpack.c.l.b16 %v2003
        %v2631 = vunpack.c.h.b16 %v2003
        %v2632 = vunpack.c.l.b16 %v2004
        %v2633 = vunpack.c.h.b16 %v2004
        %v2634 = vunpack.c.l.b16 %v2005
        %v2635 = vunpack.c.l.b16 %v2006
        %v2636 = vunpack.c.h.b16 %v2006
        %v2637 = vunpack.c.l.b16 %v2007
        %v2638 = vunpack.c.h.b16 %v2007
        %v2639 = vunpack.c.l.b16 %v2008
        %v2640 = vunpack.c.l.b16 %v2009
        %v2641 = vunpack.c.h.b16 %v2009
        %v2642 = vunpack.c.l.b16 %v2010
        %v2643 = vunpack.c.h.b16 %v2010
        %v2644 = vunpack.c.l.b16 %v2011
        %v2645 = vunpack.c.l.b16 %v2012
        %v2646 = vunpack.c.h.b16 %v2012
        %v2647 = vunpack.c.l.b16 %v2013
        %v2648 = vunpack.c.h.b16 %v2013
        %v2649 = vunpack.c.l.b16 %v2014
        %v2650 = vunpack.c.l.b16 %v2015
        %v2651 = vunpack.c.h.b16 %v2015
        %v2652 = vunpack.c.l.b16 %v2016
        %v2653 = vunpack.c.h.b16 %v2016
        %v2654 = vunpack.c.l.b16 %v2017
        %v2655 = vunpack.c.l.b16 %v2018
        %v2656 = vunpack.c.h.b16 %v2018
        %v2657 = vunpack.c.l.b16 %v2019
        %v2658 = vunpack.c.h.b16 %v2019
        %v2659 = vunpack.c.l.b16 %v2020
        %v2660 = vunpack.c.l.b16 %v2021
        %v2661 = vunpack.c.h.b16 %v2021
        %v2662 = vunpack.c.l.b16 %v2022
        %v2663 = vunpack.c.h.b16 %v2022
        %v2664 = vunpack.c.l.b16 %v2023
        %v2665 = vunpack.c.l.b16 %v2024
        %v2666 = vunpack.c.h.b16 %v2024
        %v2667 = vunpack.c.l.b16 %v2025
        %v2668 = vunpack.c.h.b16 %v2025
        %v2669 = vunpack.c.l.b16 %v2026
        %v2670 = vunpack.c.l.b16 %v2027
        %v2671 = vunpack.c.h.b16 %v2027
        %v2672 = vunpack.c.l.b16 %v2028
        %v2673 = vunpack.c.h.b16 %v2028
        %v2674 = vunpack.c.l.b16 %v2029
        %v2675 = vunpack.c.l.b16 %v2030
        %v2676 = vunpack.c.h.b16 %v2030
        %v2677 = vunpack.c.l.b16 %v2031
        %v2678 = vunpack.c.h.b16 %v2031
        %v2679 = vunpack.c.l.b16 %v2032
        %v2680 = vunpack.c.l.b16 %v2033
        %v2681 = vunpack.c.h.b16 %v2033
        %v2682 = vunpack.c.l.b16 %v2034
        %v2683 = vunpack.c.h.b16 %v2034
        %v2684 = vunpack.c.l.b16 %v2035
        %v2685 = vunpack.c.l.b16 %v2036
        %v2686 = vunpack.c.h.b16 %v2036
        %v2687 = vunpack.c.l.b16 %v2037
        %v2688 = vunpack.c.h.b16 %v2037
        %v2689 = vunpack.c.l.b16 %v2038
        %v2690 = vunpack.c.l.b16 %v2039
        %v2691 = vunpack.c.h.b16 %v2039
        %v2692 = vunpack.c.l.b16 %v2040
        %v2693 = vunpack.c.h.b16 %v2040
        %v2694 = vunpack.c.l.b16 %v2041
        %v2695 = vunpack.c.l.b16 %v2042
        %v2696 = vunpack.c.h.b16 %v2042
        %v2697 = vunpack.c.l.b16 %v2043
        %v2698 = vunpack.c.h.b16 %v2043
        %v2699 = vunpack.c.l.b16 %v2044
        %v2700 = vunpack.c.l.b16 %v2045
        %v2701 = vunpack.c.h.b16 %v2045
        %v2702 = vunpack.c.l.b16 %v2046
        %v2703 = vunpack.c.h.b16 %v2046
        %v2704 = vunpack.c.l.b16 %v2047
        %v2705 = vpack.c.b16 %v2310, %v2305
        %v2706 = vpack.c.b16 %v2311, %v2306
        %v2707 = vpack.c.b16 %v2312, %v2307
        %v2708 = vpack.c.b16 %v2313, %v2308
        %v2709 = vpack.c.b16 %v2314, %v2309
        %v2710 = vpack.c.b16 %v2320, %v2315
        %v2711 = vpack.c.b16 %v2321, %v2316
        %v2712 = vpack.c.b16 %v2322, %v2317
        %v2713 = vpack.c.b16 %v2323, %v2318
        %v2714 = vpack.c.b16 %v2324, %v2319
        %v2715 = vpack.c.b16 %v2330, %v2325
        %v2716 = vpack.c.b16 %v2331, %v2326
        %v2717 = vpack.c.b16 %v2332, %v2327
        %v2718 = vpack.c.b16 %v2333, %v2328
        %v2719 = vpack.c.b16 %v2334, %v2329
        %v2720 = vpack.c.b16 %v2340, %v2335
        %v2721 = vpack.c.b16 %v2341, %v2336
        %v2722 = vpack.c.b16 %v2342, %v2337
        %v2723 = vpack.c.b16 %v2343, %v2338
        %v2724 = vpack.c.b16 %v2344, %v2339
        %v2725 = vpack.c.b16 %v2350, %v2345
        %v2726 = vpack.c.b16 %v2351, %v2346
        %v2727 = vpack.c.b16 %v2352, %v2347
        %v2728 = vpack.c.b16 %v2353, %v2348
        %v2729 = vpack.c.b16 %v2354, %v2349
        %v2730 = vpack.c.b16 %v2360, %v2355
        %v2731 = vpack.c.b16 %v2361, %v2356
        %v2732 = vpack.c.b16 %v2362, %v2357
        %v2733 = vpack.c.b16 %v2363, %v2358
        %v2734 = vpack.c.b16 %v2364, %v2359
        %v2735 = vpack.c.b16 %v2370, %v2365
        %v2736 = vpack.c.b16 %v2371, %v2366
        %v2737 = vpack.c.b16 %v2372, %v2367
        %v2738 = vpack.c.b16 %v2373, %v2368
        %v2739 = vpack.c.b16 %v2374, %v2369
        %v2740 = vpack.c.b16 %v2380, %v2375
        %v2741 = vpack.c.b16 %v2381, %v2376
        %v2742 = vpack.c.b16 %v2382, %v2377
        %v2743 = vpack.c.b16 %v2383, %v2378
        %v2744 = vpack.c.b16 %v2384, %v2379
        %v2745 = vpack.c.b16 %v2390, %v2385
        %v2746 = vpack.c.b16 %v2391, %v2386
        %v2747 = vpack.c.b16 %v2392, %v2387
        %v2748 = vpack.c.b16 %v2393, %v2388
        %v2749 = vpack.c.b16 %v2394, %v2389
        %v2750 = vpack.c.b16 %v2400, %v2395
        %v2751 = vpack.c.b16 %v2401, %v2396
        %v2752 = vpack.c.b16 %v2402, %v2397
        %v2753 = vpack.c.b16 %v2403, %v2398
        %v2754 = vpack.c.b16 %v2404, %v2399
        %v2755 = vpack.c.b16 %v2410, %v2405
        %v2756 = vpack.c.b16 %v2411, %v2406
        %v2757 = vpack.c.b16 %v2412, %v2407
        %v2758 = vpack.c.b16 %v2413, %v2408
        %v2759 = vpack.c.b16 %v2414, %v2409
        %v2760 = vpack.c.b16 %v2420, %v2415
        %v2761 = vpack.c.b16 %v2421, %v2416
        %v2762 = vpack.c.b16 %v2422, %v2417
        %v2763 = vpack.c.b16 %v2423, %v2418
        %v2764 = vpack.c.b16 %v2424, %v2419
        %v2765 = vpack.c.b16 %v2430, %v2425
        %v2766 = vpack.c.b16 %v2431, %v2426
        %v2767 = vpack.c.b16 %v2432, %v2427
        %v2768 = vpack.c.b16 %v2433, %v2428
        %v2769 = vpack.c.b16 %v2434, %v2429
        %v2770 = vpack.c.b16 %v2440, %v2435
        %v2771 = vpack.c.b16 %v2441, %v2436
        %v2772 = vpack.c.b16 %v2442, %v2437
        %v2773 = vpack.c.b16 %v2443, %v2438
        %v2774 = vpack.c.b16 %v2444, %v2439
        %v2775 = vpack.c.b16 %v2450, %v2445
        %v2776 = vpack.c.b16 %v2451, %v2446
        %v2777 = vpack.c.b16 %v2452, %v2447
        %v2778 = vpack.c.b16 %v2453, %v2448
        %v2779 = vpack.c.b16 %v2454, %v2449
        %v2780 = vpack.c.b16 %v2460, %v2455
        %v2781 = vpack.c.b16 %v2461, %v2456
        %v2782 = vpack.c.b16 %v2462, %v2457
        %v2783 = vpack.c.b16 %v2463, %v2458
        %v2784 = vpack.c.b16 %v2464, %v2459
        %v2785 = vpack.c.b16 %v2470, %v2465
        %v2786 = vpack.c.b16 %v2471, %v2466
        %v2787 = vpack.c.b16 %v2472, %v2467
        %v2788 = vpack.c.b16 %v2473, %v2468
        %v2789 = vpack.c.b16 %v2474, %v2469
        %v2790 = vpack.c.b16 %v2480, %v2475
        %v2791 = vpack.c.b16 %v2481, %v2476
        %v2792 = vpack.c.b16 %v2482, %v2477
        %v2793 = vpack.c.b16 %v2483, %v2478
        %v2794 = vpack.c.b16 %v2484, %v2479
        %v2795 = vpack.c.b16 %v2490, %v2485
        %v2796 = vpack.c.b16 %v2491, %v2486
        %v2797 = vpack.c.b16 %v2492, %v2487
        %v2798 = vpack.c.b16 %v2493, %v2488
        %v2799 = vpack.c.b16 %v2494, %v2489
        %v2800 = vpack.c.b16 %v2500, %v2495
        %v2801 = vpack.c.b16 %v2501, %v2496
        %v2802 = vpack.c.b16 %v2502, %v2497
        %v2803 = vpack.c.b16 %v2503, %v2498
        %v2804 = vpack.c.b16 %v2504, %v2499
        %v2805 = vpack.c.b16 %v2510, %v2505
        %v2806 = vpack.c.b16 %v2511, %v2506
        %v2807 = vpack.c.b16 %v2512, %v2507
        %v2808 = vpack.c.b16 %v2513, %v2508
        %v2809 = vpack.c.b16 %v2514, %v2509
        %v2810 = vpack.c.b16 %v2520, %v2515
        %v2811 = vpack.c.b16 %v2521, %v2516
        %v2812 = vpack.c.b16 %v2522, %v2517
        %v2813 = vpack.c.b16 %v2523, %v2518
        %v2814 = vpack.c.b16 %v2524, %v2519
        %v2815 = vpack.c.b16 %v2530, %v2525
        %v2816 = vpack.c.b16 %v2531, %v2526
        %v2817 = vpack.c.b16 %v2532, %v2527
        %v2818 = vpack.c.b16 %v2533, %v2528
        %v2819 = vpack.c.b16 %v2534, %v2529
        %v2820 = vpack.c.b16 %v2540, %v2535
        %v2821 = vpack.c.b16 %v2541, %v2536
        %v2822 = vpack.c.b16 %v2542, %v2537
        %v2823 = vpack.c.b16 %v2543, %v2538
        %v2824 = vpack.c.b16 %v2544, %v2539
        %v2825 = vpack.c.b16 %v2550, %v2545
        %v2826 = vpack.c.b16 %v2551, %v2546
        %v2827 = vpack.c.b16 %v2552, %v2547
        %v2828 = vpack.c.b16 %v2553, %v2548
        %v2829 = vpack.c.b16 %v2554, %v2549
        %v2830 = vpack.c.b16 %v2560, %v2555
        %v2831 = vpack.c.b16 %v2561, %v2556
        %v2832 = vpack.c.b16 %v2562, %v2557
        %v2833 = vpack.c.b16 %v2563, %v2558
        %v2834 = vpack.c.b16 %v2564, %v2559
        %v2835 = vpack.c.b16 %v2570, %v2565
        %v2836 = vpack.c.b16 %v2571, %v2566
        %v2837 = vpack.c.b16 %v2572, %v2567
        %v2838 = vpack.c.b16 %v2573, %v2568
        %v2839 = vpack.c.b16 %v2574, %v2569
        %v2840 = vpack.c.b16 %v2580, %v2575
        %v2841 = vpack.c.b16 %v2581, %v2576
        %v2842 = vpack.c.b16 %v2582, %v2577
        %v2843 = vpack.c.b16 %v2583, %v2578
        %v2844 = vpack.c.b16 %v2584, %v2579
        %v2845 = vpack.c.b16 %v2590, %v2585
        %v2846 = vpack.c.b16 %v2591, %v2586
        %v2847 = vpack.c.b16 %v2592, %v2587
        %v2848 = vpack.c.b16 %v2593, %v2588
        %v2849 = vpack.c.b16 %v2594, %v2589
        %v2850 = vpack.c.b16 %v2600, %v2595
        %v2851 = vpack.c.b16 %v2601, %v2596
        %v2852 = vpack.c.b16 %v2602, %v2597
        %v2853 = vpack.c.b16 %v2603, %v2598
        %v2854 = vpack.c.b16 %v2604, %v2599
        %v2855 = vpack.c.b16 %v2610, %v2605
        %v2856 = vpack.c.b16 %v2611, %v2606
        %v2857 = vpack.c.b16 %v2612, %v2607
        %v2858 = vpack.c.b16 %v2613, %v2608
        %v2859 = vpack.c.b16 %v2614, %v2609
        %v2860 = vpack.c.b16 %v2620, %v2615
        %v2861 = vpack.c.b16 %v2621, %v2616
        %v2862 = vpack.c.b16 %v2622, %v2617
        %v2863 = vpack.c.b16 %v2623, %v2618
        %v2864 = vpack.c.b16 %v2624, %v2619
        %v2865 = vpack.c.b16 %v2630, %v2625
        %v2866 = vpack.c.b16 %v2631, %v2626
        %v2867 = vpack.c.b16 %v2632, %v2627
        %v2868 = vpack.c.b16 %v2633, %v2628
        %v2869 = vpack.c.b16 %v2634, %v2629
        %v2870 = vpack.c.b16 %v2640, %v2635
        %v2871 = vpack.c.b16 %v2641, %v2636
        %v2872 = vpack.c.b16 %v2642, %v2637
        %v2873 = vpack.c.b16 %v2643, %v2638
        %v2874 = vpack.c.b16 %v2644, %v2639
        %v2875 = vpack.c.b16 %v2650, %v2645
        %v2876 = vpack.c.b16 %v2651, %v2646
        %v2877 = vpack.c.b16 %v2652, %v2647
        %v2878 = vpack.c.b16 %v2653, %v2648
        %v2879 = vpack.c.b16 %v2654, %v2649
        %v2880 = vpack.c.b16 %v2660, %v2655
        %v2881 = vpack.c.b16 %v2661, %v2656
        %v2882 = vpack.c.b16 %v2662, %v2657
        %v2883 = vpack.c.b16 %v2663, %v2658
        %v2884 = vpack.c.b16 %v2664, %v2659
        %v2885 = vpack.c.b16 %v2670, %v2665
        %v2886 = vpack.c.b16 %v2671, %v2666
        %v2887 = vpack.c.b16 %v2672, %v2667
        %v2888 = vpack.c.b16 %v2673, %v2668
        %v2889 = vpack.c.b16 %v2674, %v2669
        %v2890 = vpack.c.b16 %v2680, %v2675
        %v2891 = vpack.c.b16 %v2681, %v2676
        %v2892 = vpack.c.b16 %v2682, %v2677
        %v2893 = vpack.c.b16 %v2683, %v2678
        %v2894 = vpack.c.b16 %v2684, %v2679
        %v2895 = vpack.c.b16 %v2690, %v2685
        %v2896 = vpack.c.b16 %v2691, %v2686
        %v2897 = vpack.c.b16 %v2692, %v2687
        %v2898 = vpack.c.b16 %v2693, %v2688
        %v2899 = vpack.c.b16 %v2694, %v2689
        %v2900 = vpack.c.b16 %v2700, %v2695
        %v2901 = vpack.c.b16 %v2701, %v2696
        %v2902 = vpack.c.b16 %v2702, %v2697
        %v2903 = vpack.c.b16 %v2703, %v2698
        %v2904 = vpack.c.b16 %v2704, %v2699
        %3105 = vmatpush.bf16.msra.mxu0 %v2740
        %3106 = vmatpush.bf16.msra.mxu0 %v2735
        %3107 = vmatpush.bf16.msra.mxu0 %v2730
        %3108 = vmatpush.bf16.msra.mxu0 %v2725
        %3109 = vmatpush.bf16.msra.mxu0 %v2720
        %3110 = vmatpush.bf16.msra.mxu0 %v2715
        %3111 = vmatpush.bf16.msra.mxu0 %v2710
        %3112 = vmatpush.bf16.msra.mxu0 %v2705
        %3113 = vmatmul.bf16.gmra.mxu0 %v2048
        %v3114 = vpop.f32.mrf.mxu0
        %v3115 = vadd.f32 %v2055, %v3114
        %v3116 = vpop.f32.mrf.mxu0
        %3117 = vdwg.mxu0
        %3118 = vmatpush.bf16.msra.mxu0 %v2780
        %3119 = vmatpush.bf16.msra.mxu0 %v2775
        %3120 = vmatpush.bf16.msra.mxu0 %v2770
        %3121 = vmatpush.bf16.msra.mxu0 %v2765
        %3122 = vmatpush.bf16.msra.mxu0 %v2760
        %3123 = vmatpush.bf16.msra.mxu0 %v2755
        %3124 = vmatpush.bf16.msra.mxu0 %v2750
        %3125 = vmatpush.bf16.msra.mxu0 %v2745
        %3126 = vmatmul.bf16.gmra.mxu0 %v2049
        %v3127 = vpop.f32.mrf.mxu0
        %v3128 = vadd.f32 %v3115, %v3127
        %v3129 = vpop.f32.mrf.mxu0
        %3130 = vdwg.mxu0
        %3131 = vmatpush.bf16.msra.mxu0 %v2820
        %3132 = vmatpush.bf16.msra.mxu0 %v2815
        %3133 = vmatpush.bf16.msra.mxu0 %v2810
        %3134 = vmatpush.bf16.msra.mxu0 %v2805
        %3135 = vmatpush.bf16.msra.mxu0 %v2800
        %3136 = vmatpush.bf16.msra.mxu0 %v2795
        %3137 = vmatpush.bf16.msra.mxu0 %v2790
        %3138 = vmatpush.bf16.msra.mxu0 %v2785
        %3139 = vmatmul.bf16.gmra.mxu0 %v2050
        %v3140 = vpop.f32.mrf.mxu0
        %v3141 = vadd.f32 %v3128, %v3140
        %v3142 = vpop.f32.mrf.mxu0
        %3143 = vdwg.mxu0
        %3144 = vmatpush.bf16.msra.mxu0 %v2860
        %3145 = vmatpush.bf16.msra.mxu0 %v2855
        %3146 = vmatpush.bf16.msra.mxu0 %v2850
        %3147 = vmatpush.bf16.msra.mxu0 %v2845
        %3148 = vmatpush.bf16.msra.mxu0 %v2840
        %3149 = vmatpush.bf16.msra.mxu0 %v2835
        %3150 = vmatpush.bf16.msra.mxu0 %v2830
        %3151 = vmatpush.bf16.msra.mxu0 %v2825
        %3152 = vmatmul.bf16.gmra.mxu0 %v2051
        %v3153 = vpop.f32.mrf.mxu0
        %v3154 = vadd.f32 %v3141, %v3153
        %v3155 = vpop.f32.mrf.mxu0
        %3156 = vdwg.mxu0
        %3157 = vmatpush.bf16.msra.mxu0 %v2900
        %3158 = vmatpush.bf16.msra.mxu0 %v2895
        %3159 = vmatpush.bf16.msra.mxu0 %v2890
        %3160 = vmatpush.bf16.msra.mxu0 %v2885
        %3161 = vmatpush.bf16.msra.mxu0 %v2880
        %3162 = vmatpush.bf16.msra.mxu0 %v2875
        %3163 = vmatpush.bf16.msra.mxu0 %v2870
        %3164 = vmatpush.bf16.msra.mxu0 %v2865
        %3165 = vmatmul.bf16.gmra.mxu0 %v2052
        %v3166 = vpop.f32.mrf.mxu0
        %v3167 = vadd.f32 %v3154, %v3166
        %v3168 = vpop.f32.mrf.mxu0
        %3169 = vdwg.mxu0
        %3170 = vmatpush.bf16.msra.mxu0 %v2741
        %3171 = vmatpush.bf16.msra.mxu0 %v2736
        %3172 = vmatpush.bf16.msra.mxu0 %v2731
        %3173 = vmatpush.bf16.msra.mxu0 %v2726
        %3174 = vmatpush.bf16.msra.mxu0 %v2721
        %3175 = vmatpush.bf16.msra.mxu0 %v2716
        %3176 = vmatpush.bf16.msra.mxu0 %v2711
        %3177 = vmatpush.bf16.msra.mxu0 %v2706
        %3178 = vmatmul.bf16.gmra.mxu0 %v2048
        %v3179 = vpop.f32.mrf.mxu0
        %v3180 = vadd.f32 %v2056, %v3179
        %v3181 = vpop.f32.mrf.mxu0
        %3182 = vdwg.mxu0
        %3183 = vmatpush.bf16.msra.mxu0 %v2781
        %3184 = vmatpush.bf16.msra.mxu0 %v2776
        %3185 = vmatpush.bf16.msra.mxu0 %v2771
        %3186 = vmatpush.bf16.msra.mxu0 %v2766
        %3187 = vmatpush.bf16.msra.mxu0 %v2761
        %3188 = vmatpush.bf16.msra.mxu0 %v2756
        %3189 = vmatpush.bf16.msra.mxu0 %v2751
        %3190 = vmatpush.bf16.msra.mxu0 %v2746
        %3191 = vmatmul.bf16.gmra.mxu0 %v2049
        %v3192 = vpop.f32.mrf.mxu0
        %v3193 = vadd.f32 %v3180, %v3192
        %v3194 = vpop.f32.mrf.mxu0
        %3195 = vdwg.mxu0
        %3196 = vmatpush.bf16.msra.mxu0 %v2821
        %3197 = vmatpush.bf16.msra.mxu0 %v2816
        %3198 = vmatpush.bf16.msra.mxu0 %v2811
        %3199 = vmatpush.bf16.msra.mxu0 %v2806
        %3200 = vmatpush.bf16.msra.mxu0 %v2801
        %3201 = vmatpush.bf16.msra.mxu0 %v2796
        %3202 = vmatpush.bf16.msra.mxu0 %v2791
        %3203 = vmatpush.bf16.msra.mxu0 %v2786
        %3204 = vmatmul.bf16.gmra.mxu0 %v2050
        %v3205 = vpop.f32.mrf.mxu0
        %v3206 = vadd.f32 %v3193, %v3205
        %v3207 = vpop.f32.mrf.mxu0
        %3208 = vdwg.mxu0
        %3209 = vmatpush.bf16.msra.mxu0 %v2861
        %3210 = vmatpush.bf16.msra.mxu0 %v2856
        %3211 = vmatpush.bf16.msra.mxu0 %v2851
        %3212 = vmatpush.bf16.msra.mxu0 %v2846
        %3213 = vmatpush.bf16.msra.mxu0 %v2841
        %3214 = vmatpush.bf16.msra.mxu0 %v2836
        %3215 = vmatpush.bf16.msra.mxu0 %v2831
        %3216 = vmatpush.bf16.msra.mxu0 %v2826
        %3217 = vmatmul.bf16.gmra.mxu0 %v2051
        %v3218 = vpop.f32.mrf.mxu0
        %v3219 = vadd.f32 %v3206, %v3218
        %v3220 = vpop.f32.mrf.mxu0
        %3221 = vdwg.mxu0
        %3222 = vmatpush.bf16.msra.mxu0 %v2901
        %3223 = vmatpush.bf16.msra.mxu0 %v2896
        %3224 = vmatpush.bf16.msra.mxu0 %v2891
        %3225 = vmatpush.bf16.msra.mxu0 %v2886
        %3226 = vmatpush.bf16.msra.mxu0 %v2881
        %3227 = vmatpush.bf16.msra.mxu0 %v2876
        %3228 = vmatpush.bf16.msra.mxu0 %v2871
        %3229 = vmatpush.bf16.msra.mxu0 %v2866
        %3230 = vmatmul.bf16.gmra.mxu0 %v2052
        %v3231 = vpop.f32.mrf.mxu0
        %v3232 = vadd.f32 %v3219, %v3231
        %v3233 = vpop.f32.mrf.mxu0
        %3234 = vdwg.mxu0
        %3235 = vmatpush.bf16.msra.mxu0 %v2742
        %3236 = vmatpush.bf16.msra.mxu0 %v2737
        %3237 = vmatpush.bf16.msra.mxu0 %v2732
        %3238 = vmatpush.bf16.msra.mxu0 %v2727
        %3239 = vmatpush.bf16.msra.mxu0 %v2722
        %3240 = vmatpush.bf16.msra.mxu0 %v2717
        %3241 = vmatpush.bf16.msra.mxu0 %v2712
        %3242 = vmatpush.bf16.msra.mxu0 %v2707
        %3243 = vmatmul.bf16.gmra.mxu0 %v2048
        %v3244 = vpop.f32.mrf.mxu0
        %v3245 = vadd.f32 %v2057, %v3244
        %v3246 = vpop.f32.mrf.mxu0
        %3247 = vdwg.mxu0
        %3248 = vmatpush.bf16.msra.mxu0 %v2782
        %3249 = vmatpush.bf16.msra.mxu0 %v2777
        %3250 = vmatpush.bf16.msra.mxu0 %v2772
        %3251 = vmatpush.bf16.msra.mxu0 %v2767
        %3252 = vmatpush.bf16.msra.mxu0 %v2762
        %3253 = vmatpush.bf16.msra.mxu0 %v2757
        %3254 = vmatpush.bf16.msra.mxu0 %v2752
        %3255 = vmatpush.bf16.msra.mxu0 %v2747
        %3256 = vmatmul.bf16.gmra.mxu0 %v2049
        %v3257 = vpop.f32.mrf.mxu0
        %v3258 = vadd.f32 %v3245, %v3257
        %v3259 = vpop.f32.mrf.mxu0
        %3260 = vdwg.mxu0
        %3261 = vmatpush.bf16.msra.mxu0 %v2822
        %3262 = vmatpush.bf16.msra.mxu0 %v2817
        %3263 = vmatpush.bf16.msra.mxu0 %v2812
        %3264 = vmatpush.bf16.msra.mxu0 %v2807
        %3265 = vmatpush.bf16.msra.mxu0 %v2802
        %3266 = vmatpush.bf16.msra.mxu0 %v2797
        %3267 = vmatpush.bf16.msra.mxu0 %v2792
        %3268 = vmatpush.bf16.msra.mxu0 %v2787
        %3269 = vmatmul.bf16.gmra.mxu0 %v2050
        %v3270 = vpop.f32.mrf.mxu0
        %v3271 = vadd.f32 %v3258, %v3270
        %v3272 = vpop.f32.mrf.mxu0
        %3273 = vdwg.mxu0
        %3274 = vmatpush.bf16.msra.mxu0 %v2862
        %3275 = vmatpush.bf16.msra.mxu0 %v2857
        %3276 = vmatpush.bf16.msra.mxu0 %v2852
        %3277 = vmatpush.bf16.msra.mxu0 %v2847
        %3278 = vmatpush.bf16.msra.mxu0 %v2842
        %3279 = vmatpush.bf16.msra.mxu0 %v2837
        %3280 = vmatpush.bf16.msra.mxu0 %v2832
        %3281 = vmatpush.bf16.msra.mxu0 %v2827
        %3282 = vmatmul.bf16.gmra.mxu0 %v2051
        %v3283 = vpop.f32.mrf.mxu0
        %v3284 = vadd.f32 %v3271, %v3283
        %v3285 = vpop.f32.mrf.mxu0
        %3286 = vdwg.mxu0
        %3287 = vmatpush.bf16.msra.mxu0 %v2902
        %3288 = vmatpush.bf16.msra.mxu0 %v2897
        %3289 = vmatpush.bf16.msra.mxu0 %v2892
        %3290 = vmatpush.bf16.msra.mxu0 %v2887
        %3291 = vmatpush.bf16.msra.mxu0 %v2882
        %3292 = vmatpush.bf16.msra.mxu0 %v2877
        %3293 = vmatpush.bf16.msra.mxu0 %v2872
        %3294 = vmatpush.bf16.msra.mxu0 %v2867
        %3295 = vmatmul.bf16.gmra.mxu0 %v2052
        %v3296 = vpop.f32.mrf.mxu0
        %v3297 = vadd.f32 %v3284, %v3296
        %v3298 = vpop.f32.mrf.mxu0
        %3299 = vdwg.mxu0
        %3300 = vmatpush.bf16.msra.mxu0 %v2743
        %3301 = vmatpush.bf16.msra.mxu0 %v2738
        %3302 = vmatpush.bf16.msra.mxu0 %v2733
        %3303 = vmatpush.bf16.msra.mxu0 %v2728
        %3304 = vmatpush.bf16.msra.mxu0 %v2723
        %3305 = vmatpush.bf16.msra.mxu0 %v2718
        %3306 = vmatpush.bf16.msra.mxu0 %v2713
        %3307 = vmatpush.bf16.msra.mxu0 %v2708
        %3308 = vmatmul.bf16.gmra.mxu0 %v2048
        %v3309 = vpop.f32.mrf.mxu0
        %v3310 = vadd.f32 %v2058, %v3309
        %v3311 = vpop.f32.mrf.mxu0
        %3312 = vdwg.mxu0
        %3313 = vmatpush.bf16.msra.mxu0 %v2783
        %3314 = vmatpush.bf16.msra.mxu0 %v2778
        %3315 = vmatpush.bf16.msra.mxu0 %v2773
        %3316 = vmatpush.bf16.msra.mxu0 %v2768
        %3317 = vmatpush.bf16.msra.mxu0 %v2763
        %3318 = vmatpush.bf16.msra.mxu0 %v2758
        %3319 = vmatpush.bf16.msra.mxu0 %v2753
        %3320 = vmatpush.bf16.msra.mxu0 %v2748
        %3321 = vmatmul.bf16.gmra.mxu0 %v2049
        %v3322 = vpop.f32.mrf.mxu0
        %v3323 = vadd.f32 %v3310, %v3322
        %v3324 = vpop.f32.mrf.mxu0
        %3325 = vdwg.mxu0
        %3326 = vmatpush.bf16.msra.mxu0 %v2823
        %3327 = vmatpush.bf16.msra.mxu0 %v2818
        %3328 = vmatpush.bf16.msra.mxu0 %v2813
        %3329 = vmatpush.bf16.msra.mxu0 %v2808
        %3330 = vmatpush.bf16.msra.mxu0 %v2803
        %3331 = vmatpush.bf16.msra.mxu0 %v2798
        %3332 = vmatpush.bf16.msra.mxu0 %v2793
        %3333 = vmatpush.bf16.msra.mxu0 %v2788
        %3334 = vmatmul.bf16.gmra.mxu0 %v2050
        %v3335 = vpop.f32.mrf.mxu0
        %v3336 = vadd.f32 %v3323, %v3335
        %v3337 = vpop.f32.mrf.mxu0
        %3338 = vdwg.mxu0
        %3339 = vmatpush.bf16.msra.mxu0 %v2863
        %3340 = vmatpush.bf16.msra.mxu0 %v2858
        %3341 = vmatpush.bf16.msra.mxu0 %v2853
        %3342 = vmatpush.bf16.msra.mxu0 %v2848
        %3343 = vmatpush.bf16.msra.mxu0 %v2843
        %3344 = vmatpush.bf16.msra.mxu0 %v2838
        %3345 = vmatpush.bf16.msra.mxu0 %v2833
        %3346 = vmatpush.bf16.msra.mxu0 %v2828
        %3347 = vmatmul.bf16.gmra.mxu0 %v2051
        %v3348 = vpop.f32.mrf.mxu0
        %v3349 = vadd.f32 %v3336, %v3348
        %v3350 = vpop.f32.mrf.mxu0
        %3351 = vdwg.mxu0
        %3352 = vmatpush.bf16.msra.mxu0 %v2903
        %3353 = vmatpush.bf16.msra.mxu0 %v2898
        %3354 = vmatpush.bf16.msra.mxu0 %v2893
        %3355 = vmatpush.bf16.msra.mxu0 %v2888
        %3356 = vmatpush.bf16.msra.mxu0 %v2883
        %3357 = vmatpush.bf16.msra.mxu0 %v2878
        %3358 = vmatpush.bf16.msra.mxu0 %v2873
        %3359 = vmatpush.bf16.msra.mxu0 %v2868
        %3360 = vmatmul.bf16.gmra.mxu0 %v2052
        %v3361 = vpop.f32.mrf.mxu0
        %v3362 = vadd.f32 %v3349, %v3361
        %v3363 = vpop.f32.mrf.mxu0
        %3364 = vdwg.mxu0
        %3365 = vmatpush.bf16.msra.mxu0 %v2744
        %3366 = vmatpush.bf16.msra.mxu0 %v2739
        %3367 = vmatpush.bf16.msra.mxu0 %v2734
        %3368 = vmatpush.bf16.msra.mxu0 %v2729
        %3369 = vmatpush.bf16.msra.mxu0 %v2724
        %3370 = vmatpush.bf16.msra.mxu0 %v2719
        %3371 = vmatpush.bf16.msra.mxu0 %v2714
        %3372 = vmatpush.bf16.msra.mxu0 %v2709
        %3373 = vmatmul.bf16.gmra.mxu0 %v2048
        %v3374 = vpop.f32.mrf.mxu0
        %v3375 = vadd.f32 %v2059, %v3374
        %v3376 = vpop.f32.mrf.mxu0
        %3377 = vdwg.mxu0
        %3378 = vmatpush.bf16.msra.mxu0 %v2784
        %3379 = vmatpush.bf16.msra.mxu0 %v2779
        %3380 = vmatpush.bf16.msra.mxu0 %v2774
        %3381 = vmatpush.bf16.msra.mxu0 %v2769
        %3382 = vmatpush.bf16.msra.mxu0 %v2764
        %3383 = vmatpush.bf16.msra.mxu0 %v2759
        %3384 = vmatpush.bf16.msra.mxu0 %v2754
        %3385 = vmatpush.bf16.msra.mxu0 %v2749
        %3386 = vmatmul.bf16.gmra.mxu0 %v2049
        %v3387 = vpop.f32.mrf.mxu0
        %v3388 = vadd.f32 %v3375, %v3387
        %v3389 = vpop.f32.mrf.mxu0
        %3390 = vdwg.mxu0
        %3391 = vmatpush.bf16.msra.mxu0 %v2824
        %3392 = vmatpush.bf16.msra.mxu0 %v2819
        %3393 = vmatpush.bf16.msra.mxu0 %v2814
        %3394 = vmatpush.bf16.msra.mxu0 %v2809
        %3395 = vmatpush.bf16.msra.mxu0 %v2804
        %3396 = vmatpush.bf16.msra.mxu0 %v2799
        %3397 = vmatpush.bf16.msra.mxu0 %v2794
        %3398 = vmatpush.bf16.msra.mxu0 %v2789
        %3399 = vmatmul.bf16.gmra.mxu0 %v2050
        %v3400 = vpop.f32.mrf.mxu0
        %v3401 = vadd.f32 %v3388, %v3400
        %v3402 = vpop.f32.mrf.mxu0
        %3403 = vdwg.mxu0
        %3404 = vmatpush.bf16.msra.mxu0 %v2864
        %3405 = vmatpush.bf16.msra.mxu0 %v2859
        %3406 = vmatpush.bf16.msra.mxu0 %v2854
        %3407 = vmatpush.bf16.msra.mxu0 %v2849
        %3408 = vmatpush.bf16.msra.mxu0 %v2844
        %3409 = vmatpush.bf16.msra.mxu0 %v2839
        %3410 = vmatpush.bf16.msra.mxu0 %v2834
        %3411 = vmatpush.bf16.msra.mxu0 %v2829
        %3412 = vmatmul.bf16.gmra.mxu0 %v2051
        %v3413 = vpop.f32.mrf.mxu0
        %v3414 = vadd.f32 %v3401, %v3413
        %v3415 = vpop.f32.mrf.mxu0
        %3416 = vdwg.mxu0
        %3417 = vmatpush.bf16.msra.mxu0 %v2904
        %3418 = vmatpush.bf16.msra.mxu0 %v2899
        %3419 = vmatpush.bf16.msra.mxu0 %v2894
        %3420 = vmatpush.bf16.msra.mxu0 %v2889
        %3421 = vmatpush.bf16.msra.mxu0 %v2884
        %3422 = vmatpush.bf16.msra.mxu0 %v2879
        %3423 = vmatpush.bf16.msra.mxu0 %v2874
        %3424 = vmatpush.bf16.msra.mxu0 %v2869
        %3425 = vmatmul.bf16.gmra.mxu0 %v2052
        %v3426 = vpop.f32.mrf.mxu0
        %v3427 = vadd.f32 %v3414, %v3426
        %v3428 = vpop.f32.mrf.mxu0
        %3429 = vdwg.mxu0
        %v3434 = vrot.slane %v3232, 6
        %v3435 = vrot.slane %v3297, 4
        %v3436 = vrot.slane %v3362, 2
        %v3437 = vsel %vm1241, %v3167, %v3434
        %vm3438 = vcmask 1045508
        %v3439 = vsel %vm3438, %v3435, %v3436
        %vm3440 = vcmask 1043456
        %v3441 = vsel %vm3440, %v3437, %v3439
        %3443 = vst [vmem:[%s267] sm:$0xff] %v3441
        %3444 = vst [vmem:[%s267 + $0x8] sm:$0x3] %v3427
        %s3445 = scalar_lea.vmem %s5, 1600
        %v3446 = vld [vmem:[%s3445] sm:$0xff]
        %v3447 = vld [vmem:[%s3445 + $0x8] sm:$0xff]
        %v3448 = vld [vmem:[%s3445 + $0x10] sm:$0xf]
        %v3449 = vld [vmem:[%s3445 + $0x14] sm:$0xff]
        %v3450 = vld [vmem:[%s3445 + $0x1c] sm:$0xff]
        %v3451 = vld [vmem:[%s3445 + $0x24] sm:$0xf]
        %v3452 = vld [vmem:[%s3445 + $0x28] sm:$0xff]
        %v3453 = vld [vmem:[%s3445 + $0x30] sm:$0xff]
        %v3454 = vld [vmem:[%s3445 + $0x38] sm:$0xf]
        %v3455 = vld [vmem:[%s3445 + $0x3c] sm:$0xff]
        %v3456 = vld [vmem:[%s3445 + $0x44] sm:$0xff]
        %v3457 = vld [vmem:[%s3445 + $0x4c] sm:$0xf]
        %v3458 = vld [vmem:[%s3445 + $0x50] sm:$0xff]
        %v3459 = vld [vmem:[%s3445 + $0x58] sm:$0xff]
        %v3460 = vld [vmem:[%s3445 + $0x60] sm:$0xf]
        %v3461 = vld [vmem:[%s3445 + $0x64] sm:$0xff]
        %v3462 = vld [vmem:[%s3445 + $0x6c] sm:$0xff]
        %v3463 = vld [vmem:[%s3445 + $0x74] sm:$0xf]
        %v3464 = vld [vmem:[%s3445 + $0x78] sm:$0xff]
        %v3465 = vld [vmem:[%s3445 + $0x80] sm:$0xff]
        %v3466 = vld [vmem:[%s3445 + $0x88] sm:$0xf]
        %v3467 = vld [vmem:[%s3445 + $0x8c] sm:$0xff]
        %v3468 = vld [vmem:[%s3445 + $0x94] sm:$0xff]
        %v3469 = vld [vmem:[%s3445 + $0x9c] sm:$0xf]
        %v3470 = vld [vmem:[%s3445 + $0xa0] sm:$0xff]
        %v3471 = vld [vmem:[%s3445 + $0xa8] sm:$0xff]
        %v3472 = vld [vmem:[%s3445 + $0xb0] sm:$0xf]
        %v3473 = vld [vmem:[%s3445 + $0xb4] sm:$0xff]
        %v3474 = vld [vmem:[%s3445 + $0xbc] sm:$0xff]
        %v3475 = vld [vmem:[%s3445 + $0xc4] sm:$0xf]
        %v3476 = vld [vmem:[%s3445 + $0xc8] sm:$0xff]
        %v3477 = vld [vmem:[%s3445 + $0xd0] sm:$0xff]
        %v3478 = vld [vmem:[%s3445 + $0xd8] sm:$0xf]
        %v3479 = vld [vmem:[%s3445 + $0xdc] sm:$0xff]
        %v3480 = vld [vmem:[%s3445 + $0xe4] sm:$0xff]
        %v3481 = vld [vmem:[%s3445 + $0xec] sm:$0xf]
        %v3482 = vld [vmem:[%s3445 + $0xf0] sm:$0xff]
        %v3483 = vld [vmem:[%s3445 + $0xf8] sm:$0xff]
        %v3484 = vld [vmem:[%s3445 + $0x100] sm:$0xf]
        %v3485 = vld [vmem:[%s3445 + $0x104] sm:$0xff]
        %v3486 = vld [vmem:[%s3445 + $0x10c] sm:$0xff]
        %v3487 = vld [vmem:[%s3445 + $0x114] sm:$0xf]
        %v3488 = vld [vmem:[%s3445 + $0x118] sm:$0xff]
        %v3489 = vld [vmem:[%s3445 + $0x120] sm:$0xff]
        %v3490 = vld [vmem:[%s3445 + $0x128] sm:$0xf]
        %v3491 = vld [vmem:[%s3445 + $0x12c] sm:$0xff]
        %v3492 = vld [vmem:[%s3445 + $0x134] sm:$0xff]
        %v3493 = vld [vmem:[%s3445 + $0x13c] sm:$0xf]
        %v3494 = vld [vmem:[%s3445 + $0x140] sm:$0xff]
        %v3495 = vld [vmem:[%s3445 + $0x148] sm:$0xff]
        %v3496 = vld [vmem:[%s3445 + $0x150] sm:$0xf]
        %v3497 = vld [vmem:[%s3445 + $0x154] sm:$0xff]
        %v3498 = vld [vmem:[%s3445 + $0x15c] sm:$0xff]
        %v3499 = vld [vmem:[%s3445 + $0x164] sm:$0xf]
        %v3500 = vld [vmem:[%s3445 + $0x168] sm:$0xff]
        %v3501 = vld [vmem:[%s3445 + $0x170] sm:$0xff]
        %v3502 = vld [vmem:[%s3445 + $0x178] sm:$0xf]
        %v3503 = vld [vmem:[%s3445 + $0x17c] sm:$0xff]
        %v3504 = vld [vmem:[%s3445 + $0x184] sm:$0xff]
        %v3505 = vld [vmem:[%s3445 + $0x18c] sm:$0xf]
        %v3506 = vld [vmem:[%s3445 + $0x190] sm:$0xff]
        %v3507 = vld [vmem:[%s3445 + $0x198] sm:$0xff]
        %v3508 = vld [vmem:[%s3445 + $0x1a0] sm:$0xf]
        %v3509 = vld [vmem:[%s3445 + $0x1a4] sm:$0xff]
        %v3510 = vld [vmem:[%s3445 + $0x1ac] sm:$0xff]
        %v3511 = vld [vmem:[%s3445 + $0x1b4] sm:$0xf]
        %v3512 = vld [vmem:[%s3445 + $0x1b8] sm:$0xff]
        %v3513 = vld [vmem:[%s3445 + $0x1c0] sm:$0xff]
        %v3514 = vld [vmem:[%s3445 + $0x1c8] sm:$0xf]
        %v3515 = vld [vmem:[%s3445 + $0x1cc] sm:$0xff]
        %v3516 = vld [vmem:[%s3445 + $0x1d4] sm:$0xff]
        %v3517 = vld [vmem:[%s3445 + $0x1dc] sm:$0xf]
        %v3518 = vld [vmem:[%s3445 + $0x1e0] sm:$0xff]
        %v3519 = vld [vmem:[%s3445 + $0x1e8] sm:$0xff]
        %v3520 = vld [vmem:[%s3445 + $0x1f0] sm:$0xf]
        %v3521 = vld [vmem:[%s3445 + $0x1f4] sm:$0xff]
        %v3522 = vld [vmem:[%s3445 + $0x1fc] sm:$0xff]
        %v3523 = vld [vmem:[%s3445 + $0x204] sm:$0xf]
        %v3524 = vld [vmem:[%s3445 + $0x208] sm:$0xff]
        %v3525 = vld [vmem:[%s3445 + $0x210] sm:$0xff]
        %v3526 = vld [vmem:[%s3445 + $0x218] sm:$0xf]
        %v3527 = vld [vmem:[%s3445 + $0x21c] sm:$0xff]
        %v3528 = vld [vmem:[%s3445 + $0x224] sm:$0xff]
        %v3529 = vld [vmem:[%s3445 + $0x22c] sm:$0xf]
        %v3530 = vld [vmem:[%s3445 + $0x230] sm:$0xff]
        %v3531 = vld [vmem:[%s3445 + $0x238] sm:$0xff]
        %v3532 = vld [vmem:[%s3445 + $0x240] sm:$0xf]
        %v3533 = vld [vmem:[%s3445 + $0x244] sm:$0xff]
        %v3534 = vld [vmem:[%s3445 + $0x24c] sm:$0xff]
        %v3535 = vld [vmem:[%s3445 + $0x254] sm:$0xf]
        %v3536 = vld [vmem:[%s3445 + $0x258] sm:$0xff]
        %v3537 = vld [vmem:[%s3445 + $0x260] sm:$0xff]
        %v3538 = vld [vmem:[%s3445 + $0x268] sm:$0xf]
        %v3539 = vld [vmem:[%s3445 + $0x26c] sm:$0xff]
        %v3540 = vld [vmem:[%s3445 + $0x274] sm:$0xff]
        %v3541 = vld [vmem:[%s3445 + $0x27c] sm:$0xf]
        %v3542 = vld [vmem:[%s3445 + $0x280] sm:$0xff]
        %v3543 = vld [vmem:[%s3445 + $0x288] sm:$0xff]
        %v3544 = vld [vmem:[%s3445 + $0x290] sm:$0xf]
        %v3545 = vld [vmem:[%s3445 + $0x294] sm:$0xff]
        %v3546 = vld [vmem:[%s3445 + $0x29c] sm:$0xff]
        %v3547 = vld [vmem:[%s3445 + $0x2a4] sm:$0xf]
        %v3548 = vld [vmem:[%s3445 + $0x2a8] sm:$0xff]
        %v3549 = vld [vmem:[%s3445 + $0x2b0] sm:$0xff]
        %v3550 = vld [vmem:[%s3445 + $0x2b8] sm:$0xf]
        %v3551 = vld [vmem:[%s3445 + $0x2bc] sm:$0xff]
        %v3552 = vld [vmem:[%s3445 + $0x2c4] sm:$0xff]
        %v3553 = vld [vmem:[%s3445 + $0x2cc] sm:$0xf]
        %v3554 = vld [vmem:[%s3445 + $0x2d0] sm:$0xff]
        %v3555 = vld [vmem:[%s3445 + $0x2d8] sm:$0xff]
        %v3556 = vld [vmem:[%s3445 + $0x2e0] sm:$0xf]
        %v3557 = vld [vmem:[%s3445 + $0x2e4] sm:$0xff]
        %v3558 = vld [vmem:[%s3445 + $0x2ec] sm:$0xff]
        %v3559 = vld [vmem:[%s3445 + $0x2f4] sm:$0xf]
        %v3560 = vld [vmem:[%s3445 + $0x2f8] sm:$0xff]
        %v3561 = vld [vmem:[%s3445 + $0x300] sm:$0xff]
        %v3562 = vld [vmem:[%s3445 + $0x308] sm:$0xf]
        %v3563 = vld [vmem:[%s3445 + $0x30c] sm:$0xff]
        %v3564 = vld [vmem:[%s3445 + $0x314] sm:$0xff]
        %v3565 = vld [vmem:[%s3445 + $0x31c] sm:$0xf]
        %v3566 = vld [vmem:[%s3445 + $0x320] sm:$0xff]
        %v3567 = vld [vmem:[%s3445 + $0x328] sm:$0xff]
        %v3568 = vld [vmem:[%s3445 + $0x330] sm:$0xf]
        %v3569 = vld [vmem:[%s3445 + $0x334] sm:$0xff]
        %v3570 = vld [vmem:[%s3445 + $0x33c] sm:$0xff]
        %v3571 = vld [vmem:[%s3445 + $0x344] sm:$0xf]
        %v3572 = vld [vmem:[%s3445 + $0x348] sm:$0xff]
        %v3573 = vld [vmem:[%s3445 + $0x350] sm:$0xff]
        %v3574 = vld [vmem:[%s3445 + $0x358] sm:$0xf]
        %v3575 = vld [vmem:[%s3445 + $0x35c] sm:$0xff]
        %v3576 = vld [vmem:[%s3445 + $0x364] sm:$0xff]
        %v3577 = vld [vmem:[%s3445 + $0x36c] sm:$0xf]
        %v3578 = vld [vmem:[%s3445 + $0x370] sm:$0xff]
        %v3579 = vld [vmem:[%s3445 + $0x378] sm:$0xff]
        %v3580 = vld [vmem:[%s3445 + $0x380] sm:$0xf]
        %v3581 = vld [vmem:[%s3445 + $0x384] sm:$0xff]
        %v3582 = vld [vmem:[%s3445 + $0x38c] sm:$0xff]
        %v3583 = vld [vmem:[%s3445 + $0x394] sm:$0xf]
        %v3584 = vld [vmem:[%s3445 + $0x398] sm:$0xff]
        %v3585 = vld [vmem:[%s3445 + $0x3a0] sm:$0xff]
        %v3586 = vld [vmem:[%s3445 + $0x3a8] sm:$0xf]
        %v3587 = vld [vmem:[%s3445 + $0x3ac] sm:$0xff]
        %v3588 = vld [vmem:[%s3445 + $0x3b4] sm:$0xff]
        %v3589 = vld [vmem:[%s3445 + $0x3bc] sm:$0xf]
        %v3590 = vld [vmem:[%s3445 + $0x3c0] sm:$0xff]
        %v3591 = vld [vmem:[%s3445 + $0x3c8] sm:$0xff]
        %v3592 = vld [vmem:[%s3445 + $0x3d0] sm:$0xf]
        %v3593 = vld [vmem:[%s3445 + $0x3d4] sm:$0xff]
        %v3594 = vld [vmem:[%s3445 + $0x3dc] sm:$0xff]
        %v3595 = vld [vmem:[%s3445 + $0x3e4] sm:$0xf]
        %v3596 = vld [vmem:[%s3445 + $0x3e8] sm:$0xff]
        %v3597 = vld [vmem:[%s3445 + $0x3f0] sm:$0xff]
        %v3598 = vld [vmem:[%s3445 + $0x3f8] sm:$0xf]
        %v3599 = vld [vmem:[%s3445 + $0x3fc] sm:$0xff]
        %v3600 = vld [vmem:[%s3445 + $0x404] sm:$0xff]
        %v3601 = vld [vmem:[%s3445 + $0x40c] sm:$0xf]
        %v3602 = vld [vmem:[%s3445 + $0x410] sm:$0xff]
        %v3603 = vld [vmem:[%s3445 + $0x418] sm:$0xff]
        %v3604 = vld [vmem:[%s3445 + $0x420] sm:$0xf]
        %v3605 = vld [vmem:[%s3445 + $0x424] sm:$0xff]
        %v3606 = vld [vmem:[%s3445 + $0x42c] sm:$0xff]
        %v3607 = vld [vmem:[%s3445 + $0x434] sm:$0xf]
        %v3608 = vld [vmem:[%s3445 + $0x438] sm:$0xff]
        %v3609 = vld [vmem:[%s3445 + $0x440] sm:$0xff]
        %v3610 = vld [vmem:[%s3445 + $0x448] sm:$0xf]
        %v3611 = vld [vmem:[%s3445 + $0x44c] sm:$0xff]
        %v3612 = vld [vmem:[%s3445 + $0x454] sm:$0xff]
        %v3613 = vld [vmem:[%s3445 + $0x45c] sm:$0xf]
        %v3614 = vld [vmem:[%s3445 + $0x460] sm:$0xff]
        %v3615 = vld [vmem:[%s3445 + $0x468] sm:$0xff]
        %v3616 = vld [vmem:[%s3445 + $0x470] sm:$0xf]
        %v3617 = vld [vmem:[%s3445 + $0x474] sm:$0xff]
        %v3618 = vld [vmem:[%s3445 + $0x47c] sm:$0xff]
        %v3619 = vld [vmem:[%s3445 + $0x484] sm:$0xf]
        %v3620 = vld [vmem:[%s3445 + $0x488] sm:$0xff]
        %v3621 = vld [vmem:[%s3445 + $0x490] sm:$0xff]
        %v3622 = vld [vmem:[%s3445 + $0x498] sm:$0xf]
        %v3623 = vld [vmem:[%s3445 + $0x49c] sm:$0xff]
        %v3624 = vld [vmem:[%s3445 + $0x4a4] sm:$0xff]
        %v3625 = vld [vmem:[%s3445 + $0x4ac] sm:$0xf]
        %v3626 = vld [vmem:[%s3445 + $0x4b0] sm:$0xff]
        %v3627 = vld [vmem:[%s3445 + $0x4b8] sm:$0xff]
        %v3628 = vld [vmem:[%s3445 + $0x4c0] sm:$0xf]
        %v3629 = vld [vmem:[%s3445 + $0x4c4] sm:$0xff]
        %v3630 = vld [vmem:[%s3445 + $0x4cc] sm:$0xff]
        %v3631 = vld [vmem:[%s3445 + $0x4d4] sm:$0xf]
        %v3632 = vld [vmem:[%s3445 + $0x4d8] sm:$0xff]
        %v3633 = vld [vmem:[%s3445 + $0x4e0] sm:$0xff]
        %v3634 = vld [vmem:[%s3445 + $0x4e8] sm:$0xf]
        %v3635 = vld [vmem:[%s3445 + $0x4ec] sm:$0xff]
        %v3636 = vld [vmem:[%s3445 + $0x4f4] sm:$0xff]
        %v3637 = vld [vmem:[%s3445 + $0x4fc] sm:$0xf]
        %v3638 = vld [vmem:[%s3445 + $0x500] sm:$0xff]
        %v3639 = vld [vmem:[%s3445 + $0x508] sm:$0xff]
        %v3640 = vld [vmem:[%s3445 + $0x510] sm:$0xf]
        %v3641 = vld [vmem:[%s3445 + $0x514] sm:$0xff]
        %v3642 = vld [vmem:[%s3445 + $0x51c] sm:$0xff]
        %v3643 = vld [vmem:[%s3445 + $0x524] sm:$0xf]
        %v3644 = vld [vmem:[%s3445 + $0x528] sm:$0xff]
        %v3645 = vld [vmem:[%s3445 + $0x530] sm:$0xff]
        %v3646 = vld [vmem:[%s3445 + $0x538] sm:$0xf]
        %v3647 = vld [vmem:[%s3445 + $0x53c] sm:$0xff]
        %v3648 = vld [vmem:[%s3445 + $0x544] sm:$0xff]
        %v3649 = vld [vmem:[%s3445 + $0x54c] sm:$0xf]
        %v3650 = vld [vmem:[%s3445 + $0x550] sm:$0xff]
        %v3651 = vld [vmem:[%s3445 + $0x558] sm:$0xff]
        %v3652 = vld [vmem:[%s3445 + $0x560] sm:$0xf]
        %v3653 = vld [vmem:[%s3445 + $0x564] sm:$0xff]
        %v3654 = vld [vmem:[%s3445 + $0x56c] sm:$0xff]
        %v3655 = vld [vmem:[%s3445 + $0x574] sm:$0xf]
        %v3656 = vld [vmem:[%s3445 + $0x578] sm:$0xff]
        %v3657 = vld [vmem:[%s3445 + $0x580] sm:$0xff]
        %v3658 = vld [vmem:[%s3445 + $0x588] sm:$0xf]
        %v3659 = vld [vmem:[%s3445 + $0x58c] sm:$0xff]
        %v3660 = vld [vmem:[%s3445 + $0x594] sm:$0xff]
        %v3661 = vld [vmem:[%s3445 + $0x59c] sm:$0xf]
        %v3662 = vld [vmem:[%s3445 + $0x5a0] sm:$0xff]
        %v3663 = vld [vmem:[%s3445 + $0x5a8] sm:$0xff]
        %v3664 = vld [vmem:[%s3445 + $0x5b0] sm:$0xf]
        %v3665 = vld [vmem:[%s3445 + $0x5b4] sm:$0xff]
        %v3666 = vld [vmem:[%s3445 + $0x5bc] sm:$0xff]
        %v3667 = vld [vmem:[%s3445 + $0x5c4] sm:$0xf]
        %v3668 = vld [vmem:[%s3445 + $0x5c8] sm:$0xff]
        %v3669 = vld [vmem:[%s3445 + $0x5d0] sm:$0xff]
        %v3670 = vld [vmem:[%s3445 + $0x5d8] sm:$0xf]
        %v3671 = vld [vmem:[%s3445 + $0x5dc] sm:$0xff]
        %v3672 = vld [vmem:[%s3445 + $0x5e4] sm:$0xff]
        %v3673 = vld [vmem:[%s3445 + $0x5ec] sm:$0xf]
        %v3674 = vld [vmem:[%s3445 + $0x5f0] sm:$0xff]
        %v3675 = vld [vmem:[%s3445 + $0x5f8] sm:$0xff]
        %v3676 = vld [vmem:[%s3445 + $0x600] sm:$0xf]
        %v3677 = vld [vmem:[%s3445 + $0x604] sm:$0xff]
        %v3678 = vld [vmem:[%s3445 + $0x60c] sm:$0xff]
        %v3679 = vld [vmem:[%s3445 + $0x614] sm:$0xf]
        %v3680 = vld [vmem:[%s3445 + $0x618] sm:$0xff]
        %v3681 = vld [vmem:[%s3445 + $0x620] sm:$0xff]
        %v3682 = vld [vmem:[%s3445 + $0x628] sm:$0xf]
        %v3683 = vld [vmem:[%s3445 + $0x62c] sm:$0xff]
        %v3684 = vld [vmem:[%s3445 + $0x634] sm:$0xff]
        %v3685 = vld [vmem:[%s3445 + $0x63c] sm:$0xf]
        %v3686 = vpack.c.bf16 %v1798, %v1798
        %v3687 = vpack.c.bf16 %v1799, %v1799
        %v3688 = vpack.c.bf16 %v1800, %v1800
        %v3689 = vpack.c.bf16 %v1801, %v1801
        %v3690 = vpack.c.bf16 %v1802, %v1802
        %v3691 = vld [vmem:[%s6 + $0x5] sm:$0x1f]
        %v3693 = vperm.slane %v3691, 0
        %v3694 = vperm.slane %v3691, 1
        %v3695 = vperm.slane %v3691, 2
        %v3696 = vperm.slane %v3691, 3
        %v3697 = vperm.slane %v3691, 4
        %v3943 = vunpack.c.l.b16 %v3446
        %v3944 = vunpack.c.h.b16 %v3446
        %v3945 = vunpack.c.l.b16 %v3447
        %v3946 = vunpack.c.h.b16 %v3447
        %v3947 = vunpack.c.l.b16 %v3448
        %v3948 = vunpack.c.l.b16 %v3449
        %v3949 = vunpack.c.h.b16 %v3449
        %v3950 = vunpack.c.l.b16 %v3450
        %v3951 = vunpack.c.h.b16 %v3450
        %v3952 = vunpack.c.l.b16 %v3451
        %v3953 = vunpack.c.l.b16 %v3452
        %v3954 = vunpack.c.h.b16 %v3452
        %v3955 = vunpack.c.l.b16 %v3453
        %v3956 = vunpack.c.h.b16 %v3453
        %v3957 = vunpack.c.l.b16 %v3454
        %v3958 = vunpack.c.l.b16 %v3455
        %v3959 = vunpack.c.h.b16 %v3455
        %v3960 = vunpack.c.l.b16 %v3456
        %v3961 = vunpack.c.h.b16 %v3456
        %v3962 = vunpack.c.l.b16 %v3457
        %v3963 = vunpack.c.l.b16 %v3458
        %v3964 = vunpack.c.h.b16 %v3458
        %v3965 = vunpack.c.l.b16 %v3459
        %v3966 = vunpack.c.h.b16 %v3459
        %v3967 = vunpack.c.l.b16 %v3460
        %v3968 = vunpack.c.l.b16 %v3461
        %v3969 = vunpack.c.h.b16 %v3461
        %v3970 = vunpack.c.l.b16 %v3462
        %v3971 = vunpack.c.h.b16 %v3462
        %v3972 = vunpack.c.l.b16 %v3463
        %v3973 = vunpack.c.l.b16 %v3464
        %v3974 = vunpack.c.h.b16 %v3464
        %v3975 = vunpack.c.l.b16 %v3465
        %v3976 = vunpack.c.h.b16 %v3465
        %v3977 = vunpack.c.l.b16 %v3466
        %v3978 = vunpack.c.l.b16 %v3467
        %v3979 = vunpack.c.h.b16 %v3467
        %v3980 = vunpack.c.l.b16 %v3468
        %v3981 = vunpack.c.h.b16 %v3468
        %v3982 = vunpack.c.l.b16 %v3469
        %v3983 = vunpack.c.l.b16 %v3470
        %v3984 = vunpack.c.h.b16 %v3470
        %v3985 = vunpack.c.l.b16 %v3471
        %v3986 = vunpack.c.h.b16 %v3471
        %v3987 = vunpack.c.l.b16 %v3472
        %v3988 = vunpack.c.l.b16 %v3473
        %v3989 = vunpack.c.h.b16 %v3473
        %v3990 = vunpack.c.l.b16 %v3474
        %v3991 = vunpack.c.h.b16 %v3474
        %v3992 = vunpack.c.l.b16 %v3475
        %v3993 = vunpack.c.l.b16 %v3476
        %v3994 = vunpack.c.h.b16 %v3476
        %v3995 = vunpack.c.l.b16 %v3477
        %v3996 = vunpack.c.h.b16 %v3477
        %v3997 = vunpack.c.l.b16 %v3478
        %v3998 = vunpack.c.l.b16 %v3479
        %v3999 = vunpack.c.h.b16 %v3479
        %v4000 = vunpack.c.l.b16 %v3480
        %v4001 = vunpack.c.h.b16 %v3480
        %v4002 = vunpack.c.l.b16 %v3481
        %v4003 = vunpack.c.l.b16 %v3482
        %v4004 = vunpack.c.h.b16 %v3482
        %v4005 = vunpack.c.l.b16 %v3483
        %v4006 = vunpack.c.h.b16 %v3483
        %v4007 = vunpack.c.l.b16 %v3484
        %v4008 = vunpack.c.l.b16 %v3485
        %v4009 = vunpack.c.h.b16 %v3485
        %v4010 = vunpack.c.l.b16 %v3486
        %v4011 = vunpack.c.h.b16 %v3486
        %v4012 = vunpack.c.l.b16 %v3487
        %v4013 = vunpack.c.l.b16 %v3488
        %v4014 = vunpack.c.h.b16 %v3488
        %v4015 = vunpack.c.l.b16 %v3489
        %v4016 = vunpack.c.h.b16 %v3489
        %v4017 = vunpack.c.l.b16 %v3490
        %v4018 = vunpack.c.l.b16 %v3491
        %v4019 = vunpack.c.h.b16 %v3491
        %v4020 = vunpack.c.l.b16 %v3492
        %v4021 = vunpack.c.h.b16 %v3492
        %v4022 = vunpack.c.l.b16 %v3493
        %v4023 = vunpack.c.l.b16 %v3494
        %v4024 = vunpack.c.h.b16 %v3494
        %v4025 = vunpack.c.l.b16 %v3495
        %v4026 = vunpack.c.h.b16 %v3495
        %v4027 = vunpack.c.l.b16 %v3496
        %v4028 = vunpack.c.l.b16 %v3497
        %v4029 = vunpack.c.h.b16 %v3497
        %v4030 = vunpack.c.l.b16 %v3498
        %v4031 = vunpack.c.h.b16 %v3498
        %v4032 = vunpack.c.l.b16 %v3499
        %v4033 = vunpack.c.l.b16 %v3500
        %v4034 = vunpack.c.h.b16 %v3500
        %v4035 = vunpack.c.l.b16 %v3501
        %v4036 = vunpack.c.h.b16 %v3501
        %v4037 = vunpack.c.l.b16 %v3502
        %v4038 = vunpack.c.l.b16 %v3503
        %v4039 = vunpack.c.h.b16 %v3503
        %v4040 = vunpack.c.l.b16 %v3504
        %v4041 = vunpack.c.h.b16 %v3504
        %v4042 = vunpack.c.l.b16 %v3505
        %v4043 = vunpack.c.l.b16 %v3506
        %v4044 = vunpack.c.h.b16 %v3506
        %v4045 = vunpack.c.l.b16 %v3507
        %v4046 = vunpack.c.h.b16 %v3507
        %v4047 = vunpack.c.l.b16 %v3508
        %v4048 = vunpack.c.l.b16 %v3509
        %v4049 = vunpack.c.h.b16 %v3509
        %v4050 = vunpack.c.l.b16 %v3510
        %v4051 = vunpack.c.h.b16 %v3510
        %v4052 = vunpack.c.l.b16 %v3511
        %v4053 = vunpack.c.l.b16 %v3512
        %v4054 = vunpack.c.h.b16 %v3512
        %v4055 = vunpack.c.l.b16 %v3513
        %v4056 = vunpack.c.h.b16 %v3513
        %v4057 = vunpack.c.l.b16 %v3514
        %v4058 = vunpack.c.l.b16 %v3515
        %v4059 = vunpack.c.h.b16 %v3515
        %v4060 = vunpack.c.l.b16 %v3516
        %v4061 = vunpack.c.h.b16 %v3516
        %v4062 = vunpack.c.l.b16 %v3517
        %v4063 = vunpack.c.l.b16 %v3518
        %v4064 = vunpack.c.h.b16 %v3518
        %v4065 = vunpack.c.l.b16 %v3519
        %v4066 = vunpack.c.h.b16 %v3519
        %v4067 = vunpack.c.l.b16 %v3520
        %v4068 = vunpack.c.l.b16 %v3521
        %v4069 = vunpack.c.h.b16 %v3521
        %v4070 = vunpack.c.l.b16 %v3522
        %v4071 = vunpack.c.h.b16 %v3522
        %v4072 = vunpack.c.l.b16 %v3523
        %v4073 = vunpack.c.l.b16 %v3524
        %v4074 = vunpack.c.h.b16 %v3524
        %v4075 = vunpack.c.l.b16 %v3525
        %v4076 = vunpack.c.h.b16 %v3525
        %v4077 = vunpack.c.l.b16 %v3526
        %v4078 = vunpack.c.l.b16 %v3527
        %v4079 = vunpack.c.h.b16 %v3527
        %v4080 = vunpack.c.l.b16 %v3528
        %v4081 = vunpack.c.h.b16 %v3528
        %v4082 = vunpack.c.l.b16 %v3529
        %v4083 = vunpack.c.l.b16 %v3530
        %v4084 = vunpack.c.h.b16 %v3530
        %v4085 = vunpack.c.l.b16 %v3531
        %v4086 = vunpack.c.h.b16 %v3531
        %v4087 = vunpack.c.l.b16 %v3532
        %v4088 = vunpack.c.l.b16 %v3533
        %v4089 = vunpack.c.h.b16 %v3533
        %v4090 = vunpack.c.l.b16 %v3534
        %v4091 = vunpack.c.h.b16 %v3534
        %v4092 = vunpack.c.l.b16 %v3535
        %v4093 = vunpack.c.l.b16 %v3536
        %v4094 = vunpack.c.h.b16 %v3536
        %v4095 = vunpack.c.l.b16 %v3537
        %v4096 = vunpack.c.h.b16 %v3537
        %v4097 = vunpack.c.l.b16 %v3538
        %v4098 = vunpack.c.l.b16 %v3539
        %v4099 = vunpack.c.h.b16 %v3539
        %v4100 = vunpack.c.l.b16 %v3540
        %v4101 = vunpack.c.h.b16 %v3540
        %v4102 = vunpack.c.l.b16 %v3541
        %v4103 = vunpack.c.l.b16 %v3542
        %v4104 = vunpack.c.h.b16 %v3542
        %v4105 = vunpack.c.l.b16 %v3543
        %v4106 = vunpack.c.h.b16 %v3543
        %v4107 = vunpack.c.l.b16 %v3544
        %v4108 = vunpack.c.l.b16 %v3545
        %v4109 = vunpack.c.h.b16 %v3545
        %v4110 = vunpack.c.l.b16 %v3546
        %v4111 = vunpack.c.h.b16 %v3546
        %v4112 = vunpack.c.l.b16 %v3547
        %v4113 = vunpack.c.l.b16 %v3548
        %v4114 = vunpack.c.h.b16 %v3548
        %v4115 = vunpack.c.l.b16 %v3549
        %v4116 = vunpack.c.h.b16 %v3549
        %v4117 = vunpack.c.l.b16 %v3550
        %v4118 = vunpack.c.l.b16 %v3551
        %v4119 = vunpack.c.h.b16 %v3551
        %v4120 = vunpack.c.l.b16 %v3552
        %v4121 = vunpack.c.h.b16 %v3552
        %v4122 = vunpack.c.l.b16 %v3553
        %v4123 = vunpack.c.l.b16 %v3554
        %v4124 = vunpack.c.h.b16 %v3554
        %v4125 = vunpack.c.l.b16 %v3555
        %v4126 = vunpack.c.h.b16 %v3555
        %v4127 = vunpack.c.l.b16 %v3556
        %v4128 = vunpack.c.l.b16 %v3557
        %v4129 = vunpack.c.h.b16 %v3557
        %v4130 = vunpack.c.l.b16 %v3558
        %v4131 = vunpack.c.h.b16 %v3558
        %v4132 = vunpack.c.l.b16 %v3559
        %v4133 = vunpack.c.l.b16 %v3560
        %v4134 = vunpack.c.h.b16 %v3560
        %v4135 = vunpack.c.l.b16 %v3561
        %v4136 = vunpack.c.h.b16 %v3561
        %v4137 = vunpack.c.l.b16 %v3562
        %v4138 = vunpack.c.l.b16 %v3563
        %v4139 = vunpack.c.h.b16 %v3563
        %v4140 = vunpack.c.l.b16 %v3564
        %v4141 = vunpack.c.h.b16 %v3564
        %v4142 = vunpack.c.l.b16 %v3565
        %v4143 = vunpack.c.l.b16 %v3566
        %v4144 = vunpack.c.h.b16 %v3566
        %v4145 = vunpack.c.l.b16 %v3567
        %v4146 = vunpack.c.h.b16 %v3567
        %v4147 = vunpack.c.l.b16 %v3568
        %v4148 = vunpack.c.l.b16 %v3569
        %v4149 = vunpack.c.h.b16 %v3569
        %v4150 = vunpack.c.l.b16 %v3570
        %v4151 = vunpack.c.h.b16 %v3570
        %v4152 = vunpack.c.l.b16 %v3571
        %v4153 = vunpack.c.l.b16 %v3572
        %v4154 = vunpack.c.h.b16 %v3572
        %v4155 = vunpack.c.l.b16 %v3573
        %v4156 = vunpack.c.h.b16 %v3573
        %v4157 = vunpack.c.l.b16 %v3574
        %v4158 = vunpack.c.l.b16 %v3575
        %v4159 = vunpack.c.h.b16 %v3575
        %v4160 = vunpack.c.l.b16 %v3576
        %v4161 = vunpack.c.h.b16 %v3576
        %v4162 = vunpack.c.l.b16 %v3577
        %v4163 = vunpack.c.l.b16 %v3578
        %v4164 = vunpack.c.h.b16 %v3578
        %v4165 = vunpack.c.l.b16 %v3579
        %v4166 = vunpack.c.h.b16 %v3579
        %v4167 = vunpack.c.l.b16 %v3580
        %v4168 = vunpack.c.l.b16 %v3581
        %v4169 = vunpack.c.h.b16 %v3581
        %v4170 = vunpack.c.l.b16 %v3582
        %v4171 = vunpack.c.h.b16 %v3582
        %v4172 = vunpack.c.l.b16 %v3583
        %v4173 = vunpack.c.l.b16 %v3584
        %v4174 = vunpack.c.h.b16 %v3584
        %v4175 = vunpack.c.l.b16 %v3585
        %v4176 = vunpack.c.h.b16 %v3585
        %v4177 = vunpack.c.l.b16 %v3586
        %v4178 = vunpack.c.l.b16 %v3587
        %v4179 = vunpack.c.h.b16 %v3587
        %v4180 = vunpack.c.l.b16 %v3588
        %v4181 = vunpack.c.h.b16 %v3588
        %v4182 = vunpack.c.l.b16 %v3589
        %v4183 = vunpack.c.l.b16 %v3590
        %v4184 = vunpack.c.h.b16 %v3590
        %v4185 = vunpack.c.l.b16 %v3591
        %v4186 = vunpack.c.h.b16 %v3591
        %v4187 = vunpack.c.l.b16 %v3592
        %v4188 = vunpack.c.l.b16 %v3593
        %v4189 = vunpack.c.h.b16 %v3593
        %v4190 = vunpack.c.l.b16 %v3594
        %v4191 = vunpack.c.h.b16 %v3594
        %v4192 = vunpack.c.l.b16 %v3595
        %v4193 = vunpack.c.l.b16 %v3596
        %v4194 = vunpack.c.h.b16 %v3596
        %v4195 = vunpack.c.l.b16 %v3597
        %v4196 = vunpack.c.h.b16 %v3597
        %v4197 = vunpack.c.l.b16 %v3598
        %v4198 = vunpack.c.l.b16 %v3599
        %v4199 = vunpack.c.h.b16 %v3599
        %v4200 = vunpack.c.l.b16 %v3600
        %v4201 = vunpack.c.h.b16 %v3600
        %v4202 = vunpack.c.l.b16 %v3601
        %v4203 = vunpack.c.l.b16 %v3602
        %v4204 = vunpack.c.h.b16 %v3602
        %v4205 = vunpack.c.l.b16 %v3603
        %v4206 = vunpack.c.h.b16 %v3603
        %v4207 = vunpack.c.l.b16 %v3604
        %v4208 = vunpack.c.l.b16 %v3605
        %v4209 = vunpack.c.h.b16 %v3605
        %v4210 = vunpack.c.l.b16 %v3606
        %v4211 = vunpack.c.h.b16 %v3606
        %v4212 = vunpack.c.l.b16 %v3607
        %v4213 = vunpack.c.l.b16 %v3608
        %v4214 = vunpack.c.h.b16 %v3608
        %v4215 = vunpack.c.l.b16 %v3609
        %v4216 = vunpack.c.h.b16 %v3609
        %v4217 = vunpack.c.l.b16 %v3610
        %v4218 = vunpack.c.l.b16 %v3611
        %v4219 = vunpack.c.h.b16 %v3611
        %v4220 = vunpack.c.l.b16 %v3612
        %v4221 = vunpack.c.h.b16 %v3612
        %v4222 = vunpack.c.l.b16 %v3613
        %v4223 = vunpack.c.l.b16 %v3614
        %v4224 = vunpack.c.h.b16 %v3614
        %v4225 = vunpack.c.l.b16 %v3615
        %v4226 = vunpack.c.h.b16 %v3615
        %v4227 = vunpack.c.l.b16 %v3616
        %v4228 = vunpack.c.l.b16 %v3617
        %v4229 = vunpack.c.h.b16 %v3617
        %v4230 = vunpack.c.l.b16 %v3618
        %v4231 = vunpack.c.h.b16 %v3618
        %v4232 = vunpack.c.l.b16 %v3619
        %v4233 = vunpack.c.l.b16 %v3620
        %v4234 = vunpack.c.h.b16 %v3620
        %v4235 = vunpack.c.l.b16 %v3621
        %v4236 = vunpack.c.h.b16 %v3621
        %v4237 = vunpack.c.l.b16 %v3622
        %v4238 = vunpack.c.l.b16 %v3623
        %v4239 = vunpack.c.h.b16 %v3623
        %v4240 = vunpack.c.l.b16 %v3624
        %v4241 = vunpack.c.h.b16 %v3624
        %v4242 = vunpack.c.l.b16 %v3625
        %v4243 = vunpack.c.l.b16 %v3626
        %v4244 = vunpack.c.h.b16 %v3626
        %v4245 = vunpack.c.l.b16 %v3627
        %v4246 = vunpack.c.h.b16 %v3627
        %v4247 = vunpack.c.l.b16 %v3628
        %v4248 = vunpack.c.l.b16 %v3629
        %v4249 = vunpack.c.h.b16 %v3629
        %v4250 = vunpack.c.l.b16 %v3630
        %v4251 = vunpack.c.h.b16 %v3630
        %v4252 = vunpack.c.l.b16 %v3631
        %v4253 = vunpack.c.l.b16 %v3632
        %v4254 = vunpack.c.h.b16 %v3632
        %v4255 = vunpack.c.l.b16 %v3633
        %v4256 = vunpack.c.h.b16 %v3633
        %v4257 = vunpack.c.l.b16 %v3634
        %v4258 = vunpack.c.l.b16 %v3635
        %v4259 = vunpack.c.h.b16 %v3635
        %v4260 = vunpack.c.l.b16 %v3636
        %v4261 = vunpack.c.h.b16 %v3636
        %v4262 = vunpack.c.l.b16 %v3637
        %v4263 = vunpack.c.l.b16 %v3638
        %v4264 = vunpack.c.h.b16 %v3638
        %v4265 = vunpack.c.l.b16 %v3639
        %v4266 = vunpack.c.h.b16 %v3639
        %v4267 = vunpack.c.l.b16 %v3640
        %v4268 = vunpack.c.l.b16 %v3641
        %v4269 = vunpack.c.h.b16 %v3641
        %v4270 = vunpack.c.l.b16 %v3642
        %v4271 = vunpack.c.h.b16 %v3642
        %v4272 = vunpack.c.l.b16 %v3643
        %v4273 = vunpack.c.l.b16 %v3644
        %v4274 = vunpack.c.h.b16 %v3644
        %v4275 = vunpack.c.l.b16 %v3645
        %v4276 = vunpack.c.h.b16 %v3645
        %v4277 = vunpack.c.l.b16 %v3646
        %v4278 = vunpack.c.l.b16 %v3647
        %v4279 = vunpack.c.h.b16 %v3647
        %v4280 = vunpack.c.l.b16 %v3648
        %v4281 = vunpack.c.h.b16 %v3648
        %v4282 = vunpack.c.l.b16 %v3649
        %v4283 = vunpack.c.l.b16 %v3650
        %v4284 = vunpack.c.h.b16 %v3650
        %v4285 = vunpack.c.l.b16 %v3651
        %v4286 = vunpack.c.h.b16 %v3651
        %v4287 = vunpack.c.l.b16 %v3652
        %v4288 = vunpack.c.l.b16 %v3653
        %v4289 = vunpack.c.h.b16 %v3653
        %v4290 = vunpack.c.l.b16 %v3654
        %v4291 = vunpack.c.h.b16 %v3654
        %v4292 = vunpack.c.l.b16 %v3655
        %v4293 = vunpack.c.l.b16 %v3656
        %v4294 = vunpack.c.h.b16 %v3656
        %v4295 = vunpack.c.l.b16 %v3657
        %v4296 = vunpack.c.h.b16 %v3657
        %v4297 = vunpack.c.l.b16 %v3658
        %v4298 = vunpack.c.l.b16 %v3659
        %v4299 = vunpack.c.h.b16 %v3659
        %v4300 = vunpack.c.l.b16 %v3660
        %v4301 = vunpack.c.h.b16 %v3660
        %v4302 = vunpack.c.l.b16 %v3661
        %v4303 = vunpack.c.l.b16 %v3662
        %v4304 = vunpack.c.h.b16 %v3662
        %v4305 = vunpack.c.l.b16 %v3663
        %v4306 = vunpack.c.h.b16 %v3663
        %v4307 = vunpack.c.l.b16 %v3664
        %v4308 = vunpack.c.l.b16 %v3665
        %v4309 = vunpack.c.h.b16 %v3665
        %v4310 = vunpack.c.l.b16 %v3666
        %v4311 = vunpack.c.h.b16 %v3666
        %v4312 = vunpack.c.l.b16 %v3667
        %v4313 = vunpack.c.l.b16 %v3668
        %v4314 = vunpack.c.h.b16 %v3668
        %v4315 = vunpack.c.l.b16 %v3669
        %v4316 = vunpack.c.h.b16 %v3669
        %v4317 = vunpack.c.l.b16 %v3670
        %v4318 = vunpack.c.l.b16 %v3671
        %v4319 = vunpack.c.h.b16 %v3671
        %v4320 = vunpack.c.l.b16 %v3672
        %v4321 = vunpack.c.h.b16 %v3672
        %v4322 = vunpack.c.l.b16 %v3673
        %v4323 = vunpack.c.l.b16 %v3674
        %v4324 = vunpack.c.h.b16 %v3674
        %v4325 = vunpack.c.l.b16 %v3675
        %v4326 = vunpack.c.h.b16 %v3675
        %v4327 = vunpack.c.l.b16 %v3676
        %v4328 = vunpack.c.l.b16 %v3677
        %v4329 = vunpack.c.h.b16 %v3677
        %v4330 = vunpack.c.l.b16 %v3678
        %v4331 = vunpack.c.h.b16 %v3678
        %v4332 = vunpack.c.l.b16 %v3679
        %v4333 = vunpack.c.l.b16 %v3680
        %v4334 = vunpack.c.h.b16 %v3680
        %v4335 = vunpack.c.l.b16 %v3681
        %v4336 = vunpack.c.h.b16 %v3681
        %v4337 = vunpack.c.l.b16 %v3682
        %v4338 = vunpack.c.l.b16 %v3683
        %v4339 = vunpack.c.h.b16 %v3683
        %v4340 = vunpack.c.l.b16 %v3684
        %v4341 = vunpack.c.h.b16 %v3684
        %v4342 = vunpack.c.l.b16 %v3685
        %v4343 = vpack.c.b16 %v3948, %v3943
        %v4344 = vpack.c.b16 %v3949, %v3944
        %v4345 = vpack.c.b16 %v3950, %v3945
        %v4346 = vpack.c.b16 %v3951, %v3946
        %v4347 = vpack.c.b16 %v3952, %v3947
        %v4348 = vpack.c.b16 %v3958, %v3953
        %v4349 = vpack.c.b16 %v3959, %v3954
        %v4350 = vpack.c.b16 %v3960, %v3955
        %v4351 = vpack.c.b16 %v3961, %v3956
        %v4352 = vpack.c.b16 %v3962, %v3957
        %v4353 = vpack.c.b16 %v3968, %v3963
        %v4354 = vpack.c.b16 %v3969, %v3964
        %v4355 = vpack.c.b16 %v3970, %v3965
        %v4356 = vpack.c.b16 %v3971, %v3966
        %v4357 = vpack.c.b16 %v3972, %v3967
        %v4358 = vpack.c.b16 %v3978, %v3973
        %v4359 = vpack.c.b16 %v3979, %v3974
        %v4360 = vpack.c.b16 %v3980, %v3975
        %v4361 = vpack.c.b16 %v3981, %v3976
        %v4362 = vpack.c.b16 %v3982, %v3977
        %v4363 = vpack.c.b16 %v3988, %v3983
        %v4364 = vpack.c.b16 %v3989, %v3984
        %v4365 = vpack.c.b16 %v3990, %v3985
        %v4366 = vpack.c.b16 %v3991, %v3986
        %v4367 = vpack.c.b16 %v3992, %v3987
        %v4368 = vpack.c.b16 %v3998, %v3993
        %v4369 = vpack.c.b16 %v3999, %v3994
        %v4370 = vpack.c.b16 %v4000, %v3995
        %v4371 = vpack.c.b16 %v4001, %v3996
        %v4372 = vpack.c.b16 %v4002, %v3997
        %v4373 = vpack.c.b16 %v4008, %v4003
        %v4374 = vpack.c.b16 %v4009, %v4004
        %v4375 = vpack.c.b16 %v4010, %v4005
        %v4376 = vpack.c.b16 %v4011, %v4006
        %v4377 = vpack.c.b16 %v4012, %v4007
        %v4378 = vpack.c.b16 %v4018, %v4013
        %v4379 = vpack.c.b16 %v4019, %v4014
        %v4380 = vpack.c.b16 %v4020, %v4015
        %v4381 = vpack.c.b16 %v4021, %v4016
        %v4382 = vpack.c.b16 %v4022, %v4017
        %v4383 = vpack.c.b16 %v4028, %v4023
        %v4384 = vpack.c.b16 %v4029, %v4024
        %v4385 = vpack.c.b16 %v4030, %v4025
        %v4386 = vpack.c.b16 %v4031, %v4026
        %v4387 = vpack.c.b16 %v4032, %v4027
        %v4388 = vpack.c.b16 %v4038, %v4033
        %v4389 = vpack.c.b16 %v4039, %v4034
        %v4390 = vpack.c.b16 %v4040, %v4035
        %v4391 = vpack.c.b16 %v4041, %v4036
        %v4392 = vpack.c.b16 %v4042, %v4037
        %v4393 = vpack.c.b16 %v4048, %v4043
        %v4394 = vpack.c.b16 %v4049, %v4044
        %v4395 = vpack.c.b16 %v4050, %v4045
        %v4396 = vpack.c.b16 %v4051, %v4046
        %v4397 = vpack.c.b16 %v4052, %v4047
        %v4398 = vpack.c.b16 %v4058, %v4053
        %v4399 = vpack.c.b16 %v4059, %v4054
        %v4400 = vpack.c.b16 %v4060, %v4055
        %v4401 = vpack.c.b16 %v4061, %v4056
        %v4402 = vpack.c.b16 %v4062, %v4057
        %v4403 = vpack.c.b16 %v4068, %v4063
        %v4404 = vpack.c.b16 %v4069, %v4064
        %v4405 = vpack.c.b16 %v4070, %v4065
        %v4406 = vpack.c.b16 %v4071, %v4066
        %v4407 = vpack.c.b16 %v4072, %v4067
        %v4408 = vpack.c.b16 %v4078, %v4073
        %v4409 = vpack.c.b16 %v4079, %v4074
        %v4410 = vpack.c.b16 %v4080, %v4075
        %v4411 = vpack.c.b16 %v4081, %v4076
        %v4412 = vpack.c.b16 %v4082, %v4077
        %v4413 = vpack.c.b16 %v4088, %v4083
        %v4414 = vpack.c.b16 %v4089, %v4084
        %v4415 = vpack.c.b16 %v4090, %v4085
        %v4416 = vpack.c.b16 %v4091, %v4086
        %v4417 = vpack.c.b16 %v4092, %v4087
        %v4418 = vpack.c.b16 %v4098, %v4093
        %v4419 = vpack.c.b16 %v4099, %v4094
        %v4420 = vpack.c.b16 %v4100, %v4095
        %v4421 = vpack.c.b16 %v4101, %v4096
        %v4422 = vpack.c.b16 %v4102, %v4097
        %v4423 = vpack.c.b16 %v4108, %v4103
        %v4424 = vpack.c.b16 %v4109, %v4104
        %v4425 = vpack.c.b16 %v4110, %v4105
        %v4426 = vpack.c.b16 %v4111, %v4106
        %v4427 = vpack.c.b16 %v4112, %v4107
        %v4428 = vpack.c.b16 %v4118, %v4113
        %v4429 = vpack.c.b16 %v4119, %v4114
        %v4430 = vpack.c.b16 %v4120, %v4115
        %v4431 = vpack.c.b16 %v4121, %v4116
        %v4432 = vpack.c.b16 %v4122, %v4117
        %v4433 = vpack.c.b16 %v4128, %v4123
        %v4434 = vpack.c.b16 %v4129, %v4124
        %v4435 = vpack.c.b16 %v4130, %v4125
        %v4436 = vpack.c.b16 %v4131, %v4126
        %v4437 = vpack.c.b16 %v4132, %v4127
        %v4438 = vpack.c.b16 %v4138, %v4133
        %v4439 = vpack.c.b16 %v4139, %v4134
        %v4440 = vpack.c.b16 %v4140, %v4135
        %v4441 = vpack.c.b16 %v4141, %v4136
        %v4442 = vpack.c.b16 %v4142, %v4137
        %v4443 = vpack.c.b16 %v4148, %v4143
        %v4444 = vpack.c.b16 %v4149, %v4144
        %v4445 = vpack.c.b16 %v4150, %v4145
        %v4446 = vpack.c.b16 %v4151, %v4146
        %v4447 = vpack.c.b16 %v4152, %v4147
        %v4448 = vpack.c.b16 %v4158, %v4153
        %v4449 = vpack.c.b16 %v4159, %v4154
        %v4450 = vpack.c.b16 %v4160, %v4155
        %v4451 = vpack.c.b16 %v4161, %v4156
        %v4452 = vpack.c.b16 %v4162, %v4157
        %v4453 = vpack.c.b16 %v4168, %v4163
        %v4454 = vpack.c.b16 %v4169, %v4164
        %v4455 = vpack.c.b16 %v4170, %v4165
        %v4456 = vpack.c.b16 %v4171, %v4166
        %v4457 = vpack.c.b16 %v4172, %v4167
        %v4458 = vpack.c.b16 %v4178, %v4173
        %v4459 = vpack.c.b16 %v4179, %v4174
        %v4460 = vpack.c.b16 %v4180, %v4175
        %v4461 = vpack.c.b16 %v4181, %v4176
        %v4462 = vpack.c.b16 %v4182, %v4177
        %v4463 = vpack.c.b16 %v4188, %v4183
        %v4464 = vpack.c.b16 %v4189, %v4184
        %v4465 = vpack.c.b16 %v4190, %v4185
        %v4466 = vpack.c.b16 %v4191, %v4186
        %v4467 = vpack.c.b16 %v4192, %v4187
        %v4468 = vpack.c.b16 %v4198, %v4193
        %v4469 = vpack.c.b16 %v4199, %v4194
        %v4470 = vpack.c.b16 %v4200, %v4195
        %v4471 = vpack.c.b16 %v4201, %v4196
        %v4472 = vpack.c.b16 %v4202, %v4197
        %v4473 = vpack.c.b16 %v4208, %v4203
        %v4474 = vpack.c.b16 %v4209, %v4204
        %v4475 = vpack.c.b16 %v4210, %v4205
        %v4476 = vpack.c.b16 %v4211, %v4206
        %v4477 = vpack.c.b16 %v4212, %v4207
        %v4478 = vpack.c.b16 %v4218, %v4213
        %v4479 = vpack.c.b16 %v4219, %v4214
        %v4480 = vpack.c.b16 %v4220, %v4215
        %v4481 = vpack.c.b16 %v4221, %v4216
        %v4482 = vpack.c.b16 %v4222, %v4217
        %v4483 = vpack.c.b16 %v4228, %v4223
        %v4484 = vpack.c.b16 %v4229, %v4224
        %v4485 = vpack.c.b16 %v4230, %v4225
        %v4486 = vpack.c.b16 %v4231, %v4226
        %v4487 = vpack.c.b16 %v4232, %v4227
        %v4488 = vpack.c.b16 %v4238, %v4233
        %v4489 = vpack.c.b16 %v4239, %v4234
        %v4490 = vpack.c.b16 %v4240, %v4235
        %v4491 = vpack.c.b16 %v4241, %v4236
        %v4492 = vpack.c.b16 %v4242, %v4237
        %v4493 = vpack.c.b16 %v4248, %v4243
        %v4494 = vpack.c.b16 %v4249, %v4244
        %v4495 = vpack.c.b16 %v4250, %v4245
        %v4496 = vpack.c.b16 %v4251, %v4246
        %v4497 = vpack.c.b16 %v4252, %v4247
        %v4498 = vpack.c.b16 %v4258, %v4253
        %v4499 = vpack.c.b16 %v4259, %v4254
        %v4500 = vpack.c.b16 %v4260, %v4255
        %v4501 = vpack.c.b16 %v4261, %v4256
        %v4502 = vpack.c.b16 %v4262, %v4257
        %v4503 = vpack.c.b16 %v4268, %v4263
        %v4504 = vpack.c.b16 %v4269, %v4264
        %v4505 = vpack.c.b16 %v4270, %v4265
        %v4506 = vpack.c.b16 %v4271, %v4266
        %v4507 = vpack.c.b16 %v4272, %v4267
        %v4508 = vpack.c.b16 %v4278, %v4273
        %v4509 = vpack.c.b16 %v4279, %v4274
        %v4510 = vpack.c.b16 %v4280, %v4275
        %v4511 = vpack.c.b16 %v4281, %v4276
        %v4512 = vpack.c.b16 %v4282, %v4277
        %v4513 = vpack.c.b16 %v4288, %v4283
        %v4514 = vpack.c.b16 %v4289, %v4284
        %v4515 = vpack.c.b16 %v4290, %v4285
        %v4516 = vpack.c.b16 %v4291, %v4286
        %v4517 = vpack.c.b16 %v4292, %v4287
        %v4518 = vpack.c.b16 %v4298, %v4293
        %v4519 = vpack.c.b16 %v4299, %v4294
        %v4520 = vpack.c.b16 %v4300, %v4295
        %v4521 = vpack.c.b16 %v4301, %v4296
        %v4522 = vpack.c.b16 %v4302, %v4297
        %v4523 = vpack.c.b16 %v4308, %v4303
        %v4524 = vpack.c.b16 %v4309, %v4304
        %v4525 = vpack.c.b16 %v4310, %v4305
        %v4526 = vpack.c.b16 %v4311, %v4306
        %v4527 = vpack.c.b16 %v4312, %v4307
        %v4528 = vpack.c.b16 %v4318, %v4313
        %v4529 = vpack.c.b16 %v4319, %v4314
        %v4530 = vpack.c.b16 %v4320, %v4315
        %v4531 = vpack.c.b16 %v4321, %v4316
        %v4532 = vpack.c.b16 %v4322, %v4317
        %v4533 = vpack.c.b16 %v4328, %v4323
        %v4534 = vpack.c.b16 %v4329, %v4324
        %v4535 = vpack.c.b16 %v4330, %v4325
        %v4536 = vpack.c.b16 %v4331, %v4326
        %v4537 = vpack.c.b16 %v4332, %v4327
        %v4538 = vpack.c.b16 %v4338, %v4333
        %v4539 = vpack.c.b16 %v4339, %v4334
        %v4540 = vpack.c.b16 %v4340, %v4335
        %v4541 = vpack.c.b16 %v4341, %v4336
        %v4542 = vpack.c.b16 %v4342, %v4337
        %4743 = vmatpush.bf16.msra.mxu0 %v4378
        %4744 = vmatpush.bf16.msra.mxu0 %v4373
        %4745 = vmatpush.bf16.msra.mxu0 %v4368
        %4746 = vmatpush.bf16.msra.mxu0 %v4363
        %4747 = vmatpush.bf16.msra.mxu0 %v4358
        %4748 = vmatpush.bf16.msra.mxu0 %v4353
        %4749 = vmatpush.bf16.msra.mxu0 %v4348
        %4750 = vmatpush.bf16.msra.mxu0 %v4343
        %4751 = vmatmul.bf16.gmra.mxu0 %v3686
        %v4752 = vpop.f32.mrf.mxu0
        %v4753 = vadd.f32 %v3693, %v4752
        %v4754 = vpop.f32.mrf.mxu0
        %4755 = vdwg.mxu0
        %4756 = vmatpush.bf16.msra.mxu0 %v4418
        %4757 = vmatpush.bf16.msra.mxu0 %v4413
        %4758 = vmatpush.bf16.msra.mxu0 %v4408
        %4759 = vmatpush.bf16.msra.mxu0 %v4403
        %4760 = vmatpush.bf16.msra.mxu0 %v4398
        %4761 = vmatpush.bf16.msra.mxu0 %v4393
        %4762 = vmatpush.bf16.msra.mxu0 %v4388
        %4763 = vmatpush.bf16.msra.mxu0 %v4383
        %4764 = vmatmul.bf16.gmra.mxu0 %v3687
        %v4765 = vpop.f32.mrf.mxu0
        %v4766 = vadd.f32 %v4753, %v4765
        %v4767 = vpop.f32.mrf.mxu0
        %4768 = vdwg.mxu0
        %4769 = vmatpush.bf16.msra.mxu0 %v4458
        %4770 = vmatpush.bf16.msra.mxu0 %v4453
        %4771 = vmatpush.bf16.msra.mxu0 %v4448
        %4772 = vmatpush.bf16.msra.mxu0 %v4443
        %4773 = vmatpush.bf16.msra.mxu0 %v4438
        %4774 = vmatpush.bf16.msra.mxu0 %v4433
        %4775 = vmatpush.bf16.msra.mxu0 %v4428
        %4776 = vmatpush.bf16.msra.mxu0 %v4423
        %4777 = vmatmul.bf16.gmra.mxu0 %v3688
        %v4778 = vpop.f32.mrf.mxu0
        %v4779 = vadd.f32 %v4766, %v4778
        %v4780 = vpop.f32.mrf.mxu0
        %4781 = vdwg.mxu0
        %4782 = vmatpush.bf16.msra.mxu0 %v4498
        %4783 = vmatpush.bf16.msra.mxu0 %v4493
        %4784 = vmatpush.bf16.msra.mxu0 %v4488
        %4785 = vmatpush.bf16.msra.mxu0 %v4483
        %4786 = vmatpush.bf16.msra.mxu0 %v4478
        %4787 = vmatpush.bf16.msra.mxu0 %v4473
        %4788 = vmatpush.bf16.msra.mxu0 %v4468
        %4789 = vmatpush.bf16.msra.mxu0 %v4463
        %4790 = vmatmul.bf16.gmra.mxu0 %v3689
        %v4791 = vpop.f32.mrf.mxu0
        %v4792 = vadd.f32 %v4779, %v4791
        %v4793 = vpop.f32.mrf.mxu0
        %4794 = vdwg.mxu0
        %4795 = vmatpush.bf16.msra.mxu0 %v4538
        %4796 = vmatpush.bf16.msra.mxu0 %v4533
        %4797 = vmatpush.bf16.msra.mxu0 %v4528
        %4798 = vmatpush.bf16.msra.mxu0 %v4523
        %4799 = vmatpush.bf16.msra.mxu0 %v4518
        %4800 = vmatpush.bf16.msra.mxu0 %v4513
        %4801 = vmatpush.bf16.msra.mxu0 %v4508
        %4802 = vmatpush.bf16.msra.mxu0 %v4503
        %4803 = vmatmul.bf16.gmra.mxu0 %v3690
        %v4804 = vpop.f32.mrf.mxu0
        %v4805 = vadd.f32 %v4792, %v4804
        %v4806 = vpop.f32.mrf.mxu0
        %4807 = vdwg.mxu0
        %4808 = vmatpush.bf16.msra.mxu0 %v4379
        %4809 = vmatpush.bf16.msra.mxu0 %v4374
        %4810 = vmatpush.bf16.msra.mxu0 %v4369
        %4811 = vmatpush.bf16.msra.mxu0 %v4364
        %4812 = vmatpush.bf16.msra.mxu0 %v4359
        %4813 = vmatpush.bf16.msra.mxu0 %v4354
        %4814 = vmatpush.bf16.msra.mxu0 %v4349
        %4815 = vmatpush.bf16.msra.mxu0 %v4344
        %4816 = vmatmul.bf16.gmra.mxu0 %v3686
        %v4817 = vpop.f32.mrf.mxu0
        %v4818 = vadd.f32 %v3694, %v4817
        %v4819 = vpop.f32.mrf.mxu0
        %4820 = vdwg.mxu0
        %4821 = vmatpush.bf16.msra.mxu0 %v4419
        %4822 = vmatpush.bf16.msra.mxu0 %v4414
        %4823 = vmatpush.bf16.msra.mxu0 %v4409
        %4824 = vmatpush.bf16.msra.mxu0 %v4404
        %4825 = vmatpush.bf16.msra.mxu0 %v4399
        %4826 = vmatpush.bf16.msra.mxu0 %v4394
        %4827 = vmatpush.bf16.msra.mxu0 %v4389
        %4828 = vmatpush.bf16.msra.mxu0 %v4384
        %4829 = vmatmul.bf16.gmra.mxu0 %v3687
        %v4830 = vpop.f32.mrf.mxu0
        %v4831 = vadd.f32 %v4818, %v4830
        %v4832 = vpop.f32.mrf.mxu0
        %4833 = vdwg.mxu0
        %4834 = vmatpush.bf16.msra.mxu0 %v4459
        %4835 = vmatpush.bf16.msra.mxu0 %v4454
        %4836 = vmatpush.bf16.msra.mxu0 %v4449
        %4837 = vmatpush.bf16.msra.mxu0 %v4444
        %4838 = vmatpush.bf16.msra.mxu0 %v4439
        %4839 = vmatpush.bf16.msra.mxu0 %v4434
        %4840 = vmatpush.bf16.msra.mxu0 %v4429
        %4841 = vmatpush.bf16.msra.mxu0 %v4424
        %4842 = vmatmul.bf16.gmra.mxu0 %v3688
        %v4843 = vpop.f32.mrf.mxu0
        %v4844 = vadd.f32 %v4831, %v4843
        %v4845 = vpop.f32.mrf.mxu0
        %4846 = vdwg.mxu0
        %4847 = vmatpush.bf16.msra.mxu0 %v4499
        %4848 = vmatpush.bf16.msra.mxu0 %v4494
        %4849 = vmatpush.bf16.msra.mxu0 %v4489
        %4850 = vmatpush.bf16.msra.mxu0 %v4484
        %4851 = vmatpush.bf16.msra.mxu0 %v4479
        %4852 = vmatpush.bf16.msra.mxu0 %v4474
        %4853 = vmatpush.bf16.msra.mxu0 %v4469
        %4854 = vmatpush.bf16.msra.mxu0 %v4464
        %4855 = vmatmul.bf16.gmra.mxu0 %v3689
        %v4856 = vpop.f32.mrf.mxu0
        %v4857 = vadd.f32 %v4844, %v4856
        %v4858 = vpop.f32.mrf.mxu0
        %4859 = vdwg.mxu0
        %4860 = vmatpush.bf16.msra.mxu0 %v4539
        %4861 = vmatpush.bf16.msra.mxu0 %v4534
        %4862 = vmatpush.bf16.msra.mxu0 %v4529
        %4863 = vmatpush.bf16.msra.mxu0 %v4524
        %4864 = vmatpush.bf16.msra.mxu0 %v4519
        %4865 = vmatpush.bf16.msra.mxu0 %v4514
        %4866 = vmatpush.bf16.msra.mxu0 %v4509
        %4867 = vmatpush.bf16.msra.mxu0 %v4504
        %4868 = vmatmul.bf16.gmra.mxu0 %v3690
        %v4869 = vpop.f32.mrf.mxu0
        %v4870 = vadd.f32 %v4857, %v4869
        %v4871 = vpop.f32.mrf.mxu0
        %4872 = vdwg.mxu0
        %4873 = vmatpush.bf16.msra.mxu0 %v4380
        %4874 = vmatpush.bf16.msra.mxu0 %v4375
        %4875 = vmatpush.bf16.msra.mxu0 %v4370
        %4876 = vmatpush.bf16.msra.mxu0 %v4365
        %4877 = vmatpush.bf16.msra.mxu0 %v4360
        %4878 = vmatpush.bf16.msra.mxu0 %v4355
        %4879 = vmatpush.bf16.msra.mxu0 %v4350
        %4880 = vmatpush.bf16.msra.mxu0 %v4345
        %4881 = vmatmul.bf16.gmra.mxu0 %v3686
        %v4882 = vpop.f32.mrf.mxu0
        %v4883 = vadd.f32 %v3695, %v4882
        %v4884 = vpop.f32.mrf.mxu0
        %4885 = vdwg.mxu0
        %4886 = vmatpush.bf16.msra.mxu0 %v4420
        %4887 = vmatpush.bf16.msra.mxu0 %v4415
        %4888 = vmatpush.bf16.msra.mxu0 %v4410
        %4889 = vmatpush.bf16.msra.mxu0 %v4405
        %4890 = vmatpush.bf16.msra.mxu0 %v4400
        %4891 = vmatpush.bf16.msra.mxu0 %v4395
        %4892 = vmatpush.bf16.msra.mxu0 %v4390
        %4893 = vmatpush.bf16.msra.mxu0 %v4385
        %4894 = vmatmul.bf16.gmra.mxu0 %v3687
        %v4895 = vpop.f32.mrf.mxu0
        %v4896 = vadd.f32 %v4883, %v4895
        %v4897 = vpop.f32.mrf.mxu0
        %4898 = vdwg.mxu0
        %4899 = vmatpush.bf16.msra.mxu0 %v4460
        %4900 = vmatpush.bf16.msra.mxu0 %v4455
        %4901 = vmatpush.bf16.msra.mxu0 %v4450
        %4902 = vmatpush.bf16.msra.mxu0 %v4445
        %4903 = vmatpush.bf16.msra.mxu0 %v4440
        %4904 = vmatpush.bf16.msra.mxu0 %v4435
        %4905 = vmatpush.bf16.msra.mxu0 %v4430
        %4906 = vmatpush.bf16.msra.mxu0 %v4425
        %4907 = vmatmul.bf16.gmra.mxu0 %v3688
        %v4908 = vpop.f32.mrf.mxu0
        %v4909 = vadd.f32 %v4896, %v4908
        %v4910 = vpop.f32.mrf.mxu0
        %4911 = vdwg.mxu0
        %4912 = vmatpush.bf16.msra.mxu0 %v4500
        %4913 = vmatpush.bf16.msra.mxu0 %v4495
        %4914 = vmatpush.bf16.msra.mxu0 %v4490
        %4915 = vmatpush.bf16.msra.mxu0 %v4485
        %4916 = vmatpush.bf16.msra.mxu0 %v4480
        %4917 = vmatpush.bf16.msra.mxu0 %v4475
        %4918 = vmatpush.bf16.msra.mxu0 %v4470
        %4919 = vmatpush.bf16.msra.mxu0 %v4465
        %4920 = vmatmul.bf16.gmra.mxu0 %v3689
        %v4921 = vpop.f32.mrf.mxu0
        %v4922 = vadd.f32 %v4909, %v4921
        %v4923 = vpop.f32.mrf.mxu0
        %4924 = vdwg.mxu0
        %4925 = vmatpush.bf16.msra.mxu0 %v4540
        %4926 = vmatpush.bf16.msra.mxu0 %v4535
        %4927 = vmatpush.bf16.msra.mxu0 %v4530
        %4928 = vmatpush.bf16.msra.mxu0 %v4525
        %4929 = vmatpush.bf16.msra.mxu0 %v4520
        %4930 = vmatpush.bf16.msra.mxu0 %v4515
        %4931 = vmatpush.bf16.msra.mxu0 %v4510
        %4932 = vmatpush.bf16.msra.mxu0 %v4505
        %4933 = vmatmul.bf16.gmra.mxu0 %v3690
        %v4934 = vpop.f32.mrf.mxu0
        %v4935 = vadd.f32 %v4922, %v4934
        %v4936 = vpop.f32.mrf.mxu0
        %4937 = vdwg.mxu0
        %4938 = vmatpush.bf16.msra.mxu0 %v4381
        %4939 = vmatpush.bf16.msra.mxu0 %v4376
        %4940 = vmatpush.bf16.msra.mxu0 %v4371
        %4941 = vmatpush.bf16.msra.mxu0 %v4366
        %4942 = vmatpush.bf16.msra.mxu0 %v4361
        %4943 = vmatpush.bf16.msra.mxu0 %v4356
        %4944 = vmatpush.bf16.msra.mxu0 %v4351
        %4945 = vmatpush.bf16.msra.mxu0 %v4346
        %4946 = vmatmul.bf16.gmra.mxu0 %v3686
        %v4947 = vpop.f32.mrf.mxu0
        %v4948 = vadd.f32 %v3696, %v4947
        %v4949 = vpop.f32.mrf.mxu0
        %4950 = vdwg.mxu0
        %4951 = vmatpush.bf16.msra.mxu0 %v4421
        %4952 = vmatpush.bf16.msra.mxu0 %v4416
        %4953 = vmatpush.bf16.msra.mxu0 %v4411
        %4954 = vmatpush.bf16.msra.mxu0 %v4406
        %4955 = vmatpush.bf16.msra.mxu0 %v4401
        %4956 = vmatpush.bf16.msra.mxu0 %v4396
        %4957 = vmatpush.bf16.msra.mxu0 %v4391
        %4958 = vmatpush.bf16.msra.mxu0 %v4386
        %4959 = vmatmul.bf16.gmra.mxu0 %v3687
        %v4960 = vpop.f32.mrf.mxu0
        %v4961 = vadd.f32 %v4948, %v4960
        %v4962 = vpop.f32.mrf.mxu0
        %4963 = vdwg.mxu0
        %4964 = vmatpush.bf16.msra.mxu0 %v4461
        %4965 = vmatpush.bf16.msra.mxu0 %v4456
        %4966 = vmatpush.bf16.msra.mxu0 %v4451
        %4967 = vmatpush.bf16.msra.mxu0 %v4446
        %4968 = vmatpush.bf16.msra.mxu0 %v4441
        %4969 = vmatpush.bf16.msra.mxu0 %v4436
        %4970 = vmatpush.bf16.msra.mxu0 %v4431
        %4971 = vmatpush.bf16.msra.mxu0 %v4426
        %4972 = vmatmul.bf16.gmra.mxu0 %v3688
        %v4973 = vpop.f32.mrf.mxu0
        %v4974 = vadd.f32 %v4961, %v4973
        %v4975 = vpop.f32.mrf.mxu0
        %4976 = vdwg.mxu0
        %4977 = vmatpush.bf16.msra.mxu0 %v4501
        %4978 = vmatpush.bf16.msra.mxu0 %v4496
        %4979 = vmatpush.bf16.msra.mxu0 %v4491
        %4980 = vmatpush.bf16.msra.mxu0 %v4486
        %4981 = vmatpush.bf16.msra.mxu0 %v4481
        %4982 = vmatpush.bf16.msra.mxu0 %v4476
        %4983 = vmatpush.bf16.msra.mxu0 %v4471
        %4984 = vmatpush.bf16.msra.mxu0 %v4466
        %4985 = vmatmul.bf16.gmra.mxu0 %v3689
        %v4986 = vpop.f32.mrf.mxu0
        %v4987 = vadd.f32 %v4974, %v4986
        %v4988 = vpop.f32.mrf.mxu0
        %4989 = vdwg.mxu0
        %4990 = vmatpush.bf16.msra.mxu0 %v4541
        %4991 = vmatpush.bf16.msra.mxu0 %v4536
        %4992 = vmatpush.bf16.msra.mxu0 %v4531
        %4993 = vmatpush.bf16.msra.mxu0 %v4526
        %4994 = vmatpush.bf16.msra.mxu0 %v4521
        %4995 = vmatpush.bf16.msra.mxu0 %v4516
        %4996 = vmatpush.bf16.msra.mxu0 %v4511
        %4997 = vmatpush.bf16.msra.mxu0 %v4506
        %4998 = vmatmul.bf16.gmra.mxu0 %v3690
        %v4999 = vpop.f32.mrf.mxu0
        %v5000 = vadd.f32 %v4987, %v4999
        %v5001 = vpop.f32.mrf.mxu0
        %5002 = vdwg.mxu0
        %5003 = vmatpush.bf16.msra.mxu0 %v4382
        %5004 = vmatpush.bf16.msra.mxu0 %v4377
        %5005 = vmatpush.bf16.msra.mxu0 %v4372
        %5006 = vmatpush.bf16.msra.mxu0 %v4367
        %5007 = vmatpush.bf16.msra.mxu0 %v4362
        %5008 = vmatpush.bf16.msra.mxu0 %v4357
        %5009 = vmatpush.bf16.msra.mxu0 %v4352
        %5010 = vmatpush.bf16.msra.mxu0 %v4347
        %5011 = vmatmul.bf16.gmra.mxu0 %v3686
        %v5012 = vpop.f32.mrf.mxu0
        %v5013 = vadd.f32 %v3697, %v5012
        %v5014 = vpop.f32.mrf.mxu0
        %5015 = vdwg.mxu0
        %5016 = vmatpush.bf16.msra.mxu0 %v4422
        %5017 = vmatpush.bf16.msra.mxu0 %v4417
        %5018 = vmatpush.bf16.msra.mxu0 %v4412
        %5019 = vmatpush.bf16.msra.mxu0 %v4407
        %5020 = vmatpush.bf16.msra.mxu0 %v4402
        %5021 = vmatpush.bf16.msra.mxu0 %v4397
        %5022 = vmatpush.bf16.msra.mxu0 %v4392
        %5023 = vmatpush.bf16.msra.mxu0 %v4387
        %5024 = vmatmul.bf16.gmra.mxu0 %v3687
        %v5025 = vpop.f32.mrf.mxu0
        %v5026 = vadd.f32 %v5013, %v5025
        %v5027 = vpop.f32.mrf.mxu0
        %5028 = vdwg.mxu0
        %5029 = vmatpush.bf16.msra.mxu0 %v4462
        %5030 = vmatpush.bf16.msra.mxu0 %v4457
        %5031 = vmatpush.bf16.msra.mxu0 %v4452
        %5032 = vmatpush.bf16.msra.mxu0 %v4447
        %5033 = vmatpush.bf16.msra.mxu0 %v4442
        %5034 = vmatpush.bf16.msra.mxu0 %v4437
        %5035 = vmatpush.bf16.msra.mxu0 %v4432
        %5036 = vmatpush.bf16.msra.mxu0 %v4427
        %5037 = vmatmul.bf16.gmra.mxu0 %v3688
        %v5038 = vpop.f32.mrf.mxu0
        %v5039 = vadd.f32 %v5026, %v5038
        %v5040 = vpop.f32.mrf.mxu0
        %5041 = vdwg.mxu0
        %5042 = vmatpush.bf16.msra.mxu0 %v4502
        %5043 = vmatpush.bf16.msra.mxu0 %v4497
        %5044 = vmatpush.bf16.msra.mxu0 %v4492
        %5045 = vmatpush.bf16.msra.mxu0 %v4487
        %5046 = vmatpush.bf16.msra.mxu0 %v4482
        %5047 = vmatpush.bf16.msra.mxu0 %v4477
        %5048 = vmatpush.bf16.msra.mxu0 %v4472
        %5049 = vmatpush.bf16.msra.mxu0 %v4467
        %5050 = vmatmul.bf16.gmra.mxu0 %v3689
        %v5051 = vpop.f32.mrf.mxu0
        %v5052 = vadd.f32 %v5039, %v5051
        %v5053 = vpop.f32.mrf.mxu0
        %5054 = vdwg.mxu0
        %5055 = vmatpush.bf16.msra.mxu0 %v4542
        %5056 = vmatpush.bf16.msra.mxu0 %v4537
        %5057 = vmatpush.bf16.msra.mxu0 %v4532
        %5058 = vmatpush.bf16.msra.mxu0 %v4527
        %5059 = vmatpush.bf16.msra.mxu0 %v4522
        %5060 = vmatpush.bf16.msra.mxu0 %v4517
        %5061 = vmatpush.bf16.msra.mxu0 %v4512
        %5062 = vmatpush.bf16.msra.mxu0 %v4507
        %5063 = vmatmul.bf16.gmra.mxu0 %v3690
        %v5064 = vpop.f32.mrf.mxu0
        %v5065 = vadd.f32 %v5052, %v5064
        %v5066 = vpop.f32.mrf.mxu0
        %5067 = vdwg.mxu0
        %v5072 = vrot.slane %v4870, 6
        %v5073 = vrot.slane %v4935, 4
        %v5074 = vrot.slane %v5000, 2
        %v5075 = vsel %vm1241, %v4805, %v5072
        %v5076 = vsel %vm3438, %v5073, %v5074
        %v5077 = vsel %vm3440, %v5075, %v5076
        %5079 = vst [vmem:[%s267 + $0xa] sm:$0xff] %v5077
        %5080 = vst [vmem:[%s267 + $0x12] sm:$0x3] %v5065
        %s5081 = scalar_lea.vmem %s5, 3200
        %v5082 = vld [vmem:[%s5081] sm:$0xff]
        %v5083 = vld [vmem:[%s5081 + $0x8] sm:$0xff]
        %v5084 = vld [vmem:[%s5081 + $0x10] sm:$0xf]
        %v5085 = vld [vmem:[%s5081 + $0x14] sm:$0xff]
        %v5086 = vld [vmem:[%s5081 + $0x1c] sm:$0xff]
        %v5087 = vld [vmem:[%s5081 + $0x24] sm:$0xf]
        %v5088 = vld [vmem:[%s5081 + $0x28] sm:$0xff]
        %v5089 = vld [vmem:[%s5081 + $0x30] sm:$0xff]
        %v5090 = vld [vmem:[%s5081 + $0x38] sm:$0xf]
        %v5091 = vld [vmem:[%s5081 + $0x3c] sm:$0xff]
        %v5092 = vld [vmem:[%s5081 + $0x44] sm:$0xff]
        %v5093 = vld [vmem:[%s5081 + $0x4c] sm:$0xf]
        %v5094 = vld [vmem:[%s5081 + $0x50] sm:$0xff]
        %v5095 = vld [vmem:[%s5081 + $0x58] sm:$0xff]
        %v5096 = vld [vmem:[%s5081 + $0x60] sm:$0xf]
        %v5097 = vld [vmem:[%s5081 + $0x64] sm:$0xff]
        %v5098 = vld [vmem:[%s5081 + $0x6c] sm:$0xff]
        %v5099 = vld [vmem:[%s5081 + $0x74] sm:$0xf]
        %v5100 = vld [vmem:[%s5081 + $0x78] sm:$0xff]
        %v5101 = vld [vmem:[%s5081 + $0x80] sm:$0xff]
        %v5102 = vld [vmem:[%s5081 + $0x88] sm:$0xf]
        %v5103 = vld [vmem:[%s5081 + $0x8c] sm:$0xff]
        %v5104 = vld [vmem:[%s5081 + $0x94] sm:$0xff]
        %v5105 = vld [vmem:[%s5081 + $0x9c] sm:$0xf]
        %v5106 = vld [vmem:[%s5081 + $0xa0] sm:$0xff]
        %v5107 = vld [vmem:[%s5081 + $0xa8] sm:$0xff]
        %v5108 = vld [vmem:[%s5081 + $0xb0] sm:$0xf]
        %v5109 = vld [vmem:[%s5081 + $0xb4] sm:$0xff]
        %v5110 = vld [vmem:[%s5081 + $0xbc] sm:$0xff]
        %v5111 = vld [vmem:[%s5081 + $0xc4] sm:$0xf]
        %v5112 = vld [vmem:[%s5081 + $0xc8] sm:$0xff]
        %v5113 = vld [vmem:[%s5081 + $0xd0] sm:$0xff]
        %v5114 = vld [vmem:[%s5081 + $0xd8] sm:$0xf]
        %v5115 = vld [vmem:[%s5081 + $0xdc] sm:$0xff]
        %v5116 = vld [vmem:[%s5081 + $0xe4] sm:$0xff]
        %v5117 = vld [vmem:[%s5081 + $0xec] sm:$0xf]
        %v5118 = vld [vmem:[%s5081 + $0xf0] sm:$0xff]
        %v5119 = vld [vmem:[%s5081 + $0xf8] sm:$0xff]
        %v5120 = vld [vmem:[%s5081 + $0x100] sm:$0xf]
        %v5121 = vld [vmem:[%s5081 + $0x104] sm:$0xff]
        %v5122 = vld [vmem:[%s5081 + $0x10c] sm:$0xff]
        %v5123 = vld [vmem:[%s5081 + $0x114] sm:$0xf]
        %v5124 = vld [vmem:[%s5081 + $0x118] sm:$0xff]
        %v5125 = vld [vmem:[%s5081 + $0x120] sm:$0xff]
        %v5126 = vld [vmem:[%s5081 + $0x128] sm:$0xf]
        %v5127 = vld [vmem:[%s5081 + $0x12c] sm:$0xff]
        %v5128 = vld [vmem:[%s5081 + $0x134] sm:$0xff]
        %v5129 = vld [vmem:[%s5081 + $0x13c] sm:$0xf]
        %v5130 = vld [vmem:[%s5081 + $0x140] sm:$0xff]
        %v5131 = vld [vmem:[%s5081 + $0x148] sm:$0xff]
        %v5132 = vld [vmem:[%s5081 + $0x150] sm:$0xf]
        %v5133 = vld [vmem:[%s5081 + $0x154] sm:$0xff]
        %v5134 = vld [vmem:[%s5081 + $0x15c] sm:$0xff]
        %v5135 = vld [vmem:[%s5081 + $0x164] sm:$0xf]
        %v5136 = vld [vmem:[%s5081 + $0x168] sm:$0xff]
        %v5137 = vld [vmem:[%s5081 + $0x170] sm:$0xff]
        %v5138 = vld [vmem:[%s5081 + $0x178] sm:$0xf]
        %v5139 = vld [vmem:[%s5081 + $0x17c] sm:$0xff]
        %v5140 = vld [vmem:[%s5081 + $0x184] sm:$0xff]
        %v5141 = vld [vmem:[%s5081 + $0x18c] sm:$0xf]
        %v5142 = vld [vmem:[%s5081 + $0x190] sm:$0xff]
        %v5143 = vld [vmem:[%s5081 + $0x198] sm:$0xff]
        %v5144 = vld [vmem:[%s5081 + $0x1a0] sm:$0xf]
        %v5145 = vld [vmem:[%s5081 + $0x1a4] sm:$0xff]
        %v5146 = vld [vmem:[%s5081 + $0x1ac] sm:$0xff]
        %v5147 = vld [vmem:[%s5081 + $0x1b4] sm:$0xf]
        %v5148 = vld [vmem:[%s5081 + $0x1b8] sm:$0xff]
        %v5149 = vld [vmem:[%s5081 + $0x1c0] sm:$0xff]
        %v5150 = vld [vmem:[%s5081 + $0x1c8] sm:$0xf]
        %v5151 = vld [vmem:[%s5081 + $0x1cc] sm:$0xff]
        %v5152 = vld [vmem:[%s5081 + $0x1d4] sm:$0xff]
        %v5153 = vld [vmem:[%s5081 + $0x1dc] sm:$0xf]
        %v5154 = vld [vmem:[%s5081 + $0x1e0] sm:$0xff]
        %v5155 = vld [vmem:[%s5081 + $0x1e8] sm:$0xff]
        %v5156 = vld [vmem:[%s5081 + $0x1f0] sm:$0xf]
        %v5157 = vld [vmem:[%s5081 + $0x1f4] sm:$0xff]
        %v5158 = vld [vmem:[%s5081 + $0x1fc] sm:$0xff]
        %v5159 = vld [vmem:[%s5081 + $0x204] sm:$0xf]
        %v5160 = vld [vmem:[%s5081 + $0x208] sm:$0xff]
        %v5161 = vld [vmem:[%s5081 + $0x210] sm:$0xff]
        %v5162 = vld [vmem:[%s5081 + $0x218] sm:$0xf]
        %v5163 = vld [vmem:[%s5081 + $0x21c] sm:$0xff]
        %v5164 = vld [vmem:[%s5081 + $0x224] sm:$0xff]
        %v5165 = vld [vmem:[%s5081 + $0x22c] sm:$0xf]
        %v5166 = vld [vmem:[%s5081 + $0x230] sm:$0xff]
        %v5167 = vld [vmem:[%s5081 + $0x238] sm:$0xff]
        %v5168 = vld [vmem:[%s5081 + $0x240] sm:$0xf]
        %v5169 = vld [vmem:[%s5081 + $0x244] sm:$0xff]
        %v5170 = vld [vmem:[%s5081 + $0x24c] sm:$0xff]
        %v5171 = vld [vmem:[%s5081 + $0x254] sm:$0xf]
        %v5172 = vld [vmem:[%s5081 + $0x258] sm:$0xff]
        %v5173 = vld [vmem:[%s5081 + $0x260] sm:$0xff]
        %v5174 = vld [vmem:[%s5081 + $0x268] sm:$0xf]
        %v5175 = vld [vmem:[%s5081 + $0x26c] sm:$0xff]
        %v5176 = vld [vmem:[%s5081 + $0x274] sm:$0xff]
        %v5177 = vld [vmem:[%s5081 + $0x27c] sm:$0xf]
        %v5178 = vld [vmem:[%s5081 + $0x280] sm:$0xff]
        %v5179 = vld [vmem:[%s5081 + $0x288] sm:$0xff]
        %v5180 = vld [vmem:[%s5081 + $0x290] sm:$0xf]
        %v5181 = vld [vmem:[%s5081 + $0x294] sm:$0xff]
        %v5182 = vld [vmem:[%s5081 + $0x29c] sm:$0xff]
        %v5183 = vld [vmem:[%s5081 + $0x2a4] sm:$0xf]
        %v5184 = vld [vmem:[%s5081 + $0x2a8] sm:$0xff]
        %v5185 = vld [vmem:[%s5081 + $0x2b0] sm:$0xff]
        %v5186 = vld [vmem:[%s5081 + $0x2b8] sm:$0xf]
        %v5187 = vld [vmem:[%s5081 + $0x2bc] sm:$0xff]
        %v5188 = vld [vmem:[%s5081 + $0x2c4] sm:$0xff]
        %v5189 = vld [vmem:[%s5081 + $0x2cc] sm:$0xf]
        %v5190 = vld [vmem:[%s5081 + $0x2d0] sm:$0xff]
        %v5191 = vld [vmem:[%s5081 + $0x2d8] sm:$0xff]
        %v5192 = vld [vmem:[%s5081 + $0x2e0] sm:$0xf]
        %v5193 = vld [vmem:[%s5081 + $0x2e4] sm:$0xff]
        %v5194 = vld [vmem:[%s5081 + $0x2ec] sm:$0xff]
        %v5195 = vld [vmem:[%s5081 + $0x2f4] sm:$0xf]
        %v5196 = vld [vmem:[%s5081 + $0x2f8] sm:$0xff]
        %v5197 = vld [vmem:[%s5081 + $0x300] sm:$0xff]
        %v5198 = vld [vmem:[%s5081 + $0x308] sm:$0xf]
        %v5199 = vld [vmem:[%s5081 + $0x30c] sm:$0xff]
        %v5200 = vld [vmem:[%s5081 + $0x314] sm:$0xff]
        %v5201 = vld [vmem:[%s5081 + $0x31c] sm:$0xf]
        %v5202 = vld [vmem:[%s5081 + $0x320] sm:$0xff]
        %v5203 = vld [vmem:[%s5081 + $0x328] sm:$0xff]
        %v5204 = vld [vmem:[%s5081 + $0x330] sm:$0xf]
        %v5205 = vld [vmem:[%s5081 + $0x334] sm:$0xff]
        %v5206 = vld [vmem:[%s5081 + $0x33c] sm:$0xff]
        %v5207 = vld [vmem:[%s5081 + $0x344] sm:$0xf]
        %v5208 = vld [vmem:[%s5081 + $0x348] sm:$0xff]
        %v5209 = vld [vmem:[%s5081 + $0x350] sm:$0xff]
        %v5210 = vld [vmem:[%s5081 + $0x358] sm:$0xf]
        %v5211 = vld [vmem:[%s5081 + $0x35c] sm:$0xff]
        %v5212 = vld [vmem:[%s5081 + $0x364] sm:$0xff]
        %v5213 = vld [vmem:[%s5081 + $0x36c] sm:$0xf]
        %v5214 = vld [vmem:[%s5081 + $0x370] sm:$0xff]
        %v5215 = vld [vmem:[%s5081 + $0x378] sm:$0xff]
        %v5216 = vld [vmem:[%s5081 + $0x380] sm:$0xf]
        %v5217 = vld [vmem:[%s5081 + $0x384] sm:$0xff]
        %v5218 = vld [vmem:[%s5081 + $0x38c] sm:$0xff]
        %v5219 = vld [vmem:[%s5081 + $0x394] sm:$0xf]
        %v5220 = vld [vmem:[%s5081 + $0x398] sm:$0xff]
        %v5221 = vld [vmem:[%s5081 + $0x3a0] sm:$0xff]
        %v5222 = vld [vmem:[%s5081 + $0x3a8] sm:$0xf]
        %v5223 = vld [vmem:[%s5081 + $0x3ac] sm:$0xff]
        %v5224 = vld [vmem:[%s5081 + $0x3b4] sm:$0xff]
        %v5225 = vld [vmem:[%s5081 + $0x3bc] sm:$0xf]
        %v5226 = vld [vmem:[%s5081 + $0x3c0] sm:$0xff]
        %v5227 = vld [vmem:[%s5081 + $0x3c8] sm:$0xff]
        %v5228 = vld [vmem:[%s5081 + $0x3d0] sm:$0xf]
        %v5229 = vld [vmem:[%s5081 + $0x3d4] sm:$0xff]
        %v5230 = vld [vmem:[%s5081 + $0x3dc] sm:$0xff]
        %v5231 = vld [vmem:[%s5081 + $0x3e4] sm:$0xf]
        %v5232 = vld [vmem:[%s5081 + $0x3e8] sm:$0xff]
        %v5233 = vld [vmem:[%s5081 + $0x3f0] sm:$0xff]
        %v5234 = vld [vmem:[%s5081 + $0x3f8] sm:$0xf]
        %v5235 = vld [vmem:[%s5081 + $0x3fc] sm:$0xff]
        %v5236 = vld [vmem:[%s5081 + $0x404] sm:$0xff]
        %v5237 = vld [vmem:[%s5081 + $0x40c] sm:$0xf]
        %v5238 = vld [vmem:[%s5081 + $0x410] sm:$0xff]
        %v5239 = vld [vmem:[%s5081 + $0x418] sm:$0xff]
        %v5240 = vld [vmem:[%s5081 + $0x420] sm:$0xf]
        %v5241 = vld [vmem:[%s5081 + $0x424] sm:$0xff]
        %v5242 = vld [vmem:[%s5081 + $0x42c] sm:$0xff]
        %v5243 = vld [vmem:[%s5081 + $0x434] sm:$0xf]
        %v5244 = vld [vmem:[%s5081 + $0x438] sm:$0xff]
        %v5245 = vld [vmem:[%s5081 + $0x440] sm:$0xff]
        %v5246 = vld [vmem:[%s5081 + $0x448] sm:$0xf]
        %v5247 = vld [vmem:[%s5081 + $0x44c] sm:$0xff]
        %v5248 = vld [vmem:[%s5081 + $0x454] sm:$0xff]
        %v5249 = vld [vmem:[%s5081 + $0x45c] sm:$0xf]
        %v5250 = vld [vmem:[%s5081 + $0x460] sm:$0xff]
        %v5251 = vld [vmem:[%s5081 + $0x468] sm:$0xff]
        %v5252 = vld [vmem:[%s5081 + $0x470] sm:$0xf]
        %v5253 = vld [vmem:[%s5081 + $0x474] sm:$0xff]
        %v5254 = vld [vmem:[%s5081 + $0x47c] sm:$0xff]
        %v5255 = vld [vmem:[%s5081 + $0x484] sm:$0xf]
        %v5256 = vld [vmem:[%s5081 + $0x488] sm:$0xff]
        %v5257 = vld [vmem:[%s5081 + $0x490] sm:$0xff]
        %v5258 = vld [vmem:[%s5081 + $0x498] sm:$0xf]
        %v5259 = vld [vmem:[%s5081 + $0x49c] sm:$0xff]
        %v5260 = vld [vmem:[%s5081 + $0x4a4] sm:$0xff]
        %v5261 = vld [vmem:[%s5081 + $0x4ac] sm:$0xf]
        %v5262 = vld [vmem:[%s5081 + $0x4b0] sm:$0xff]
        %v5263 = vld [vmem:[%s5081 + $0x4b8] sm:$0xff]
        %v5264 = vld [vmem:[%s5081 + $0x4c0] sm:$0xf]
        %v5265 = vld [vmem:[%s5081 + $0x4c4] sm:$0xff]
        %v5266 = vld [vmem:[%s5081 + $0x4cc] sm:$0xff]
        %v5267 = vld [vmem:[%s5081 + $0x4d4] sm:$0xf]
        %v5268 = vld [vmem:[%s5081 + $0x4d8] sm:$0xff]
        %v5269 = vld [vmem:[%s5081 + $0x4e0] sm:$0xff]
        %v5270 = vld [vmem:[%s5081 + $0x4e8] sm:$0xf]
        %v5271 = vld [vmem:[%s5081 + $0x4ec] sm:$0xff]
        %v5272 = vld [vmem:[%s5081 + $0x4f4] sm:$0xff]
        %v5273 = vld [vmem:[%s5081 + $0x4fc] sm:$0xf]
        %v5274 = vld [vmem:[%s5081 + $0x500] sm:$0xff]
        %v5275 = vld [vmem:[%s5081 + $0x508] sm:$0xff]
        %v5276 = vld [vmem:[%s5081 + $0x510] sm:$0xf]
        %v5277 = vld [vmem:[%s5081 + $0x514] sm:$0xff]
        %v5278 = vld [vmem:[%s5081 + $0x51c] sm:$0xff]
        %v5279 = vld [vmem:[%s5081 + $0x524] sm:$0xf]
        %v5280 = vld [vmem:[%s5081 + $0x528] sm:$0xff]
        %v5281 = vld [vmem:[%s5081 + $0x530] sm:$0xff]
        %v5282 = vld [vmem:[%s5081 + $0x538] sm:$0xf]
        %v5283 = vld [vmem:[%s5081 + $0x53c] sm:$0xff]
        %v5284 = vld [vmem:[%s5081 + $0x544] sm:$0xff]
        %v5285 = vld [vmem:[%s5081 + $0x54c] sm:$0xf]
        %v5286 = vld [vmem:[%s5081 + $0x550] sm:$0xff]
        %v5287 = vld [vmem:[%s5081 + $0x558] sm:$0xff]
        %v5288 = vld [vmem:[%s5081 + $0x560] sm:$0xf]
        %v5289 = vld [vmem:[%s5081 + $0x564] sm:$0xff]
        %v5290 = vld [vmem:[%s5081 + $0x56c] sm:$0xff]
        %v5291 = vld [vmem:[%s5081 + $0x574] sm:$0xf]
        %v5292 = vld [vmem:[%s5081 + $0x578] sm:$0xff]
        %v5293 = vld [vmem:[%s5081 + $0x580] sm:$0xff]
        %v5294 = vld [vmem:[%s5081 + $0x588] sm:$0xf]
        %v5295 = vld [vmem:[%s5081 + $0x58c] sm:$0xff]
        %v5296 = vld [vmem:[%s5081 + $0x594] sm:$0xff]
        %v5297 = vld [vmem:[%s5081 + $0x59c] sm:$0xf]
        %v5298 = vld [vmem:[%s5081 + $0x5a0] sm:$0xff]
        %v5299 = vld [vmem:[%s5081 + $0x5a8] sm:$0xff]
        %v5300 = vld [vmem:[%s5081 + $0x5b0] sm:$0xf]
        %v5301 = vld [vmem:[%s5081 + $0x5b4] sm:$0xff]
        %v5302 = vld [vmem:[%s5081 + $0x5bc] sm:$0xff]
        %v5303 = vld [vmem:[%s5081 + $0x5c4] sm:$0xf]
        %v5304 = vld [vmem:[%s5081 + $0x5c8] sm:$0xff]
        %v5305 = vld [vmem:[%s5081 + $0x5d0] sm:$0xff]
        %v5306 = vld [vmem:[%s5081 + $0x5d8] sm:$0xf]
        %v5307 = vld [vmem:[%s5081 + $0x5dc] sm:$0xff]
        %v5308 = vld [vmem:[%s5081 + $0x5e4] sm:$0xff]
        %v5309 = vld [vmem:[%s5081 + $0x5ec] sm:$0xf]
        %v5310 = vld [vmem:[%s5081 + $0x5f0] sm:$0xff]
        %v5311 = vld [vmem:[%s5081 + $0x5f8] sm:$0xff]
        %v5312 = vld [vmem:[%s5081 + $0x600] sm:$0xf]
        %v5313 = vld [vmem:[%s5081 + $0x604] sm:$0xff]
        %v5314 = vld [vmem:[%s5081 + $0x60c] sm:$0xff]
        %v5315 = vld [vmem:[%s5081 + $0x614] sm:$0xf]
        %v5316 = vld [vmem:[%s5081 + $0x618] sm:$0xff]
        %v5317 = vld [vmem:[%s5081 + $0x620] sm:$0xff]
        %v5318 = vld [vmem:[%s5081 + $0x628] sm:$0xf]
        %v5319 = vld [vmem:[%s5081 + $0x62c] sm:$0xff]
        %v5320 = vld [vmem:[%s5081 + $0x634] sm:$0xff]
        %v5321 = vld [vmem:[%s5081 + $0x63c] sm:$0xf]
        %v5322 = vpack.c.bf16 %v1803, %v1803
        %v5323 = vpack.c.bf16 %v1804, %v1804
        %v5324 = vpack.c.bf16 %v1805, %v1805
        %v5325 = vpack.c.bf16 %v1806, %v1806
        %v5326 = vpack.c.bf16 %v1807, %v1807
        %v5327 = vld [vmem:[%s6 + $0xa] sm:$0x1f]
        %v5329 = vperm.slane %v5327, 0
        %v5330 = vperm.slane %v5327, 1
        %v5331 = vperm.slane %v5327, 2
        %v5332 = vperm.slane %v5327, 3
        %v5333 = vperm.slane %v5327, 4
        %v5579 = vunpack.c.l.b16 %v5082
        %v5580 = vunpack.c.h.b16 %v5082
        %v5581 = vunpack.c.l.b16 %v5083
        %v5582 = vunpack.c.h.b16 %v5083
        %v5583 = vunpack.c.l.b16 %v5084
        %v5584 = vunpack.c.l.b16 %v5085
        %v5585 = vunpack.c.h.b16 %v5085
        %v5586 = vunpack.c.l.b16 %v5086
        %v5587 = vunpack.c.h.b16 %v5086
        %v5588 = vunpack.c.l.b16 %v5087
        %v5589 = vunpack.c.l.b16 %v5088
        %v5590 = vunpack.c.h.b16 %v5088
        %v5591 = vunpack.c.l.b16 %v5089
        %v5592 = vunpack.c.h.b16 %v5089
        %v5593 = vunpack.c.l.b16 %v5090
        %v5594 = vunpack.c.l.b16 %v5091
        %v5595 = vunpack.c.h.b16 %v5091
        %v5596 = vunpack.c.l.b16 %v5092
        %v5597 = vunpack.c.h.b16 %v5092
        %v5598 = vunpack.c.l.b16 %v5093
        %v5599 = vunpack.c.l.b16 %v5094
        %v5600 = vunpack.c.h.b16 %v5094
        %v5601 = vunpack.c.l.b16 %v5095
        %v5602 = vunpack.c.h.b16 %v5095
        %v5603 = vunpack.c.l.b16 %v5096
        %v5604 = vunpack.c.l.b16 %v5097
        %v5605 = vunpack.c.h.b16 %v5097
        %v5606 = vunpack.c.l.b16 %v5098
        %v5607 = vunpack.c.h.b16 %v5098
        %v5608 = vunpack.c.l.b16 %v5099
        %v5609 = vunpack.c.l.b16 %v5100
        %v5610 = vunpack.c.h.b16 %v5100
        %v5611 = vunpack.c.l.b16 %v5101
        %v5612 = vunpack.c.h.b16 %v5101
        %v5613 = vunpack.c.l.b16 %v5102
        %v5614 = vunpack.c.l.b16 %v5103
        %v5615 = vunpack.c.h.b16 %v5103
        %v5616 = vunpack.c.l.b16 %v5104
        %v5617 = vunpack.c.h.b16 %v5104
        %v5618 = vunpack.c.l.b16 %v5105
        %v5619 = vunpack.c.l.b16 %v5106
        %v5620 = vunpack.c.h.b16 %v5106
        %v5621 = vunpack.c.l.b16 %v5107
        %v5622 = vunpack.c.h.b16 %v5107
        %v5623 = vunpack.c.l.b16 %v5108
        %v5624 = vunpack.c.l.b16 %v5109
        %v5625 = vunpack.c.h.b16 %v5109
        %v5626 = vunpack.c.l.b16 %v5110
        %v5627 = vunpack.c.h.b16 %v5110
        %v5628 = vunpack.c.l.b16 %v5111
        %v5629 = vunpack.c.l.b16 %v5112
        %v5630 = vunpack.c.h.b16 %v5112
        %v5631 = vunpack.c.l.b16 %v5113
        %v5632 = vunpack.c.h.b16 %v5113
        %v5633 = vunpack.c.l.b16 %v5114
        %v5634 = vunpack.c.l.b16 %v5115
        %v5635 = vunpack.c.h.b16 %v5115
        %v5636 = vunpack.c.l.b16 %v5116
        %v5637 = vunpack.c.h.b16 %v5116
        %v5638 = vunpack.c.l.b16 %v5117
        %v5639 = vunpack.c.l.b16 %v5118
        %v5640 = vunpack.c.h.b16 %v5118
        %v5641 = vunpack.c.l.b16 %v5119
        %v5642 = vunpack.c.h.b16 %v5119
        %v5643 = vunpack.c.l.b16 %v5120
        %v5644 = vunpack.c.l.b16 %v5121
        %v5645 = vunpack.c.h.b16 %v5121
        %v5646 = vunpack.c.l.b16 %v5122
        %v5647 = vunpack.c.h.b16 %v5122
        %v5648 = vunpack.c.l.b16 %v5123
        %v5649 = vunpack.c.l.b16 %v5124
        %v5650 = vunpack.c.h.b16 %v5124
        %v5651 = vunpack.c.l.b16 %v5125
        %v5652 = vunpack.c.h.b16 %v5125
        %v5653 = vunpack.c.l.b16 %v5126
        %v5654 = vunpack.c.l.b16 %v5127
        %v5655 = vunpack.c.h.b16 %v5127
        %v5656 = vunpack.c.l.b16 %v5128
        %v5657 = vunpack.c.h.b16 %v5128
        %v5658 = vunpack.c.l.b16 %v5129
        %v5659 = vunpack.c.l.b16 %v5130
        %v5660 = vunpack.c.h.b16 %v5130
        %v5661 = vunpack.c.l.b16 %v5131
        %v5662 = vunpack.c.h.b16 %v5131
        %v5663 = vunpack.c.l.b16 %v5132
        %v5664 = vunpack.c.l.b16 %v5133
        %v5665 = vunpack.c.h.b16 %v5133
        %v5666 = vunpack.c.l.b16 %v5134
        %v5667 = vunpack.c.h.b16 %v5134
        %v5668 = vunpack.c.l.b16 %v5135
        %v5669 = vunpack.c.l.b16 %v5136
        %v5670 = vunpack.c.h.b16 %v5136
        %v5671 = vunpack.c.l.b16 %v5137
        %v5672 = vunpack.c.h.b16 %v5137
        %v5673 = vunpack.c.l.b16 %v5138
        %v5674 = vunpack.c.l.b16 %v5139
        %v5675 = vunpack.c.h.b16 %v5139
        %v5676 = vunpack.c.l.b16 %v5140
        %v5677 = vunpack.c.h.b16 %v5140
        %v5678 = vunpack.c.l.b16 %v5141
        %v5679 = vunpack.c.l.b16 %v5142
        %v5680 = vunpack.c.h.b16 %v5142
        %v5681 = vunpack.c.l.b16 %v5143
        %v5682 = vunpack.c.h.b16 %v5143
        %v5683 = vunpack.c.l.b16 %v5144
        %v5684 = vunpack.c.l.b16 %v5145
        %v5685 = vunpack.c.h.b16 %v5145
        %v5686 = vunpack.c.l.b16 %v5146
        %v5687 = vunpack.c.h.b16 %v5146
        %v5688 = vunpack.c.l.b16 %v5147
        %v5689 = vunpack.c.l.b16 %v5148
        %v5690 = vunpack.c.h.b16 %v5148
        %v5691 = vunpack.c.l.b16 %v5149
        %v5692 = vunpack.c.h.b16 %v5149
        %v5693 = vunpack.c.l.b16 %v5150
        %v5694 = vunpack.c.l.b16 %v5151
        %v5695 = vunpack.c.h.b16 %v5151
        %v5696 = vunpack.c.l.b16 %v5152
        %v5697 = vunpack.c.h.b16 %v5152
        %v5698 = vunpack.c.l.b16 %v5153
        %v5699 = vunpack.c.l.b16 %v5154
        %v5700 = vunpack.c.h.b16 %v5154
        %v5701 = vunpack.c.l.b16 %v5155
        %v5702 = vunpack.c.h.b16 %v5155
        %v5703 = vunpack.c.l.b16 %v5156
        %v5704 = vunpack.c.l.b16 %v5157
        %v5705 = vunpack.c.h.b16 %v5157
        %v5706 = vunpack.c.l.b16 %v5158
        %v5707 = vunpack.c.h.b16 %v5158
        %v5708 = vunpack.c.l.b16 %v5159
        %v5709 = vunpack.c.l.b16 %v5160
        %v5710 = vunpack.c.h.b16 %v5160
        %v5711 = vunpack.c.l.b16 %v5161
        %v5712 = vunpack.c.h.b16 %v5161
        %v5713 = vunpack.c.l.b16 %v5162
        %v5714 = vunpack.c.l.b16 %v5163
        %v5715 = vunpack.c.h.b16 %v5163
        %v5716 = vunpack.c.l.b16 %v5164
        %v5717 = vunpack.c.h.b16 %v5164
        %v5718 = vunpack.c.l.b16 %v5165
        %v5719 = vunpack.c.l.b16 %v5166
        %v5720 = vunpack.c.h.b16 %v5166
        %v5721 = vunpack.c.l.b16 %v5167
        %v5722 = vunpack.c.h.b16 %v5167
        %v5723 = vunpack.c.l.b16 %v5168
        %v5724 = vunpack.c.l.b16 %v5169
        %v5725 = vunpack.c.h.b16 %v5169
        %v5726 = vunpack.c.l.b16 %v5170
        %v5727 = vunpack.c.h.b16 %v5170
        %v5728 = vunpack.c.l.b16 %v5171
        %v5729 = vunpack.c.l.b16 %v5172
        %v5730 = vunpack.c.h.b16 %v5172
        %v5731 = vunpack.c.l.b16 %v5173
        %v5732 = vunpack.c.h.b16 %v5173
        %v5733 = vunpack.c.l.b16 %v5174
        %v5734 = vunpack.c.l.b16 %v5175
        %v5735 = vunpack.c.h.b16 %v5175
        %v5736 = vunpack.c.l.b16 %v5176
        %v5737 = vunpack.c.h.b16 %v5176
        %v5738 = vunpack.c.l.b16 %v5177
        %v5739 = vunpack.c.l.b16 %v5178
        %v5740 = vunpack.c.h.b16 %v5178
        %v5741 = vunpack.c.l.b16 %v5179
        %v5742 = vunpack.c.h.b16 %v5179
        %v5743 = vunpack.c.l.b16 %v5180
        %v5744 = vunpack.c.l.b16 %v5181
        %v5745 = vunpack.c.h.b16 %v5181
        %v5746 = vunpack.c.l.b16 %v5182
        %v5747 = vunpack.c.h.b16 %v5182
        %v5748 = vunpack.c.l.b16 %v5183
        %v5749 = vunpack.c.l.b16 %v5184
        %v5750 = vunpack.c.h.b16 %v5184
        %v5751 = vunpack.c.l.b16 %v5185
        %v5752 = vunpack.c.h.b16 %v5185
        %v5753 = vunpack.c.l.b16 %v5186
        %v5754 = vunpack.c.l.b16 %v5187
        %v5755 = vunpack.c.h.b16 %v5187
        %v5756 = vunpack.c.l.b16 %v5188
        %v5757 = vunpack.c.h.b16 %v5188
        %v5758 = vunpack.c.l.b16 %v5189
        %v5759 = vunpack.c.l.b16 %v5190
        %v5760 = vunpack.c.h.b16 %v5190
        %v5761 = vunpack.c.l.b16 %v5191
        %v5762 = vunpack.c.h.b16 %v5191
        %v5763 = vunpack.c.l.b16 %v5192
        %v5764 = vunpack.c.l.b16 %v5193
        %v5765 = vunpack.c.h.b16 %v5193
        %v5766 = vunpack.c.l.b16 %v5194
        %v5767 = vunpack.c.h.b16 %v5194
        %v5768 = vunpack.c.l.b16 %v5195
        %v5769 = vunpack.c.l.b16 %v5196
        %v5770 = vunpack.c.h.b16 %v5196
        %v5771 = vunpack.c.l.b16 %v5197
        %v5772 = vunpack.c.h.b16 %v5197
        %v5773 = vunpack.c.l.b16 %v5198
        %v5774 = vunpack.c.l.b16 %v5199
        %v5775 = vunpack.c.h.b16 %v5199
        %v5776 = vunpack.c.l.b16 %v5200
        %v5777 = vunpack.c.h.b16 %v5200
        %v5778 = vunpack.c.l.b16 %v5201
        %v5779 = vunpack.c.l.b16 %v5202
        %v5780 = vunpack.c.h.b16 %v5202
        %v5781 = vunpack.c.l.b16 %v5203
        %v5782 = vunpack.c.h.b16 %v5203
        %v5783 = vunpack.c.l.b16 %v5204
        %v5784 = vunpack.c.l.b16 %v5205
        %v5785 = vunpack.c.h.b16 %v5205
        %v5786 = vunpack.c.l.b16 %v5206
        %v5787 = vunpack.c.h.b16 %v5206
        %v5788 = vunpack.c.l.b16 %v5207
        %v5789 = vunpack.c.l.b16 %v5208
        %v5790 = vunpack.c.h.b16 %v5208
        %v5791 = vunpack.c.l.b16 %v5209
        %v5792 = vunpack.c.h.b16 %v5209
        %v5793 = vunpack.c.l.b16 %v5210
        %v5794 = vunpack.c.l.b16 %v5211
        %v5795 = vunpack.c.h.b16 %v5211
        %v5796 = vunpack.c.l.b16 %v5212
        %v5797 = vunpack.c.h.b16 %v5212
        %v5798 = vunpack.c.l.b16 %v5213
        %v5799 = vunpack.c.l.b16 %v5214
        %v5800 = vunpack.c.h.b16 %v5214
        %v5801 = vunpack.c.l.b16 %v5215
        %v5802 = vunpack.c.h.b16 %v5215
        %v5803 = vunpack.c.l.b16 %v5216
        %v5804 = vunpack.c.l.b16 %v5217
        %v5805 = vunpack.c.h.b16 %v5217
        %v5806 = vunpack.c.l.b16 %v5218
        %v5807 = vunpack.c.h.b16 %v5218
        %v5808 = vunpack.c.l.b16 %v5219
        %v5809 = vunpack.c.l.b16 %v5220
        %v5810 = vunpack.c.h.b16 %v5220
        %v5811 = vunpack.c.l.b16 %v5221
        %v5812 = vunpack.c.h.b16 %v5221
        %v5813 = vunpack.c.l.b16 %v5222
        %v5814 = vunpack.c.l.b16 %v5223
        %v5815 = vunpack.c.h.b16 %v5223
        %v5816 = vunpack.c.l.b16 %v5224
        %v5817 = vunpack.c.h.b16 %v5224
        %v5818 = vunpack.c.l.b16 %v5225
        %v5819 = vunpack.c.l.b16 %v5226
        %v5820 = vunpack.c.h.b16 %v5226
        %v5821 = vunpack.c.l.b16 %v5227
        %v5822 = vunpack.c.h.b16 %v5227
        %v5823 = vunpack.c.l.b16 %v5228
        %v5824 = vunpack.c.l.b16 %v5229
        %v5825 = vunpack.c.h.b16 %v5229
        %v5826 = vunpack.c.l.b16 %v5230
        %v5827 = vunpack.c.h.b16 %v5230
        %v5828 = vunpack.c.l.b16 %v5231
        %v5829 = vunpack.c.l.b16 %v5232
        %v5830 = vunpack.c.h.b16 %v5232
        %v5831 = vunpack.c.l.b16 %v5233
        %v5832 = vunpack.c.h.b16 %v5233
        %v5833 = vunpack.c.l.b16 %v5234
        %v5834 = vunpack.c.l.b16 %v5235
        %v5835 = vunpack.c.h.b16 %v5235
        %v5836 = vunpack.c.l.b16 %v5236
        %v5837 = vunpack.c.h.b16 %v5236
        %v5838 = vunpack.c.l.b16 %v5237
        %v5839 = vunpack.c.l.b16 %v5238
        %v5840 = vunpack.c.h.b16 %v5238
        %v5841 = vunpack.c.l.b16 %v5239
        %v5842 = vunpack.c.h.b16 %v5239
        %v5843 = vunpack.c.l.b16 %v5240
        %v5844 = vunpack.c.l.b16 %v5241
        %v5845 = vunpack.c.h.b16 %v5241
        %v5846 = vunpack.c.l.b16 %v5242
        %v5847 = vunpack.c.h.b16 %v5242
        %v5848 = vunpack.c.l.b16 %v5243
        %v5849 = vunpack.c.l.b16 %v5244
        %v5850 = vunpack.c.h.b16 %v5244
        %v5851 = vunpack.c.l.b16 %v5245
        %v5852 = vunpack.c.h.b16 %v5245
        %v5853 = vunpack.c.l.b16 %v5246
        %v5854 = vunpack.c.l.b16 %v5247
        %v5855 = vunpack.c.h.b16 %v5247
        %v5856 = vunpack.c.l.b16 %v5248
        %v5857 = vunpack.c.h.b16 %v5248
        %v5858 = vunpack.c.l.b16 %v5249
        %v5859 = vunpack.c.l.b16 %v5250
        %v5860 = vunpack.c.h.b16 %v5250
        %v5861 = vunpack.c.l.b16 %v5251
        %v5862 = vunpack.c.h.b16 %v5251
        %v5863 = vunpack.c.l.b16 %v5252
        %v5864 = vunpack.c.l.b16 %v5253
        %v5865 = vunpack.c.h.b16 %v5253
        %v5866 = vunpack.c.l.b16 %v5254
        %v5867 = vunpack.c.h.b16 %v5254
        %v5868 = vunpack.c.l.b16 %v5255
        %v5869 = vunpack.c.l.b16 %v5256
        %v5870 = vunpack.c.h.b16 %v5256
        %v5871 = vunpack.c.l.b16 %v5257
        %v5872 = vunpack.c.h.b16 %v5257
        %v5873 = vunpack.c.l.b16 %v5258
        %v5874 = vunpack.c.l.b16 %v5259
        %v5875 = vunpack.c.h.b16 %v5259
        %v5876 = vunpack.c.l.b16 %v5260
        %v5877 = vunpack.c.h.b16 %v5260
        %v5878 = vunpack.c.l.b16 %v5261
        %v5879 = vunpack.c.l.b16 %v5262
        %v5880 = vunpack.c.h.b16 %v5262
        %v5881 = vunpack.c.l.b16 %v5263
        %v5882 = vunpack.c.h.b16 %v5263
        %v5883 = vunpack.c.l.b16 %v5264
        %v5884 = vunpack.c.l.b16 %v5265
        %v5885 = vunpack.c.h.b16 %v5265
        %v5886 = vunpack.c.l.b16 %v5266
        %v5887 = vunpack.c.h.b16 %v5266
        %v5888 = vunpack.c.l.b16 %v5267
        %v5889 = vunpack.c.l.b16 %v5268
        %v5890 = vunpack.c.h.b16 %v5268
        %v5891 = vunpack.c.l.b16 %v5269
        %v5892 = vunpack.c.h.b16 %v5269
        %v5893 = vunpack.c.l.b16 %v5270
        %v5894 = vunpack.c.l.b16 %v5271
        %v5895 = vunpack.c.h.b16 %v5271
        %v5896 = vunpack.c.l.b16 %v5272
        %v5897 = vunpack.c.h.b16 %v5272
        %v5898 = vunpack.c.l.b16 %v5273
        %v5899 = vunpack.c.l.b16 %v5274
        %v5900 = vunpack.c.h.b16 %v5274
        %v5901 = vunpack.c.l.b16 %v5275
        %v5902 = vunpack.c.h.b16 %v5275
        %v5903 = vunpack.c.l.b16 %v5276
        %v5904 = vunpack.c.l.b16 %v5277
        %v5905 = vunpack.c.h.b16 %v5277
        %v5906 = vunpack.c.l.b16 %v5278
        %v5907 = vunpack.c.h.b16 %v5278
        %v5908 = vunpack.c.l.b16 %v5279
        %v5909 = vunpack.c.l.b16 %v5280
        %v5910 = vunpack.c.h.b16 %v5280
        %v5911 = vunpack.c.l.b16 %v5281
        %v5912 = vunpack.c.h.b16 %v5281
        %v5913 = vunpack.c.l.b16 %v5282
        %v5914 = vunpack.c.l.b16 %v5283
        %v5915 = vunpack.c.h.b16 %v5283
        %v5916 = vunpack.c.l.b16 %v5284
        %v5917 = vunpack.c.h.b16 %v5284
        %v5918 = vunpack.c.l.b16 %v5285
        %v5919 = vunpack.c.l.b16 %v5286
        %v5920 = vunpack.c.h.b16 %v5286
        %v5921 = vunpack.c.l.b16 %v5287
        %v5922 = vunpack.c.h.b16 %v5287
        %v5923 = vunpack.c.l.b16 %v5288
        %v5924 = vunpack.c.l.b16 %v5289
        %v5925 = vunpack.c.h.b16 %v5289
        %v5926 = vunpack.c.l.b16 %v5290
        %v5927 = vunpack.c.h.b16 %v5290
        %v5928 = vunpack.c.l.b16 %v5291
        %v5929 = vunpack.c.l.b16 %v5292
        %v5930 = vunpack.c.h.b16 %v5292
        %v5931 = vunpack.c.l.b16 %v5293
        %v5932 = vunpack.c.h.b16 %v5293
        %v5933 = vunpack.c.l.b16 %v5294
        %v5934 = vunpack.c.l.b16 %v5295
        %v5935 = vunpack.c.h.b16 %v5295
        %v5936 = vunpack.c.l.b16 %v5296
        %v5937 = vunpack.c.h.b16 %v5296
        %v5938 = vunpack.c.l.b16 %v5297
        %v5939 = vunpack.c.l.b16 %v5298
        %v5940 = vunpack.c.h.b16 %v5298
        %v5941 = vunpack.c.l.b16 %v5299
        %v5942 = vunpack.c.h.b16 %v5299
        %v5943 = vunpack.c.l.b16 %v5300
        %v5944 = vunpack.c.l.b16 %v5301
        %v5945 = vunpack.c.h.b16 %v5301
        %v5946 = vunpack.c.l.b16 %v5302
        %v5947 = vunpack.c.h.b16 %v5302
        %v5948 = vunpack.c.l.b16 %v5303
        %v5949 = vunpack.c.l.b16 %v5304
        %v5950 = vunpack.c.h.b16 %v5304
        %v5951 = vunpack.c.l.b16 %v5305
        %v5952 = vunpack.c.h.b16 %v5305
        %v5953 = vunpack.c.l.b16 %v5306
        %v5954 = vunpack.c.l.b16 %v5307
        %v5955 = vunpack.c.h.b16 %v5307
        %v5956 = vunpack.c.l.b16 %v5308
        %v5957 = vunpack.c.h.b16 %v5308
        %v5958 = vunpack.c.l.b16 %v5309
        %v5959 = vunpack.c.l.b16 %v5310
        %v5960 = vunpack.c.h.b16 %v5310
        %v5961 = vunpack.c.l.b16 %v5311
        %v5962 = vunpack.c.h.b16 %v5311
        %v5963 = vunpack.c.l.b16 %v5312
        %v5964 = vunpack.c.l.b16 %v5313
        %v5965 = vunpack.c.h.b16 %v5313
        %v5966 = vunpack.c.l.b16 %v5314
        %v5967 = vunpack.c.h.b16 %v5314
        %v5968 = vunpack.c.l.b16 %v5315
        %v5969 = vunpack.c.l.b16 %v5316
        %v5970 = vunpack.c.h.b16 %v5316
        %v5971 = vunpack.c.l.b16 %v5317
        %v5972 = vunpack.c.h.b16 %v5317
        %v5973 = vunpack.c.l.b16 %v5318
        %v5974 = vunpack.c.l.b16 %v5319
        %v5975 = vunpack.c.h.b16 %v5319
        %v5976 = vunpack.c.l.b16 %v5320
        %v5977 = vunpack.c.h.b16 %v5320
        %v5978 = vunpack.c.l.b16 %v5321
        %v5979 = vpack.c.b16 %v5584, %v5579
        %v5980 = vpack.c.b16 %v5585, %v5580
        %v5981 = vpack.c.b16 %v5586, %v5581
        %v5982 = vpack.c.b16 %v5587, %v5582
        %v5983 = vpack.c.b16 %v5588, %v5583
        %v5984 = vpack.c.b16 %v5594, %v5589
        %v5985 = vpack.c.b16 %v5595, %v5590
        %v5986 = vpack.c.b16 %v5596, %v5591
        %v5987 = vpack.c.b16 %v5597, %v5592
        %v5988 = vpack.c.b16 %v5598, %v5593
        %v5989 = vpack.c.b16 %v5604, %v5599
        %v5990 = vpack.c.b16 %v5605, %v5600
        %v5991 = vpack.c.b16 %v5606, %v5601
        %v5992 = vpack.c.b16 %v5607, %v5602
        %v5993 = vpack.c.b16 %v5608, %v5603
        %v5994 = vpack.c.b16 %v5614, %v5609
        %v5995 = vpack.c.b16 %v5615, %v5610
        %v5996 = vpack.c.b16 %v5616, %v5611
        %v5997 = vpack.c.b16 %v5617, %v5612
        %v5998 = vpack.c.b16 %v5618, %v5613
        %v5999 = vpack.c.b16 %v5624, %v5619
        %v6000 = vpack.c.b16 %v5625, %v5620
        %v6001 = vpack.c.b16 %v5626, %v5621
        %v6002 = vpack.c.b16 %v5627, %v5622
        %v6003 = vpack.c.b16 %v5628, %v5623
        %v6004 = vpack.c.b16 %v5634, %v5629
        %v6005 = vpack.c.b16 %v5635, %v5630
        %v6006 = vpack.c.b16 %v5636, %v5631
        %v6007 = vpack.c.b16 %v5637, %v5632
        %v6008 = vpack.c.b16 %v5638, %v5633
        %v6009 = vpack.c.b16 %v5644, %v5639
        %v6010 = vpack.c.b16 %v5645, %v5640
        %v6011 = vpack.c.b16 %v5646, %v5641
        %v6012 = vpack.c.b16 %v5647, %v5642
        %v6013 = vpack.c.b16 %v5648, %v5643
        %v6014 = vpack.c.b16 %v5654, %v5649
        %v6015 = vpack.c.b16 %v5655, %v5650
        %v6016 = vpack.c.b16 %v5656, %v5651
        %v6017 = vpack.c.b16 %v5657, %v5652
        %v6018 = vpack.c.b16 %v5658, %v5653
        %v6019 = vpack.c.b16 %v5664, %v5659
        %v6020 = vpack.c.b16 %v5665, %v5660
        %v6021 = vpack.c.b16 %v5666, %v5661
        %v6022 = vpack.c.b16 %v5667, %v5662
        %v6023 = vpack.c.b16 %v5668, %v5663
        %v6024 = vpack.c.b16 %v5674, %v5669
        %v6025 = vpack.c.b16 %v5675, %v5670
        %v6026 = vpack.c.b16 %v5676, %v5671
        %v6027 = vpack.c.b16 %v5677, %v5672
        %v6028 = vpack.c.b16 %v5678, %v5673
        %v6029 = vpack.c.b16 %v5684, %v5679
        %v6030 = vpack.c.b16 %v5685, %v5680
        %v6031 = vpack.c.b16 %v5686, %v5681
        %v6032 = vpack.c.b16 %v5687, %v5682
        %v6033 = vpack.c.b16 %v5688, %v5683
        %v6034 = vpack.c.b16 %v5694, %v5689
        %v6035 = vpack.c.b16 %v5695, %v5690
        %v6036 = vpack.c.b16 %v5696, %v5691
        %v6037 = vpack.c.b16 %v5697, %v5692
        %v6038 = vpack.c.b16 %v5698, %v5693
        %v6039 = vpack.c.b16 %v5704, %v5699
        %v6040 = vpack.c.b16 %v5705, %v5700
        %v6041 = vpack.c.b16 %v5706, %v5701
        %v6042 = vpack.c.b16 %v5707, %v5702
        %v6043 = vpack.c.b16 %v5708, %v5703
        %v6044 = vpack.c.b16 %v5714, %v5709
        %v6045 = vpack.c.b16 %v5715, %v5710
        %v6046 = vpack.c.b16 %v5716, %v5711
        %v6047 = vpack.c.b16 %v5717, %v5712
        %v6048 = vpack.c.b16 %v5718, %v5713
        %v6049 = vpack.c.b16 %v5724, %v5719
        %v6050 = vpack.c.b16 %v5725, %v5720
        %v6051 = vpack.c.b16 %v5726, %v5721
        %v6052 = vpack.c.b16 %v5727, %v5722
        %v6053 = vpack.c.b16 %v5728, %v5723
        %v6054 = vpack.c.b16 %v5734, %v5729
        %v6055 = vpack.c.b16 %v5735, %v5730
        %v6056 = vpack.c.b16 %v5736, %v5731
        %v6057 = vpack.c.b16 %v5737, %v5732
        %v6058 = vpack.c.b16 %v5738, %v5733
        %v6059 = vpack.c.b16 %v5744, %v5739
        %v6060 = vpack.c.b16 %v5745, %v5740
        %v6061 = vpack.c.b16 %v5746, %v5741
        %v6062 = vpack.c.b16 %v5747, %v5742
        %v6063 = vpack.c.b16 %v5748, %v5743
        %v6064 = vpack.c.b16 %v5754, %v5749
        %v6065 = vpack.c.b16 %v5755, %v5750
        %v6066 = vpack.c.b16 %v5756, %v5751
        %v6067 = vpack.c.b16 %v5757, %v5752
        %v6068 = vpack.c.b16 %v5758, %v5753
        %v6069 = vpack.c.b16 %v5764, %v5759
        %v6070 = vpack.c.b16 %v5765, %v5760
        %v6071 = vpack.c.b16 %v5766, %v5761
        %v6072 = vpack.c.b16 %v5767, %v5762
        %v6073 = vpack.c.b16 %v5768, %v5763
        %v6074 = vpack.c.b16 %v5774, %v5769
        %v6075 = vpack.c.b16 %v5775, %v5770
        %v6076 = vpack.c.b16 %v5776, %v5771
        %v6077 = vpack.c.b16 %v5777, %v5772
        %v6078 = vpack.c.b16 %v5778, %v5773
        %v6079 = vpack.c.b16 %v5784, %v5779
        %v6080 = vpack.c.b16 %v5785, %v5780
        %v6081 = vpack.c.b16 %v5786, %v5781
        %v6082 = vpack.c.b16 %v5787, %v5782
        %v6083 = vpack.c.b16 %v5788, %v5783
        %v6084 = vpack.c.b16 %v5794, %v5789
        %v6085 = vpack.c.b16 %v5795, %v5790
        %v6086 = vpack.c.b16 %v5796, %v5791
        %v6087 = vpack.c.b16 %v5797, %v5792
        %v6088 = vpack.c.b16 %v5798, %v5793
        %v6089 = vpack.c.b16 %v5804, %v5799
        %v6090 = vpack.c.b16 %v5805, %v5800
        %v6091 = vpack.c.b16 %v5806, %v5801
        %v6092 = vpack.c.b16 %v5807, %v5802
        %v6093 = vpack.c.b16 %v5808, %v5803
        %v6094 = vpack.c.b16 %v5814, %v5809
        %v6095 = vpack.c.b16 %v5815, %v5810
        %v6096 = vpack.c.b16 %v5816, %v5811
        %v6097 = vpack.c.b16 %v5817, %v5812
        %v6098 = vpack.c.b16 %v5818, %v5813
        %v6099 = vpack.c.b16 %v5824, %v5819
        %v6100 = vpack.c.b16 %v5825, %v5820
        %v6101 = vpack.c.b16 %v5826, %v5821
        %v6102 = vpack.c.b16 %v5827, %v5822
        %v6103 = vpack.c.b16 %v5828, %v5823
        %v6104 = vpack.c.b16 %v5834, %v5829
        %v6105 = vpack.c.b16 %v5835, %v5830
        %v6106 = vpack.c.b16 %v5836, %v5831
        %v6107 = vpack.c.b16 %v5837, %v5832
        %v6108 = vpack.c.b16 %v5838, %v5833
        %v6109 = vpack.c.b16 %v5844, %v5839
        %v6110 = vpack.c.b16 %v5845, %v5840
        %v6111 = vpack.c.b16 %v5846, %v5841
        %v6112 = vpack.c.b16 %v5847, %v5842
        %v6113 = vpack.c.b16 %v5848, %v5843
        %v6114 = vpack.c.b16 %v5854, %v5849
        %v6115 = vpack.c.b16 %v5855, %v5850
        %v6116 = vpack.c.b16 %v5856, %v5851
        %v6117 = vpack.c.b16 %v5857, %v5852
        %v6118 = vpack.c.b16 %v5858, %v5853
        %v6119 = vpack.c.b16 %v5864, %v5859
        %v6120 = vpack.c.b16 %v5865, %v5860
        %v6121 = vpack.c.b16 %v5866, %v5861
        %v6122 = vpack.c.b16 %v5867, %v5862
        %v6123 = vpack.c.b16 %v5868, %v5863
        %v6124 = vpack.c.b16 %v5874, %v5869
        %v6125 = vpack.c.b16 %v5875, %v5870
        %v6126 = vpack.c.b16 %v5876, %v5871
        %v6127 = vpack.c.b16 %v5877, %v5872
        %v6128 = vpack.c.b16 %v5878, %v5873
        %v6129 = vpack.c.b16 %v5884, %v5879
        %v6130 = vpack.c.b16 %v5885, %v5880
        %v6131 = vpack.c.b16 %v5886, %v5881
        %v6132 = vpack.c.b16 %v5887, %v5882
        %v6133 = vpack.c.b16 %v5888, %v5883
        %v6134 = vpack.c.b16 %v5894, %v5889
        %v6135 = vpack.c.b16 %v5895, %v5890
        %v6136 = vpack.c.b16 %v5896, %v5891
        %v6137 = vpack.c.b16 %v5897, %v5892
        %v6138 = vpack.c.b16 %v5898, %v5893
        %v6139 = vpack.c.b16 %v5904, %v5899
        %v6140 = vpack.c.b16 %v5905, %v5900
        %v6141 = vpack.c.b16 %v5906, %v5901
        %v6142 = vpack.c.b16 %v5907, %v5902
        %v6143 = vpack.c.b16 %v5908, %v5903
        %v6144 = vpack.c.b16 %v5914, %v5909
        %v6145 = vpack.c.b16 %v5915, %v5910
        %v6146 = vpack.c.b16 %v5916, %v5911
        %v6147 = vpack.c.b16 %v5917, %v5912
        %v6148 = vpack.c.b16 %v5918, %v5913
        %v6149 = vpack.c.b16 %v5924, %v5919
        %v6150 = vpack.c.b16 %v5925, %v5920
        %v6151 = vpack.c.b16 %v5926, %v5921
        %v6152 = vpack.c.b16 %v5927, %v5922
        %v6153 = vpack.c.b16 %v5928, %v5923
        %v6154 = vpack.c.b16 %v5934, %v5929
        %v6155 = vpack.c.b16 %v5935, %v5930
        %v6156 = vpack.c.b16 %v5936, %v5931
        %v6157 = vpack.c.b16 %v5937, %v5932
        %v6158 = vpack.c.b16 %v5938, %v5933
        %v6159 = vpack.c.b16 %v5944, %v5939
        %v6160 = vpack.c.b16 %v5945, %v5940
        %v6161 = vpack.c.b16 %v5946, %v5941
        %v6162 = vpack.c.b16 %v5947, %v5942
        %v6163 = vpack.c.b16 %v5948, %v5943
        %v6164 = vpack.c.b16 %v5954, %v5949
        %v6165 = vpack.c.b16 %v5955, %v5950
        %v6166 = vpack.c.b16 %v5956, %v5951
        %v6167 = vpack.c.b16 %v5957, %v5952
        %v6168 = vpack.c.b16 %v5958, %v5953
        %v6169 = vpack.c.b16 %v5964, %v5959
        %v6170 = vpack.c.b16 %v5965, %v5960
        %v6171 = vpack.c.b16 %v5966, %v5961
        %v6172 = vpack.c.b16 %v5967, %v5962
        %v6173 = vpack.c.b16 %v5968, %v5963
        %v6174 = vpack.c.b16 %v5974, %v5969
        %v6175 = vpack.c.b16 %v5975, %v5970
        %v6176 = vpack.c.b16 %v5976, %v5971
        %v6177 = vpack.c.b16 %v5977, %v5972
        %v6178 = vpack.c.b16 %v5978, %v5973
        %6379 = vmatpush.bf16.msra.mxu0 %v6014
        %6380 = vmatpush.bf16.msra.mxu0 %v6009
        %6381 = vmatpush.bf16.msra.mxu0 %v6004
        %6382 = vmatpush.bf16.msra.mxu0 %v5999
        %6383 = vmatpush.bf16.msra.mxu0 %v5994
        %6384 = vmatpush.bf16.msra.mxu0 %v5989
        %6385 = vmatpush.bf16.msra.mxu0 %v5984
        %6386 = vmatpush.bf16.msra.mxu0 %v5979
        %6387 = vmatmul.bf16.gmra.mxu0 %v5322
        %v6388 = vpop.f32.mrf.mxu0
        %v6389 = vadd.f32 %v5329, %v6388
        %v6390 = vpop.f32.mrf.mxu0
        %6391 = vdwg.mxu0
        %6392 = vmatpush.bf16.msra.mxu0 %v6054
        %6393 = vmatpush.bf16.msra.mxu0 %v6049
        %6394 = vmatpush.bf16.msra.mxu0 %v6044
        %6395 = vmatpush.bf16.msra.mxu0 %v6039
        %6396 = vmatpush.bf16.msra.mxu0 %v6034
        %6397 = vmatpush.bf16.msra.mxu0 %v6029
        %6398 = vmatpush.bf16.msra.mxu0 %v6024
        %6399 = vmatpush.bf16.msra.mxu0 %v6019
        %6400 = vmatmul.bf16.gmra.mxu0 %v5323
        %v6401 = vpop.f32.mrf.mxu0
        %v6402 = vadd.f32 %v6389, %v6401
        %v6403 = vpop.f32.mrf.mxu0
        %6404 = vdwg.mxu0
        %6405 = vmatpush.bf16.msra.mxu0 %v6094
        %6406 = vmatpush.bf16.msra.mxu0 %v6089
        %6407 = vmatpush.bf16.msra.mxu0 %v6084
        %6408 = vmatpush.bf16.msra.mxu0 %v6079
        %6409 = vmatpush.bf16.msra.mxu0 %v6074
        %6410 = vmatpush.bf16.msra.mxu0 %v6069
        %6411 = vmatpush.bf16.msra.mxu0 %v6064
        %6412 = vmatpush.bf16.msra.mxu0 %v6059
        %6413 = vmatmul.bf16.gmra.mxu0 %v5324
        %v6414 = vpop.f32.mrf.mxu0
        %v6415 = vadd.f32 %v6402, %v6414
        %v6416 = vpop.f32.mrf.mxu0
        %6417 = vdwg.mxu0
        %6418 = vmatpush.bf16.msra.mxu0 %v6134
        %6419 = vmatpush.bf16.msra.mxu0 %v6129
        %6420 = vmatpush.bf16.msra.mxu0 %v6124
        %6421 = vmatpush.bf16.msra.mxu0 %v6119
        %6422 = vmatpush.bf16.msra.mxu0 %v6114
        %6423 = vmatpush.bf16.msra.mxu0 %v6109
        %6424 = vmatpush.bf16.msra.mxu0 %v6104
        %6425 = vmatpush.bf16.msra.mxu0 %v6099
        %6426 = vmatmul.bf16.gmra.mxu0 %v5325
        %v6427 = vpop.f32.mrf.mxu0
        %v6428 = vadd.f32 %v6415, %v6427
        %v6429 = vpop.f32.mrf.mxu0
        %6430 = vdwg.mxu0
        %6431 = vmatpush.bf16.msra.mxu0 %v6174
        %6432 = vmatpush.bf16.msra.mxu0 %v6169
        %6433 = vmatpush.bf16.msra.mxu0 %v6164
        %6434 = vmatpush.bf16.msra.mxu0 %v6159
        %6435 = vmatpush.bf16.msra.mxu0 %v6154
        %6436 = vmatpush.bf16.msra.mxu0 %v6149
        %6437 = vmatpush.bf16.msra.mxu0 %v6144
        %6438 = vmatpush.bf16.msra.mxu0 %v6139
        %6439 = vmatmul.bf16.gmra.mxu0 %v5326
        %v6440 = vpop.f32.mrf.mxu0
        %v6441 = vadd.f32 %v6428, %v6440
        %v6442 = vpop.f32.mrf.mxu0
        %6443 = vdwg.mxu0
        %6444 = vmatpush.bf16.msra.mxu0 %v6015
        %6445 = vmatpush.bf16.msra.mxu0 %v6010
        %6446 = vmatpush.bf16.msra.mxu0 %v6005
        %6447 = vmatpush.bf16.msra.mxu0 %v6000
        %6448 = vmatpush.bf16.msra.mxu0 %v5995
        %6449 = vmatpush.bf16.msra.mxu0 %v5990
        %6450 = vmatpush.bf16.msra.mxu0 %v5985
        %6451 = vmatpush.bf16.msra.mxu0 %v5980
        %6452 = vmatmul.bf16.gmra.mxu0 %v5322
        %v6453 = vpop.f32.mrf.mxu0
        %v6454 = vadd.f32 %v5330, %v6453
        %v6455 = vpop.f32.mrf.mxu0
        %6456 = vdwg.mxu0
        %6457 = vmatpush.bf16.msra.mxu0 %v6055
        %6458 = vmatpush.bf16.msra.mxu0 %v6050
        %6459 = vmatpush.bf16.msra.mxu0 %v6045
        %6460 = vmatpush.bf16.msra.mxu0 %v6040
        %6461 = vmatpush.bf16.msra.mxu0 %v6035
        %6462 = vmatpush.bf16.msra.mxu0 %v6030
        %6463 = vmatpush.bf16.msra.mxu0 %v6025
        %6464 = vmatpush.bf16.msra.mxu0 %v6020
        %6465 = vmatmul.bf16.gmra.mxu0 %v5323
        %v6466 = vpop.f32.mrf.mxu0
        %v6467 = vadd.f32 %v6454, %v6466
        %v6468 = vpop.f32.mrf.mxu0
        %6469 = vdwg.mxu0
        %6470 = vmatpush.bf16.msra.mxu0 %v6095
        %6471 = vmatpush.bf16.msra.mxu0 %v6090
        %6472 = vmatpush.bf16.msra.mxu0 %v6085
        %6473 = vmatpush.bf16.msra.mxu0 %v6080
        %6474 = vmatpush.bf16.msra.mxu0 %v6075
        %6475 = vmatpush.bf16.msra.mxu0 %v6070
        %6476 = vmatpush.bf16.msra.mxu0 %v6065
        %6477 = vmatpush.bf16.msra.mxu0 %v6060
        %6478 = vmatmul.bf16.gmra.mxu0 %v5324
        %v6479 = vpop.f32.mrf.mxu0
        %v6480 = vadd.f32 %v6467, %v6479
        %v6481 = vpop.f32.mrf.mxu0
        %6482 = vdwg.mxu0
        %6483 = vmatpush.bf16.msra.mxu0 %v6135
        %6484 = vmatpush.bf16.msra.mxu0 %v6130
        %6485 = vmatpush.bf16.msra.mxu0 %v6125
        %6486 = vmatpush.bf16.msra.mxu0 %v6120
        %6487 = vmatpush.bf16.msra.mxu0 %v6115
        %6488 = vmatpush.bf16.msra.mxu0 %v6110
        %6489 = vmatpush.bf16.msra.mxu0 %v6105
        %6490 = vmatpush.bf16.msra.mxu0 %v6100
        %6491 = vmatmul.bf16.gmra.mxu0 %v5325
        %v6492 = vpop.f32.mrf.mxu0
        %v6493 = vadd.f32 %v6480, %v6492
        %v6494 = vpop.f32.mrf.mxu0
        %6495 = vdwg.mxu0
        %6496 = vmatpush.bf16.msra.mxu0 %v6175
        %6497 = vmatpush.bf16.msra.mxu0 %v6170
        %6498 = vmatpush.bf16.msra.mxu0 %v6165
        %6499 = vmatpush.bf16.msra.mxu0 %v6160
        %6500 = vmatpush.bf16.msra.mxu0 %v6155
        %6501 = vmatpush.bf16.msra.mxu0 %v6150
        %6502 = vmatpush.bf16.msra.mxu0 %v6145
        %6503 = vmatpush.bf16.msra.mxu0 %v6140
        %6504 = vmatmul.bf16.gmra.mxu0 %v5326
        %v6505 = vpop.f32.mrf.mxu0
        %v6506 = vadd.f32 %v6493, %v6505
        %v6507 = vpop.f32.mrf.mxu0
        %6508 = vdwg.mxu0
        %6509 = vmatpush.bf16.msra.mxu0 %v6016
        %6510 = vmatpush.bf16.msra.mxu0 %v6011
        %6511 = vmatpush.bf16.msra.mxu0 %v6006
        %6512 = vmatpush.bf16.msra.mxu0 %v6001
        %6513 = vmatpush.bf16.msra.mxu0 %v5996
        %6514 = vmatpush.bf16.msra.mxu0 %v5991
        %6515 = vmatpush.bf16.msra.mxu0 %v5986
        %6516 = vmatpush.bf16.msra.mxu0 %v5981
        %6517 = vmatmul.bf16.gmra.mxu0 %v5322
        %v6518 = vpop.f32.mrf.mxu0
        %v6519 = vadd.f32 %v5331, %v6518
        %v6520 = vpop.f32.mrf.mxu0
        %6521 = vdwg.mxu0
        %6522 = vmatpush.bf16.msra.mxu0 %v6056
        %6523 = vmatpush.bf16.msra.mxu0 %v6051
        %6524 = vmatpush.bf16.msra.mxu0 %v6046
        %6525 = vmatpush.bf16.msra.mxu0 %v6041
        %6526 = vmatpush.bf16.msra.mxu0 %v6036
        %6527 = vmatpush.bf16.msra.mxu0 %v6031
        %6528 = vmatpush.bf16.msra.mxu0 %v6026
        %6529 = vmatpush.bf16.msra.mxu0 %v6021
        %6530 = vmatmul.bf16.gmra.mxu0 %v5323
        %v6531 = vpop.f32.mrf.mxu0
        %v6532 = vadd.f32 %v6519, %v6531
        %v6533 = vpop.f32.mrf.mxu0
        %6534 = vdwg.mxu0
        %6535 = vmatpush.bf16.msra.mxu0 %v6096
        %6536 = vmatpush.bf16.msra.mxu0 %v6091
        %6537 = vmatpush.bf16.msra.mxu0 %v6086
        %6538 = vmatpush.bf16.msra.mxu0 %v6081
        %6539 = vmatpush.bf16.msra.mxu0 %v6076
        %6540 = vmatpush.bf16.msra.mxu0 %v6071
        %6541 = vmatpush.bf16.msra.mxu0 %v6066
        %6542 = vmatpush.bf16.msra.mxu0 %v6061
        %6543 = vmatmul.bf16.gmra.mxu0 %v5324
        %v6544 = vpop.f32.mrf.mxu0
        %v6545 = vadd.f32 %v6532, %v6544
        %v6546 = vpop.f32.mrf.mxu0
        %6547 = vdwg.mxu0
        %6548 = vmatpush.bf16.msra.mxu0 %v6136
        %6549 = vmatpush.bf16.msra.mxu0 %v6131
        %6550 = vmatpush.bf16.msra.mxu0 %v6126
        %6551 = vmatpush.bf16.msra.mxu0 %v6121
        %6552 = vmatpush.bf16.msra.mxu0 %v6116
        %6553 = vmatpush.bf16.msra.mxu0 %v6111
        %6554 = vmatpush.bf16.msra.mxu0 %v6106
        %6555 = vmatpush.bf16.msra.mxu0 %v6101
        %6556 = vmatmul.bf16.gmra.mxu0 %v5325
        %v6557 = vpop.f32.mrf.mxu0
        %v6558 = vadd.f32 %v6545, %v6557
        %v6559 = vpop.f32.mrf.mxu0
        %6560 = vdwg.mxu0
        %6561 = vmatpush.bf16.msra.mxu0 %v6176
        %6562 = vmatpush.bf16.msra.mxu0 %v6171
        %6563 = vmatpush.bf16.msra.mxu0 %v6166
        %6564 = vmatpush.bf16.msra.mxu0 %v6161
        %6565 = vmatpush.bf16.msra.mxu0 %v6156
        %6566 = vmatpush.bf16.msra.mxu0 %v6151
        %6567 = vmatpush.bf16.msra.mxu0 %v6146
        %6568 = vmatpush.bf16.msra.mxu0 %v6141
        %6569 = vmatmul.bf16.gmra.mxu0 %v5326
        %v6570 = vpop.f32.mrf.mxu0
        %v6571 = vadd.f32 %v6558, %v6570
        %v6572 = vpop.f32.mrf.mxu0
        %6573 = vdwg.mxu0
        %6574 = vmatpush.bf16.msra.mxu0 %v6017
        %6575 = vmatpush.bf16.msra.mxu0 %v6012
        %6576 = vmatpush.bf16.msra.mxu0 %v6007
        %6577 = vmatpush.bf16.msra.mxu0 %v6002
        %6578 = vmatpush.bf16.msra.mxu0 %v5997
        %6579 = vmatpush.bf16.msra.mxu0 %v5992
        %6580 = vmatpush.bf16.msra.mxu0 %v5987
        %6581 = vmatpush.bf16.msra.mxu0 %v5982
        %6582 = vmatmul.bf16.gmra.mxu0 %v5322
        %v6583 = vpop.f32.mrf.mxu0
        %v6584 = vadd.f32 %v5332, %v6583
        %v6585 = vpop.f32.mrf.mxu0
        %6586 = vdwg.mxu0
        %6587 = vmatpush.bf16.msra.mxu0 %v6057
        %6588 = vmatpush.bf16.msra.mxu0 %v6052
        %6589 = vmatpush.bf16.msra.mxu0 %v6047
        %6590 = vmatpush.bf16.msra.mxu0 %v6042
        %6591 = vmatpush.bf16.msra.mxu0 %v6037
        %6592 = vmatpush.bf16.msra.mxu0 %v6032
        %6593 = vmatpush.bf16.msra.mxu0 %v6027
        %6594 = vmatpush.bf16.msra.mxu0 %v6022
        %6595 = vmatmul.bf16.gmra.mxu0 %v5323
        %v6596 = vpop.f32.mrf.mxu0
        %v6597 = vadd.f32 %v6584, %v6596
        %v6598 = vpop.f32.mrf.mxu0
        %6599 = vdwg.mxu0
        %6600 = vmatpush.bf16.msra.mxu0 %v6097
        %6601 = vmatpush.bf16.msra.mxu0 %v6092
        %6602 = vmatpush.bf16.msra.mxu0 %v6087
        %6603 = vmatpush.bf16.msra.mxu0 %v6082
        %6604 = vmatpush.bf16.msra.mxu0 %v6077
        %6605 = vmatpush.bf16.msra.mxu0 %v6072
        %6606 = vmatpush.bf16.msra.mxu0 %v6067
        %6607 = vmatpush.bf16.msra.mxu0 %v6062
        %6608 = vmatmul.bf16.gmra.mxu0 %v5324
        %v6609 = vpop.f32.mrf.mxu0
        %v6610 = vadd.f32 %v6597, %v6609
        %v6611 = vpop.f32.mrf.mxu0
        %6612 = vdwg.mxu0
        %6613 = vmatpush.bf16.msra.mxu0 %v6137
        %6614 = vmatpush.bf16.msra.mxu0 %v6132
        %6615 = vmatpush.bf16.msra.mxu0 %v6127
        %6616 = vmatpush.bf16.msra.mxu0 %v6122
        %6617 = vmatpush.bf16.msra.mxu0 %v6117
        %6618 = vmatpush.bf16.msra.mxu0 %v6112
        %6619 = vmatpush.bf16.msra.mxu0 %v6107
        %6620 = vmatpush.bf16.msra.mxu0 %v6102
        %6621 = vmatmul.bf16.gmra.mxu0 %v5325
        %v6622 = vpop.f32.mrf.mxu0
        %v6623 = vadd.f32 %v6610, %v6622
        %v6624 = vpop.f32.mrf.mxu0
        %6625 = vdwg.mxu0
        %6626 = vmatpush.bf16.msra.mxu0 %v6177
        %6627 = vmatpush.bf16.msra.mxu0 %v6172
        %6628 = vmatpush.bf16.msra.mxu0 %v6167
        %6629 = vmatpush.bf16.msra.mxu0 %v6162
        %6630 = vmatpush.bf16.msra.mxu0 %v6157
        %6631 = vmatpush.bf16.msra.mxu0 %v6152
        %6632 = vmatpush.bf16.msra.mxu0 %v6147
        %6633 = vmatpush.bf16.msra.mxu0 %v6142
        %6634 = vmatmul.bf16.gmra.mxu0 %v5326
        %v6635 = vpop.f32.mrf.mxu0
        %v6636 = vadd.f32 %v6623, %v6635
        %v6637 = vpop.f32.mrf.mxu0
        %6638 = vdwg.mxu0
        %6639 = vmatpush.bf16.msra.mxu0 %v6018
        %6640 = vmatpush.bf16.msra.mxu0 %v6013
        %6641 = vmatpush.bf16.msra.mxu0 %v6008
        %6642 = vmatpush.bf16.msra.mxu0 %v6003
        %6643 = vmatpush.bf16.msra.mxu0 %v5998
        %6644 = vmatpush.bf16.msra.mxu0 %v5993
        %6645 = vmatpush.bf16.msra.mxu0 %v5988
        %6646 = vmatpush.bf16.msra.mxu0 %v5983
        %6647 = vmatmul.bf16.gmra.mxu0 %v5322
        %v6648 = vpop.f32.mrf.mxu0
        %v6649 = vadd.f32 %v5333, %v6648
        %v6650 = vpop.f32.mrf.mxu0
        %6651 = vdwg.mxu0
        %6652 = vmatpush.bf16.msra.mxu0 %v6058
        %6653 = vmatpush.bf16.msra.mxu0 %v6053
        %6654 = vmatpush.bf16.msra.mxu0 %v6048
        %6655 = vmatpush.bf16.msra.mxu0 %v6043
        %6656 = vmatpush.bf16.msra.mxu0 %v6038
        %6657 = vmatpush.bf16.msra.mxu0 %v6033
        %6658 = vmatpush.bf16.msra.mxu0 %v6028
        %6659 = vmatpush.bf16.msra.mxu0 %v6023
        %6660 = vmatmul.bf16.gmra.mxu0 %v5323
        %v6661 = vpop.f32.mrf.mxu0
        %v6662 = vadd.f32 %v6649, %v6661
        %v6663 = vpop.f32.mrf.mxu0
        %6664 = vdwg.mxu0
        %6665 = vmatpush.bf16.msra.mxu0 %v6098
        %6666 = vmatpush.bf16.msra.mxu0 %v6093
        %6667 = vmatpush.bf16.msra.mxu0 %v6088
        %6668 = vmatpush.bf16.msra.mxu0 %v6083
        %6669 = vmatpush.bf16.msra.mxu0 %v6078
        %6670 = vmatpush.bf16.msra.mxu0 %v6073
        %6671 = vmatpush.bf16.msra.mxu0 %v6068
        %6672 = vmatpush.bf16.msra.mxu0 %v6063
        %6673 = vmatmul.bf16.gmra.mxu0 %v5324
        %v6674 = vpop.f32.mrf.mxu0
        %v6675 = vadd.f32 %v6662, %v6674
        %v6676 = vpop.f32.mrf.mxu0
        %6677 = vdwg.mxu0
        %6678 = vmatpush.bf16.msra.mxu0 %v6138
        %6679 = vmatpush.bf16.msra.mxu0 %v6133
        %6680 = vmatpush.bf16.msra.mxu0 %v6128
        %6681 = vmatpush.bf16.msra.mxu0 %v6123
        %6682 = vmatpush.bf16.msra.mxu0 %v6118
        %6683 = vmatpush.bf16.msra.mxu0 %v6113
        %6684 = vmatpush.bf16.msra.mxu0 %v6108
        %6685 = vmatpush.bf16.msra.mxu0 %v6103
        %6686 = vmatmul.bf16.gmra.mxu0 %v5325
        %v6687 = vpop.f32.mrf.mxu0
        %v6688 = vadd.f32 %v6675, %v6687
        %v6689 = vpop.f32.mrf.mxu0
        %6690 = vdwg.mxu0
        %6691 = vmatpush.bf16.msra.mxu0 %v6178
        %6692 = vmatpush.bf16.msra.mxu0 %v6173
        %6693 = vmatpush.bf16.msra.mxu0 %v6168
        %6694 = vmatpush.bf16.msra.mxu0 %v6163
        %6695 = vmatpush.bf16.msra.mxu0 %v6158
        %6696 = vmatpush.bf16.msra.mxu0 %v6153
        %6697 = vmatpush.bf16.msra.mxu0 %v6148
        %6698 = vmatpush.bf16.msra.mxu0 %v6143
        %6699 = vmatmul.bf16.gmra.mxu0 %v5326
        %v6700 = vpop.f32.mrf.mxu0
        %v6701 = vadd.f32 %v6688, %v6700
        %v6702 = vpop.f32.mrf.mxu0
        %6703 = vdwg.mxu0
        %v6708 = vrot.slane %v6506, 6
        %v6709 = vrot.slane %v6571, 4
        %v6710 = vrot.slane %v6636, 2
        %v6711 = vsel %vm1241, %v6441, %v6708
        %v6712 = vsel %vm3438, %v6709, %v6710
        %v6713 = vsel %vm3440, %v6711, %v6712
        %6715 = vst [vmem:[%s267 + $0x14] sm:$0xff] %v6713
        %6716 = vst [vmem:[%s267 + $0x1c] sm:$0x3] %v6701
        %s6717 = sand.u32 %s181, 1
        %s6718 = scalar_lea.sflag [#allocation3], %s6717
        %s6719 = sand.u32 %s181, 1
        %s6720 = smul.addr %s6719, 30
        %s6721 = scalar_lea.vmem [#allocation2], %s6720
        // Predicated region
        $region49: #{_lambda_.9} parent=47 // pred_check
          %p6722 = pneg %p191
        $region50: #{_lambda_.9} parent=47 // pred_check_branch
          %6724 = sbr.rel (%p6722) target = $region52
        $region51: #{_lambda_.9} parent=47 // pred_region
          %6726 = vsyncadd %s6718, 0
          %s6727 = smul.addr %s21, 15
          %s6728 = smul.addr %s6727, 2
          %s6729 = scalar_lea.hbm %s7, %s6728
          %s6731 = sshll.u32 %s6721, 4
          %s6732 = int_to_ptr.vmem [resolvable:$true] %s6731
          %s6733 = sshll.u32 %s6729, 4
          %s6734 = int_to_ptr.hbm [resolvable:$true] %s6733
          %6736 = dma.vmem_to_hbm [thread:$0]  %s6732, 480, %s6734, %s6718
        $region52: #{_lambda_.9} parent=47 // pred_fallthru
          _
      $region48: #{_lambda_.9} parent=5 // pred_fallthru
        _
      %p6737 = scmp.le.s32.totalorder 2, %s16
      // Predicated region
      $region53: #{_lambda_.9} parent=5 // pred_check
        %p6738 = pneg %p6737
      $region54: #{_lambda_.9} parent=5 // pred_check_branch
        %6740 = sbr.rel (%p6738) target = $region56
      $region55: #{_lambda_.9} parent=5 // pred_region
        %s6741 = ssub.s32 %s16, 2
        // Predicated region
        $region57: #{_lambda_.9} parent=55 // pred_check
          %p6742 = pneg %p197
        $region58: #{_lambda_.9} parent=55 // pred_check_branch
          %6744 = sbr.rel (%p6742) target = $region60
        $region59: #{_lambda_.9} parent=55 // pred_region
          %s6745 = sand.u32 %s182, 1
          %s6746 = scalar_lea.sflag [#allocation3], %s6745
          %s6747 = sand.u32 %s182, 1
          %s6748 = smul.addr %s6747, 30
          %s6749 = scalar_lea.vmem [#allocation2], %s6748
          %6751 = dma.done %s6746, 480
        $region60: #{_lambda_.9} parent=55 // pred_fallthru
          _
      $region56: #{_lambda_.9} parent=5 // pred_fallthru
        _
    $region6: #{_lambda_.9} parent=1 // loop_footer
      %s20 = sadd.s32 1, %s16
    $region7: #{_lambda_.9} parent=1 // loop_footer_branch
      %15 = sbr.rel target = $region3
    $region8: #{_lambda_.9} parent=1 // loop_exit
      _
    %6752 = vsyncpa [#allocation3], 1
    %s6753 = scalar_lea.sflag [#allocation3], 1
    %6754 = vsyncpa %s6753, 1

</llo_original>
